<compile_context>
chip_gen: v7x
topology: tpu7x:2x2x1
jax: 0.10.0
libtpu: 0.0.40
codegen_flags: <defaults>
</compile_context>

<pallas_src>
import functools

import jax
import jax.numpy as jnp
from jax.experimental import pallas as pl
from jax.experimental.pallas import tpu as pltpu

IN_DIM = 28 * 28 * 3          # 2352
IN_PAD = 19 * 128             # 2432 (lane-dense padding of 2352)
H1 = 256
H2 = 128
TILE_B = 128                  # batch tile (multiple of 8; fills MXU rows)


def vae_kernel(latent_dim,
               x_ref, eps_ref,
               w1_ref, b1_ref, w2_ref, b2_ref,
               wml_ref, bml_ref,
               wd1_ref, bd1_ref, wd2_ref, bd2_ref, wd3_ref, bd3_ref,
               recon_ref, mulv_ref):
    f32 = jnp.float32
    bf16 = jnp.bfloat16

    def mm(a_f32, w_ref, b_ref):
        # bf16 MXU feed, f32 accumulation, f32 elementwise bias add.
        return jnp.dot(a_f32.astype(bf16), w_ref[...],
                       preferred_element_type=f32) + b_ref[...]

    x = x_ref[...]                                     # (TILE_B, IN_PAD) f32

    # --- encoder ---
    h = jnp.maximum(mm(x, w1_ref, b1_ref), 0.0)        # (TILE_B, 256)
    h = jnp.maximum(mm(h, w2_ref, b2_ref), 0.0)        # (TILE_B, 128)

    # --- fused fc_mu | fc_logvar ---
    mulv = mm(h, wml_ref, bml_ref)                     # (TILE_B, 2*latent)
    mu = mulv[:, :latent_dim]
    log_var = mulv[:, latent_dim:]

    # --- reparameterize: z = mu + eps * exp(0.5 * log_var) (all f32) ---
    z = mu + eps_ref[...] * jnp.exp(0.5 * log_var)

    # --- decoder ---
    d = jnp.maximum(mm(z, wd1_ref, bd1_ref), 0.0)      # (TILE_B, 128)
    d = jnp.maximum(mm(d, wd2_ref, bd2_ref), 0.0)      # (TILE_B, 256)
    logits = mm(d, wd3_ref, bd3_ref)                   # (TILE_B, IN_PAD)

    recon_ref[...] = jax.nn.sigmoid(logits)
    mulv_ref[...] = mulv


def init_linear(key, fan_in, fan_out):
    """Mimics torch.nn.Linear's U(-1/sqrt(in), 1/sqrt(in)) init."""
    kw, kb = jax.random.split(key)
    bound = 1.0 / jnp.sqrt(jnp.float32(fan_in))
    w = jax.random.uniform(kw, (fan_in, fan_out), jnp.float32, -bound, bound)
    b = jax.random.uniform(kb, (1, fan_out), jnp.float32, -bound, bound)
    return w, b


def init_vae_params(key, latent_dim):
    ks = jax.random.split(key, 7)
    p = {}
    p["w1"], p["b1"] = init_linear(ks[0], IN_DIM, H1)        # encoder Linear 1
    p["w2"], p["b2"] = init_linear(ks[1], H1, H2)            # encoder Linear 2
    p["wmu"], p["bmu"] = init_linear(ks[2], H2, latent_dim)  # fc_mu
    p["wlv"], p["blv"] = init_linear(ks[3], H2, latent_dim)  # fc_logvar
    p["wd1"], p["bd1"] = init_linear(ks[4], latent_dim, H2)  # decoder Linear 1
    p["wd2"], p["bd2"] = init_linear(ks[5], H2, H1)          # decoder Linear 2
    p["wd3"], p["bd3"] = init_linear(ks[6], H1, IN_DIM)      # decoder Linear 3
    return p


def pack_params(p):
    """One-time repack: lane-pad 2352->2432, fuse fc_mu|fc_logvar, bf16 weights."""
    bf16 = jnp.bfloat16
    pad = IN_PAD - IN_DIM
    pk = {
        # encoder
        "w1": jnp.pad(p["w1"], ((0, pad), (0, 0))).astype(bf16),   # (2432, 256)
        "b1": p["b1"],
        "w2": p["w2"].astype(bf16),                                # (256, 128)
        "b2": p["b2"],
        # fused mu|logvar head
        "wml": jnp.concatenate([p["wmu"], p["wlv"]], 1).astype(bf16),
        "bml": jnp.concatenate([p["bmu"], p["blv"]], 1),
        # decoder
        "wd1": p["wd1"].astype(bf16),                              # (latent, 128)
        "bd1": p["bd1"],
        "wd2": p["wd2"].astype(bf16),                              # (128, 256)
        "bd2": p["bd2"],
        "wd3": jnp.pad(p["wd3"], ((0, 0), (0, pad))).astype(bf16), # (256, 2432)
        "bd3": jnp.pad(p["bd3"], ((0, 0), (0, pad))),
    }
    return pk


@functools.partial(jax.jit, static_argnames=("latent_dim",))
def vae_forward(x, eps, pk, latent_dim):
    B = x.shape[0]
    B_pad = ((B + TILE_B - 1) // TILE_B) * TILE_B
    n_tiles = B_pad // TILE_B

    # nn.Flatten(): (B, 3, 28, 28) -> (B, 2352) row-major over (C, H, W),
    # then lane-pad to 2432 and batch-pad to a multiple of TILE_B.
    x_flat = x.reshape(B, -1).astype(jnp.float32)
    x_p = jnp.pad(x_flat, ((0, B_pad - B), (0, IN_PAD - IN_DIM)))
    eps_p = jnp.pad(eps.astype(jnp.float32), ((0, B_pad - B), (0, 0)))

    weight_args = (pk["w1"], pk["b1"], pk["w2"], pk["b2"],
                   pk["wml"], pk["bml"],
                   pk["wd1"], pk["bd1"], pk["wd2"], pk["bd2"],
                   pk["wd3"], pk["bd3"])

    # Activation tiles stream along the batch grid; weights use a constant
    # index_map so they are fetched once and stay VMEM-resident.
    act_specs = [
        pl.BlockSpec((TILE_B, IN_PAD), lambda i: (i, 0)),        # x
        pl.BlockSpec((TILE_B, latent_dim), lambda i: (i, 0)),    # eps
    ]
    weight_specs = [pl.BlockSpec(w.shape, lambda i: (0, 0)) for w in weight_args]

    recon_p, mulv_p = pl.pallas_call(
        functools.partial(vae_kernel, latent_dim),
        grid=(n_tiles,),
        in_specs=act_specs + weight_specs,
        out_specs=(
            pl.BlockSpec((TILE_B, IN_PAD), lambda i: (i, 0)),
            pl.BlockSpec((TILE_B, 2 * latent_dim), lambda i: (i, 0)),
        ),
        out_shape=(
            jax.ShapeDtypeStruct((B_pad, IN_PAD), jnp.float32),
            jax.ShapeDtypeStruct((B_pad, 2 * latent_dim), jnp.float32),
        ),
        compiler_params=pltpu.CompilerParams(
            dimension_semantics=("parallel",),
            vmem_limit_bytes=48 << 20,
        ),
    )(x_p, eps_p, *weight_args)

    recon = recon_p[:B, :IN_DIM]
    mu = mulv_p[:B, :latent_dim]
    log_var = mulv_p[:B, latent_dim:]
    return recon, mu, log_var


def vae_reference(x, eps, pk, latent_dim):
    """Pure-JAX reference in the same mixed precision as the kernel."""
    B = x.shape[0]
    xf = jnp.pad(x.reshape(B, -1).astype(jnp.float32),
                 ((0, 0), (0, IN_PAD - IN_DIM)))

    def mm(a, w, b):
        return jnp.dot(a.astype(jnp.bfloat16), w,
                       preferred_element_type=jnp.float32) + b

    h = jnp.maximum(mm(xf, pk["w1"], pk["b1"]), 0.0)
    h = jnp.maximum(mm(h, pk["w2"], pk["b2"]), 0.0)
    mulv = mm(h, pk["wml"], pk["bml"])
    mu, log_var = mulv[:, :latent_dim], mulv[:, latent_dim:]
    z = mu + eps * jnp.exp(0.5 * log_var)
    d = jnp.maximum(mm(z, pk["wd1"], pk["bd1"]), 0.0)
    d = jnp.maximum(mm(d, pk["wd2"], pk["bd2"]), 0.0)
    logits = mm(d, pk["wd3"], pk["bd3"])
    return jax.nn.sigmoid(logits)[:, :IN_DIM], mu, log_var


if __name__ == "__main__":
    latent_dim = 16
    batch = 2

    root = jax.random.PRNGKey(0)
    k_params, k_x, k_eps = jax.random.split(root, 3)

    params = init_vae_params(k_params, latent_dim)
    pk = pack_params(params)

    x = jax.random.uniform(k_x, (batch, 3, 28, 28), jnp.float32)      # NCHW
    eps = jax.random.normal(k_eps, (batch, latent_dim), jnp.float32)  # randn_like

    recon, mu, log_var = vae_forward(x, eps, pk, latent_dim)
    jax.block_until_ready((recon, mu, log_var))

    # Shape / range sanity.
    assert recon.shape == (batch, IN_DIM)
    assert mu.shape == (batch, latent_dim)
    assert log_var.shape == (batch, latent_dim)
    assert bool(jnp.all(jnp.isfinite(recon)))
    assert bool(jnp.all((recon >= 0.0) & (recon <= 1.0)))  # sigmoid range

    # Numerical check vs. same-precision pure-JAX reference.
    r_ref, mu_ref, lv_ref = vae_reference(x, eps, pk, latent_dim)
    assert bool(jnp.allclose(recon, r_ref, atol=2e-3, rtol=2e-3))
    assert bool(jnp.allclose(mu, mu_ref, atol=2e-3, rtol=2e-3))
    assert bool(jnp.allclose(log_var, lv_ref, atol=2e-3, rtol=2e-3))

    print("KERNEL_OK")
</pallas_src>

<mosaic_0001>
module attributes {stable_mosaic.version = 11 : i64} {
  func.func @vae_kernel(%arg0: i32, %arg1: memref<128x2432xf32, #tpu.memory_space<vmem>>, %arg2: memref<128x16xf32, #tpu.memory_space<vmem>>, %arg3: memref<2432x256xbf16, #tpu.memory_space<vmem>>, %arg4: memref<1x256xf32, #tpu.memory_space<vmem>>, %arg5: memref<256x128xbf16, #tpu.memory_space<vmem>>, %arg6: memref<1x128xf32, #tpu.memory_space<vmem>>, %arg7: memref<128x32xbf16, #tpu.memory_space<vmem>>, %arg8: memref<1x32xf32, #tpu.memory_space<vmem>>, %arg9: memref<16x128xbf16, #tpu.memory_space<vmem>>, %arg10: memref<1x128xf32, #tpu.memory_space<vmem>>, %arg11: memref<128x256xbf16, #tpu.memory_space<vmem>>, %arg12: memref<1x256xf32, #tpu.memory_space<vmem>>, %arg13: memref<256x2432xbf16, #tpu.memory_space<vmem>>, %arg14: memref<1x2432xf32, #tpu.memory_space<vmem>>, %arg15: memref<128x2432xf32, #tpu.memory_space<vmem>>, %arg16: memref<128x32xf32, #tpu.memory_space<vmem>>) attributes {dimension_semantics = [#tpu.dimension_semantics<parallel>], iteration_bounds = array<i64: 1>, scalar_prefetch = 0 : i64, scratch_operands = 0 : i64, tpu.core_type = #tpu.core_type<tc>, window_params = [{transform_indices = @transform_0, window_bounds = array<i64: 128, 2432>}, {transform_indices = @transform_1, window_bounds = array<i64: 128, 16>}, {pipeline_mode = #tpu.pipeline_mode<synchronous>, transform_indices = @transform_2, window_bounds = array<i64: 2432, 256>}, {pipeline_mode = #tpu.pipeline_mode<synchronous>, transform_indices = @transform_3, window_bounds = array<i64: 1, 256>}, {pipeline_mode = #tpu.pipeline_mode<synchronous>, transform_indices = @transform_4, window_bounds = array<i64: 256, 128>}, {pipeline_mode = #tpu.pipeline_mode<synchronous>, transform_indices = @transform_5, window_bounds = array<i64: 1, 128>}, {pipeline_mode = #tpu.pipeline_mode<synchronous>, transform_indices = @transform_6, window_bounds = array<i64: 128, 32>}, {pipeline_mode = #tpu.pipeline_mode<synchronous>, transform_indices = @transform_7, window_bounds = array<i64: 1, 32>}, {pipeline_mode = #tpu.pipeline_mode<synchronous>, transform_indices = @transform_8, window_bounds = array<i64: 16, 128>}, {pipeline_mode = #tpu.pipeline_mode<synchronous>, transform_indices = @transform_9, window_bounds = array<i64: 1, 128>}, {pipeline_mode = #tpu.pipeline_mode<synchronous>, transform_indices = @transform_10, window_bounds = array<i64: 128, 256>}, {pipeline_mode = #tpu.pipeline_mode<synchronous>, transform_indices = @transform_11, window_bounds = array<i64: 1, 256>}, {pipeline_mode = #tpu.pipeline_mode<synchronous>, transform_indices = @transform_12, window_bounds = array<i64: 256, 2432>}, {pipeline_mode = #tpu.pipeline_mode<synchronous>, transform_indices = @transform_13, window_bounds = array<i64: 1, 2432>}, {transform_indices = @transform_14, window_bounds = array<i64: 128, 2432>}, {transform_indices = @transform_15, window_bounds = array<i64: 128, 32>}]} {
    %c0 = arith.constant 0 : index
    %c0_0 = arith.constant 0 : index
    %0 = vector.load %arg1[%c0, %c0_0] : memref<128x2432xf32, #tpu.memory_space<vmem>>, vector<128x2432xf32>
    %1 = arith.truncf %0 : vector<128x2432xf32> to vector<128x2432xbf16>
    %c0_1 = arith.constant 0 : index
    %c0_2 = arith.constant 0 : index
    %2 = vector.load %arg3[%c0_1, %c0_2] : memref<2432x256xbf16, #tpu.memory_space<vmem>>, vector<2432x256xbf16>
    %cst = arith.constant dense<0.000000e+00> : vector<128x256xf32>
    %3 = tpu.matmul %1, %2, %cst {dimension_numbers = #tpu.dot_dimension_numbers<[1], [0], [0], [1], [0, 0, 1, 1], [], []>} : vector<128x2432xbf16>, vector<2432x256xbf16>, vector<128x256xf32> -> vector<128x256xf32>
    %c0_3 = arith.constant 0 : index
    %c0_4 = arith.constant 0 : index
    %4 = vector.load %arg4[%c0_3, %c0_4] : memref<1x256xf32, #tpu.memory_space<vmem>>, vector<1x256xf32>
    %5 = vector.broadcast %4 : vector<1x256xf32> to vector<128x256xf32>
    %6 = arith.addf %3, %5 : vector<128x256xf32>
    %cst_5 = arith.constant 0.000000e+00 : f32
    %7 = vector.broadcast %cst_5 : f32 to vector<128x256xf32>
    %8 = arith.maximumf %6, %7 : vector<128x256xf32>
    %9 = arith.truncf %8 : vector<128x256xf32> to vector<128x256xbf16>
    %c0_6 = arith.constant 0 : index
    %c0_7 = arith.constant 0 : index
    %10 = vector.load %arg5[%c0_6, %c0_7] : memref<256x128xbf16, #tpu.memory_space<vmem>>, vector<256x128xbf16>
    %cst_8 = arith.constant dense<0.000000e+00> : vector<128x128xf32>
    %11 = tpu.matmul %9, %10, %cst_8 {dimension_numbers = #tpu.dot_dimension_numbers<[1], [0], [0], [1], [0, 0, 1, 1], [], []>} : vector<128x256xbf16>, vector<256x128xbf16>, vector<128x128xf32> -> vector<128x128xf32>
    %c0_9 = arith.constant 0 : index
    %c0_10 = arith.constant 0 : index
    %12 = vector.load %arg6[%c0_9, %c0_10] : memref<1x128xf32, #tpu.memory_space<vmem>>, vector<1x128xf32>
    %13 = vector.broadcast %12 : vector<1x128xf32> to vector<128x128xf32>
    %14 = arith.addf %11, %13 : vector<128x128xf32>
    %cst_11 = arith.constant 0.000000e+00 : f32
    %15 = vector.broadcast %cst_11 : f32 to vector<128x128xf32>
    %16 = arith.maximumf %14, %15 : vector<128x128xf32>
    %17 = arith.truncf %16 : vector<128x128xf32> to vector<128x128xbf16>
    %c0_12 = arith.constant 0 : index
    %c0_13 = arith.constant 0 : index
    %18 = vector.load %arg7[%c0_12, %c0_13] : memref<128x32xbf16, #tpu.memory_space<vmem>>, vector<128x32xbf16>
    %cst_14 = arith.constant dense<0.000000e+00> : vector<128x32xf32>
    %19 = tpu.matmul %17, %18, %cst_14 {dimension_numbers = #tpu.dot_dimension_numbers<[1], [0], [0], [1], [0, 0, 1, 1], [], []>} : vector<128x128xbf16>, vector<128x32xbf16>, vector<128x32xf32> -> vector<128x32xf32>
    %c0_15 = arith.constant 0 : index
    %c0_16 = arith.constant 0 : index
    %20 = vector.load %arg8[%c0_15, %c0_16] : memref<1x32xf32, #tpu.memory_space<vmem>>, vector<1x32xf32>
    %21 = vector.broadcast %20 : vector<1x32xf32> to vector<128x32xf32>
    %22 = arith.addf %19, %21 : vector<128x32xf32>
    %23 = vector.extract_strided_slice %22 {offsets = [0, 0], sizes = [128, 16], strides = [1, 1]} : vector<128x32xf32> to vector<128x16xf32>
    %24 = vector.extract_strided_slice %22 {offsets = [0, 16], sizes = [128, 16], strides = [1, 1]} : vector<128x32xf32> to vector<128x16xf32>
    %c0_17 = arith.constant 0 : index
    %c0_18 = arith.constant 0 : index
    %25 = vector.load %arg2[%c0_17, %c0_18] : memref<128x16xf32, #tpu.memory_space<vmem>>, vector<128x16xf32>
    %cst_19 = arith.constant 5.000000e-01 : f32
    %26 = vector.broadcast %cst_19 : f32 to vector<128x16xf32>
    %27 = arith.mulf %26, %24 : vector<128x16xf32>
    %28 = math.exp %27 : vector<128x16xf32>
    %29 = arith.mulf %25, %28 : vector<128x16xf32>
    %30 = arith.addf %23, %29 : vector<128x16xf32>
    %31 = arith.truncf %30 : vector<128x16xf32> to vector<128x16xbf16>
    %c0_20 = arith.constant 0 : index
    %c0_21 = arith.constant 0 : index
    %32 = vector.load %arg9[%c0_20, %c0_21] : memref<16x128xbf16, #tpu.memory_space<vmem>>, vector<16x128xbf16>
    %cst_22 = arith.constant dense<0.000000e+00> : vector<128x128xf32>
    %33 = tpu.matmul %31, %32, %cst_22 {dimension_numbers = #tpu.dot_dimension_numbers<[1], [0], [0], [1], [0, 0, 1, 1], [], []>} : vector<128x16xbf16>, vector<16x128xbf16>, vector<128x128xf32> -> vector<128x128xf32>
    %c0_23 = arith.constant 0 : index
    %c0_24 = arith.constant 0 : index
    %34 = vector.load %arg10[%c0_23, %c0_24] : memref<1x128xf32, #tpu.memory_space<vmem>>, vector<1x128xf32>
    %35 = vector.broadcast %34 : vector<1x128xf32> to vector<128x128xf32>
    %36 = arith.addf %33, %35 : vector<128x128xf32>
    %cst_25 = arith.constant 0.000000e+00 : f32
    %37 = vector.broadcast %cst_25 : f32 to vector<128x128xf32>
    %38 = arith.maximumf %36, %37 : vector<128x128xf32>
    %39 = arith.truncf %38 : vector<128x128xf32> to vector<128x128xbf16>
    %c0_26 = arith.constant 0 : index
    %c0_27 = arith.constant 0 : index
    %40 = vector.load %arg11[%c0_26, %c0_27] : memref<128x256xbf16, #tpu.memory_space<vmem>>, vector<128x256xbf16>
    %cst_28 = arith.constant dense<0.000000e+00> : vector<128x256xf32>
    %41 = tpu.matmul %39, %40, %cst_28 {dimension_numbers = #tpu.dot_dimension_numbers<[1], [0], [0], [1], [0, 0, 1, 1], [], []>} : vector<128x128xbf16>, vector<128x256xbf16>, vector<128x256xf32> -> vector<128x256xf32>
    %c0_29 = arith.constant 0 : index
    %c0_30 = arith.constant 0 : index
    %42 = vector.load %arg12[%c0_29, %c0_30] : memref<1x256xf32, #tpu.memory_space<vmem>>, vector<1x256xf32>
    %43 = vector.broadcast %42 : vector<1x256xf32> to vector<128x256xf32>
    %44 = arith.addf %41, %43 : vector<128x256xf32>
    %cst_31 = arith.constant 0.000000e+00 : f32
    %45 = vector.broadcast %cst_31 : f32 to vector<128x256xf32>
    %46 = arith.maximumf %44, %45 : vector<128x256xf32>
    %47 = arith.truncf %46 : vector<128x256xf32> to vector<128x256xbf16>
    %c0_32 = arith.constant 0 : index
    %c0_33 = arith.constant 0 : index
    %48 = vector.load %arg13[%c0_32, %c0_33] : memref<256x2432xbf16, #tpu.memory_space<vmem>>, vector<256x2432xbf16>
    %cst_34 = arith.constant dense<0.000000e+00> : vector<128x2432xf32>
    %49 = tpu.matmul %47, %48, %cst_34 {dimension_numbers = #tpu.dot_dimension_numbers<[1], [0], [0], [1], [0, 0, 1, 1], [], []>} : vector<128x256xbf16>, vector<256x2432xbf16>, vector<128x2432xf32> -> vector<128x2432xf32>
    %c0_35 = arith.constant 0 : index
    %c0_36 = arith.constant 0 : index
    %50 = vector.load %arg14[%c0_35, %c0_36] : memref<1x2432xf32, #tpu.memory_space<vmem>>, vector<1x2432xf32>
    %51 = vector.broadcast %50 : vector<1x2432xf32> to vector<128x2432xf32>
    %52 = arith.addf %49, %51 : vector<128x2432xf32>
    %53 = arith.negf %52 : vector<128x2432xf32>
    %54 = math.exp %53 : vector<128x2432xf32>
    %cst_37 = arith.constant 1.000000e+00 : f32
    %55 = vector.broadcast %cst_37 : f32 to vector<128x2432xf32>
    %56 = arith.addf %55, %54 : vector<128x2432xf32>
    %57 = arith.divf %55, %56 : vector<128x2432xf32>
    %c0_38 = arith.constant 0 : index
    %c0_39 = arith.constant 0 : index
    %58 = vector.load %arg15[%c0_38, %c0_39] : memref<128x2432xf32, #tpu.memory_space<vmem>>, vector<128x2432xf32>
    tpu.vector_store %arg15[%c0_38, %c0_39], %57 {strides = array<i32>} : memref<128x2432xf32, #tpu.memory_space<vmem>>, vector<128x2432xf32>,
    %c0_40 = arith.constant 0 : index
    %c0_41 = arith.constant 0 : index
    %59 = vector.load %arg16[%c0_40, %c0_41] : memref<128x32xf32, #tpu.memory_space<vmem>>, vector<128x32xf32>
    tpu.vector_store %arg16[%c0_40, %c0_41], %22 {strides = array<i32>} : memref<128x32xf32, #tpu.memory_space<vmem>>, vector<128x32xf32>,
    return
  }
  func.func @transform_0(%arg0: i32) -> (i32, i32) {
    %c0_i32 = arith.constant 0 : i32
    %c0_i32_0 = arith.constant 0 : i32
    return %arg0, %c0_i32 : i32, i32
  }
  func.func @transform_1(%arg0: i32) -> (i32, i32) {
    %c0_i32 = arith.constant 0 : i32
    %c0_i32_0 = arith.constant 0 : i32
    return %arg0, %c0_i32 : i32, i32
  }
  func.func @transform_2(%arg0: i32) -> (i32, i32) {
    %c0_i32 = arith.constant 0 : i32
    %c0_i32_0 = arith.constant 0 : i32
    %c0_i32_1 = arith.constant 0 : i32
    return %c0_i32, %c0_i32_0 : i32, i32
  }
  func.func @transform_3(%arg0: i32) -> (i32, i32) {
    %c0_i32 = arith.constant 0 : i32
    %c0_i32_0 = arith.constant 0 : i32
    %c0_i32_1 = arith.constant 0 : i32
    return %c0_i32, %c0_i32_0 : i32, i32
  }
  func.func @transform_4(%arg0: i32) -> (i32, i32) {
    %c0_i32 = arith.constant 0 : i32
    %c0_i32_0 = arith.constant 0 : i32
    %c0_i32_1 = arith.constant 0 : i32
    return %c0_i32, %c0_i32_0 : i32, i32
  }
  func.func @transform_5(%arg0: i32) -> (i32, i32) {
    %c0_i32 = arith.constant 0 : i32
    %c0_i32_0 = arith.constant 0 : i32
    %c0_i32_1 = arith.constant 0 : i32
    return %c0_i32, %c0_i32_0 : i32, i32
  }
  func.func @transform_6(%arg0: i32) -> (i32, i32) {
    %c0_i32 = arith.constant 0 : i32
    %c0_i32_0 = arith.constant 0 : i32
    %c0_i32_1 = arith.constant 0 : i32
    return %c0_i32, %c0_i32_0 : i32, i32
  }
  func.func @transform_7(%arg0: i32) -> (i32, i32) {
    %c0_i32 = arith.constant 0 : i32
    %c0_i32_0 = arith.constant 0 : i32
    %c0_i32_1 = arith.constant 0 : i32
    return %c0_i32, %c0_i32_0 : i32, i32
  }
  func.func @transform_8(%arg0: i32) -> (i32, i32) {
    %c0_i32 = arith.constant 0 : i32
    %c0_i32_0 = arith.constant 0 : i32
    %c0_i32_1 = arith.constant 0 : i32
    return %c0_i32, %c0_i32_0 : i32, i32
  }
  func.func @transform_9(%arg0: i32) -> (i32, i32) {
    %c0_i32 = arith.constant 0 : i32
    %c0_i32_0 = arith.constant 0 : i32
    %c0_i32_1 = arith.constant 0 : i32
    return %c0_i32, %c0_i32_0 : i32, i32
  }
  func.func @transform_10(%arg0: i32) -> (i32, i32) {
    %c0_i32 = arith.constant 0 : i32
    %c0_i32_0 = arith.constant 0 : i32
    %c0_i32_1 = arith.constant 0 : i32
    return %c0_i32, %c0_i32_0 : i32, i32
  }
  func.func @transform_11(%arg0: i32) -> (i32, i32) {
    %c0_i32 = arith.constant 0 : i32
    %c0_i32_0 = arith.constant 0 : i32
    %c0_i32_1 = arith.constant 0 : i32
    return %c0_i32, %c0_i32_0 : i32, i32
  }
  func.func @transform_12(%arg0: i32) -> (i32, i32) {
    %c0_i32 = arith.constant 0 : i32
    %c0_i32_0 = arith.constant 0 : i32
    %c0_i32_1 = arith.constant 0 : i32
    return %c0_i32, %c0_i32_0 : i32, i32
  }
  func.func @transform_13(%arg0: i32) -> (i32, i32) {
    %c0_i32 = arith.constant 0 : i32
    %c0_i32_0 = arith.constant 0 : i32
    %c0_i32_1 = arith.constant 0 : i32
    return %c0_i32, %c0_i32_0 : i32, i32
  }
  func.func @transform_14(%arg0: i32) -> (i32, i32) {
    %c0_i32 = arith.constant 0 : i32
    %c0_i32_0 = arith.constant 0 : i32
    return %arg0, %c0_i32 : i32, i32
  }
  func.func @transform_15(%arg0: i32) -> (i32, i32) {
    %c0_i32 = arith.constant 0 : i32
    %c0_i32_0 = arith.constant 0 : i32
    return %arg0, %c0_i32 : i32, i32
  }
}

</mosaic_0001>

<llo_original>
// kernel: vae_forward.1
$region0: #{vae_forward.1}
  #allocation0 [shape = 'u32[]', space=smem, size = 0x4, offset = 0x4, fixed_abs, tag = 'smem constant byte address 0x4 - core index']
  #allocation1 [shape = 'u32[144,128]{1,0:T(1,128)}', space=vmem, size = 0x12000, scoped, tag = 'internal scratch']
  %s0 = inlined_call_operand.vmem [shape: f32[128,2432], index: 0, kind: input, shape index: {}]
  %s1 = inlined_call_operand.vmem [shape: f32[128,16], index: 1, kind: input, shape index: {}]
  %s2 = inlined_call_operand.vmem [shape: bf16[2432,256], index: 2, kind: input, shape index: {}]
  %s3 = inlined_call_operand.vmem [shape: f32[1,256], index: 3, kind: input, shape index: {}]
  %s4 = inlined_call_operand.vmem [shape: bf16[256,128], index: 4, kind: input, shape index: {}]
  %s5 = inlined_call_operand.vmem [shape: f32[1,128], index: 5, kind: input, shape index: {}]
  %s6 = inlined_call_operand.vmem [shape: bf16[128,32], index: 6, kind: input, shape index: {}]
  %s7 = inlined_call_operand.vmem [shape: f32[1,32], index: 7, kind: input, shape index: {}]
  %s8 = inlined_call_operand.vmem [shape: bf16[16,128], index: 8, kind: input, shape index: {}]
  %s9 = inlined_call_operand.vmem [shape: f32[1,128], index: 9, kind: input, shape index: {}]
  %s10 = inlined_call_operand.vmem [shape: bf16[128,256], index: 10, kind: input, shape index: {}]
  %s11 = inlined_call_operand.vmem [shape: f32[1,256], index: 11, kind: input, shape index: {}]
  %s12 = inlined_call_operand.hbm [shape: bf16[256,2432], index: 12, kind: input, shape index: {}]
  %s13 = inlined_call_operand.vmem [shape: f32[1,2432], index: 13, kind: input, shape index: {}]
  %s14 = inlined_call_operand.vmem [shape: f32[128,2432], index: 14, kind: output, shape index: {0}]
  %s15 = inlined_call_operand.vmem [shape: f32[128,32], index: 15, kind: output, shape index: {1}]
  %16 = xla_tuple %s14, %s15
  %s17 = sld [smem:[#allocation0]]
  $region78: #{vae_forward.1} parent=0
    _
  %s19 = ssub.s32 1, %s17
  %s20 = scalar_select 0, %s19, %s17
  $region1: #{vae_forward.1} parent=0
    #allocation2 [shape = 'u8[1245184]{0}', space=vmem, size = 0x130000, scoped, tag = 'input window, operand 12, single buffered']
    #allocation3 [shape = 's32[1]{0}', space=sflag, size = 0x4, scoped, tag = 'scoped memory for vae_forward.1']
    %21 = vsyncpa [#allocation3], 0
    // Predicated region
    $region2: #{vae_forward.1} parent=1 // pred_check
      _
    $region3: #{vae_forward.1} parent=1 // pred_check_branch
      %23 = sbr.rel (0) target = $region5
    $region4: #{vae_forward.1} parent=1 // pred_region
      _
    $region5: #{vae_forward.1} parent=1 // pred_fallthru
      _
    // Predicated region
    $region6: #{vae_forward.1} parent=1 // pred_check
      _
    $region7: #{vae_forward.1} parent=1 // pred_check_branch
      %25 = sbr.rel (0) target = $region9
    $region8: #{vae_forward.1} parent=1 // pred_region
      _
    $region9: #{vae_forward.1} parent=1 // pred_fallthru
      _
    // Predicated region
    $region10: #{vae_forward.1} parent=1 // pred_check
      _
    $region11: #{vae_forward.1} parent=1 // pred_check_branch
      %27 = sbr.rel (0) target = $region13
    $region12: #{vae_forward.1} parent=1 // pred_region
      _
    $region13: #{vae_forward.1} parent=1 // pred_fallthru
      _
    // Predicated region
    $region14: #{vae_forward.1} parent=1 // pred_check
      _
    $region15: #{vae_forward.1} parent=1 // pred_check_branch
      %29 = sbr.rel (0) target = $region17
    $region16: #{vae_forward.1} parent=1 // pred_region
      _
    $region17: #{vae_forward.1} parent=1 // pred_fallthru
      _
    // Predicated region
    $region18: #{vae_forward.1} parent=1 // pred_check
      _
    $region19: #{vae_forward.1} parent=1 // pred_check_branch
      %31 = sbr.rel (0) target = $region21
    $region20: #{vae_forward.1} parent=1 // pred_region
      _
    $region21: #{vae_forward.1} parent=1 // pred_fallthru
      _
    // Predicated region
    $region22: #{vae_forward.1} parent=1 // pred_check
      _
    $region23: #{vae_forward.1} parent=1 // pred_check_branch
      %33 = sbr.rel (0) target = $region25
    $region24: #{vae_forward.1} parent=1 // pred_region
      _
    $region25: #{vae_forward.1} parent=1 // pred_fallthru
      _
    // Predicated region
    $region26: #{vae_forward.1} parent=1 // pred_check
      _
    $region27: #{vae_forward.1} parent=1 // pred_check_branch
      %35 = sbr.rel (0) target = $region29
    $region28: #{vae_forward.1} parent=1 // pred_region
      _
    $region29: #{vae_forward.1} parent=1 // pred_fallthru
      _
    // Predicated region
    $region30: #{vae_forward.1} parent=1 // pred_check
      _
    $region31: #{vae_forward.1} parent=1 // pred_check_branch
      %37 = sbr.rel (0) target = $region33
    $region32: #{vae_forward.1} parent=1 // pred_region
      _
    $region33: #{vae_forward.1} parent=1 // pred_fallthru
      _
    // Predicated region
    $region34: #{vae_forward.1} parent=1 // pred_check
      _
    $region35: #{vae_forward.1} parent=1 // pred_check_branch
      %39 = sbr.rel (0) target = $region37
    $region36: #{vae_forward.1} parent=1 // pred_region
      _
    $region37: #{vae_forward.1} parent=1 // pred_fallthru
      _
    // Predicated region
    $region38: #{vae_forward.1} parent=1 // pred_check
      _
    $region39: #{vae_forward.1} parent=1 // pred_check_branch
      %41 = sbr.rel (0) target = $region41
    $region40: #{vae_forward.1} parent=1 // pred_region
      _
    $region41: #{vae_forward.1} parent=1 // pred_fallthru
      _
    // Predicated region
    $region42: #{vae_forward.1} parent=1 // pred_check
      _
    $region43: #{vae_forward.1} parent=1 // pred_check_branch
      %43 = sbr.rel (0) target = $region45
    $region44: #{vae_forward.1} parent=1 // pred_region
      _
    $region45: #{vae_forward.1} parent=1 // pred_fallthru
      _
    // Predicated region
    $region46: #{vae_forward.1} parent=1 // pred_check
      _
    $region47: #{vae_forward.1} parent=1 // pred_check_branch
      %45 = sbr.rel (0) target = $region49
    $region48: #{vae_forward.1} parent=1 // pred_region
      _
    $region49: #{vae_forward.1} parent=1 // pred_fallthru
      _
    // Predicated region
    $region50: #{vae_forward.1} parent=1 // pred_check
      _
    $region51: #{vae_forward.1} parent=1 // pred_check_branch
      %47 = sbr.rel (0) target = $region53
    $region52: #{vae_forward.1} parent=1 // pred_region
      %s49 = ssub.s32 38912, 38912
      %50 = vsyncadd [#allocation3], %s49
      %s51 = sshll.u32 [#allocation2], 4
      %s52 = int_to_ptr.vmem [resolvable:$true] %s51
      %57 = dma.hbm_to_vmem [thread:$0]  %s12, 38912, %s52, [#allocation3], 1216, 1216, 76
    $region53: #{vae_forward.1} parent=1 // pred_fallthru
      _
    // Predicated region
    $region54: #{vae_forward.1} parent=1 // pred_check
      _
    $region55: #{vae_forward.1} parent=1 // pred_check_branch
      %59 = sbr.rel (0) target = $region57
    $region56: #{vae_forward.1} parent=1 // pred_region
      _
    $region57: #{vae_forward.1} parent=1 // pred_fallthru
      _
    // Predicated region
    $region58: #{vae_forward.1} parent=1 // pred_check
      _
    $region59: #{vae_forward.1} parent=1 // pred_check_branch
      %61 = sbr.rel (0) target = $region61
    $region60: #{vae_forward.1} parent=1 // pred_region
      %62 = dma.done [#allocation3], 38912
    $region61: #{vae_forward.1} parent=1 // pred_fallthru
      _
    %v64 = vld [vmem:[%s0] sm:$0xff]
    %v65 = vld [vmem:[%s0 + $0x8] sm:$0xff]
    %v66 = vld [vmem:[%s0 + $0x10] sm:$0xff]
    %v67 = vld [vmem:[%s0 + $0x18] sm:$0xff]
    %v68 = vld [vmem:[%s0 + $0x20] sm:$0xff]
    %v69 = vld [vmem:[%s0 + $0x28] sm:$0xff]
    %v70 = vld [vmem:[%s0 + $0x30] sm:$0xff]
    %v71 = vld [vmem:[%s0 + $0x38] sm:$0xff]
    %v72 = vld [vmem:[%s0 + $0x40] sm:$0xff]
    %v73 = vld [vmem:[%s0 + $0x48] sm:$0xff]
    %v74 = vld [vmem:[%s0 + $0x50] sm:$0xff]
    %v75 = vld [vmem:[%s0 + $0x58] sm:$0xff]
    %v76 = vld [vmem:[%s0 + $0x60] sm:$0xff]
    %v77 = vld [vmem:[%s0 + $0x68] sm:$0xff]
    %v78 = vld [vmem:[%s0 + $0x70] sm:$0xff]
    %v79 = vld [vmem:[%s0 + $0x78] sm:$0xff]
    %v80 = vld [vmem:[%s0 + $0x80] sm:$0xff]
    %v81 = vld [vmem:[%s0 + $0x88] sm:$0xff]
    %v82 = vld [vmem:[%s0 + $0x90] sm:$0xff]
    %v83 = vld [vmem:[%s0 + $0x98] sm:$0xff]
    %v84 = vld [vmem:[%s0 + $0xa0] sm:$0xff]
    %v85 = vld [vmem:[%s0 + $0xa8] sm:$0xff]
    %v86 = vld [vmem:[%s0 + $0xb0] sm:$0xff]
    %v87 = vld [vmem:[%s0 + $0xb8] sm:$0xff]
    %v88 = vld [vmem:[%s0 + $0xc0] sm:$0xff]
    %v89 = vld [vmem:[%s0 + $0xc8] sm:$0xff]
    %v90 = vld [vmem:[%s0 + $0xd0] sm:$0xff]
    %v91 = vld [vmem:[%s0 + $0xd8] sm:$0xff]
    %v92 = vld [vmem:[%s0 + $0xe0] sm:$0xff]
    %v93 = vld [vmem:[%s0 + $0xe8] sm:$0xff]
    %v94 = vld [vmem:[%s0 + $0xf0] sm:$0xff]
    %v95 = vld [vmem:[%s0 + $0xf8] sm:$0xff]
    %v96 = vld [vmem:[%s0 + $0x100] sm:$0xff]
    %v97 = vld [vmem:[%s0 + $0x108] sm:$0xff]
    %v98 = vld [vmem:[%s0 + $0x110] sm:$0xff]
    %v99 = vld [vmem:[%s0 + $0x118] sm:$0xff]
    %v100 = vld [vmem:[%s0 + $0x120] sm:$0xff]
    %v101 = vld [vmem:[%s0 + $0x128] sm:$0xff]
    %v102 = vld [vmem:[%s0 + $0x130] sm:$0xff]
    %v103 = vld [vmem:[%s0 + $0x138] sm:$0xff]
    %v104 = vld [vmem:[%s0 + $0x140] sm:$0xff]
    %v105 = vld [vmem:[%s0 + $0x148] sm:$0xff]
    %v106 = vld [vmem:[%s0 + $0x150] sm:$0xff]
    %v107 = vld [vmem:[%s0 + $0x158] sm:$0xff]
    %v108 = vld [vmem:[%s0 + $0x160] sm:$0xff]
    %v109 = vld [vmem:[%s0 + $0x168] sm:$0xff]
    %v110 = vld [vmem:[%s0 + $0x170] sm:$0xff]
    %v111 = vld [vmem:[%s0 + $0x178] sm:$0xff]
    %v112 = vld [vmem:[%s0 + $0x180] sm:$0xff]
    %v113 = vld [vmem:[%s0 + $0x188] sm:$0xff]
    %v114 = vld [vmem:[%s0 + $0x190] sm:$0xff]
    %v115 = vld [vmem:[%s0 + $0x198] sm:$0xff]
    %v116 = vld [vmem:[%s0 + $0x1a0] sm:$0xff]
    %v117 = vld [vmem:[%s0 + $0x1a8] sm:$0xff]
    %v118 = vld [vmem:[%s0 + $0x1b0] sm:$0xff]
    %v119 = vld [vmem:[%s0 + $0x1b8] sm:$0xff]
    %v120 = vld [vmem:[%s0 + $0x1c0] sm:$0xff]
    %v121 = vld [vmem:[%s0 + $0x1c8] sm:$0xff]
    %v122 = vld [vmem:[%s0 + $0x1d0] sm:$0xff]
    %v123 = vld [vmem:[%s0 + $0x1d8] sm:$0xff]
    %v124 = vld [vmem:[%s0 + $0x1e0] sm:$0xff]
    %v125 = vld [vmem:[%s0 + $0x1e8] sm:$0xff]
    %v126 = vld [vmem:[%s0 + $0x1f0] sm:$0xff]
    %v127 = vld [vmem:[%s0 + $0x1f8] sm:$0xff]
    %v128 = vld [vmem:[%s0 + $0x200] sm:$0xff]
    %v129 = vld [vmem:[%s0 + $0x208] sm:$0xff]
    %v130 = vld [vmem:[%s0 + $0x210] sm:$0xff]
    %v131 = vld [vmem:[%s0 + $0x218] sm:$0xff]
    %v132 = vld [vmem:[%s0 + $0x220] sm:$0xff]
    %v133 = vld [vmem:[%s0 + $0x228] sm:$0xff]
    %v134 = vld [vmem:[%s0 + $0x230] sm:$0xff]
    %v135 = vld [vmem:[%s0 + $0x238] sm:$0xff]
    %v136 = vld [vmem:[%s0 + $0x240] sm:$0xff]
    %v137 = vld [vmem:[%s0 + $0x248] sm:$0xff]
    %v138 = vld [vmem:[%s0 + $0x250] sm:$0xff]
    %v139 = vld [vmem:[%s0 + $0x258] sm:$0xff]
    %v140 = vld [vmem:[%s0 + $0x260] sm:$0xff]
    %v141 = vld [vmem:[%s0 + $0x268] sm:$0xff]
    %v142 = vld [vmem:[%s0 + $0x270] sm:$0xff]
    %v143 = vld [vmem:[%s0 + $0x278] sm:$0xff]
    %v144 = vld [vmem:[%s0 + $0x280] sm:$0xff]
    %v145 = vld [vmem:[%s0 + $0x288] sm:$0xff]
    %v146 = vld [vmem:[%s0 + $0x290] sm:$0xff]
    %v147 = vld [vmem:[%s0 + $0x298] sm:$0xff]
    %v148 = vld [vmem:[%s0 + $0x2a0] sm:$0xff]
    %v149 = vld [vmem:[%s0 + $0x2a8] sm:$0xff]
    %v150 = vld [vmem:[%s0 + $0x2b0] sm:$0xff]
    %v151 = vld [vmem:[%s0 + $0x2b8] sm:$0xff]
    %v152 = vld [vmem:[%s0 + $0x2c0] sm:$0xff]
    %v153 = vld [vmem:[%s0 + $0x2c8] sm:$0xff]
    %v154 = vld [vmem:[%s0 + $0x2d0] sm:$0xff]
    %v155 = vld [vmem:[%s0 + $0x2d8] sm:$0xff]
    %v156 = vld [vmem:[%s0 + $0x2e0] sm:$0xff]
    %v157 = vld [vmem:[%s0 + $0x2e8] sm:$0xff]
    %v158 = vld [vmem:[%s0 + $0x2f0] sm:$0xff]
    %v159 = vld [vmem:[%s0 + $0x2f8] sm:$0xff]
    %v160 = vld [vmem:[%s0 + $0x300] sm:$0xff]
    %v161 = vld [vmem:[%s0 + $0x308] sm:$0xff]
    %v162 = vld [vmem:[%s0 + $0x310] sm:$0xff]
    %v163 = vld [vmem:[%s0 + $0x318] sm:$0xff]
    %v164 = vld [vmem:[%s0 + $0x320] sm:$0xff]
    %v165 = vld [vmem:[%s0 + $0x328] sm:$0xff]
    %v166 = vld [vmem:[%s0 + $0x330] sm:$0xff]
    %v167 = vld [vmem:[%s0 + $0x338] sm:$0xff]
    %v168 = vld [vmem:[%s0 + $0x340] sm:$0xff]
    %v169 = vld [vmem:[%s0 + $0x348] sm:$0xff]
    %v170 = vld [vmem:[%s0 + $0x350] sm:$0xff]
    %v171 = vld [vmem:[%s0 + $0x358] sm:$0xff]
    %v172 = vld [vmem:[%s0 + $0x360] sm:$0xff]
    %v173 = vld [vmem:[%s0 + $0x368] sm:$0xff]
    %v174 = vld [vmem:[%s0 + $0x370] sm:$0xff]
    %v175 = vld [vmem:[%s0 + $0x378] sm:$0xff]
    %v176 = vld [vmem:[%s0 + $0x380] sm:$0xff]
    %v177 = vld [vmem:[%s0 + $0x388] sm:$0xff]
    %v178 = vld [vmem:[%s0 + $0x390] sm:$0xff]
    %v179 = vld [vmem:[%s0 + $0x398] sm:$0xff]
    %v180 = vld [vmem:[%s0 + $0x3a0] sm:$0xff]
    %v181 = vld [vmem:[%s0 + $0x3a8] sm:$0xff]
    %v182 = vld [vmem:[%s0 + $0x3b0] sm:$0xff]
    %v183 = vld [vmem:[%s0 + $0x3b8] sm:$0xff]
    %v184 = vld [vmem:[%s0 + $0x3c0] sm:$0xff]
    %v185 = vld [vmem:[%s0 + $0x3c8] sm:$0xff]
    %v186 = vld [vmem:[%s0 + $0x3d0] sm:$0xff]
    %v187 = vld [vmem:[%s0 + $0x3d8] sm:$0xff]
    %v188 = vld [vmem:[%s0 + $0x3e0] sm:$0xff]
    %v189 = vld [vmem:[%s0 + $0x3e8] sm:$0xff]
    %v190 = vld [vmem:[%s0 + $0x3f0] sm:$0xff]
    %v191 = vld [vmem:[%s0 + $0x3f8] sm:$0xff]
    %v192 = vld [vmem:[%s0 + $0x400] sm:$0xff]
    %v193 = vld [vmem:[%s0 + $0x408] sm:$0xff]
    %v194 = vld [vmem:[%s0 + $0x410] sm:$0xff]
    %v195 = vld [vmem:[%s0 + $0x418] sm:$0xff]
    %v196 = vld [vmem:[%s0 + $0x420] sm:$0xff]
    %v197 = vld [vmem:[%s0 + $0x428] sm:$0xff]
    %v198 = vld [vmem:[%s0 + $0x430] sm:$0xff]
    %v199 = vld [vmem:[%s0 + $0x438] sm:$0xff]
    %v200 = vld [vmem:[%s0 + $0x440] sm:$0xff]
    %v201 = vld [vmem:[%s0 + $0x448] sm:$0xff]
    %v202 = vld [vmem:[%s0 + $0x450] sm:$0xff]
    %v203 = vld [vmem:[%s0 + $0x458] sm:$0xff]
    %v204 = vld [vmem:[%s0 + $0x460] sm:$0xff]
    %v205 = vld [vmem:[%s0 + $0x468] sm:$0xff]
    %v206 = vld [vmem:[%s0 + $0x470] sm:$0xff]
    %v207 = vld [vmem:[%s0 + $0x478] sm:$0xff]
    %v208 = vld [vmem:[%s0 + $0x480] sm:$0xff]
    %v209 = vld [vmem:[%s0 + $0x488] sm:$0xff]
    %v210 = vld [vmem:[%s0 + $0x490] sm:$0xff]
    %v211 = vld [vmem:[%s0 + $0x498] sm:$0xff]
    %v212 = vld [vmem:[%s0 + $0x4a0] sm:$0xff]
    %v213 = vld [vmem:[%s0 + $0x4a8] sm:$0xff]
    %v214 = vld [vmem:[%s0 + $0x4b0] sm:$0xff]
    %v215 = vld [vmem:[%s0 + $0x4b8] sm:$0xff]
    %v216 = vld [vmem:[%s0 + $0x4c0] sm:$0xff]
    %v217 = vld [vmem:[%s0 + $0x4c8] sm:$0xff]
    %v218 = vld [vmem:[%s0 + $0x4d0] sm:$0xff]
    %v219 = vld [vmem:[%s0 + $0x4d8] sm:$0xff]
    %v220 = vld [vmem:[%s0 + $0x4e0] sm:$0xff]
    %v221 = vld [vmem:[%s0 + $0x4e8] sm:$0xff]
    %v222 = vld [vmem:[%s0 + $0x4f0] sm:$0xff]
    %v223 = vld [vmem:[%s0 + $0x4f8] sm:$0xff]
    %v224 = vld [vmem:[%s0 + $0x500] sm:$0xff]
    %v225 = vld [vmem:[%s0 + $0x508] sm:$0xff]
    %v226 = vld [vmem:[%s0 + $0x510] sm:$0xff]
    %v227 = vld [vmem:[%s0 + $0x518] sm:$0xff]
    %v228 = vld [vmem:[%s0 + $0x520] sm:$0xff]
    %v229 = vld [vmem:[%s0 + $0x528] sm:$0xff]
    %v230 = vld [vmem:[%s0 + $0x530] sm:$0xff]
    %v231 = vld [vmem:[%s0 + $0x538] sm:$0xff]
    %v232 = vld [vmem:[%s0 + $0x540] sm:$0xff]
    %v233 = vld [vmem:[%s0 + $0x548] sm:$0xff]
    %v234 = vld [vmem:[%s0 + $0x550] sm:$0xff]
    %v235 = vld [vmem:[%s0 + $0x558] sm:$0xff]
    %v236 = vld [vmem:[%s0 + $0x560] sm:$0xff]
    %v237 = vld [vmem:[%s0 + $0x568] sm:$0xff]
    %v238 = vld [vmem:[%s0 + $0x570] sm:$0xff]
    %v239 = vld [vmem:[%s0 + $0x578] sm:$0xff]
    %v240 = vld [vmem:[%s0 + $0x580] sm:$0xff]
    %v241 = vld [vmem:[%s0 + $0x588] sm:$0xff]
    %v242 = vld [vmem:[%s0 + $0x590] sm:$0xff]
    %v243 = vld [vmem:[%s0 + $0x598] sm:$0xff]
    %v244 = vld [vmem:[%s0 + $0x5a0] sm:$0xff]
    %v245 = vld [vmem:[%s0 + $0x5a8] sm:$0xff]
    %v246 = vld [vmem:[%s0 + $0x5b0] sm:$0xff]
    %v247 = vld [vmem:[%s0 + $0x5b8] sm:$0xff]
    %v248 = vld [vmem:[%s0 + $0x5c0] sm:$0xff]
    %v249 = vld [vmem:[%s0 + $0x5c8] sm:$0xff]
    %v250 = vld [vmem:[%s0 + $0x5d0] sm:$0xff]
    %v251 = vld [vmem:[%s0 + $0x5d8] sm:$0xff]
    %v252 = vld [vmem:[%s0 + $0x5e0] sm:$0xff]
    %v253 = vld [vmem:[%s0 + $0x5e8] sm:$0xff]
    %v254 = vld [vmem:[%s0 + $0x5f0] sm:$0xff]
    %v255 = vld [vmem:[%s0 + $0x5f8] sm:$0xff]
    %v256 = vld [vmem:[%s0 + $0x600] sm:$0xff]
    %v257 = vld [vmem:[%s0 + $0x608] sm:$0xff]
    %v258 = vld [vmem:[%s0 + $0x610] sm:$0xff]
    %v259 = vld [vmem:[%s0 + $0x618] sm:$0xff]
    %v260 = vld [vmem:[%s0 + $0x620] sm:$0xff]
    %v261 = vld [vmem:[%s0 + $0x628] sm:$0xff]
    %v262 = vld [vmem:[%s0 + $0x630] sm:$0xff]
    %v263 = vld [vmem:[%s0 + $0x638] sm:$0xff]
    %v264 = vld [vmem:[%s0 + $0x640] sm:$0xff]
    %v265 = vld [vmem:[%s0 + $0x648] sm:$0xff]
    %v266 = vld [vmem:[%s0 + $0x650] sm:$0xff]
    %v267 = vld [vmem:[%s0 + $0x658] sm:$0xff]
    %v268 = vld [vmem:[%s0 + $0x660] sm:$0xff]
    %v269 = vld [vmem:[%s0 + $0x668] sm:$0xff]
    %v270 = vld [vmem:[%s0 + $0x670] sm:$0xff]
    %v271 = vld [vmem:[%s0 + $0x678] sm:$0xff]
    %v272 = vld [vmem:[%s0 + $0x680] sm:$0xff]
    %v273 = vld [vmem:[%s0 + $0x688] sm:$0xff]
    %v274 = vld [vmem:[%s0 + $0x690] sm:$0xff]
    %v275 = vld [vmem:[%s0 + $0x698] sm:$0xff]
    %v276 = vld [vmem:[%s0 + $0x6a0] sm:$0xff]
    %v277 = vld [vmem:[%s0 + $0x6a8] sm:$0xff]
    %v278 = vld [vmem:[%s0 + $0x6b0] sm:$0xff]
    %v279 = vld [vmem:[%s0 + $0x6b8] sm:$0xff]
    %v280 = vld [vmem:[%s0 + $0x6c0] sm:$0xff]
    %v281 = vld [vmem:[%s0 + $0x6c8] sm:$0xff]
    %v282 = vld [vmem:[%s0 + $0x6d0] sm:$0xff]
    %v283 = vld [vmem:[%s0 + $0x6d8] sm:$0xff]
    %v284 = vld [vmem:[%s0 + $0x6e0] sm:$0xff]
    %v285 = vld [vmem:[%s0 + $0x6e8] sm:$0xff]
    %v286 = vld [vmem:[%s0 + $0x6f0] sm:$0xff]
    %v287 = vld [vmem:[%s0 + $0x6f8] sm:$0xff]
    %v288 = vld [vmem:[%s0 + $0x700] sm:$0xff]
    %v289 = vld [vmem:[%s0 + $0x708] sm:$0xff]
    %v290 = vld [vmem:[%s0 + $0x710] sm:$0xff]
    %v291 = vld [vmem:[%s0 + $0x718] sm:$0xff]
    %v292 = vld [vmem:[%s0 + $0x720] sm:$0xff]
    %v293 = vld [vmem:[%s0 + $0x728] sm:$0xff]
    %v294 = vld [vmem:[%s0 + $0x730] sm:$0xff]
    %v295 = vld [vmem:[%s0 + $0x738] sm:$0xff]
    %v296 = vld [vmem:[%s0 + $0x740] sm:$0xff]
    %v297 = vld [vmem:[%s0 + $0x748] sm:$0xff]
    %v298 = vld [vmem:[%s0 + $0x750] sm:$0xff]
    %v299 = vld [vmem:[%s0 + $0x758] sm:$0xff]
    %v300 = vld [vmem:[%s0 + $0x760] sm:$0xff]
    %v301 = vld [vmem:[%s0 + $0x768] sm:$0xff]
    %v302 = vld [vmem:[%s0 + $0x770] sm:$0xff]
    %v303 = vld [vmem:[%s0 + $0x778] sm:$0xff]
    %v304 = vld [vmem:[%s0 + $0x780] sm:$0xff]
    %v305 = vld [vmem:[%s0 + $0x788] sm:$0xff]
    %v306 = vld [vmem:[%s0 + $0x790] sm:$0xff]
    %v307 = vld [vmem:[%s0 + $0x798] sm:$0xff]
    %v308 = vld [vmem:[%s0 + $0x7a0] sm:$0xff]
    %v309 = vld [vmem:[%s0 + $0x7a8] sm:$0xff]
    %v310 = vld [vmem:[%s0 + $0x7b0] sm:$0xff]
    %v311 = vld [vmem:[%s0 + $0x7b8] sm:$0xff]
    %v312 = vld [vmem:[%s0 + $0x7c0] sm:$0xff]
    %v313 = vld [vmem:[%s0 + $0x7c8] sm:$0xff]
    %v314 = vld [vmem:[%s0 + $0x7d0] sm:$0xff]
    %v315 = vld [vmem:[%s0 + $0x7d8] sm:$0xff]
    %v316 = vld [vmem:[%s0 + $0x7e0] sm:$0xff]
    %v317 = vld [vmem:[%s0 + $0x7e8] sm:$0xff]
    %v318 = vld [vmem:[%s0 + $0x7f0] sm:$0xff]
    %v319 = vld [vmem:[%s0 + $0x7f8] sm:$0xff]
    %v320 = vld [vmem:[%s0 + $0x800] sm:$0xff]
    %v321 = vld [vmem:[%s0 + $0x808] sm:$0xff]
    %v322 = vld [vmem:[%s0 + $0x810] sm:$0xff]
    %v323 = vld [vmem:[%s0 + $0x818] sm:$0xff]
    %v324 = vld [vmem:[%s0 + $0x820] sm:$0xff]
    %v325 = vld [vmem:[%s0 + $0x828] sm:$0xff]
    %v326 = vld [vmem:[%s0 + $0x830] sm:$0xff]
    %v327 = vld [vmem:[%s0 + $0x838] sm:$0xff]
    %v328 = vld [vmem:[%s0 + $0x840] sm:$0xff]
    %v329 = vld [vmem:[%s0 + $0x848] sm:$0xff]
    %v330 = vld [vmem:[%s0 + $0x850] sm:$0xff]
    %v331 = vld [vmem:[%s0 + $0x858] sm:$0xff]
    %v332 = vld [vmem:[%s0 + $0x860] sm:$0xff]
    %v333 = vld [vmem:[%s0 + $0x868] sm:$0xff]
    %v334 = vld [vmem:[%s0 + $0x870] sm:$0xff]
    %v335 = vld [vmem:[%s0 + $0x878] sm:$0xff]
    %v336 = vld [vmem:[%s0 + $0x880] sm:$0xff]
    %v337 = vld [vmem:[%s0 + $0x888] sm:$0xff]
    %v338 = vld [vmem:[%s0 + $0x890] sm:$0xff]
    %v339 = vld [vmem:[%s0 + $0x898] sm:$0xff]
    %v340 = vld [vmem:[%s0 + $0x8a0] sm:$0xff]
    %v341 = vld [vmem:[%s0 + $0x8a8] sm:$0xff]
    %v342 = vld [vmem:[%s0 + $0x8b0] sm:$0xff]
    %v343 = vld [vmem:[%s0 + $0x8b8] sm:$0xff]
    %v344 = vld [vmem:[%s0 + $0x8c0] sm:$0xff]
    %v345 = vld [vmem:[%s0 + $0x8c8] sm:$0xff]
    %v346 = vld [vmem:[%s0 + $0x8d0] sm:$0xff]
    %v347 = vld [vmem:[%s0 + $0x8d8] sm:$0xff]
    %v348 = vld [vmem:[%s0 + $0x8e0] sm:$0xff]
    %v349 = vld [vmem:[%s0 + $0x8e8] sm:$0xff]
    %v350 = vld [vmem:[%s0 + $0x8f0] sm:$0xff]
    %v351 = vld [vmem:[%s0 + $0x8f8] sm:$0xff]
    %v352 = vld [vmem:[%s0 + $0x900] sm:$0xff]
    %v353 = vld [vmem:[%s0 + $0x908] sm:$0xff]
    %v354 = vld [vmem:[%s0 + $0x910] sm:$0xff]
    %v355 = vld [vmem:[%s0 + $0x918] sm:$0xff]
    %v356 = vld [vmem:[%s0 + $0x920] sm:$0xff]
    %v357 = vld [vmem:[%s0 + $0x928] sm:$0xff]
    %v358 = vld [vmem:[%s0 + $0x930] sm:$0xff]
    %v359 = vld [vmem:[%s0 + $0x938] sm:$0xff]
    %v360 = vld [vmem:[%s0 + $0x940] sm:$0xff]
    %v361 = vld [vmem:[%s0 + $0x948] sm:$0xff]
    %v362 = vld [vmem:[%s0 + $0x950] sm:$0xff]
    %v363 = vld [vmem:[%s0 + $0x958] sm:$0xff]
    %v364 = vld [vmem:[%s0 + $0x960] sm:$0xff]
    %v365 = vld [vmem:[%s0 + $0x968] sm:$0xff]
    %v366 = vld [vmem:[%s0 + $0x970] sm:$0xff]
    %v367 = vld [vmem:[%s0 + $0x978] sm:$0xff]
    %v368 = vpack.c.bf16 %v83, %v64
    %v369 = vpack.c.bf16 %v84, %v65
    %v370 = vpack.c.bf16 %v85, %v66
    %v371 = vpack.c.bf16 %v86, %v67
    %v372 = vpack.c.bf16 %v87, %v68
    %v373 = vpack.c.bf16 %v88, %v69
    %v374 = vpack.c.bf16 %v89, %v70
    %v375 = vpack.c.bf16 %v90, %v71
    %v376 = vpack.c.bf16 %v91, %v72
    %v377 = vpack.c.bf16 %v92, %v73
    %v378 = vpack.c.bf16 %v93, %v74
    %v379 = vpack.c.bf16 %v94, %v75
    %v380 = vpack.c.bf16 %v95, %v76
    %v381 = vpack.c.bf16 %v96, %v77
    %v382 = vpack.c.bf16 %v97, %v78
    %v383 = vpack.c.bf16 %v98, %v79
    %v384 = vpack.c.bf16 %v99, %v80
    %v385 = vpack.c.bf16 %v100, %v81
    %v386 = vpack.c.bf16 %v101, %v82
    %v387 = vpack.c.bf16 %v121, %v102
    %v388 = vpack.c.bf16 %v122, %v103
    %v389 = vpack.c.bf16 %v123, %v104
    %v390 = vpack.c.bf16 %v124, %v105
    %v391 = vpack.c.bf16 %v125, %v106
    %v392 = vpack.c.bf16 %v126, %v107
    %v393 = vpack.c.bf16 %v127, %v108
    %v394 = vpack.c.bf16 %v128, %v109
    %v395 = vpack.c.bf16 %v129, %v110
    %v396 = vpack.c.bf16 %v130, %v111
    %v397 = vpack.c.bf16 %v131, %v112
    %v398 = vpack.c.bf16 %v132, %v113
    %v399 = vpack.c.bf16 %v133, %v114
    %v400 = vpack.c.bf16 %v134, %v115
    %v401 = vpack.c.bf16 %v135, %v116
    %v402 = vpack.c.bf16 %v136, %v117
    %v403 = vpack.c.bf16 %v137, %v118
    %v404 = vpack.c.bf16 %v138, %v119
    %v405 = vpack.c.bf16 %v139, %v120
    %v406 = vpack.c.bf16 %v159, %v140
    %v407 = vpack.c.bf16 %v160, %v141
    %v408 = vpack.c.bf16 %v161, %v142
    %v409 = vpack.c.bf16 %v162, %v143
    %v410 = vpack.c.bf16 %v163, %v144
    %v411 = vpack.c.bf16 %v164, %v145
    %v412 = vpack.c.bf16 %v165, %v146
    %v413 = vpack.c.bf16 %v166, %v147
    %v414 = vpack.c.bf16 %v167, %v148
    %v415 = vpack.c.bf16 %v168, %v149
    %v416 = vpack.c.bf16 %v169, %v150
    %v417 = vpack.c.bf16 %v170, %v151
    %v418 = vpack.c.bf16 %v171, %v152
    %v419 = vpack.c.bf16 %v172, %v153
    %v420 = vpack.c.bf16 %v173, %v154
    %v421 = vpack.c.bf16 %v174, %v155
    %v422 = vpack.c.bf16 %v175, %v156
    %v423 = vpack.c.bf16 %v176, %v157
    %v424 = vpack.c.bf16 %v177, %v158
    %v425 = vpack.c.bf16 %v197, %v178
    %v426 = vpack.c.bf16 %v198, %v179
    %v427 = vpack.c.bf16 %v199, %v180
    %v428 = vpack.c.bf16 %v200, %v181
    %v429 = vpack.c.bf16 %v201, %v182
    %v430 = vpack.c.bf16 %v202, %v183
    %v431 = vpack.c.bf16 %v203, %v184
    %v432 = vpack.c.bf16 %v204, %v185
    %v433 = vpack.c.bf16 %v205, %v186
    %v434 = vpack.c.bf16 %v206, %v187
    %v435 = vpack.c.bf16 %v207, %v188
    %v436 = vpack.c.bf16 %v208, %v189
    %v437 = vpack.c.bf16 %v209, %v190
    %v438 = vpack.c.bf16 %v210, %v191
    %v439 = vpack.c.bf16 %v211, %v192
    %v440 = vpack.c.bf16 %v212, %v193
    %v441 = vpack.c.bf16 %v213, %v194
    %v442 = vpack.c.bf16 %v214, %v195
    %v443 = vpack.c.bf16 %v215, %v196
    %v444 = vpack.c.bf16 %v235, %v216
    %v445 = vpack.c.bf16 %v236, %v217
    %v446 = vpack.c.bf16 %v237, %v218
    %v447 = vpack.c.bf16 %v238, %v219
    %v448 = vpack.c.bf16 %v239, %v220
    %v449 = vpack.c.bf16 %v240, %v221
    %v450 = vpack.c.bf16 %v241, %v222
    %v451 = vpack.c.bf16 %v242, %v223
    %v452 = vpack.c.bf16 %v243, %v224
    %v453 = vpack.c.bf16 %v244, %v225
    %v454 = vpack.c.bf16 %v245, %v226
    %v455 = vpack.c.bf16 %v246, %v227
    %v456 = vpack.c.bf16 %v247, %v228
    %v457 = vpack.c.bf16 %v248, %v229
    %v458 = vpack.c.bf16 %v249, %v230
    %v459 = vpack.c.bf16 %v250, %v231
    %v460 = vpack.c.bf16 %v251, %v232
    %v461 = vpack.c.bf16 %v252, %v233
    %v462 = vpack.c.bf16 %v253, %v234
    %v463 = vpack.c.bf16 %v273, %v254
    %v464 = vpack.c.bf16 %v274, %v255
    %v465 = vpack.c.bf16 %v275, %v256
    %v466 = vpack.c.bf16 %v276, %v257
    %v467 = vpack.c.bf16 %v277, %v258
    %v468 = vpack.c.bf16 %v278, %v259
    %v469 = vpack.c.bf16 %v279, %v260
    %v470 = vpack.c.bf16 %v280, %v261
    %v471 = vpack.c.bf16 %v281, %v262
    %v472 = vpack.c.bf16 %v282, %v263
    %v473 = vpack.c.bf16 %v283, %v264
    %v474 = vpack.c.bf16 %v284, %v265
    %v475 = vpack.c.bf16 %v285, %v266
    %v476 = vpack.c.bf16 %v286, %v267
    %v477 = vpack.c.bf16 %v287, %v268
    %v478 = vpack.c.bf16 %v288, %v269
    %v479 = vpack.c.bf16 %v289, %v270
    %v480 = vpack.c.bf16 %v290, %v271
    %v481 = vpack.c.bf16 %v291, %v272
    %v482 = vpack.c.bf16 %v311, %v292
    %v483 = vpack.c.bf16 %v312, %v293
    %v484 = vpack.c.bf16 %v313, %v294
    %v485 = vpack.c.bf16 %v314, %v295
    %v486 = vpack.c.bf16 %v315, %v296
    %v487 = vpack.c.bf16 %v316, %v297
    %v488 = vpack.c.bf16 %v317, %v298
    %v489 = vpack.c.bf16 %v318, %v299
    %v490 = vpack.c.bf16 %v319, %v300
    %v491 = vpack.c.bf16 %v320, %v301
    %v492 = vpack.c.bf16 %v321, %v302
    %v493 = vpack.c.bf16 %v322, %v303
    %v494 = vpack.c.bf16 %v323, %v304
    %v495 = vpack.c.bf16 %v324, %v305
    %v496 = vpack.c.bf16 %v325, %v306
    %v497 = vpack.c.bf16 %v326, %v307
    %v498 = vpack.c.bf16 %v327, %v308
    %v499 = vpack.c.bf16 %v328, %v309
    %v500 = vpack.c.bf16 %v329, %v310
    %v501 = vpack.c.bf16 %v349, %v330
    %v502 = vpack.c.bf16 %v350, %v331
    %v503 = vpack.c.bf16 %v351, %v332
    %v504 = vpack.c.bf16 %v352, %v333
    %v505 = vpack.c.bf16 %v353, %v334
    %v506 = vpack.c.bf16 %v354, %v335
    %v507 = vpack.c.bf16 %v355, %v336
    %v508 = vpack.c.bf16 %v356, %v337
    %v509 = vpack.c.bf16 %v357, %v338
    %v510 = vpack.c.bf16 %v358, %v339
    %v511 = vpack.c.bf16 %v359, %v340
    %v512 = vpack.c.bf16 %v360, %v341
    %v513 = vpack.c.bf16 %v361, %v342
    %v514 = vpack.c.bf16 %v362, %v343
    %v515 = vpack.c.bf16 %v363, %v344
    %v516 = vpack.c.bf16 %v364, %v345
    %v517 = vpack.c.bf16 %v365, %v346
    %v518 = vpack.c.bf16 %v366, %v347
    %v519 = vpack.c.bf16 %v367, %v348
    %v520 = vld [vmem:[%s2] sm:$0xff]
    %v521 = vld [vmem:[%s2 + $0x8] sm:$0xff]
    %v522 = vld [vmem:[%s2 + $0x10] sm:$0xff]
    %v523 = vld [vmem:[%s2 + $0x18] sm:$0xff]
    %v524 = vld [vmem:[%s2 + $0x20] sm:$0xff]
    %v525 = vld [vmem:[%s2 + $0x28] sm:$0xff]
    %v526 = vld [vmem:[%s2 + $0x30] sm:$0xff]
    %v527 = vld [vmem:[%s2 + $0x38] sm:$0xff]
    %v528 = vld [vmem:[%s2 + $0x40] sm:$0xff]
    %v529 = vld [vmem:[%s2 + $0x48] sm:$0xff]
    %v530 = vld [vmem:[%s2 + $0x50] sm:$0xff]
    %v531 = vld [vmem:[%s2 + $0x58] sm:$0xff]
    %v532 = vld [vmem:[%s2 + $0x60] sm:$0xff]
    %v533 = vld [vmem:[%s2 + $0x68] sm:$0xff]
    %v534 = vld [vmem:[%s2 + $0x70] sm:$0xff]
    %v535 = vld [vmem:[%s2 + $0x78] sm:$0xff]
    %v536 = vld [vmem:[%s2 + $0x80] sm:$0xff]
    %v537 = vld [vmem:[%s2 + $0x88] sm:$0xff]
    %v538 = vld [vmem:[%s2 + $0x90] sm:$0xff]
    %v539 = vld [vmem:[%s2 + $0x98] sm:$0xff]
    %v540 = vld [vmem:[%s2 + $0xa0] sm:$0xff]
    %v541 = vld [vmem:[%s2 + $0xa8] sm:$0xff]
    %v542 = vld [vmem:[%s2 + $0xb0] sm:$0xff]
    %v543 = vld [vmem:[%s2 + $0xb8] sm:$0xff]
    %v544 = vld [vmem:[%s2 + $0xc0] sm:$0xff]
    %v545 = vld [vmem:[%s2 + $0xc8] sm:$0xff]
    %v546 = vld [vmem:[%s2 + $0xd0] sm:$0xff]
    %v547 = vld [vmem:[%s2 + $0xd8] sm:$0xff]
    %v548 = vld [vmem:[%s2 + $0xe0] sm:$0xff]
    %v549 = vld [vmem:[%s2 + $0xe8] sm:$0xff]
    %v550 = vld [vmem:[%s2 + $0xf0] sm:$0xff]
    %v551 = vld [vmem:[%s2 + $0xf8] sm:$0xff]
    %v552 = vld [vmem:[%s2 + $0x100] sm:$0xff]
    %v553 = vld [vmem:[%s2 + $0x108] sm:$0xff]
    %v554 = vld [vmem:[%s2 + $0x110] sm:$0xff]
    %v555 = vld [vmem:[%s2 + $0x118] sm:$0xff]
    %v556 = vld [vmem:[%s2 + $0x120] sm:$0xff]
    %v557 = vld [vmem:[%s2 + $0x128] sm:$0xff]
    %v558 = vld [vmem:[%s2 + $0x130] sm:$0xff]
    %v559 = vld [vmem:[%s2 + $0x138] sm:$0xff]
    %v560 = vld [vmem:[%s2 + $0x140] sm:$0xff]
    %v561 = vld [vmem:[%s2 + $0x148] sm:$0xff]
    %v562 = vld [vmem:[%s2 + $0x150] sm:$0xff]
    %v563 = vld [vmem:[%s2 + $0x158] sm:$0xff]
    %v564 = vld [vmem:[%s2 + $0x160] sm:$0xff]
    %v565 = vld [vmem:[%s2 + $0x168] sm:$0xff]
    %v566 = vld [vmem:[%s2 + $0x170] sm:$0xff]
    %v567 = vld [vmem:[%s2 + $0x178] sm:$0xff]
    %v568 = vld [vmem:[%s2 + $0x180] sm:$0xff]
    %v569 = vld [vmem:[%s2 + $0x188] sm:$0xff]
    %v570 = vld [vmem:[%s2 + $0x190] sm:$0xff]
    %v571 = vld [vmem:[%s2 + $0x198] sm:$0xff]
    %v572 = vld [vmem:[%s2 + $0x1a0] sm:$0xff]
    %v573 = vld [vmem:[%s2 + $0x1a8] sm:$0xff]
    %v574 = vld [vmem:[%s2 + $0x1b0] sm:$0xff]
    %v575 = vld [vmem:[%s2 + $0x1b8] sm:$0xff]
    %v576 = vld [vmem:[%s2 + $0x1c0] sm:$0xff]
    %v577 = vld [vmem:[%s2 + $0x1c8] sm:$0xff]
    %v578 = vld [vmem:[%s2 + $0x1d0] sm:$0xff]
    %v579 = vld [vmem:[%s2 + $0x1d8] sm:$0xff]
    %v580 = vld [vmem:[%s2 + $0x1e0] sm:$0xff]
    %v581 = vld [vmem:[%s2 + $0x1e8] sm:$0xff]
    %v582 = vld [vmem:[%s2 + $0x1f0] sm:$0xff]
    %v583 = vld [vmem:[%s2 + $0x1f8] sm:$0xff]
    %v584 = vld [vmem:[%s2 + $0x200] sm:$0xff]
    %v585 = vld [vmem:[%s2 + $0x208] sm:$0xff]
    %v586 = vld [vmem:[%s2 + $0x210] sm:$0xff]
    %v587 = vld [vmem:[%s2 + $0x218] sm:$0xff]
    %v588 = vld [vmem:[%s2 + $0x220] sm:$0xff]
    %v589 = vld [vmem:[%s2 + $0x228] sm:$0xff]
    %v590 = vld [vmem:[%s2 + $0x230] sm:$0xff]
    %v591 = vld [vmem:[%s2 + $0x238] sm:$0xff]
    %v592 = vld [vmem:[%s2 + $0x240] sm:$0xff]
    %v593 = vld [vmem:[%s2 + $0x248] sm:$0xff]
    %v594 = vld [vmem:[%s2 + $0x250] sm:$0xff]
    %v595 = vld [vmem:[%s2 + $0x258] sm:$0xff]
    %v596 = vld [vmem:[%s2 + $0x260] sm:$0xff]
    %v597 = vld [vmem:[%s2 + $0x268] sm:$0xff]
    %v598 = vld [vmem:[%s2 + $0x270] sm:$0xff]
    %v599 = vld [vmem:[%s2 + $0x278] sm:$0xff]
    %v600 = vld [vmem:[%s2 + $0x280] sm:$0xff]
    %v601 = vld [vmem:[%s2 + $0x288] sm:$0xff]
    %v602 = vld [vmem:[%s2 + $0x290] sm:$0xff]
    %v603 = vld [vmem:[%s2 + $0x298] sm:$0xff]
    %v604 = vld [vmem:[%s2 + $0x2a0] sm:$0xff]
    %v605 = vld [vmem:[%s2 + $0x2a8] sm:$0xff]
    %v606 = vld [vmem:[%s2 + $0x2b0] sm:$0xff]
    %v607 = vld [vmem:[%s2 + $0x2b8] sm:$0xff]
    %v608 = vld [vmem:[%s2 + $0x2c0] sm:$0xff]
    %v609 = vld [vmem:[%s2 + $0x2c8] sm:$0xff]
    %v610 = vld [vmem:[%s2 + $0x2d0] sm:$0xff]
    %v611 = vld [vmem:[%s2 + $0x2d8] sm:$0xff]
    %v612 = vld [vmem:[%s2 + $0x2e0] sm:$0xff]
    %v613 = vld [vmem:[%s2 + $0x2e8] sm:$0xff]
    %v614 = vld [vmem:[%s2 + $0x2f0] sm:$0xff]
    %v615 = vld [vmem:[%s2 + $0x2f8] sm:$0xff]
    %v616 = vld [vmem:[%s2 + $0x300] sm:$0xff]
    %v617 = vld [vmem:[%s2 + $0x308] sm:$0xff]
    %v618 = vld [vmem:[%s2 + $0x310] sm:$0xff]
    %v619 = vld [vmem:[%s2 + $0x318] sm:$0xff]
    %v620 = vld [vmem:[%s2 + $0x320] sm:$0xff]
    %v621 = vld [vmem:[%s2 + $0x328] sm:$0xff]
    %v622 = vld [vmem:[%s2 + $0x330] sm:$0xff]
    %v623 = vld [vmem:[%s2 + $0x338] sm:$0xff]
    %v624 = vld [vmem:[%s2 + $0x340] sm:$0xff]
    %v625 = vld [vmem:[%s2 + $0x348] sm:$0xff]
    %v626 = vld [vmem:[%s2 + $0x350] sm:$0xff]
    %v627 = vld [vmem:[%s2 + $0x358] sm:$0xff]
    %v628 = vld [vmem:[%s2 + $0x360] sm:$0xff]
    %v629 = vld [vmem:[%s2 + $0x368] sm:$0xff]
    %v630 = vld [vmem:[%s2 + $0x370] sm:$0xff]
    %v631 = vld [vmem:[%s2 + $0x378] sm:$0xff]
    %v632 = vld [vmem:[%s2 + $0x380] sm:$0xff]
    %v633 = vld [vmem:[%s2 + $0x388] sm:$0xff]
    %v634 = vld [vmem:[%s2 + $0x390] sm:$0xff]
    %v635 = vld [vmem:[%s2 + $0x398] sm:$0xff]
    %v636 = vld [vmem:[%s2 + $0x3a0] sm:$0xff]
    %v637 = vld [vmem:[%s2 + $0x3a8] sm:$0xff]
    %v638 = vld [vmem:[%s2 + $0x3b0] sm:$0xff]
    %v639 = vld [vmem:[%s2 + $0x3b8] sm:$0xff]
    %v640 = vld [vmem:[%s2 + $0x3c0] sm:$0xff]
    %v641 = vld [vmem:[%s2 + $0x3c8] sm:$0xff]
    %v642 = vld [vmem:[%s2 + $0x3d0] sm:$0xff]
    %v643 = vld [vmem:[%s2 + $0x3d8] sm:$0xff]
    %v644 = vld [vmem:[%s2 + $0x3e0] sm:$0xff]
    %v645 = vld [vmem:[%s2 + $0x3e8] sm:$0xff]
    %v646 = vld [vmem:[%s2 + $0x3f0] sm:$0xff]
    %v647 = vld [vmem:[%s2 + $0x3f8] sm:$0xff]
    %v648 = vld [vmem:[%s2 + $0x400] sm:$0xff]
    %v649 = vld [vmem:[%s2 + $0x408] sm:$0xff]
    %v650 = vld [vmem:[%s2 + $0x410] sm:$0xff]
    %v651 = vld [vmem:[%s2 + $0x418] sm:$0xff]
    %v652 = vld [vmem:[%s2 + $0x420] sm:$0xff]
    %v653 = vld [vmem:[%s2 + $0x428] sm:$0xff]
    %v654 = vld [vmem:[%s2 + $0x430] sm:$0xff]
    %v655 = vld [vmem:[%s2 + $0x438] sm:$0xff]
    %v656 = vld [vmem:[%s2 + $0x440] sm:$0xff]
    %v657 = vld [vmem:[%s2 + $0x448] sm:$0xff]
    %v658 = vld [vmem:[%s2 + $0x450] sm:$0xff]
    %v659 = vld [vmem:[%s2 + $0x458] sm:$0xff]
    %v660 = vld [vmem:[%s2 + $0x460] sm:$0xff]
    %v661 = vld [vmem:[%s2 + $0x468] sm:$0xff]
    %v662 = vld [vmem:[%s2 + $0x470] sm:$0xff]
    %v663 = vld [vmem:[%s2 + $0x478] sm:$0xff]
    %v664 = vld [vmem:[%s2 + $0x480] sm:$0xff]
    %v665 = vld [vmem:[%s2 + $0x488] sm:$0xff]
    %v666 = vld [vmem:[%s2 + $0x490] sm:$0xff]
    %v667 = vld [vmem:[%s2 + $0x498] sm:$0xff]
    %v668 = vld [vmem:[%s2 + $0x4a0] sm:$0xff]
    %v669 = vld [vmem:[%s2 + $0x4a8] sm:$0xff]
    %v670 = vld [vmem:[%s2 + $0x4b0] sm:$0xff]
    %v671 = vld [vmem:[%s2 + $0x4b8] sm:$0xff]
    %v672 = vld [vmem:[%s2 + $0x4c0] sm:$0xff]
    %v673 = vld [vmem:[%s2 + $0x4c8] sm:$0xff]
    %v674 = vld [vmem:[%s2 + $0x4d0] sm:$0xff]
    %v675 = vld [vmem:[%s2 + $0x4d8] sm:$0xff]
    %v676 = vld [vmem:[%s2 + $0x4e0] sm:$0xff]
    %v677 = vld [vmem:[%s2 + $0x4e8] sm:$0xff]
    %v678 = vld [vmem:[%s2 + $0x4f0] sm:$0xff]
    %v679 = vld [vmem:[%s2 + $0x4f8] sm:$0xff]
    %v680 = vld [vmem:[%s2 + $0x500] sm:$0xff]
    %v681 = vld [vmem:[%s2 + $0x508] sm:$0xff]
    %v682 = vld [vmem:[%s2 + $0x510] sm:$0xff]
    %v683 = vld [vmem:[%s2 + $0x518] sm:$0xff]
    %v684 = vld [vmem:[%s2 + $0x520] sm:$0xff]
    %v685 = vld [vmem:[%s2 + $0x528] sm:$0xff]
    %v686 = vld [vmem:[%s2 + $0x530] sm:$0xff]
    %v687 = vld [vmem:[%s2 + $0x538] sm:$0xff]
    %v688 = vld [vmem:[%s2 + $0x540] sm:$0xff]
    %v689 = vld [vmem:[%s2 + $0x548] sm:$0xff]
    %v690 = vld [vmem:[%s2 + $0x550] sm:$0xff]
    %v691 = vld [vmem:[%s2 + $0x558] sm:$0xff]
    %v692 = vld [vmem:[%s2 + $0x560] sm:$0xff]
    %v693 = vld [vmem:[%s2 + $0x568] sm:$0xff]
    %v694 = vld [vmem:[%s2 + $0x570] sm:$0xff]
    %v695 = vld [vmem:[%s2 + $0x578] sm:$0xff]
    %v696 = vld [vmem:[%s2 + $0x580] sm:$0xff]
    %v697 = vld [vmem:[%s2 + $0x588] sm:$0xff]
    %v698 = vld [vmem:[%s2 + $0x590] sm:$0xff]
    %v699 = vld [vmem:[%s2 + $0x598] sm:$0xff]
    %v700 = vld [vmem:[%s2 + $0x5a0] sm:$0xff]
    %v701 = vld [vmem:[%s2 + $0x5a8] sm:$0xff]
    %v702 = vld [vmem:[%s2 + $0x5b0] sm:$0xff]
    %v703 = vld [vmem:[%s2 + $0x5b8] sm:$0xff]
    %v704 = vld [vmem:[%s2 + $0x5c0] sm:$0xff]
    %v705 = vld [vmem:[%s2 + $0x5c8] sm:$0xff]
    %v706 = vld [vmem:[%s2 + $0x5d0] sm:$0xff]
    %v707 = vld [vmem:[%s2 + $0x5d8] sm:$0xff]
    %v708 = vld [vmem:[%s2 + $0x5e0] sm:$0xff]
    %v709 = vld [vmem:[%s2 + $0x5e8] sm:$0xff]
    %v710 = vld [vmem:[%s2 + $0x5f0] sm:$0xff]
    %v711 = vld [vmem:[%s2 + $0x5f8] sm:$0xff]
    %v712 = vld [vmem:[%s2 + $0x600] sm:$0xff]
    %v713 = vld [vmem:[%s2 + $0x608] sm:$0xff]
    %v714 = vld [vmem:[%s2 + $0x610] sm:$0xff]
    %v715 = vld [vmem:[%s2 + $0x618] sm:$0xff]
    %v716 = vld [vmem:[%s2 + $0x620] sm:$0xff]
    %v717 = vld [vmem:[%s2 + $0x628] sm:$0xff]
    %v718 = vld [vmem:[%s2 + $0x630] sm:$0xff]
    %v719 = vld [vmem:[%s2 + $0x638] sm:$0xff]
    %v720 = vld [vmem:[%s2 + $0x640] sm:$0xff]
    %v721 = vld [vmem:[%s2 + $0x648] sm:$0xff]
    %v722 = vld [vmem:[%s2 + $0x650] sm:$0xff]
    %v723 = vld [vmem:[%s2 + $0x658] sm:$0xff]
    %v724 = vld [vmem:[%s2 + $0x660] sm:$0xff]
    %v725 = vld [vmem:[%s2 + $0x668] sm:$0xff]
    %v726 = vld [vmem:[%s2 + $0x670] sm:$0xff]
    %v727 = vld [vmem:[%s2 + $0x678] sm:$0xff]
    %v728 = vld [vmem:[%s2 + $0x680] sm:$0xff]
    %v729 = vld [vmem:[%s2 + $0x688] sm:$0xff]
    %v730 = vld [vmem:[%s2 + $0x690] sm:$0xff]
    %v731 = vld [vmem:[%s2 + $0x698] sm:$0xff]
    %v732 = vld [vmem:[%s2 + $0x6a0] sm:$0xff]
    %v733 = vld [vmem:[%s2 + $0x6a8] sm:$0xff]
    %v734 = vld [vmem:[%s2 + $0x6b0] sm:$0xff]
    %v735 = vld [vmem:[%s2 + $0x6b8] sm:$0xff]
    %v736 = vld [vmem:[%s2 + $0x6c0] sm:$0xff]
    %v737 = vld [vmem:[%s2 + $0x6c8] sm:$0xff]
    %v738 = vld [vmem:[%s2 + $0x6d0] sm:$0xff]
    %v739 = vld [vmem:[%s2 + $0x6d8] sm:$0xff]
    %v740 = vld [vmem:[%s2 + $0x6e0] sm:$0xff]
    %v741 = vld [vmem:[%s2 + $0x6e8] sm:$0xff]
    %v742 = vld [vmem:[%s2 + $0x6f0] sm:$0xff]
    %v743 = vld [vmem:[%s2 + $0x6f8] sm:$0xff]
    %v744 = vld [vmem:[%s2 + $0x700] sm:$0xff]
    %v745 = vld [vmem:[%s2 + $0x708] sm:$0xff]
    %v746 = vld [vmem:[%s2 + $0x710] sm:$0xff]
    %v747 = vld [vmem:[%s2 + $0x718] sm:$0xff]
    %v748 = vld [vmem:[%s2 + $0x720] sm:$0xff]
    %v749 = vld [vmem:[%s2 + $0x728] sm:$0xff]
    %v750 = vld [vmem:[%s2 + $0x730] sm:$0xff]
    %v751 = vld [vmem:[%s2 + $0x738] sm:$0xff]
    %v752 = vld [vmem:[%s2 + $0x740] sm:$0xff]
    %v753 = vld [vmem:[%s2 + $0x748] sm:$0xff]
    %v754 = vld [vmem:[%s2 + $0x750] sm:$0xff]
    %v755 = vld [vmem:[%s2 + $0x758] sm:$0xff]
    %v756 = vld [vmem:[%s2 + $0x760] sm:$0xff]
    %v757 = vld [vmem:[%s2 + $0x768] sm:$0xff]
    %v758 = vld [vmem:[%s2 + $0x770] sm:$0xff]
    %v759 = vld [vmem:[%s2 + $0x778] sm:$0xff]
    %v760 = vld [vmem:[%s2 + $0x780] sm:$0xff]
    %v761 = vld [vmem:[%s2 + $0x788] sm:$0xff]
    %v762 = vld [vmem:[%s2 + $0x790] sm:$0xff]
    %v763 = vld [vmem:[%s2 + $0x798] sm:$0xff]
    %v764 = vld [vmem:[%s2 + $0x7a0] sm:$0xff]
    %v765 = vld [vmem:[%s2 + $0x7a8] sm:$0xff]
    %v766 = vld [vmem:[%s2 + $0x7b0] sm:$0xff]
    %v767 = vld [vmem:[%s2 + $0x7b8] sm:$0xff]
    %v768 = vld [vmem:[%s2 + $0x7c0] sm:$0xff]
    %v769 = vld [vmem:[%s2 + $0x7c8] sm:$0xff]
    %v770 = vld [vmem:[%s2 + $0x7d0] sm:$0xff]
    %v771 = vld [vmem:[%s2 + $0x7d8] sm:$0xff]
    %v772 = vld [vmem:[%s2 + $0x7e0] sm:$0xff]
    %v773 = vld [vmem:[%s2 + $0x7e8] sm:$0xff]
    %v774 = vld [vmem:[%s2 + $0x7f0] sm:$0xff]
    %v775 = vld [vmem:[%s2 + $0x7f8] sm:$0xff]
    %v776 = vld [vmem:[%s2 + $0x800] sm:$0xff]
    %v777 = vld [vmem:[%s2 + $0x808] sm:$0xff]
    %v778 = vld [vmem:[%s2 + $0x810] sm:$0xff]
    %v779 = vld [vmem:[%s2 + $0x818] sm:$0xff]
    %v780 = vld [vmem:[%s2 + $0x820] sm:$0xff]
    %v781 = vld [vmem:[%s2 + $0x828] sm:$0xff]
    %v782 = vld [vmem:[%s2 + $0x830] sm:$0xff]
    %v783 = vld [vmem:[%s2 + $0x838] sm:$0xff]
    %v784 = vld [vmem:[%s2 + $0x840] sm:$0xff]
    %v785 = vld [vmem:[%s2 + $0x848] sm:$0xff]
    %v786 = vld [vmem:[%s2 + $0x850] sm:$0xff]
    %v787 = vld [vmem:[%s2 + $0x858] sm:$0xff]
    %v788 = vld [vmem:[%s2 + $0x860] sm:$0xff]
    %v789 = vld [vmem:[%s2 + $0x868] sm:$0xff]
    %v790 = vld [vmem:[%s2 + $0x870] sm:$0xff]
    %v791 = vld [vmem:[%s2 + $0x878] sm:$0xff]
    %v792 = vld [vmem:[%s2 + $0x880] sm:$0xff]
    %v793 = vld [vmem:[%s2 + $0x888] sm:$0xff]
    %v794 = vld [vmem:[%s2 + $0x890] sm:$0xff]
    %v795 = vld [vmem:[%s2 + $0x898] sm:$0xff]
    %v796 = vld [vmem:[%s2 + $0x8a0] sm:$0xff]
    %v797 = vld [vmem:[%s2 + $0x8a8] sm:$0xff]
    %v798 = vld [vmem:[%s2 + $0x8b0] sm:$0xff]
    %v799 = vld [vmem:[%s2 + $0x8b8] sm:$0xff]
    %v800 = vld [vmem:[%s2 + $0x8c0] sm:$0xff]
    %v801 = vld [vmem:[%s2 + $0x8c8] sm:$0xff]
    %v802 = vld [vmem:[%s2 + $0x8d0] sm:$0xff]
    %v803 = vld [vmem:[%s2 + $0x8d8] sm:$0xff]
    %v804 = vld [vmem:[%s2 + $0x8e0] sm:$0xff]
    %v805 = vld [vmem:[%s2 + $0x8e8] sm:$0xff]
    %v806 = vld [vmem:[%s2 + $0x8f0] sm:$0xff]
    %v807 = vld [vmem:[%s2 + $0x8f8] sm:$0xff]
    %v808 = vld [vmem:[%s2 + $0x900] sm:$0xff]
    %v809 = vld [vmem:[%s2 + $0x908] sm:$0xff]
    %v810 = vld [vmem:[%s2 + $0x910] sm:$0xff]
    %v811 = vld [vmem:[%s2 + $0x918] sm:$0xff]
    %v812 = vld [vmem:[%s2 + $0x920] sm:$0xff]
    %v813 = vld [vmem:[%s2 + $0x928] sm:$0xff]
    %v814 = vld [vmem:[%s2 + $0x930] sm:$0xff]
    %v815 = vld [vmem:[%s2 + $0x938] sm:$0xff]
    %v816 = vld [vmem:[%s2 + $0x940] sm:$0xff]
    %v817 = vld [vmem:[%s2 + $0x948] sm:$0xff]
    %v818 = vld [vmem:[%s2 + $0x950] sm:$0xff]
    %v819 = vld [vmem:[%s2 + $0x958] sm:$0xff]
    %v820 = vld [vmem:[%s2 + $0x960] sm:$0xff]
    %v821 = vld [vmem:[%s2 + $0x968] sm:$0xff]
    %v822 = vld [vmem:[%s2 + $0x970] sm:$0xff]
    %v823 = vld [vmem:[%s2 + $0x978] sm:$0xff]
    %v824 = vld [vmem:[%s3] sm:$0x3]
    %v826 = vlaneseq
    %v827 = vshrl.u32 %v826, 7
    %v828 = vsub.s32 0, %v827
    %v829 = vrot.slane %v824, %v828
    %v830 = vlaneseq
    %v831 = vshrl.u32 %v830, 7
    %v832 = vsub.s32 1, %v831
    %v833 = vrot.slane %v824, %v832
    %v1140 = vunpack.c.l.b16 %v520
    %v1141 = vunpack.c.h.b16 %v520
    %v1142 = vunpack.c.l.b16 %v521
    %v1143 = vunpack.c.h.b16 %v521
    %v1144 = vunpack.c.l.b16 %v522
    %v1145 = vunpack.c.h.b16 %v522
    %v1146 = vunpack.c.l.b16 %v523
    %v1147 = vunpack.c.h.b16 %v523
    %v1148 = vunpack.c.l.b16 %v524
    %v1149 = vunpack.c.h.b16 %v524
    %v1150 = vunpack.c.l.b16 %v525
    %v1151 = vunpack.c.h.b16 %v525
    %v1152 = vunpack.c.l.b16 %v526
    %v1153 = vunpack.c.h.b16 %v526
    %v1154 = vunpack.c.l.b16 %v527
    %v1155 = vunpack.c.h.b16 %v527
    %v1156 = vunpack.c.l.b16 %v528
    %v1157 = vunpack.c.h.b16 %v528
    %v1158 = vunpack.c.l.b16 %v529
    %v1159 = vunpack.c.h.b16 %v529
    %v1160 = vunpack.c.l.b16 %v530
    %v1161 = vunpack.c.h.b16 %v530
    %v1162 = vunpack.c.l.b16 %v531
    %v1163 = vunpack.c.h.b16 %v531
    %v1164 = vunpack.c.l.b16 %v532
    %v1165 = vunpack.c.h.b16 %v532
    %v1166 = vunpack.c.l.b16 %v533
    %v1167 = vunpack.c.h.b16 %v533
    %v1168 = vunpack.c.l.b16 %v534
    %v1169 = vunpack.c.h.b16 %v534
    %v1170 = vunpack.c.l.b16 %v535
    %v1171 = vunpack.c.h.b16 %v535
    %v1172 = vunpack.c.l.b16 %v536
    %v1173 = vunpack.c.h.b16 %v536
    %v1174 = vunpack.c.l.b16 %v537
    %v1175 = vunpack.c.h.b16 %v537
    %v1176 = vunpack.c.l.b16 %v538
    %v1177 = vunpack.c.h.b16 %v538
    %v1178 = vunpack.c.l.b16 %v539
    %v1179 = vunpack.c.h.b16 %v539
    %v1180 = vunpack.c.l.b16 %v540
    %v1181 = vunpack.c.h.b16 %v540
    %v1182 = vunpack.c.l.b16 %v541
    %v1183 = vunpack.c.h.b16 %v541
    %v1184 = vunpack.c.l.b16 %v542
    %v1185 = vunpack.c.h.b16 %v542
    %v1186 = vunpack.c.l.b16 %v543
    %v1187 = vunpack.c.h.b16 %v543
    %v1188 = vunpack.c.l.b16 %v544
    %v1189 = vunpack.c.h.b16 %v544
    %v1190 = vunpack.c.l.b16 %v545
    %v1191 = vunpack.c.h.b16 %v545
    %v1192 = vunpack.c.l.b16 %v546
    %v1193 = vunpack.c.h.b16 %v546
    %v1194 = vunpack.c.l.b16 %v547
    %v1195 = vunpack.c.h.b16 %v547
    %v1196 = vunpack.c.l.b16 %v548
    %v1197 = vunpack.c.h.b16 %v548
    %v1198 = vunpack.c.l.b16 %v549
    %v1199 = vunpack.c.h.b16 %v549
    %v1200 = vunpack.c.l.b16 %v550
    %v1201 = vunpack.c.h.b16 %v550
    %v1202 = vunpack.c.l.b16 %v551
    %v1203 = vunpack.c.h.b16 %v551
    %v1204 = vunpack.c.l.b16 %v552
    %v1205 = vunpack.c.h.b16 %v552
    %v1206 = vunpack.c.l.b16 %v553
    %v1207 = vunpack.c.h.b16 %v553
    %v1208 = vunpack.c.l.b16 %v554
    %v1209 = vunpack.c.h.b16 %v554
    %v1210 = vunpack.c.l.b16 %v555
    %v1211 = vunpack.c.h.b16 %v555
    %v1212 = vunpack.c.l.b16 %v556
    %v1213 = vunpack.c.h.b16 %v556
    %v1214 = vunpack.c.l.b16 %v557
    %v1215 = vunpack.c.h.b16 %v557
    %v1216 = vunpack.c.l.b16 %v558
    %v1217 = vunpack.c.h.b16 %v558
    %v1218 = vunpack.c.l.b16 %v559
    %v1219 = vunpack.c.h.b16 %v559
    %v1220 = vunpack.c.l.b16 %v560
    %v1221 = vunpack.c.h.b16 %v560
    %v1222 = vunpack.c.l.b16 %v561
    %v1223 = vunpack.c.h.b16 %v561
    %v1224 = vunpack.c.l.b16 %v562
    %v1225 = vunpack.c.h.b16 %v562
    %v1226 = vunpack.c.l.b16 %v563
    %v1227 = vunpack.c.h.b16 %v563
    %v1228 = vunpack.c.l.b16 %v564
    %v1229 = vunpack.c.h.b16 %v564
    %v1230 = vunpack.c.l.b16 %v565
    %v1231 = vunpack.c.h.b16 %v565
    %v1232 = vunpack.c.l.b16 %v566
    %v1233 = vunpack.c.h.b16 %v566
    %v1234 = vunpack.c.l.b16 %v567
    %v1235 = vunpack.c.h.b16 %v567
    %v1236 = vunpack.c.l.b16 %v568
    %v1237 = vunpack.c.h.b16 %v568
    %v1238 = vunpack.c.l.b16 %v569
    %v1239 = vunpack.c.h.b16 %v569
    %v1240 = vunpack.c.l.b16 %v570
    %v1241 = vunpack.c.h.b16 %v570
    %v1242 = vunpack.c.l.b16 %v571
    %v1243 = vunpack.c.h.b16 %v571
    %v1244 = vunpack.c.l.b16 %v572
    %v1245 = vunpack.c.h.b16 %v572
    %v1246 = vunpack.c.l.b16 %v573
    %v1247 = vunpack.c.h.b16 %v573
    %v1248 = vunpack.c.l.b16 %v574
    %v1249 = vunpack.c.h.b16 %v574
    %v1250 = vunpack.c.l.b16 %v575
    %v1251 = vunpack.c.h.b16 %v575
    %v1252 = vunpack.c.l.b16 %v576
    %v1253 = vunpack.c.h.b16 %v576
    %v1254 = vunpack.c.l.b16 %v577
    %v1255 = vunpack.c.h.b16 %v577
    %v1256 = vunpack.c.l.b16 %v578
    %v1257 = vunpack.c.h.b16 %v578
    %v1258 = vunpack.c.l.b16 %v579
    %v1259 = vunpack.c.h.b16 %v579
    %v1260 = vunpack.c.l.b16 %v580
    %v1261 = vunpack.c.h.b16 %v580
    %v1262 = vunpack.c.l.b16 %v581
    %v1263 = vunpack.c.h.b16 %v581
    %v1264 = vunpack.c.l.b16 %v582
    %v1265 = vunpack.c.h.b16 %v582
    %v1266 = vunpack.c.l.b16 %v583
    %v1267 = vunpack.c.h.b16 %v583
    %v1268 = vunpack.c.l.b16 %v584
    %v1269 = vunpack.c.h.b16 %v584
    %v1270 = vunpack.c.l.b16 %v585
    %v1271 = vunpack.c.h.b16 %v585
    %v1272 = vunpack.c.l.b16 %v586
    %v1273 = vunpack.c.h.b16 %v586
    %v1274 = vunpack.c.l.b16 %v587
    %v1275 = vunpack.c.h.b16 %v587
    %v1276 = vunpack.c.l.b16 %v588
    %v1277 = vunpack.c.h.b16 %v588
    %v1278 = vunpack.c.l.b16 %v589
    %v1279 = vunpack.c.h.b16 %v589
    %v1280 = vunpack.c.l.b16 %v590
    %v1281 = vunpack.c.h.b16 %v590
    %v1282 = vunpack.c.l.b16 %v591
    %v1283 = vunpack.c.h.b16 %v591
    %v1284 = vunpack.c.l.b16 %v592
    %v1285 = vunpack.c.h.b16 %v592
    %v1286 = vunpack.c.l.b16 %v593
    %v1287 = vunpack.c.h.b16 %v593
    %v1288 = vunpack.c.l.b16 %v594
    %v1289 = vunpack.c.h.b16 %v594
    %v1290 = vunpack.c.l.b16 %v595
    %v1291 = vunpack.c.h.b16 %v595
    %v1292 = vunpack.c.l.b16 %v596
    %v1293 = vunpack.c.h.b16 %v596
    %v1294 = vunpack.c.l.b16 %v597
    %v1295 = vunpack.c.h.b16 %v597
    %v1296 = vunpack.c.l.b16 %v598
    %v1297 = vunpack.c.h.b16 %v598
    %v1298 = vunpack.c.l.b16 %v599
    %v1299 = vunpack.c.h.b16 %v599
    %v1300 = vunpack.c.l.b16 %v600
    %v1301 = vunpack.c.h.b16 %v600
    %v1302 = vunpack.c.l.b16 %v601
    %v1303 = vunpack.c.h.b16 %v601
    %v1304 = vunpack.c.l.b16 %v602
    %v1305 = vunpack.c.h.b16 %v602
    %v1306 = vunpack.c.l.b16 %v603
    %v1307 = vunpack.c.h.b16 %v603
    %v1308 = vunpack.c.l.b16 %v604
    %v1309 = vunpack.c.h.b16 %v604
    %v1310 = vunpack.c.l.b16 %v605
    %v1311 = vunpack.c.h.b16 %v605
    %v1312 = vunpack.c.l.b16 %v606
    %v1313 = vunpack.c.h.b16 %v606
    %v1314 = vunpack.c.l.b16 %v607
    %v1315 = vunpack.c.h.b16 %v607
    %v1316 = vunpack.c.l.b16 %v608
    %v1317 = vunpack.c.h.b16 %v608
    %v1318 = vunpack.c.l.b16 %v609
    %v1319 = vunpack.c.h.b16 %v609
    %v1320 = vunpack.c.l.b16 %v610
    %v1321 = vunpack.c.h.b16 %v610
    %v1322 = vunpack.c.l.b16 %v611
    %v1323 = vunpack.c.h.b16 %v611
    %v1324 = vunpack.c.l.b16 %v612
    %v1325 = vunpack.c.h.b16 %v612
    %v1326 = vunpack.c.l.b16 %v613
    %v1327 = vunpack.c.h.b16 %v613
    %v1328 = vunpack.c.l.b16 %v614
    %v1329 = vunpack.c.h.b16 %v614
    %v1330 = vunpack.c.l.b16 %v615
    %v1331 = vunpack.c.h.b16 %v615
    %v1332 = vunpack.c.l.b16 %v616
    %v1333 = vunpack.c.h.b16 %v616
    %v1334 = vunpack.c.l.b16 %v617
    %v1335 = vunpack.c.h.b16 %v617
    %v1336 = vunpack.c.l.b16 %v618
    %v1337 = vunpack.c.h.b16 %v618
    %v1338 = vunpack.c.l.b16 %v619
    %v1339 = vunpack.c.h.b16 %v619
    %v1340 = vunpack.c.l.b16 %v620
    %v1341 = vunpack.c.h.b16 %v620
    %v1342 = vunpack.c.l.b16 %v621
    %v1343 = vunpack.c.h.b16 %v621
    %v1344 = vunpack.c.l.b16 %v622
    %v1345 = vunpack.c.h.b16 %v622
    %v1346 = vunpack.c.l.b16 %v623
    %v1347 = vunpack.c.h.b16 %v623
    %v1348 = vunpack.c.l.b16 %v624
    %v1349 = vunpack.c.h.b16 %v624
    %v1350 = vunpack.c.l.b16 %v625
    %v1351 = vunpack.c.h.b16 %v625
    %v1352 = vunpack.c.l.b16 %v626
    %v1353 = vunpack.c.h.b16 %v626
    %v1354 = vunpack.c.l.b16 %v627
    %v1355 = vunpack.c.h.b16 %v627
    %v1356 = vunpack.c.l.b16 %v628
    %v1357 = vunpack.c.h.b16 %v628
    %v1358 = vunpack.c.l.b16 %v629
    %v1359 = vunpack.c.h.b16 %v629
    %v1360 = vunpack.c.l.b16 %v630
    %v1361 = vunpack.c.h.b16 %v630
    %v1362 = vunpack.c.l.b16 %v631
    %v1363 = vunpack.c.h.b16 %v631
    %v1364 = vunpack.c.l.b16 %v632
    %v1365 = vunpack.c.h.b16 %v632
    %v1366 = vunpack.c.l.b16 %v633
    %v1367 = vunpack.c.h.b16 %v633
    %v1368 = vunpack.c.l.b16 %v634
    %v1369 = vunpack.c.h.b16 %v634
    %v1370 = vunpack.c.l.b16 %v635
    %v1371 = vunpack.c.h.b16 %v635
    %v1372 = vunpack.c.l.b16 %v636
    %v1373 = vunpack.c.h.b16 %v636
    %v1374 = vunpack.c.l.b16 %v637
    %v1375 = vunpack.c.h.b16 %v637
    %v1376 = vunpack.c.l.b16 %v638
    %v1377 = vunpack.c.h.b16 %v638
    %v1378 = vunpack.c.l.b16 %v639
    %v1379 = vunpack.c.h.b16 %v639
    %v1380 = vunpack.c.l.b16 %v640
    %v1381 = vunpack.c.h.b16 %v640
    %v1382 = vunpack.c.l.b16 %v641
    %v1383 = vunpack.c.h.b16 %v641
    %v1384 = vunpack.c.l.b16 %v642
    %v1385 = vunpack.c.h.b16 %v642
    %v1386 = vunpack.c.l.b16 %v643
    %v1387 = vunpack.c.h.b16 %v643
    %v1388 = vunpack.c.l.b16 %v644
    %v1389 = vunpack.c.h.b16 %v644
    %v1390 = vunpack.c.l.b16 %v645
    %v1391 = vunpack.c.h.b16 %v645
    %v1392 = vunpack.c.l.b16 %v646
    %v1393 = vunpack.c.h.b16 %v646
    %v1394 = vunpack.c.l.b16 %v647
    %v1395 = vunpack.c.h.b16 %v647
    %v1396 = vunpack.c.l.b16 %v648
    %v1397 = vunpack.c.h.b16 %v648
    %v1398 = vunpack.c.l.b16 %v649
    %v1399 = vunpack.c.h.b16 %v649
    %v1400 = vunpack.c.l.b16 %v650
    %v1401 = vunpack.c.h.b16 %v650
    %v1402 = vunpack.c.l.b16 %v651
    %v1403 = vunpack.c.h.b16 %v651
    %v1404 = vunpack.c.l.b16 %v652
    %v1405 = vunpack.c.h.b16 %v652
    %v1406 = vunpack.c.l.b16 %v653
    %v1407 = vunpack.c.h.b16 %v653
    %v1408 = vunpack.c.l.b16 %v654
    %v1409 = vunpack.c.h.b16 %v654
    %v1410 = vunpack.c.l.b16 %v655
    %v1411 = vunpack.c.h.b16 %v655
    %v1412 = vunpack.c.l.b16 %v656
    %v1413 = vunpack.c.h.b16 %v656
    %v1414 = vunpack.c.l.b16 %v657
    %v1415 = vunpack.c.h.b16 %v657
    %v1416 = vunpack.c.l.b16 %v658
    %v1417 = vunpack.c.h.b16 %v658
    %v1418 = vunpack.c.l.b16 %v659
    %v1419 = vunpack.c.h.b16 %v659
    %v1420 = vunpack.c.l.b16 %v660
    %v1421 = vunpack.c.h.b16 %v660
    %v1422 = vunpack.c.l.b16 %v661
    %v1423 = vunpack.c.h.b16 %v661
    %v1424 = vunpack.c.l.b16 %v662
    %v1425 = vunpack.c.h.b16 %v662
    %v1426 = vunpack.c.l.b16 %v663
    %v1427 = vunpack.c.h.b16 %v663
    %v1428 = vunpack.c.l.b16 %v664
    %v1429 = vunpack.c.h.b16 %v664
    %v1430 = vunpack.c.l.b16 %v665
    %v1431 = vunpack.c.h.b16 %v665
    %v1432 = vunpack.c.l.b16 %v666
    %v1433 = vunpack.c.h.b16 %v666
    %v1434 = vunpack.c.l.b16 %v667
    %v1435 = vunpack.c.h.b16 %v667
    %v1436 = vunpack.c.l.b16 %v668
    %v1437 = vunpack.c.h.b16 %v668
    %v1438 = vunpack.c.l.b16 %v669
    %v1439 = vunpack.c.h.b16 %v669
    %v1440 = vunpack.c.l.b16 %v670
    %v1441 = vunpack.c.h.b16 %v670
    %v1442 = vunpack.c.l.b16 %v671
    %v1443 = vunpack.c.h.b16 %v671
    %v1444 = vunpack.c.l.b16 %v672
    %v1445 = vunpack.c.h.b16 %v672
    %v1446 = vunpack.c.l.b16 %v673
    %v1447 = vunpack.c.h.b16 %v673
    %v1448 = vunpack.c.l.b16 %v674
    %v1449 = vunpack.c.h.b16 %v674
    %v1450 = vunpack.c.l.b16 %v675
    %v1451 = vunpack.c.h.b16 %v675
    %v1452 = vunpack.c.l.b16 %v676
    %v1453 = vunpack.c.h.b16 %v676
    %v1454 = vunpack.c.l.b16 %v677
    %v1455 = vunpack.c.h.b16 %v677
    %v1456 = vunpack.c.l.b16 %v678
    %v1457 = vunpack.c.h.b16 %v678
    %v1458 = vunpack.c.l.b16 %v679
    %v1459 = vunpack.c.h.b16 %v679
    %v1460 = vunpack.c.l.b16 %v680
    %v1461 = vunpack.c.h.b16 %v680
    %v1462 = vunpack.c.l.b16 %v681
    %v1463 = vunpack.c.h.b16 %v681
    %v1464 = vunpack.c.l.b16 %v682
    %v1465 = vunpack.c.h.b16 %v682
    %v1466 = vunpack.c.l.b16 %v683
    %v1467 = vunpack.c.h.b16 %v683
    %v1468 = vunpack.c.l.b16 %v684
    %v1469 = vunpack.c.h.b16 %v684
    %v1470 = vunpack.c.l.b16 %v685
    %v1471 = vunpack.c.h.b16 %v685
    %v1472 = vunpack.c.l.b16 %v686
    %v1473 = vunpack.c.h.b16 %v686
    %v1474 = vunpack.c.l.b16 %v687
    %v1475 = vunpack.c.h.b16 %v687
    %v1476 = vunpack.c.l.b16 %v688
    %v1477 = vunpack.c.h.b16 %v688
    %v1478 = vunpack.c.l.b16 %v689
    %v1479 = vunpack.c.h.b16 %v689
    %v1480 = vunpack.c.l.b16 %v690
    %v1481 = vunpack.c.h.b16 %v690
    %v1482 = vunpack.c.l.b16 %v691
    %v1483 = vunpack.c.h.b16 %v691
    %v1484 = vunpack.c.l.b16 %v692
    %v1485 = vunpack.c.h.b16 %v692
    %v1486 = vunpack.c.l.b16 %v693
    %v1487 = vunpack.c.h.b16 %v693
    %v1488 = vunpack.c.l.b16 %v694
    %v1489 = vunpack.c.h.b16 %v694
    %v1490 = vunpack.c.l.b16 %v695
    %v1491 = vunpack.c.h.b16 %v695
    %v1492 = vunpack.c.l.b16 %v696
    %v1493 = vunpack.c.h.b16 %v696
    %v1494 = vunpack.c.l.b16 %v697
    %v1495 = vunpack.c.h.b16 %v697
    %v1496 = vunpack.c.l.b16 %v698
    %v1497 = vunpack.c.h.b16 %v698
    %v1498 = vunpack.c.l.b16 %v699
    %v1499 = vunpack.c.h.b16 %v699
    %v1500 = vunpack.c.l.b16 %v700
    %v1501 = vunpack.c.h.b16 %v700
    %v1502 = vunpack.c.l.b16 %v701
    %v1503 = vunpack.c.h.b16 %v701
    %v1504 = vunpack.c.l.b16 %v702
    %v1505 = vunpack.c.h.b16 %v702
    %v1506 = vunpack.c.l.b16 %v703
    %v1507 = vunpack.c.h.b16 %v703
    %v1508 = vunpack.c.l.b16 %v704
    %v1509 = vunpack.c.h.b16 %v704
    %v1510 = vunpack.c.l.b16 %v705
    %v1511 = vunpack.c.h.b16 %v705
    %v1512 = vunpack.c.l.b16 %v706
    %v1513 = vunpack.c.h.b16 %v706
    %v1514 = vunpack.c.l.b16 %v707
    %v1515 = vunpack.c.h.b16 %v707
    %v1516 = vunpack.c.l.b16 %v708
    %v1517 = vunpack.c.h.b16 %v708
    %v1518 = vunpack.c.l.b16 %v709
    %v1519 = vunpack.c.h.b16 %v709
    %v1520 = vunpack.c.l.b16 %v710
    %v1521 = vunpack.c.h.b16 %v710
    %v1522 = vunpack.c.l.b16 %v711
    %v1523 = vunpack.c.h.b16 %v711
    %v1524 = vunpack.c.l.b16 %v712
    %v1525 = vunpack.c.h.b16 %v712
    %v1526 = vunpack.c.l.b16 %v713
    %v1527 = vunpack.c.h.b16 %v713
    %v1528 = vunpack.c.l.b16 %v714
    %v1529 = vunpack.c.h.b16 %v714
    %v1530 = vunpack.c.l.b16 %v715
    %v1531 = vunpack.c.h.b16 %v715
    %v1532 = vunpack.c.l.b16 %v716
    %v1533 = vunpack.c.h.b16 %v716
    %v1534 = vunpack.c.l.b16 %v717
    %v1535 = vunpack.c.h.b16 %v717
    %v1536 = vunpack.c.l.b16 %v718
    %v1537 = vunpack.c.h.b16 %v718
    %v1538 = vunpack.c.l.b16 %v719
    %v1539 = vunpack.c.h.b16 %v719
    %v1540 = vunpack.c.l.b16 %v720
    %v1541 = vunpack.c.h.b16 %v720
    %v1542 = vunpack.c.l.b16 %v721
    %v1543 = vunpack.c.h.b16 %v721
    %v1544 = vunpack.c.l.b16 %v722
    %v1545 = vunpack.c.h.b16 %v722
    %v1546 = vunpack.c.l.b16 %v723
    %v1547 = vunpack.c.h.b16 %v723
    %v1548 = vunpack.c.l.b16 %v724
    %v1549 = vunpack.c.h.b16 %v724
    %v1550 = vunpack.c.l.b16 %v725
    %v1551 = vunpack.c.h.b16 %v725
    %v1552 = vunpack.c.l.b16 %v726
    %v1553 = vunpack.c.h.b16 %v726
    %v1554 = vunpack.c.l.b16 %v727
    %v1555 = vunpack.c.h.b16 %v727
    %v1556 = vunpack.c.l.b16 %v728
    %v1557 = vunpack.c.h.b16 %v728
    %v1558 = vunpack.c.l.b16 %v729
    %v1559 = vunpack.c.h.b16 %v729
    %v1560 = vunpack.c.l.b16 %v730
    %v1561 = vunpack.c.h.b16 %v730
    %v1562 = vunpack.c.l.b16 %v731
    %v1563 = vunpack.c.h.b16 %v731
    %v1564 = vunpack.c.l.b16 %v732
    %v1565 = vunpack.c.h.b16 %v732
    %v1566 = vunpack.c.l.b16 %v733
    %v1567 = vunpack.c.h.b16 %v733
    %v1568 = vunpack.c.l.b16 %v734
    %v1569 = vunpack.c.h.b16 %v734
    %v1570 = vunpack.c.l.b16 %v735
    %v1571 = vunpack.c.h.b16 %v735
    %v1572 = vunpack.c.l.b16 %v736
    %v1573 = vunpack.c.h.b16 %v736
    %v1574 = vunpack.c.l.b16 %v737
    %v1575 = vunpack.c.h.b16 %v737
    %v1576 = vunpack.c.l.b16 %v738
    %v1577 = vunpack.c.h.b16 %v738
    %v1578 = vunpack.c.l.b16 %v739
    %v1579 = vunpack.c.h.b16 %v739
    %v1580 = vunpack.c.l.b16 %v740
    %v1581 = vunpack.c.h.b16 %v740
    %v1582 = vunpack.c.l.b16 %v741
    %v1583 = vunpack.c.h.b16 %v741
    %v1584 = vunpack.c.l.b16 %v742
    %v1585 = vunpack.c.h.b16 %v742
    %v1586 = vunpack.c.l.b16 %v743
    %v1587 = vunpack.c.h.b16 %v743
    %v1588 = vunpack.c.l.b16 %v744
    %v1589 = vunpack.c.h.b16 %v744
    %v1590 = vunpack.c.l.b16 %v745
    %v1591 = vunpack.c.h.b16 %v745
    %v1592 = vunpack.c.l.b16 %v746
    %v1593 = vunpack.c.h.b16 %v746
    %v1594 = vunpack.c.l.b16 %v747
    %v1595 = vunpack.c.h.b16 %v747
    %v1596 = vunpack.c.l.b16 %v748
    %v1597 = vunpack.c.h.b16 %v748
    %v1598 = vunpack.c.l.b16 %v749
    %v1599 = vunpack.c.h.b16 %v749
    %v1600 = vunpack.c.l.b16 %v750
    %v1601 = vunpack.c.h.b16 %v750
    %v1602 = vunpack.c.l.b16 %v751
    %v1603 = vunpack.c.h.b16 %v751
    %v1604 = vunpack.c.l.b16 %v752
    %v1605 = vunpack.c.h.b16 %v752
    %v1606 = vunpack.c.l.b16 %v753
    %v1607 = vunpack.c.h.b16 %v753
    %v1608 = vunpack.c.l.b16 %v754
    %v1609 = vunpack.c.h.b16 %v754
    %v1610 = vunpack.c.l.b16 %v755
    %v1611 = vunpack.c.h.b16 %v755
    %v1612 = vunpack.c.l.b16 %v756
    %v1613 = vunpack.c.h.b16 %v756
    %v1614 = vunpack.c.l.b16 %v757
    %v1615 = vunpack.c.h.b16 %v757
    %v1616 = vunpack.c.l.b16 %v758
    %v1617 = vunpack.c.h.b16 %v758
    %v1618 = vunpack.c.l.b16 %v759
    %v1619 = vunpack.c.h.b16 %v759
    %v1620 = vunpack.c.l.b16 %v760
    %v1621 = vunpack.c.h.b16 %v760
    %v1622 = vunpack.c.l.b16 %v761
    %v1623 = vunpack.c.h.b16 %v761
    %v1624 = vunpack.c.l.b16 %v762
    %v1625 = vunpack.c.h.b16 %v762
    %v1626 = vunpack.c.l.b16 %v763
    %v1627 = vunpack.c.h.b16 %v763
    %v1628 = vunpack.c.l.b16 %v764
    %v1629 = vunpack.c.h.b16 %v764
    %v1630 = vunpack.c.l.b16 %v765
    %v1631 = vunpack.c.h.b16 %v765
    %v1632 = vunpack.c.l.b16 %v766
    %v1633 = vunpack.c.h.b16 %v766
    %v1634 = vunpack.c.l.b16 %v767
    %v1635 = vunpack.c.h.b16 %v767
    %v1636 = vunpack.c.l.b16 %v768
    %v1637 = vunpack.c.h.b16 %v768
    %v1638 = vunpack.c.l.b16 %v769
    %v1639 = vunpack.c.h.b16 %v769
    %v1640 = vunpack.c.l.b16 %v770
    %v1641 = vunpack.c.h.b16 %v770
    %v1642 = vunpack.c.l.b16 %v771
    %v1643 = vunpack.c.h.b16 %v771
    %v1644 = vunpack.c.l.b16 %v772
    %v1645 = vunpack.c.h.b16 %v772
    %v1646 = vunpack.c.l.b16 %v773
    %v1647 = vunpack.c.h.b16 %v773
    %v1648 = vunpack.c.l.b16 %v774
    %v1649 = vunpack.c.h.b16 %v774
    %v1650 = vunpack.c.l.b16 %v775
    %v1651 = vunpack.c.h.b16 %v775
    %v1652 = vunpack.c.l.b16 %v776
    %v1653 = vunpack.c.h.b16 %v776
    %v1654 = vunpack.c.l.b16 %v777
    %v1655 = vunpack.c.h.b16 %v777
    %v1656 = vunpack.c.l.b16 %v778
    %v1657 = vunpack.c.h.b16 %v778
    %v1658 = vunpack.c.l.b16 %v779
    %v1659 = vunpack.c.h.b16 %v779
    %v1660 = vunpack.c.l.b16 %v780
    %v1661 = vunpack.c.h.b16 %v780
    %v1662 = vunpack.c.l.b16 %v781
    %v1663 = vunpack.c.h.b16 %v781
    %v1664 = vunpack.c.l.b16 %v782
    %v1665 = vunpack.c.h.b16 %v782
    %v1666 = vunpack.c.l.b16 %v783
    %v1667 = vunpack.c.h.b16 %v783
    %v1668 = vunpack.c.l.b16 %v784
    %v1669 = vunpack.c.h.b16 %v784
    %v1670 = vunpack.c.l.b16 %v785
    %v1671 = vunpack.c.h.b16 %v785
    %v1672 = vunpack.c.l.b16 %v786
    %v1673 = vunpack.c.h.b16 %v786
    %v1674 = vunpack.c.l.b16 %v787
    %v1675 = vunpack.c.h.b16 %v787
    %v1676 = vunpack.c.l.b16 %v788
    %v1677 = vunpack.c.h.b16 %v788
    %v1678 = vunpack.c.l.b16 %v789
    %v1679 = vunpack.c.h.b16 %v789
    %v1680 = vunpack.c.l.b16 %v790
    %v1681 = vunpack.c.h.b16 %v790
    %v1682 = vunpack.c.l.b16 %v791
    %v1683 = vunpack.c.h.b16 %v791
    %v1684 = vunpack.c.l.b16 %v792
    %v1685 = vunpack.c.h.b16 %v792
    %v1686 = vunpack.c.l.b16 %v793
    %v1687 = vunpack.c.h.b16 %v793
    %v1688 = vunpack.c.l.b16 %v794
    %v1689 = vunpack.c.h.b16 %v794
    %v1690 = vunpack.c.l.b16 %v795
    %v1691 = vunpack.c.h.b16 %v795
    %v1692 = vunpack.c.l.b16 %v796
    %v1693 = vunpack.c.h.b16 %v796
    %v1694 = vunpack.c.l.b16 %v797
    %v1695 = vunpack.c.h.b16 %v797
    %v1696 = vunpack.c.l.b16 %v798
    %v1697 = vunpack.c.h.b16 %v798
    %v1698 = vunpack.c.l.b16 %v799
    %v1699 = vunpack.c.h.b16 %v799
    %v1700 = vunpack.c.l.b16 %v800
    %v1701 = vunpack.c.h.b16 %v800
    %v1702 = vunpack.c.l.b16 %v801
    %v1703 = vunpack.c.h.b16 %v801
    %v1704 = vunpack.c.l.b16 %v802
    %v1705 = vunpack.c.h.b16 %v802
    %v1706 = vunpack.c.l.b16 %v803
    %v1707 = vunpack.c.h.b16 %v803
    %v1708 = vunpack.c.l.b16 %v804
    %v1709 = vunpack.c.h.b16 %v804
    %v1710 = vunpack.c.l.b16 %v805
    %v1711 = vunpack.c.h.b16 %v805
    %v1712 = vunpack.c.l.b16 %v806
    %v1713 = vunpack.c.h.b16 %v806
    %v1714 = vunpack.c.l.b16 %v807
    %v1715 = vunpack.c.h.b16 %v807
    %v1716 = vunpack.c.l.b16 %v808
    %v1717 = vunpack.c.h.b16 %v808
    %v1718 = vunpack.c.l.b16 %v809
    %v1719 = vunpack.c.h.b16 %v809
    %v1720 = vunpack.c.l.b16 %v810
    %v1721 = vunpack.c.h.b16 %v810
    %v1722 = vunpack.c.l.b16 %v811
    %v1723 = vunpack.c.h.b16 %v811
    %v1724 = vunpack.c.l.b16 %v812
    %v1725 = vunpack.c.h.b16 %v812
    %v1726 = vunpack.c.l.b16 %v813
    %v1727 = vunpack.c.h.b16 %v813
    %v1728 = vunpack.c.l.b16 %v814
    %v1729 = vunpack.c.h.b16 %v814
    %v1730 = vunpack.c.l.b16 %v815
    %v1731 = vunpack.c.h.b16 %v815
    %v1732 = vunpack.c.l.b16 %v816
    %v1733 = vunpack.c.h.b16 %v816
    %v1734 = vunpack.c.l.b16 %v817
    %v1735 = vunpack.c.h.b16 %v817
    %v1736 = vunpack.c.l.b16 %v818
    %v1737 = vunpack.c.h.b16 %v818
    %v1738 = vunpack.c.l.b16 %v819
    %v1739 = vunpack.c.h.b16 %v819
    %v1740 = vunpack.c.l.b16 %v820
    %v1741 = vunpack.c.h.b16 %v820
    %v1742 = vunpack.c.l.b16 %v821
    %v1743 = vunpack.c.h.b16 %v821
    %v1744 = vunpack.c.l.b16 %v822
    %v1745 = vunpack.c.h.b16 %v822
    %v1746 = vunpack.c.l.b16 %v823
    %v1747 = vunpack.c.h.b16 %v823
    %v1748 = vpack.c.b16 %v1142, %v1140
    %v1749 = vpack.c.b16 %v1143, %v1141
    %v1750 = vpack.c.b16 %v1146, %v1144
    %v1751 = vpack.c.b16 %v1147, %v1145
    %v1752 = vpack.c.b16 %v1150, %v1148
    %v1753 = vpack.c.b16 %v1151, %v1149
    %v1754 = vpack.c.b16 %v1154, %v1152
    %v1755 = vpack.c.b16 %v1155, %v1153
    %v1756 = vpack.c.b16 %v1158, %v1156
    %v1757 = vpack.c.b16 %v1159, %v1157
    %v1758 = vpack.c.b16 %v1162, %v1160
    %v1759 = vpack.c.b16 %v1163, %v1161
    %v1760 = vpack.c.b16 %v1166, %v1164
    %v1761 = vpack.c.b16 %v1167, %v1165
    %v1762 = vpack.c.b16 %v1170, %v1168
    %v1763 = vpack.c.b16 %v1171, %v1169
    %v1764 = vpack.c.b16 %v1174, %v1172
    %v1765 = vpack.c.b16 %v1175, %v1173
    %v1766 = vpack.c.b16 %v1178, %v1176
    %v1767 = vpack.c.b16 %v1179, %v1177
    %v1768 = vpack.c.b16 %v1182, %v1180
    %v1769 = vpack.c.b16 %v1183, %v1181
    %v1770 = vpack.c.b16 %v1186, %v1184
    %v1771 = vpack.c.b16 %v1187, %v1185
    %v1772 = vpack.c.b16 %v1190, %v1188
    %v1773 = vpack.c.b16 %v1191, %v1189
    %v1774 = vpack.c.b16 %v1194, %v1192
    %v1775 = vpack.c.b16 %v1195, %v1193
    %v1776 = vpack.c.b16 %v1198, %v1196
    %v1777 = vpack.c.b16 %v1199, %v1197
    %v1778 = vpack.c.b16 %v1202, %v1200
    %v1779 = vpack.c.b16 %v1203, %v1201
    %v1780 = vpack.c.b16 %v1206, %v1204
    %v1781 = vpack.c.b16 %v1207, %v1205
    %v1782 = vpack.c.b16 %v1210, %v1208
    %v1783 = vpack.c.b16 %v1211, %v1209
    %v1784 = vpack.c.b16 %v1214, %v1212
    %v1785 = vpack.c.b16 %v1215, %v1213
    %v1786 = vpack.c.b16 %v1218, %v1216
    %v1787 = vpack.c.b16 %v1219, %v1217
    %v1788 = vpack.c.b16 %v1222, %v1220
    %v1789 = vpack.c.b16 %v1223, %v1221
    %v1790 = vpack.c.b16 %v1226, %v1224
    %v1791 = vpack.c.b16 %v1227, %v1225
    %v1792 = vpack.c.b16 %v1230, %v1228
    %v1793 = vpack.c.b16 %v1231, %v1229
    %v1794 = vpack.c.b16 %v1234, %v1232
    %v1795 = vpack.c.b16 %v1235, %v1233
    %v1796 = vpack.c.b16 %v1238, %v1236
    %v1797 = vpack.c.b16 %v1239, %v1237
    %v1798 = vpack.c.b16 %v1242, %v1240
    %v1799 = vpack.c.b16 %v1243, %v1241
    %v1800 = vpack.c.b16 %v1246, %v1244
    %v1801 = vpack.c.b16 %v1247, %v1245
    %v1802 = vpack.c.b16 %v1250, %v1248
    %v1803 = vpack.c.b16 %v1251, %v1249
    %v1804 = vpack.c.b16 %v1254, %v1252
    %v1805 = vpack.c.b16 %v1255, %v1253
    %v1806 = vpack.c.b16 %v1258, %v1256
    %v1807 = vpack.c.b16 %v1259, %v1257
    %v1808 = vpack.c.b16 %v1262, %v1260
    %v1809 = vpack.c.b16 %v1263, %v1261
    %v1810 = vpack.c.b16 %v1266, %v1264
    %v1811 = vpack.c.b16 %v1267, %v1265
    %v1812 = vpack.c.b16 %v1270, %v1268
    %v1813 = vpack.c.b16 %v1271, %v1269
    %v1814 = vpack.c.b16 %v1274, %v1272
    %v1815 = vpack.c.b16 %v1275, %v1273
    %v1816 = vpack.c.b16 %v1278, %v1276
    %v1817 = vpack.c.b16 %v1279, %v1277
    %v1818 = vpack.c.b16 %v1282, %v1280
    %v1819 = vpack.c.b16 %v1283, %v1281
    %v1820 = vpack.c.b16 %v1286, %v1284
    %v1821 = vpack.c.b16 %v1287, %v1285
    %v1822 = vpack.c.b16 %v1290, %v1288
    %v1823 = vpack.c.b16 %v1291, %v1289
    %v1824 = vpack.c.b16 %v1294, %v1292
    %v1825 = vpack.c.b16 %v1295, %v1293
    %v1826 = vpack.c.b16 %v1298, %v1296
    %v1827 = vpack.c.b16 %v1299, %v1297
    %v1828 = vpack.c.b16 %v1302, %v1300
    %v1829 = vpack.c.b16 %v1303, %v1301
    %v1830 = vpack.c.b16 %v1306, %v1304
    %v1831 = vpack.c.b16 %v1307, %v1305
    %v1832 = vpack.c.b16 %v1310, %v1308
    %v1833 = vpack.c.b16 %v1311, %v1309
    %v1834 = vpack.c.b16 %v1314, %v1312
    %v1835 = vpack.c.b16 %v1315, %v1313
    %v1836 = vpack.c.b16 %v1318, %v1316
    %v1837 = vpack.c.b16 %v1319, %v1317
    %v1838 = vpack.c.b16 %v1322, %v1320
    %v1839 = vpack.c.b16 %v1323, %v1321
    %v1840 = vpack.c.b16 %v1326, %v1324
    %v1841 = vpack.c.b16 %v1327, %v1325
    %v1842 = vpack.c.b16 %v1330, %v1328
    %v1843 = vpack.c.b16 %v1331, %v1329
    %v1844 = vpack.c.b16 %v1334, %v1332
    %v1845 = vpack.c.b16 %v1335, %v1333
    %v1846 = vpack.c.b16 %v1338, %v1336
    %v1847 = vpack.c.b16 %v1339, %v1337
    %v1848 = vpack.c.b16 %v1342, %v1340
    %v1849 = vpack.c.b16 %v1343, %v1341
    %v1850 = vpack.c.b16 %v1346, %v1344
    %v1851 = vpack.c.b16 %v1347, %v1345
    %v1852 = vpack.c.b16 %v1350, %v1348
    %v1853 = vpack.c.b16 %v1351, %v1349
    %v1854 = vpack.c.b16 %v1354, %v1352
    %v1855 = vpack.c.b16 %v1355, %v1353
    %v1856 = vpack.c.b16 %v1358, %v1356
    %v1857 = vpack.c.b16 %v1359, %v1357
    %v1858 = vpack.c.b16 %v1362, %v1360
    %v1859 = vpack.c.b16 %v1363, %v1361
    %v1860 = vpack.c.b16 %v1366, %v1364
    %v1861 = vpack.c.b16 %v1367, %v1365
    %v1862 = vpack.c.b16 %v1370, %v1368
    %v1863 = vpack.c.b16 %v1371, %v1369
    %v1864 = vpack.c.b16 %v1374, %v1372
    %v1865 = vpack.c.b16 %v1375, %v1373
    %v1866 = vpack.c.b16 %v1378, %v1376
    %v1867 = vpack.c.b16 %v1379, %v1377
    %v1868 = vpack.c.b16 %v1382, %v1380
    %v1869 = vpack.c.b16 %v1383, %v1381
    %v1870 = vpack.c.b16 %v1386, %v1384
    %v1871 = vpack.c.b16 %v1387, %v1385
    %v1872 = vpack.c.b16 %v1390, %v1388
    %v1873 = vpack.c.b16 %v1391, %v1389
    %v1874 = vpack.c.b16 %v1394, %v1392
    %v1875 = vpack.c.b16 %v1395, %v1393
    %v1876 = vpack.c.b16 %v1398, %v1396
    %v1877 = vpack.c.b16 %v1399, %v1397
    %v1878 = vpack.c.b16 %v1402, %v1400
    %v1879 = vpack.c.b16 %v1403, %v1401
    %v1880 = vpack.c.b16 %v1406, %v1404
    %v1881 = vpack.c.b16 %v1407, %v1405
    %v1882 = vpack.c.b16 %v1410, %v1408
    %v1883 = vpack.c.b16 %v1411, %v1409
    %v1884 = vpack.c.b16 %v1414, %v1412
    %v1885 = vpack.c.b16 %v1415, %v1413
    %v1886 = vpack.c.b16 %v1418, %v1416
    %v1887 = vpack.c.b16 %v1419, %v1417
    %v1888 = vpack.c.b16 %v1422, %v1420
    %v1889 = vpack.c.b16 %v1423, %v1421
    %v1890 = vpack.c.b16 %v1426, %v1424
    %v1891 = vpack.c.b16 %v1427, %v1425
    %v1892 = vpack.c.b16 %v1430, %v1428
    %v1893 = vpack.c.b16 %v1431, %v1429
    %v1894 = vpack.c.b16 %v1434, %v1432
    %v1895 = vpack.c.b16 %v1435, %v1433
    %v1896 = vpack.c.b16 %v1438, %v1436
    %v1897 = vpack.c.b16 %v1439, %v1437
    %v1898 = vpack.c.b16 %v1442, %v1440
    %v1899 = vpack.c.b16 %v1443, %v1441
    %v1900 = vpack.c.b16 %v1446, %v1444
    %v1901 = vpack.c.b16 %v1447, %v1445
    %v1902 = vpack.c.b16 %v1450, %v1448
    %v1903 = vpack.c.b16 %v1451, %v1449
    %v1904 = vpack.c.b16 %v1454, %v1452
    %v1905 = vpack.c.b16 %v1455, %v1453
    %v1906 = vpack.c.b16 %v1458, %v1456
    %v1907 = vpack.c.b16 %v1459, %v1457
    %v1908 = vpack.c.b16 %v1462, %v1460
    %v1909 = vpack.c.b16 %v1463, %v1461
    %v1910 = vpack.c.b16 %v1466, %v1464
    %v1911 = vpack.c.b16 %v1467, %v1465
    %v1912 = vpack.c.b16 %v1470, %v1468
    %v1913 = vpack.c.b16 %v1471, %v1469
    %v1914 = vpack.c.b16 %v1474, %v1472
    %v1915 = vpack.c.b16 %v1475, %v1473
    %v1916 = vpack.c.b16 %v1478, %v1476
    %v1917 = vpack.c.b16 %v1479, %v1477
    %v1918 = vpack.c.b16 %v1482, %v1480
    %v1919 = vpack.c.b16 %v1483, %v1481
    %v1920 = vpack.c.b16 %v1486, %v1484
    %v1921 = vpack.c.b16 %v1487, %v1485
    %v1922 = vpack.c.b16 %v1490, %v1488
    %v1923 = vpack.c.b16 %v1491, %v1489
    %v1924 = vpack.c.b16 %v1494, %v1492
    %v1925 = vpack.c.b16 %v1495, %v1493
    %v1926 = vpack.c.b16 %v1498, %v1496
    %v1927 = vpack.c.b16 %v1499, %v1497
    %v1928 = vpack.c.b16 %v1502, %v1500
    %v1929 = vpack.c.b16 %v1503, %v1501
    %v1930 = vpack.c.b16 %v1506, %v1504
    %v1931 = vpack.c.b16 %v1507, %v1505
    %v1932 = vpack.c.b16 %v1510, %v1508
    %v1933 = vpack.c.b16 %v1511, %v1509
    %v1934 = vpack.c.b16 %v1514, %v1512
    %v1935 = vpack.c.b16 %v1515, %v1513
    %v1936 = vpack.c.b16 %v1518, %v1516
    %v1937 = vpack.c.b16 %v1519, %v1517
    %v1938 = vpack.c.b16 %v1522, %v1520
    %v1939 = vpack.c.b16 %v1523, %v1521
    %v1940 = vpack.c.b16 %v1526, %v1524
    %v1941 = vpack.c.b16 %v1527, %v1525
    %v1942 = vpack.c.b16 %v1530, %v1528
    %v1943 = vpack.c.b16 %v1531, %v1529
    %v1944 = vpack.c.b16 %v1534, %v1532
    %v1945 = vpack.c.b16 %v1535, %v1533
    %v1946 = vpack.c.b16 %v1538, %v1536
    %v1947 = vpack.c.b16 %v1539, %v1537
    %v1948 = vpack.c.b16 %v1542, %v1540
    %v1949 = vpack.c.b16 %v1543, %v1541
    %v1950 = vpack.c.b16 %v1546, %v1544
    %v1951 = vpack.c.b16 %v1547, %v1545
    %v1952 = vpack.c.b16 %v1550, %v1548
    %v1953 = vpack.c.b16 %v1551, %v1549
    %v1954 = vpack.c.b16 %v1554, %v1552
    %v1955 = vpack.c.b16 %v1555, %v1553
    %v1956 = vpack.c.b16 %v1558, %v1556
    %v1957 = vpack.c.b16 %v1559, %v1557
    %v1958 = vpack.c.b16 %v1562, %v1560
    %v1959 = vpack.c.b16 %v1563, %v1561
    %v1960 = vpack.c.b16 %v1566, %v1564
    %v1961 = vpack.c.b16 %v1567, %v1565
    %v1962 = vpack.c.b16 %v1570, %v1568
    %v1963 = vpack.c.b16 %v1571, %v1569
    %v1964 = vpack.c.b16 %v1574, %v1572
    %v1965 = vpack.c.b16 %v1575, %v1573
    %v1966 = vpack.c.b16 %v1578, %v1576
    %v1967 = vpack.c.b16 %v1579, %v1577
    %v1968 = vpack.c.b16 %v1582, %v1580
    %v1969 = vpack.c.b16 %v1583, %v1581
    %v1970 = vpack.c.b16 %v1586, %v1584
    %v1971 = vpack.c.b16 %v1587, %v1585
    %v1972 = vpack.c.b16 %v1590, %v1588
    %v1973 = vpack.c.b16 %v1591, %v1589
    %v1974 = vpack.c.b16 %v1594, %v1592
    %v1975 = vpack.c.b16 %v1595, %v1593
    %v1976 = vpack.c.b16 %v1598, %v1596
    %v1977 = vpack.c.b16 %v1599, %v1597
    %v1978 = vpack.c.b16 %v1602, %v1600
    %v1979 = vpack.c.b16 %v1603, %v1601
    %v1980 = vpack.c.b16 %v1606, %v1604
    %v1981 = vpack.c.b16 %v1607, %v1605
    %v1982 = vpack.c.b16 %v1610, %v1608
    %v1983 = vpack.c.b16 %v1611, %v1609
    %v1984 = vpack.c.b16 %v1614, %v1612
    %v1985 = vpack.c.b16 %v1615, %v1613
    %v1986 = vpack.c.b16 %v1618, %v1616
    %v1987 = vpack.c.b16 %v1619, %v1617
    %v1988 = vpack.c.b16 %v1622, %v1620
    %v1989 = vpack.c.b16 %v1623, %v1621
    %v1990 = vpack.c.b16 %v1626, %v1624
    %v1991 = vpack.c.b16 %v1627, %v1625
    %v1992 = vpack.c.b16 %v1630, %v1628
    %v1993 = vpack.c.b16 %v1631, %v1629
    %v1994 = vpack.c.b16 %v1634, %v1632
    %v1995 = vpack.c.b16 %v1635, %v1633
    %v1996 = vpack.c.b16 %v1638, %v1636
    %v1997 = vpack.c.b16 %v1639, %v1637
    %v1998 = vpack.c.b16 %v1642, %v1640
    %v1999 = vpack.c.b16 %v1643, %v1641
    %v2000 = vpack.c.b16 %v1646, %v1644
    %v2001 = vpack.c.b16 %v1647, %v1645
    %v2002 = vpack.c.b16 %v1650, %v1648
    %v2003 = vpack.c.b16 %v1651, %v1649
    %v2004 = vpack.c.b16 %v1654, %v1652
    %v2005 = vpack.c.b16 %v1655, %v1653
    %v2006 = vpack.c.b16 %v1658, %v1656
    %v2007 = vpack.c.b16 %v1659, %v1657
    %v2008 = vpack.c.b16 %v1662, %v1660
    %v2009 = vpack.c.b16 %v1663, %v1661
    %v2010 = vpack.c.b16 %v1666, %v1664
    %v2011 = vpack.c.b16 %v1667, %v1665
    %v2012 = vpack.c.b16 %v1670, %v1668
    %v2013 = vpack.c.b16 %v1671, %v1669
    %v2014 = vpack.c.b16 %v1674, %v1672
    %v2015 = vpack.c.b16 %v1675, %v1673
    %v2016 = vpack.c.b16 %v1678, %v1676
    %v2017 = vpack.c.b16 %v1679, %v1677
    %v2018 = vpack.c.b16 %v1682, %v1680
    %v2019 = vpack.c.b16 %v1683, %v1681
    %v2020 = vpack.c.b16 %v1686, %v1684
    %v2021 = vpack.c.b16 %v1687, %v1685
    %v2022 = vpack.c.b16 %v1690, %v1688
    %v2023 = vpack.c.b16 %v1691, %v1689
    %v2024 = vpack.c.b16 %v1694, %v1692
    %v2025 = vpack.c.b16 %v1695, %v1693
    %v2026 = vpack.c.b16 %v1698, %v1696
    %v2027 = vpack.c.b16 %v1699, %v1697
    %v2028 = vpack.c.b16 %v1702, %v1700
    %v2029 = vpack.c.b16 %v1703, %v1701
    %v2030 = vpack.c.b16 %v1706, %v1704
    %v2031 = vpack.c.b16 %v1707, %v1705
    %v2032 = vpack.c.b16 %v1710, %v1708
    %v2033 = vpack.c.b16 %v1711, %v1709
    %v2034 = vpack.c.b16 %v1714, %v1712
    %v2035 = vpack.c.b16 %v1715, %v1713
    %v2036 = vpack.c.b16 %v1718, %v1716
    %v2037 = vpack.c.b16 %v1719, %v1717
    %v2038 = vpack.c.b16 %v1722, %v1720
    %v2039 = vpack.c.b16 %v1723, %v1721
    %v2040 = vpack.c.b16 %v1726, %v1724
    %v2041 = vpack.c.b16 %v1727, %v1725
    %v2042 = vpack.c.b16 %v1730, %v1728
    %v2043 = vpack.c.b16 %v1731, %v1729
    %v2044 = vpack.c.b16 %v1734, %v1732
    %v2045 = vpack.c.b16 %v1735, %v1733
    %v2046 = vpack.c.b16 %v1738, %v1736
    %v2047 = vpack.c.b16 %v1739, %v1737
    %v2048 = vpack.c.b16 %v1742, %v1740
    %v2049 = vpack.c.b16 %v1743, %v1741
    %v2050 = vpack.c.b16 %v1746, %v1744
    %v2051 = vpack.c.b16 %v1747, %v1745
    %2356 = vmatprep.subr.bf16.mxu0 %v1749
    %2357 = vmatpush1.bf16.msra.mxu0 %v1748
    %2358 = vmatprep.subr.bf16.mxu0 %v1751
    %2359 = vmatpush1.bf16.msra.mxu0 %v1750
    %2360 = vmatprep.subr.bf16.mxu0 %v1753
    %2361 = vmatpush1.bf16.msra.mxu0 %v1752
    %2362 = vmatprep.subr.bf16.mxu0 %v1755
    %2363 = vmatpush1.bf16.msra.mxu0 %v1754
    %2364 = vmatprep.subr.bf16.mxu0 %v1757
    %2365 = vmatpush1.bf16.msra.mxu0 %v1756
    %2366 = vmatprep.subr.bf16.mxu0 %v1759
    %2367 = vmatpush1.bf16.msra.mxu0 %v1758
    %2368 = vmatprep.subr.bf16.mxu0 %v1761
    %2369 = vmatpush1.bf16.msra.mxu0 %v1760
    %2370 = vmatprep.subr.bf16.mxu0 %v1763
    %2371 = vmatpush1.bf16.msra.mxu0 %v1762
    %2372 = vmatprep.subr.bf16.mxu0 %v1765
    %2373 = vmatpush1.bf16.msra.mxu0 %v1764
    %2374 = vmatprep.subr.bf16.mxu0 %v1767
    %2375 = vmatpush1.bf16.msra.mxu0 %v1766
    %2376 = vmatprep.subr.bf16.mxu0 %v1769
    %2377 = vmatpush1.bf16.msra.mxu0 %v1768
    %2378 = vmatprep.subr.bf16.mxu0 %v1771
    %2379 = vmatpush1.bf16.msra.mxu0 %v1770
    %2380 = vmatprep.subr.bf16.mxu0 %v1773
    %2381 = vmatpush1.bf16.msra.mxu0 %v1772
    %2382 = vmatprep.subr.bf16.mxu0 %v1775
    %2383 = vmatpush1.bf16.msra.mxu0 %v1774
    %2384 = vmatprep.subr.bf16.mxu0 %v1777
    %2385 = vmatpush1.bf16.msra.mxu0 %v1776
    %2386 = vmatprep.subr.bf16.mxu0 %v1779
    %2387 = vmatpush1.bf16.msra.mxu0 %v1778
    %2388 = vmatprep.mubr.bf16.mxu0 %v369
    %2389 = vmatmul.mubr.bf16.gmra.mrb[0].mxu0 %v368
    %v2390 = vpop.f32.mrb[0].mxu0
    %v2391 = vadd.f32 %v829, %v2390
    %v2392 = vpop.f32.mrb[0].mxu0
    %v2393 = vadd.f32 %v833, %v2392
    %v2394 = vpop.f32.mrb[0].mxu0
    %v2395 = vadd.f32 %v829, %v2394
    %v2396 = vpop.f32.mrb[0].mxu0
    %v2397 = vadd.f32 %v833, %v2396
    %2398 = vmatprep.mubr.bf16.mxu0 %v388
    %2399 = vmatmul.mubr.bf16.gmra.mrb[0].mxu0 %v387
    %v2400 = vpop.f32.mrb[0].mxu0
    %v2401 = vadd.f32 %v829, %v2400
    %v2402 = vpop.f32.mrb[0].mxu0
    %v2403 = vadd.f32 %v833, %v2402
    %v2404 = vpop.f32.mrb[0].mxu0
    %v2405 = vadd.f32 %v829, %v2404
    %v2406 = vpop.f32.mrb[0].mxu0
    %v2407 = vadd.f32 %v833, %v2406
    %2408 = vmatprep.mubr.bf16.mxu0 %v407
    %2409 = vmatmul.mubr.bf16.gmra.mrb[0].mxu0 %v406
    %v2410 = vpop.f32.mrb[0].mxu0
    %v2411 = vadd.f32 %v829, %v2410
    %v2412 = vpop.f32.mrb[0].mxu0
    %v2413 = vadd.f32 %v833, %v2412
    %v2414 = vpop.f32.mrb[0].mxu0
    %v2415 = vadd.f32 %v829, %v2414
    %v2416 = vpop.f32.mrb[0].mxu0
    %v2417 = vadd.f32 %v833, %v2416
    %2418 = vmatprep.mubr.bf16.mxu0 %v426
    %2419 = vmatmul.mubr.bf16.gmra.mrb[0].mxu0 %v425
    %v2420 = vpop.f32.mrb[0].mxu0
    %v2421 = vadd.f32 %v829, %v2420
    %v2422 = vpop.f32.mrb[0].mxu0
    %v2423 = vadd.f32 %v833, %v2422
    %v2424 = vpop.f32.mrb[0].mxu0
    %v2425 = vadd.f32 %v829, %v2424
    %v2426 = vpop.f32.mrb[0].mxu0
    %v2427 = vadd.f32 %v833, %v2426
    %2428 = vmatprep.mubr.bf16.mxu0 %v445
    %2429 = vmatmul.mubr.bf16.gmra.mrb[0].mxu0 %v444
    %v2430 = vpop.f32.mrb[0].mxu0
    %v2431 = vadd.f32 %v829, %v2430
    %v2432 = vpop.f32.mrb[0].mxu0
    %v2433 = vadd.f32 %v833, %v2432
    %v2434 = vpop.f32.mrb[0].mxu0
    %v2435 = vadd.f32 %v829, %v2434
    %v2436 = vpop.f32.mrb[0].mxu0
    %v2437 = vadd.f32 %v833, %v2436
    %2438 = vmatprep.mubr.bf16.mxu0 %v464
    %2439 = vmatmul.mubr.bf16.gmra.mrb[0].mxu0 %v463
    %v2440 = vpop.f32.mrb[0].mxu0
    %v2441 = vadd.f32 %v829, %v2440
    %v2442 = vpop.f32.mrb[0].mxu0
    %v2443 = vadd.f32 %v833, %v2442
    %v2444 = vpop.f32.mrb[0].mxu0
    %v2445 = vadd.f32 %v829, %v2444
    %v2446 = vpop.f32.mrb[0].mxu0
    %v2447 = vadd.f32 %v833, %v2446
    %2448 = vmatprep.mubr.bf16.mxu0 %v483
    %2449 = vmatmul.mubr.bf16.gmra.mrb[0].mxu0 %v482
    %v2450 = vpop.f32.mrb[0].mxu0
    %v2451 = vadd.f32 %v829, %v2450
    %v2452 = vpop.f32.mrb[0].mxu0
    %v2453 = vadd.f32 %v833, %v2452
    %v2454 = vpop.f32.mrb[0].mxu0
    %v2455 = vadd.f32 %v829, %v2454
    %v2456 = vpop.f32.mrb[0].mxu0
    %v2457 = vadd.f32 %v833, %v2456
    %2458 = vmatprep.mubr.bf16.mxu0 %v502
    %2459 = vmatmul.mubr.bf16.gmra.mrb[0].mxu0 %v501
    %v2460 = vpop.f32.mrb[0].mxu0
    %v2461 = vadd.f32 %v829, %v2460
    %v2462 = vpop.f32.mrb[0].mxu0
    %v2463 = vadd.f32 %v833, %v2462
    %v2464 = vpop.f32.mrb[0].mxu0
    %v2465 = vadd.f32 %v829, %v2464
    %v2466 = vpop.f32.mrb[0].mxu0
    %v2467 = vadd.f32 %v833, %v2466
    %2468 = vdwg.mxu0
    %2469 = vmatprep.subr.bf16.mxu0 %v1781
    %2470 = vmatpush1.bf16.msra.mxu0 %v1780
    %2471 = vmatprep.subr.bf16.mxu0 %v1783
    %2472 = vmatpush1.bf16.msra.mxu0 %v1782
    %2473 = vmatprep.subr.bf16.mxu0 %v1785
    %2474 = vmatpush1.bf16.msra.mxu0 %v1784
    %2475 = vmatprep.subr.bf16.mxu0 %v1787
    %2476 = vmatpush1.bf16.msra.mxu0 %v1786
    %2477 = vmatprep.subr.bf16.mxu0 %v1789
    %2478 = vmatpush1.bf16.msra.mxu0 %v1788
    %2479 = vmatprep.subr.bf16.mxu0 %v1791
    %2480 = vmatpush1.bf16.msra.mxu0 %v1790
    %2481 = vmatprep.subr.bf16.mxu0 %v1793
    %2482 = vmatpush1.bf16.msra.mxu0 %v1792
    %2483 = vmatprep.subr.bf16.mxu0 %v1795
    %2484 = vmatpush1.bf16.msra.mxu0 %v1794
    %2485 = vmatprep.subr.bf16.mxu0 %v1797
    %2486 = vmatpush1.bf16.msra.mxu0 %v1796
    %2487 = vmatprep.subr.bf16.mxu0 %v1799
    %2488 = vmatpush1.bf16.msra.mxu0 %v1798
    %2489 = vmatprep.subr.bf16.mxu0 %v1801
    %2490 = vmatpush1.bf16.msra.mxu0 %v1800
    %2491 = vmatprep.subr.bf16.mxu0 %v1803
    %2492 = vmatpush1.bf16.msra.mxu0 %v1802
    %2493 = vmatprep.subr.bf16.mxu0 %v1805
    %2494 = vmatpush1.bf16.msra.mxu0 %v1804
    %2495 = vmatprep.subr.bf16.mxu0 %v1807
    %2496 = vmatpush1.bf16.msra.mxu0 %v1806
    %2497 = vmatprep.subr.bf16.mxu0 %v1809
    %2498 = vmatpush1.bf16.msra.mxu0 %v1808
    %2499 = vmatprep.subr.bf16.mxu0 %v1811
    %2500 = vmatpush1.bf16.msra.mxu0 %v1810
    %2501 = vmatprep.mubr.bf16.mxu0 %v371
    %2502 = vmatmul.mubr.bf16.gmra.mrb[0].mxu0 %v370
    %v2503 = vpop.f32.mrb[0].mxu0
    %v2504 = vadd.f32 %v2391, %v2503
    %v2505 = vpop.f32.mrb[0].mxu0
    %v2506 = vadd.f32 %v2393, %v2505
    %v2507 = vpop.f32.mrb[0].mxu0
    %v2508 = vadd.f32 %v2395, %v2507
    %v2509 = vpop.f32.mrb[0].mxu0
    %v2510 = vadd.f32 %v2397, %v2509
    %2511 = vmatprep.mubr.bf16.mxu0 %v390
    %2512 = vmatmul.mubr.bf16.gmra.mrb[0].mxu0 %v389
    %v2513 = vpop.f32.mrb[0].mxu0
    %v2514 = vadd.f32 %v2401, %v2513
    %v2515 = vpop.f32.mrb[0].mxu0
    %v2516 = vadd.f32 %v2403, %v2515
    %v2517 = vpop.f32.mrb[0].mxu0
    %v2518 = vadd.f32 %v2405, %v2517
    %v2519 = vpop.f32.mrb[0].mxu0
    %v2520 = vadd.f32 %v2407, %v2519
    %2521 = vmatprep.mubr.bf16.mxu0 %v409
    %2522 = vmatmul.mubr.bf16.gmra.mrb[0].mxu0 %v408
    %v2523 = vpop.f32.mrb[0].mxu0
    %v2524 = vadd.f32 %v2411, %v2523
    %v2525 = vpop.f32.mrb[0].mxu0
    %v2526 = vadd.f32 %v2413, %v2525
    %v2527 = vpop.f32.mrb[0].mxu0
    %v2528 = vadd.f32 %v2415, %v2527
    %v2529 = vpop.f32.mrb[0].mxu0
    %v2530 = vadd.f32 %v2417, %v2529
    %2531 = vmatprep.mubr.bf16.mxu0 %v428
    %2532 = vmatmul.mubr.bf16.gmra.mrb[0].mxu0 %v427
    %v2533 = vpop.f32.mrb[0].mxu0
    %v2534 = vadd.f32 %v2421, %v2533
    %v2535 = vpop.f32.mrb[0].mxu0
    %v2536 = vadd.f32 %v2423, %v2535
    %v2537 = vpop.f32.mrb[0].mxu0
    %v2538 = vadd.f32 %v2425, %v2537
    %v2539 = vpop.f32.mrb[0].mxu0
    %v2540 = vadd.f32 %v2427, %v2539
    %2541 = vmatprep.mubr.bf16.mxu0 %v447
    %2542 = vmatmul.mubr.bf16.gmra.mrb[0].mxu0 %v446
    %v2543 = vpop.f32.mrb[0].mxu0
    %v2544 = vadd.f32 %v2431, %v2543
    %v2545 = vpop.f32.mrb[0].mxu0
    %v2546 = vadd.f32 %v2433, %v2545
    %v2547 = vpop.f32.mrb[0].mxu0
    %v2548 = vadd.f32 %v2435, %v2547
    %v2549 = vpop.f32.mrb[0].mxu0
    %v2550 = vadd.f32 %v2437, %v2549
    %2551 = vmatprep.mubr.bf16.mxu0 %v466
    %2552 = vmatmul.mubr.bf16.gmra.mrb[0].mxu0 %v465
    %v2553 = vpop.f32.mrb[0].mxu0
    %v2554 = vadd.f32 %v2441, %v2553
    %v2555 = vpop.f32.mrb[0].mxu0
    %v2556 = vadd.f32 %v2443, %v2555
    %v2557 = vpop.f32.mrb[0].mxu0
    %v2558 = vadd.f32 %v2445, %v2557
    %v2559 = vpop.f32.mrb[0].mxu0
    %v2560 = vadd.f32 %v2447, %v2559
    %2561 = vmatprep.mubr.bf16.mxu0 %v485
    %2562 = vmatmul.mubr.bf16.gmra.mrb[0].mxu0 %v484
    %v2563 = vpop.f32.mrb[0].mxu0
    %v2564 = vadd.f32 %v2451, %v2563
    %v2565 = vpop.f32.mrb[0].mxu0
    %v2566 = vadd.f32 %v2453, %v2565
    %v2567 = vpop.f32.mrb[0].mxu0
    %v2568 = vadd.f32 %v2455, %v2567
    %v2569 = vpop.f32.mrb[0].mxu0
    %v2570 = vadd.f32 %v2457, %v2569
    %2571 = vmatprep.mubr.bf16.mxu0 %v504
    %2572 = vmatmul.mubr.bf16.gmra.mrb[0].mxu0 %v503
    %v2573 = vpop.f32.mrb[0].mxu0
    %v2574 = vadd.f32 %v2461, %v2573
    %v2575 = vpop.f32.mrb[0].mxu0
    %v2576 = vadd.f32 %v2463, %v2575
    %v2577 = vpop.f32.mrb[0].mxu0
    %v2578 = vadd.f32 %v2465, %v2577
    %v2579 = vpop.f32.mrb[0].mxu0
    %v2580 = vadd.f32 %v2467, %v2579
    %2581 = vdwg.mxu0
    %2582 = vmatprep.subr.bf16.mxu0 %v1813
    %2583 = vmatpush1.bf16.msra.mxu0 %v1812
    %2584 = vmatprep.subr.bf16.mxu0 %v1815
    %2585 = vmatpush1.bf16.msra.mxu0 %v1814
    %2586 = vmatprep.subr.bf16.mxu0 %v1817
    %2587 = vmatpush1.bf16.msra.mxu0 %v1816
    %2588 = vmatprep.subr.bf16.mxu0 %v1819
    %2589 = vmatpush1.bf16.msra.mxu0 %v1818
    %2590 = vmatprep.subr.bf16.mxu0 %v1821
    %2591 = vmatpush1.bf16.msra.mxu0 %v1820
    %2592 = vmatprep.subr.bf16.mxu0 %v1823
    %2593 = vmatpush1.bf16.msra.mxu0 %v1822
    %2594 = vmatprep.subr.bf16.mxu0 %v1825
    %2595 = vmatpush1.bf16.msra.mxu0 %v1824
    %2596 = vmatprep.subr.bf16.mxu0 %v1827
    %2597 = vmatpush1.bf16.msra.mxu0 %v1826
    %2598 = vmatprep.subr.bf16.mxu0 %v1829
    %2599 = vmatpush1.bf16.msra.mxu0 %v1828
    %2600 = vmatprep.subr.bf16.mxu0 %v1831
    %2601 = vmatpush1.bf16.msra.mxu0 %v1830
    %2602 = vmatprep.subr.bf16.mxu0 %v1833
    %2603 = vmatpush1.bf16.msra.mxu0 %v1832
    %2604 = vmatprep.subr.bf16.mxu0 %v1835
    %2605 = vmatpush1.bf16.msra.mxu0 %v1834
    %2606 = vmatprep.subr.bf16.mxu0 %v1837
    %2607 = vmatpush1.bf16.msra.mxu0 %v1836
    %2608 = vmatprep.subr.bf16.mxu0 %v1839
    %2609 = vmatpush1.bf16.msra.mxu0 %v1838
    %2610 = vmatprep.subr.bf16.mxu0 %v1841
    %2611 = vmatpush1.bf16.msra.mxu0 %v1840
    %2612 = vmatprep.subr.bf16.mxu0 %v1843
    %2613 = vmatpush1.bf16.msra.mxu0 %v1842
    %2614 = vmatprep.mubr.bf16.mxu0 %v373
    %2615 = vmatmul.mubr.bf16.gmra.mrb[0].mxu0 %v372
    %v2616 = vpop.f32.mrb[0].mxu0
    %v2617 = vadd.f32 %v2504, %v2616
    %v2618 = vpop.f32.mrb[0].mxu0
    %v2619 = vadd.f32 %v2506, %v2618
    %v2620 = vpop.f32.mrb[0].mxu0
    %v2621 = vadd.f32 %v2508, %v2620
    %v2622 = vpop.f32.mrb[0].mxu0
    %v2623 = vadd.f32 %v2510, %v2622
    %2624 = vmatprep.mubr.bf16.mxu0 %v392
    %2625 = vmatmul.mubr.bf16.gmra.mrb[0].mxu0 %v391
    %v2626 = vpop.f32.mrb[0].mxu0
    %v2627 = vadd.f32 %v2514, %v2626
    %v2628 = vpop.f32.mrb[0].mxu0
    %v2629 = vadd.f32 %v2516, %v2628
    %v2630 = vpop.f32.mrb[0].mxu0
    %v2631 = vadd.f32 %v2518, %v2630
    %v2632 = vpop.f32.mrb[0].mxu0
    %v2633 = vadd.f32 %v2520, %v2632
    %2634 = vmatprep.mubr.bf16.mxu0 %v411
    %2635 = vmatmul.mubr.bf16.gmra.mrb[0].mxu0 %v410
    %v2636 = vpop.f32.mrb[0].mxu0
    %v2637 = vadd.f32 %v2524, %v2636
    %v2638 = vpop.f32.mrb[0].mxu0
    %v2639 = vadd.f32 %v2526, %v2638
    %v2640 = vpop.f32.mrb[0].mxu0
    %v2641 = vadd.f32 %v2528, %v2640
    %v2642 = vpop.f32.mrb[0].mxu0
    %v2643 = vadd.f32 %v2530, %v2642
    %2644 = vmatprep.mubr.bf16.mxu0 %v430
    %2645 = vmatmul.mubr.bf16.gmra.mrb[0].mxu0 %v429
    %v2646 = vpop.f32.mrb[0].mxu0
    %v2647 = vadd.f32 %v2534, %v2646
    %v2648 = vpop.f32.mrb[0].mxu0
    %v2649 = vadd.f32 %v2536, %v2648
    %v2650 = vpop.f32.mrb[0].mxu0
    %v2651 = vadd.f32 %v2538, %v2650
    %v2652 = vpop.f32.mrb[0].mxu0
    %v2653 = vadd.f32 %v2540, %v2652
    %2654 = vmatprep.mubr.bf16.mxu0 %v449
    %2655 = vmatmul.mubr.bf16.gmra.mrb[0].mxu0 %v448
    %v2656 = vpop.f32.mrb[0].mxu0
    %v2657 = vadd.f32 %v2544, %v2656
    %v2658 = vpop.f32.mrb[0].mxu0
    %v2659 = vadd.f32 %v2546, %v2658
    %v2660 = vpop.f32.mrb[0].mxu0
    %v2661 = vadd.f32 %v2548, %v2660
    %v2662 = vpop.f32.mrb[0].mxu0
    %v2663 = vadd.f32 %v2550, %v2662
    %2664 = vmatprep.mubr.bf16.mxu0 %v468
    %2665 = vmatmul.mubr.bf16.gmra.mrb[0].mxu0 %v467
    %v2666 = vpop.f32.mrb[0].mxu0
    %v2667 = vadd.f32 %v2554, %v2666
    %v2668 = vpop.f32.mrb[0].mxu0
    %v2669 = vadd.f32 %v2556, %v2668
    %v2670 = vpop.f32.mrb[0].mxu0
    %v2671 = vadd.f32 %v2558, %v2670
    %v2672 = vpop.f32.mrb[0].mxu0
    %v2673 = vadd.f32 %v2560, %v2672
    %2674 = vmatprep.mubr.bf16.mxu0 %v487
    %2675 = vmatmul.mubr.bf16.gmra.mrb[0].mxu0 %v486
    %v2676 = vpop.f32.mrb[0].mxu0
    %v2677 = vadd.f32 %v2564, %v2676
    %v2678 = vpop.f32.mrb[0].mxu0
    %v2679 = vadd.f32 %v2566, %v2678
    %v2680 = vpop.f32.mrb[0].mxu0
    %v2681 = vadd.f32 %v2568, %v2680
    %v2682 = vpop.f32.mrb[0].mxu0
    %v2683 = vadd.f32 %v2570, %v2682
    %2684 = vmatprep.mubr.bf16.mxu0 %v506
    %2685 = vmatmul.mubr.bf16.gmra.mrb[0].mxu0 %v505
    %v2686 = vpop.f32.mrb[0].mxu0
    %v2687 = vadd.f32 %v2574, %v2686
    %v2688 = vpop.f32.mrb[0].mxu0
    %v2689 = vadd.f32 %v2576, %v2688
    %v2690 = vpop.f32.mrb[0].mxu0
    %v2691 = vadd.f32 %v2578, %v2690
    %v2692 = vpop.f32.mrb[0].mxu0
    %v2693 = vadd.f32 %v2580, %v2692
    %2694 = vdwg.mxu0
    %2695 = vmatprep.subr.bf16.mxu0 %v1845
    %2696 = vmatpush1.bf16.msra.mxu0 %v1844
    %2697 = vmatprep.subr.bf16.mxu0 %v1847
    %2698 = vmatpush1.bf16.msra.mxu0 %v1846
    %2699 = vmatprep.subr.bf16.mxu0 %v1849
    %2700 = vmatpush1.bf16.msra.mxu0 %v1848
    %2701 = vmatprep.subr.bf16.mxu0 %v1851
    %2702 = vmatpush1.bf16.msra.mxu0 %v1850
    %2703 = vmatprep.subr.bf16.mxu0 %v1853
    %2704 = vmatpush1.bf16.msra.mxu0 %v1852
    %2705 = vmatprep.subr.bf16.mxu0 %v1855
    %2706 = vmatpush1.bf16.msra.mxu0 %v1854
    %2707 = vmatprep.subr.bf16.mxu0 %v1857
    %2708 = vmatpush1.bf16.msra.mxu0 %v1856
    %2709 = vmatprep.subr.bf16.mxu0 %v1859
    %2710 = vmatpush1.bf16.msra.mxu0 %v1858
    %2711 = vmatprep.subr.bf16.mxu0 %v1861
    %2712 = vmatpush1.bf16.msra.mxu0 %v1860
    %2713 = vmatprep.subr.bf16.mxu0 %v1863
    %2714 = vmatpush1.bf16.msra.mxu0 %v1862
    %2715 = vmatprep.subr.bf16.mxu0 %v1865
    %2716 = vmatpush1.bf16.msra.mxu0 %v1864
    %2717 = vmatprep.subr.bf16.mxu0 %v1867
    %2718 = vmatpush1.bf16.msra.mxu0 %v1866
    %2719 = vmatprep.subr.bf16.mxu0 %v1869
    %2720 = vmatpush1.bf16.msra.mxu0 %v1868
    %2721 = vmatprep.subr.bf16.mxu0 %v1871
    %2722 = vmatpush1.bf16.msra.mxu0 %v1870
    %2723 = vmatprep.subr.bf16.mxu0 %v1873
    %2724 = vmatpush1.bf16.msra.mxu0 %v1872
    %2725 = vmatprep.subr.bf16.mxu0 %v1875
    %2726 = vmatpush1.bf16.msra.mxu0 %v1874
    %2727 = vmatprep.mubr.bf16.mxu0 %v375
    %2728 = vmatmul.mubr.bf16.gmra.mrb[0].mxu0 %v374
    %v2729 = vpop.f32.mrb[0].mxu0
    %v2730 = vadd.f32 %v2617, %v2729
    %v2731 = vpop.f32.mrb[0].mxu0
    %v2732 = vadd.f32 %v2619, %v2731
    %v2733 = vpop.f32.mrb[0].mxu0
    %v2734 = vadd.f32 %v2621, %v2733
    %v2735 = vpop.f32.mrb[0].mxu0
    %v2736 = vadd.f32 %v2623, %v2735
    %2737 = vmatprep.mubr.bf16.mxu0 %v394
    %2738 = vmatmul.mubr.bf16.gmra.mrb[0].mxu0 %v393
    %v2739 = vpop.f32.mrb[0].mxu0
    %v2740 = vadd.f32 %v2627, %v2739
    %v2741 = vpop.f32.mrb[0].mxu0
    %v2742 = vadd.f32 %v2629, %v2741
    %v2743 = vpop.f32.mrb[0].mxu0
    %v2744 = vadd.f32 %v2631, %v2743
    %v2745 = vpop.f32.mrb[0].mxu0
    %v2746 = vadd.f32 %v2633, %v2745
    %2747 = vmatprep.mubr.bf16.mxu0 %v413
    %2748 = vmatmul.mubr.bf16.gmra.mrb[0].mxu0 %v412
    %v2749 = vpop.f32.mrb[0].mxu0
    %v2750 = vadd.f32 %v2637, %v2749
    %v2751 = vpop.f32.mrb[0].mxu0
    %v2752 = vadd.f32 %v2639, %v2751
    %v2753 = vpop.f32.mrb[0].mxu0
    %v2754 = vadd.f32 %v2641, %v2753
    %v2755 = vpop.f32.mrb[0].mxu0
    %v2756 = vadd.f32 %v2643, %v2755
    %2757 = vmatprep.mubr.bf16.mxu0 %v432
    %2758 = vmatmul.mubr.bf16.gmra.mrb[0].mxu0 %v431
    %v2759 = vpop.f32.mrb[0].mxu0
    %v2760 = vadd.f32 %v2647, %v2759
    %v2761 = vpop.f32.mrb[0].mxu0
    %v2762 = vadd.f32 %v2649, %v2761
    %v2763 = vpop.f32.mrb[0].mxu0
    %v2764 = vadd.f32 %v2651, %v2763
    %v2765 = vpop.f32.mrb[0].mxu0
    %v2766 = vadd.f32 %v2653, %v2765
    %2767 = vmatprep.mubr.bf16.mxu0 %v451
    %2768 = vmatmul.mubr.bf16.gmra.mrb[0].mxu0 %v450
    %v2769 = vpop.f32.mrb[0].mxu0
    %v2770 = vadd.f32 %v2657, %v2769
    %v2771 = vpop.f32.mrb[0].mxu0
    %v2772 = vadd.f32 %v2659, %v2771
    %v2773 = vpop.f32.mrb[0].mxu0
    %v2774 = vadd.f32 %v2661, %v2773
    %v2775 = vpop.f32.mrb[0].mxu0
    %v2776 = vadd.f32 %v2663, %v2775
    %2777 = vmatprep.mubr.bf16.mxu0 %v470
    %2778 = vmatmul.mubr.bf16.gmra.mrb[0].mxu0 %v469
    %v2779 = vpop.f32.mrb[0].mxu0
    %v2780 = vadd.f32 %v2667, %v2779
    %v2781 = vpop.f32.mrb[0].mxu0
    %v2782 = vadd.f32 %v2669, %v2781
    %v2783 = vpop.f32.mrb[0].mxu0
    %v2784 = vadd.f32 %v2671, %v2783
    %v2785 = vpop.f32.mrb[0].mxu0
    %v2786 = vadd.f32 %v2673, %v2785
    %2787 = vmatprep.mubr.bf16.mxu0 %v489
    %2788 = vmatmul.mubr.bf16.gmra.mrb[0].mxu0 %v488
    %v2789 = vpop.f32.mrb[0].mxu0
    %v2790 = vadd.f32 %v2677, %v2789
    %v2791 = vpop.f32.mrb[0].mxu0
    %v2792 = vadd.f32 %v2679, %v2791
    %v2793 = vpop.f32.mrb[0].mxu0
    %v2794 = vadd.f32 %v2681, %v2793
    %v2795 = vpop.f32.mrb[0].mxu0
    %v2796 = vadd.f32 %v2683, %v2795
    %2797 = vmatprep.mubr.bf16.mxu0 %v508
    %2798 = vmatmul.mubr.bf16.gmra.mrb[0].mxu0 %v507
    %v2799 = vpop.f32.mrb[0].mxu0
    %v2800 = vadd.f32 %v2687, %v2799
    %v2801 = vpop.f32.mrb[0].mxu0
    %v2802 = vadd.f32 %v2689, %v2801
    %v2803 = vpop.f32.mrb[0].mxu0
    %v2804 = vadd.f32 %v2691, %v2803
    %v2805 = vpop.f32.mrb[0].mxu0
    %v2806 = vadd.f32 %v2693, %v2805
    %2807 = vdwg.mxu0
    %2808 = vmatprep.subr.bf16.mxu0 %v1877
    %2809 = vmatpush1.bf16.msra.mxu0 %v1876
    %2810 = vmatprep.subr.bf16.mxu0 %v1879
    %2811 = vmatpush1.bf16.msra.mxu0 %v1878
    %2812 = vmatprep.subr.bf16.mxu0 %v1881
    %2813 = vmatpush1.bf16.msra.mxu0 %v1880
    %2814 = vmatprep.subr.bf16.mxu0 %v1883
    %2815 = vmatpush1.bf16.msra.mxu0 %v1882
    %2816 = vmatprep.subr.bf16.mxu0 %v1885
    %2817 = vmatpush1.bf16.msra.mxu0 %v1884
    %2818 = vmatprep.subr.bf16.mxu0 %v1887
    %2819 = vmatpush1.bf16.msra.mxu0 %v1886
    %2820 = vmatprep.subr.bf16.mxu0 %v1889
    %2821 = vmatpush1.bf16.msra.mxu0 %v1888
    %2822 = vmatprep.subr.bf16.mxu0 %v1891
    %2823 = vmatpush1.bf16.msra.mxu0 %v1890
    %2824 = vmatprep.subr.bf16.mxu0 %v1893
    %2825 = vmatpush1.bf16.msra.mxu0 %v1892
    %2826 = vmatprep.subr.bf16.mxu0 %v1895
    %2827 = vmatpush1.bf16.msra.mxu0 %v1894
    %2828 = vmatprep.subr.bf16.mxu0 %v1897
    %2829 = vmatpush1.bf16.msra.mxu0 %v1896
    %2830 = vmatprep.subr.bf16.mxu0 %v1899
    %2831 = vmatpush1.bf16.msra.mxu0 %v1898
    %2832 = vmatprep.subr.bf16.mxu0 %v1901
    %2833 = vmatpush1.bf16.msra.mxu0 %v1900
    %2834 = vmatprep.subr.bf16.mxu0 %v1903
    %2835 = vmatpush1.bf16.msra.mxu0 %v1902
    %2836 = vmatprep.subr.bf16.mxu0 %v1905
    %2837 = vmatpush1.bf16.msra.mxu0 %v1904
    %2838 = vmatprep.subr.bf16.mxu0 %v1907
    %2839 = vmatpush1.bf16.msra.mxu0 %v1906
    %2840 = vmatprep.mubr.bf16.mxu0 %v377
    %2841 = vmatmul.mubr.bf16.gmra.mrb[0].mxu0 %v376
    %v2842 = vpop.f32.mrb[0].mxu0
    %v2843 = vadd.f32 %v2730, %v2842
    %v2844 = vpop.f32.mrb[0].mxu0
    %v2845 = vadd.f32 %v2732, %v2844
    %v2846 = vpop.f32.mrb[0].mxu0
    %v2847 = vadd.f32 %v2734, %v2846
    %v2848 = vpop.f32.mrb[0].mxu0
    %v2849 = vadd.f32 %v2736, %v2848
    %2850 = vmatprep.mubr.bf16.mxu0 %v396
    %2851 = vmatmul.mubr.bf16.gmra.mrb[0].mxu0 %v395
    %v2852 = vpop.f32.mrb[0].mxu0
    %v2853 = vadd.f32 %v2740, %v2852
    %v2854 = vpop.f32.mrb[0].mxu0
    %v2855 = vadd.f32 %v2742, %v2854
    %v2856 = vpop.f32.mrb[0].mxu0
    %v2857 = vadd.f32 %v2744, %v2856
    %v2858 = vpop.f32.mrb[0].mxu0
    %v2859 = vadd.f32 %v2746, %v2858
    %2860 = vmatprep.mubr.bf16.mxu0 %v415
    %2861 = vmatmul.mubr.bf16.gmra.mrb[0].mxu0 %v414
    %v2862 = vpop.f32.mrb[0].mxu0
    %v2863 = vadd.f32 %v2750, %v2862
    %v2864 = vpop.f32.mrb[0].mxu0
    %v2865 = vadd.f32 %v2752, %v2864
    %v2866 = vpop.f32.mrb[0].mxu0
    %v2867 = vadd.f32 %v2754, %v2866
    %v2868 = vpop.f32.mrb[0].mxu0
    %v2869 = vadd.f32 %v2756, %v2868
    %2870 = vmatprep.mubr.bf16.mxu0 %v434
    %2871 = vmatmul.mubr.bf16.gmra.mrb[0].mxu0 %v433
    %v2872 = vpop.f32.mrb[0].mxu0
    %v2873 = vadd.f32 %v2760, %v2872
    %v2874 = vpop.f32.mrb[0].mxu0
    %v2875 = vadd.f32 %v2762, %v2874
    %v2876 = vpop.f32.mrb[0].mxu0
    %v2877 = vadd.f32 %v2764, %v2876
    %v2878 = vpop.f32.mrb[0].mxu0
    %v2879 = vadd.f32 %v2766, %v2878
    %2880 = vmatprep.mubr.bf16.mxu0 %v453
    %2881 = vmatmul.mubr.bf16.gmra.mrb[0].mxu0 %v452
    %v2882 = vpop.f32.mrb[0].mxu0
    %v2883 = vadd.f32 %v2770, %v2882
    %v2884 = vpop.f32.mrb[0].mxu0
    %v2885 = vadd.f32 %v2772, %v2884
    %v2886 = vpop.f32.mrb[0].mxu0
    %v2887 = vadd.f32 %v2774, %v2886
    %v2888 = vpop.f32.mrb[0].mxu0
    %v2889 = vadd.f32 %v2776, %v2888
    %2890 = vmatprep.mubr.bf16.mxu0 %v472
    %2891 = vmatmul.mubr.bf16.gmra.mrb[0].mxu0 %v471
    %v2892 = vpop.f32.mrb[0].mxu0
    %v2893 = vadd.f32 %v2780, %v2892
    %v2894 = vpop.f32.mrb[0].mxu0
    %v2895 = vadd.f32 %v2782, %v2894
    %v2896 = vpop.f32.mrb[0].mxu0
    %v2897 = vadd.f32 %v2784, %v2896
    %v2898 = vpop.f32.mrb[0].mxu0
    %v2899 = vadd.f32 %v2786, %v2898
    %2900 = vmatprep.mubr.bf16.mxu0 %v491
    %2901 = vmatmul.mubr.bf16.gmra.mrb[0].mxu0 %v490
    %v2902 = vpop.f32.mrb[0].mxu0
    %v2903 = vadd.f32 %v2790, %v2902
    %v2904 = vpop.f32.mrb[0].mxu0
    %v2905 = vadd.f32 %v2792, %v2904
    %v2906 = vpop.f32.mrb[0].mxu0
    %v2907 = vadd.f32 %v2794, %v2906
    %v2908 = vpop.f32.mrb[0].mxu0
    %v2909 = vadd.f32 %v2796, %v2908
    %2910 = vmatprep.mubr.bf16.mxu0 %v510
    %2911 = vmatmul.mubr.bf16.gmra.mrb[0].mxu0 %v509
    %v2912 = vpop.f32.mrb[0].mxu0
    %v2913 = vadd.f32 %v2800, %v2912
    %v2914 = vpop.f32.mrb[0].mxu0
    %v2915 = vadd.f32 %v2802, %v2914
    %v2916 = vpop.f32.mrb[0].mxu0
    %v2917 = vadd.f32 %v2804, %v2916
    %v2918 = vpop.f32.mrb[0].mxu0
    %v2919 = vadd.f32 %v2806, %v2918
    %2920 = vdwg.mxu0
    %2921 = vmatprep.subr.bf16.mxu0 %v1909
    %2922 = vmatpush1.bf16.msra.mxu0 %v1908
    %2923 = vmatprep.subr.bf16.mxu0 %v1911
    %2924 = vmatpush1.bf16.msra.mxu0 %v1910
    %2925 = vmatprep.subr.bf16.mxu0 %v1913
    %2926 = vmatpush1.bf16.msra.mxu0 %v1912
    %2927 = vmatprep.subr.bf16.mxu0 %v1915
    %2928 = vmatpush1.bf16.msra.mxu0 %v1914
    %2929 = vmatprep.subr.bf16.mxu0 %v1917
    %2930 = vmatpush1.bf16.msra.mxu0 %v1916
    %2931 = vmatprep.subr.bf16.mxu0 %v1919
    %2932 = vmatpush1.bf16.msra.mxu0 %v1918
    %2933 = vmatprep.subr.bf16.mxu0 %v1921
    %2934 = vmatpush1.bf16.msra.mxu0 %v1920
    %2935 = vmatprep.subr.bf16.mxu0 %v1923
    %2936 = vmatpush1.bf16.msra.mxu0 %v1922
    %2937 = vmatprep.subr.bf16.mxu0 %v1925
    %2938 = vmatpush1.bf16.msra.mxu0 %v1924
    %2939 = vmatprep.subr.bf16.mxu0 %v1927
    %2940 = vmatpush1.bf16.msra.mxu0 %v1926
    %2941 = vmatprep.subr.bf16.mxu0 %v1929
    %2942 = vmatpush1.bf16.msra.mxu0 %v1928
    %2943 = vmatprep.subr.bf16.mxu0 %v1931
    %2944 = vmatpush1.bf16.msra.mxu0 %v1930
    %2945 = vmatprep.subr.bf16.mxu0 %v1933
    %2946 = vmatpush1.bf16.msra.mxu0 %v1932
    %2947 = vmatprep.subr.bf16.mxu0 %v1935
    %2948 = vmatpush1.bf16.msra.mxu0 %v1934
    %2949 = vmatprep.subr.bf16.mxu0 %v1937
    %2950 = vmatpush1.bf16.msra.mxu0 %v1936
    %2951 = vmatprep.subr.bf16.mxu0 %v1939
    %2952 = vmatpush1.bf16.msra.mxu0 %v1938
    %2953 = vmatprep.mubr.bf16.mxu0 %v379
    %2954 = vmatmul.mubr.bf16.gmra.mrb[0].mxu0 %v378
    %v2955 = vpop.f32.mrb[0].mxu0
    %v2956 = vadd.f32 %v2843, %v2955
    %v2957 = vpop.f32.mrb[0].mxu0
    %v2958 = vadd.f32 %v2845, %v2957
    %v2959 = vpop.f32.mrb[0].mxu0
    %v2960 = vadd.f32 %v2847, %v2959
    %v2961 = vpop.f32.mrb[0].mxu0
    %v2962 = vadd.f32 %v2849, %v2961
    %2963 = vmatprep.mubr.bf16.mxu0 %v398
    %2964 = vmatmul.mubr.bf16.gmra.mrb[0].mxu0 %v397
    %v2965 = vpop.f32.mrb[0].mxu0
    %v2966 = vadd.f32 %v2853, %v2965
    %v2967 = vpop.f32.mrb[0].mxu0
    %v2968 = vadd.f32 %v2855, %v2967
    %v2969 = vpop.f32.mrb[0].mxu0
    %v2970 = vadd.f32 %v2857, %v2969
    %v2971 = vpop.f32.mrb[0].mxu0
    %v2972 = vadd.f32 %v2859, %v2971
    %2973 = vmatprep.mubr.bf16.mxu0 %v417
    %2974 = vmatmul.mubr.bf16.gmra.mrb[0].mxu0 %v416
    %v2975 = vpop.f32.mrb[0].mxu0
    %v2976 = vadd.f32 %v2863, %v2975
    %v2977 = vpop.f32.mrb[0].mxu0
    %v2978 = vadd.f32 %v2865, %v2977
    %v2979 = vpop.f32.mrb[0].mxu0
    %v2980 = vadd.f32 %v2867, %v2979
    %v2981 = vpop.f32.mrb[0].mxu0
    %v2982 = vadd.f32 %v2869, %v2981
    %2983 = vmatprep.mubr.bf16.mxu0 %v436
    %2984 = vmatmul.mubr.bf16.gmra.mrb[0].mxu0 %v435
    %v2985 = vpop.f32.mrb[0].mxu0
    %v2986 = vadd.f32 %v2873, %v2985
    %v2987 = vpop.f32.mrb[0].mxu0
    %v2988 = vadd.f32 %v2875, %v2987
    %v2989 = vpop.f32.mrb[0].mxu0
    %v2990 = vadd.f32 %v2877, %v2989
    %v2991 = vpop.f32.mrb[0].mxu0
    %v2992 = vadd.f32 %v2879, %v2991
    %2993 = vmatprep.mubr.bf16.mxu0 %v455
    %2994 = vmatmul.mubr.bf16.gmra.mrb[0].mxu0 %v454
    %v2995 = vpop.f32.mrb[0].mxu0
    %v2996 = vadd.f32 %v2883, %v2995
    %v2997 = vpop.f32.mrb[0].mxu0
    %v2998 = vadd.f32 %v2885, %v2997
    %v2999 = vpop.f32.mrb[0].mxu0
    %v3000 = vadd.f32 %v2887, %v2999
    %v3001 = vpop.f32.mrb[0].mxu0
    %v3002 = vadd.f32 %v2889, %v3001
    %3003 = vmatprep.mubr.bf16.mxu0 %v474
    %3004 = vmatmul.mubr.bf16.gmra.mrb[0].mxu0 %v473
    %v3005 = vpop.f32.mrb[0].mxu0
    %v3006 = vadd.f32 %v2893, %v3005
    %v3007 = vpop.f32.mrb[0].mxu0
    %v3008 = vadd.f32 %v2895, %v3007
    %v3009 = vpop.f32.mrb[0].mxu0
    %v3010 = vadd.f32 %v2897, %v3009
    %v3011 = vpop.f32.mrb[0].mxu0
    %v3012 = vadd.f32 %v2899, %v3011
    %3013 = vmatprep.mubr.bf16.mxu0 %v493
    %3014 = vmatmul.mubr.bf16.gmra.mrb[0].mxu0 %v492
    %v3015 = vpop.f32.mrb[0].mxu0
    %v3016 = vadd.f32 %v2903, %v3015
    %v3017 = vpop.f32.mrb[0].mxu0
    %v3018 = vadd.f32 %v2905, %v3017
    %v3019 = vpop.f32.mrb[0].mxu0
    %v3020 = vadd.f32 %v2907, %v3019
    %v3021 = vpop.f32.mrb[0].mxu0
    %v3022 = vadd.f32 %v2909, %v3021
    %3023 = vmatprep.mubr.bf16.mxu0 %v512
    %3024 = vmatmul.mubr.bf16.gmra.mrb[0].mxu0 %v511
    %v3025 = vpop.f32.mrb[0].mxu0
    %v3026 = vadd.f32 %v2913, %v3025
    %v3027 = vpop.f32.mrb[0].mxu0
    %v3028 = vadd.f32 %v2915, %v3027
    %v3029 = vpop.f32.mrb[0].mxu0
    %v3030 = vadd.f32 %v2917, %v3029
    %v3031 = vpop.f32.mrb[0].mxu0
    %v3032 = vadd.f32 %v2919, %v3031
    %3033 = vdwg.mxu0
    %3034 = vmatprep.subr.bf16.mxu0 %v1941
    %3035 = vmatpush1.bf16.msra.mxu0 %v1940
    %3036 = vmatprep.subr.bf16.mxu0 %v1943
    %3037 = vmatpush1.bf16.msra.mxu0 %v1942
    %3038 = vmatprep.subr.bf16.mxu0 %v1945
    %3039 = vmatpush1.bf16.msra.mxu0 %v1944
    %3040 = vmatprep.subr.bf16.mxu0 %v1947
    %3041 = vmatpush1.bf16.msra.mxu0 %v1946
    %3042 = vmatprep.subr.bf16.mxu0 %v1949
    %3043 = vmatpush1.bf16.msra.mxu0 %v1948
    %3044 = vmatprep.subr.bf16.mxu0 %v1951
    %3045 = vmatpush1.bf16.msra.mxu0 %v1950
    %3046 = vmatprep.subr.bf16.mxu0 %v1953
    %3047 = vmatpush1.bf16.msra.mxu0 %v1952
    %3048 = vmatprep.subr.bf16.mxu0 %v1955
    %3049 = vmatpush1.bf16.msra.mxu0 %v1954
    %3050 = vmatprep.subr.bf16.mxu0 %v1957
    %3051 = vmatpush1.bf16.msra.mxu0 %v1956
    %3052 = vmatprep.subr.bf16.mxu0 %v1959
    %3053 = vmatpush1.bf16.msra.mxu0 %v1958
    %3054 = vmatprep.subr.bf16.mxu0 %v1961
    %3055 = vmatpush1.bf16.msra.mxu0 %v1960
    %3056 = vmatprep.subr.bf16.mxu0 %v1963
    %3057 = vmatpush1.bf16.msra.mxu0 %v1962
    %3058 = vmatprep.subr.bf16.mxu0 %v1965
    %3059 = vmatpush1.bf16.msra.mxu0 %v1964
    %3060 = vmatprep.subr.bf16.mxu0 %v1967
    %3061 = vmatpush1.bf16.msra.mxu0 %v1966
    %3062 = vmatprep.subr.bf16.mxu0 %v1969
    %3063 = vmatpush1.bf16.msra.mxu0 %v1968
    %3064 = vmatprep.subr.bf16.mxu0 %v1971
    %3065 = vmatpush1.bf16.msra.mxu0 %v1970
    %3066 = vmatprep.mubr.bf16.mxu0 %v381
    %3067 = vmatmul.mubr.bf16.gmra.mrb[0].mxu0 %v380
    %v3068 = vpop.f32.mrb[0].mxu0
    %v3069 = vadd.f32 %v2956, %v3068
    %v3070 = vpop.f32.mrb[0].mxu0
    %v3071 = vadd.f32 %v2958, %v3070
    %v3072 = vpop.f32.mrb[0].mxu0
    %v3073 = vadd.f32 %v2960, %v3072
    %v3074 = vpop.f32.mrb[0].mxu0
    %v3075 = vadd.f32 %v2962, %v3074
    %3076 = vmatprep.mubr.bf16.mxu0 %v400
    %3077 = vmatmul.mubr.bf16.gmra.mrb[0].mxu0 %v399
    %v3078 = vpop.f32.mrb[0].mxu0
    %v3079 = vadd.f32 %v2966, %v3078
    %v3080 = vpop.f32.mrb[0].mxu0
    %v3081 = vadd.f32 %v2968, %v3080
    %v3082 = vpop.f32.mrb[0].mxu0
    %v3083 = vadd.f32 %v2970, %v3082
    %v3084 = vpop.f32.mrb[0].mxu0
    %v3085 = vadd.f32 %v2972, %v3084
    %3086 = vmatprep.mubr.bf16.mxu0 %v419
    %3087 = vmatmul.mubr.bf16.gmra.mrb[0].mxu0 %v418
    %v3088 = vpop.f32.mrb[0].mxu0
    %v3089 = vadd.f32 %v2976, %v3088
    %v3090 = vpop.f32.mrb[0].mxu0
    %v3091 = vadd.f32 %v2978, %v3090
    %v3092 = vpop.f32.mrb[0].mxu0
    %v3093 = vadd.f32 %v2980, %v3092
    %v3094 = vpop.f32.mrb[0].mxu0
    %v3095 = vadd.f32 %v2982, %v3094
    %3096 = vmatprep.mubr.bf16.mxu0 %v438
    %3097 = vmatmul.mubr.bf16.gmra.mrb[0].mxu0 %v437
    %v3098 = vpop.f32.mrb[0].mxu0
    %v3099 = vadd.f32 %v2986, %v3098
    %v3100 = vpop.f32.mrb[0].mxu0
    %v3101 = vadd.f32 %v2988, %v3100
    %v3102 = vpop.f32.mrb[0].mxu0
    %v3103 = vadd.f32 %v2990, %v3102
    %v3104 = vpop.f32.mrb[0].mxu0
    %v3105 = vadd.f32 %v2992, %v3104
    %3106 = vmatprep.mubr.bf16.mxu0 %v457
    %3107 = vmatmul.mubr.bf16.gmra.mrb[0].mxu0 %v456
    %v3108 = vpop.f32.mrb[0].mxu0
    %v3109 = vadd.f32 %v2996, %v3108
    %v3110 = vpop.f32.mrb[0].mxu0
    %v3111 = vadd.f32 %v2998, %v3110
    %v3112 = vpop.f32.mrb[0].mxu0
    %v3113 = vadd.f32 %v3000, %v3112
    %v3114 = vpop.f32.mrb[0].mxu0
    %v3115 = vadd.f32 %v3002, %v3114
    %3116 = vmatprep.mubr.bf16.mxu0 %v476
    %3117 = vmatmul.mubr.bf16.gmra.mrb[0].mxu0 %v475
    %v3118 = vpop.f32.mrb[0].mxu0
    %v3119 = vadd.f32 %v3006, %v3118
    %v3120 = vpop.f32.mrb[0].mxu0
    %v3121 = vadd.f32 %v3008, %v3120
    %v3122 = vpop.f32.mrb[0].mxu0
    %v3123 = vadd.f32 %v3010, %v3122
    %v3124 = vpop.f32.mrb[0].mxu0
    %v3125 = vadd.f32 %v3012, %v3124
    %3126 = vmatprep.mubr.bf16.mxu0 %v495
    %3127 = vmatmul.mubr.bf16.gmra.mrb[0].mxu0 %v494
    %v3128 = vpop.f32.mrb[0].mxu0
    %v3129 = vadd.f32 %v3016, %v3128
    %v3130 = vpop.f32.mrb[0].mxu0
    %v3131 = vadd.f32 %v3018, %v3130
    %v3132 = vpop.f32.mrb[0].mxu0
    %v3133 = vadd.f32 %v3020, %v3132
    %v3134 = vpop.f32.mrb[0].mxu0
    %v3135 = vadd.f32 %v3022, %v3134
    %3136 = vmatprep.mubr.bf16.mxu0 %v514
    %3137 = vmatmul.mubr.bf16.gmra.mrb[0].mxu0 %v513
    %v3138 = vpop.f32.mrb[0].mxu0
    %v3139 = vadd.f32 %v3026, %v3138
    %v3140 = vpop.f32.mrb[0].mxu0
    %v3141 = vadd.f32 %v3028, %v3140
    %v3142 = vpop.f32.mrb[0].mxu0
    %v3143 = vadd.f32 %v3030, %v3142
    %v3144 = vpop.f32.mrb[0].mxu0
    %v3145 = vadd.f32 %v3032, %v3144
    %3146 = vdwg.mxu0
    %3147 = vmatprep.subr.bf16.mxu0 %v1973
    %3148 = vmatpush1.bf16.msra.mxu0 %v1972
    %3149 = vmatprep.subr.bf16.mxu0 %v1975
    %3150 = vmatpush1.bf16.msra.mxu0 %v1974
    %3151 = vmatprep.subr.bf16.mxu0 %v1977
    %3152 = vmatpush1.bf16.msra.mxu0 %v1976
    %3153 = vmatprep.subr.bf16.mxu0 %v1979
    %3154 = vmatpush1.bf16.msra.mxu0 %v1978
    %3155 = vmatprep.subr.bf16.mxu0 %v1981
    %3156 = vmatpush1.bf16.msra.mxu0 %v1980
    %3157 = vmatprep.subr.bf16.mxu0 %v1983
    %3158 = vmatpush1.bf16.msra.mxu0 %v1982
    %3159 = vmatprep.subr.bf16.mxu0 %v1985
    %3160 = vmatpush1.bf16.msra.mxu0 %v1984
    %3161 = vmatprep.subr.bf16.mxu0 %v1987
    %3162 = vmatpush1.bf16.msra.mxu0 %v1986
    %3163 = vmatprep.subr.bf16.mxu0 %v1989
    %3164 = vmatpush1.bf16.msra.mxu0 %v1988
    %3165 = vmatprep.subr.bf16.mxu0 %v1991
    %3166 = vmatpush1.bf16.msra.mxu0 %v1990
    %3167 = vmatprep.subr.bf16.mxu0 %v1993
    %3168 = vmatpush1.bf16.msra.mxu0 %v1992
    %3169 = vmatprep.subr.bf16.mxu0 %v1995
    %3170 = vmatpush1.bf16.msra.mxu0 %v1994
    %3171 = vmatprep.subr.bf16.mxu0 %v1997
    %3172 = vmatpush1.bf16.msra.mxu0 %v1996
    %3173 = vmatprep.subr.bf16.mxu0 %v1999
    %3174 = vmatpush1.bf16.msra.mxu0 %v1998
    %3175 = vmatprep.subr.bf16.mxu0 %v2001
    %3176 = vmatpush1.bf16.msra.mxu0 %v2000
    %3177 = vmatprep.subr.bf16.mxu0 %v2003
    %3178 = vmatpush1.bf16.msra.mxu0 %v2002
    %3179 = vmatprep.mubr.bf16.mxu0 %v383
    %3180 = vmatmul.mubr.bf16.gmra.mrb[0].mxu0 %v382
    %v3181 = vpop.f32.mrb[0].mxu0
    %v3182 = vadd.f32 %v3069, %v3181
    %v3183 = vpop.f32.mrb[0].mxu0
    %v3184 = vadd.f32 %v3071, %v3183
    %v3185 = vpop.f32.mrb[0].mxu0
    %v3186 = vadd.f32 %v3073, %v3185
    %v3187 = vpop.f32.mrb[0].mxu0
    %v3188 = vadd.f32 %v3075, %v3187
    %3189 = vmatprep.mubr.bf16.mxu0 %v402
    %3190 = vmatmul.mubr.bf16.gmra.mrb[0].mxu0 %v401
    %v3191 = vpop.f32.mrb[0].mxu0
    %v3192 = vadd.f32 %v3079, %v3191
    %v3193 = vpop.f32.mrb[0].mxu0
    %v3194 = vadd.f32 %v3081, %v3193
    %v3195 = vpop.f32.mrb[0].mxu0
    %v3196 = vadd.f32 %v3083, %v3195
    %v3197 = vpop.f32.mrb[0].mxu0
    %v3198 = vadd.f32 %v3085, %v3197
    %3199 = vmatprep.mubr.bf16.mxu0 %v421
    %3200 = vmatmul.mubr.bf16.gmra.mrb[0].mxu0 %v420
    %v3201 = vpop.f32.mrb[0].mxu0
    %v3202 = vadd.f32 %v3089, %v3201
    %v3203 = vpop.f32.mrb[0].mxu0
    %v3204 = vadd.f32 %v3091, %v3203
    %v3205 = vpop.f32.mrb[0].mxu0
    %v3206 = vadd.f32 %v3093, %v3205
    %v3207 = vpop.f32.mrb[0].mxu0
    %v3208 = vadd.f32 %v3095, %v3207
    %3209 = vmatprep.mubr.bf16.mxu0 %v440
    %3210 = vmatmul.mubr.bf16.gmra.mrb[0].mxu0 %v439
    %v3211 = vpop.f32.mrb[0].mxu0
    %v3212 = vadd.f32 %v3099, %v3211
    %v3213 = vpop.f32.mrb[0].mxu0
    %v3214 = vadd.f32 %v3101, %v3213
    %v3215 = vpop.f32.mrb[0].mxu0
    %v3216 = vadd.f32 %v3103, %v3215
    %v3217 = vpop.f32.mrb[0].mxu0
    %v3218 = vadd.f32 %v3105, %v3217
    %3219 = vmatprep.mubr.bf16.mxu0 %v459
    %3220 = vmatmul.mubr.bf16.gmra.mrb[0].mxu0 %v458
    %v3221 = vpop.f32.mrb[0].mxu0
    %v3222 = vadd.f32 %v3109, %v3221
    %v3223 = vpop.f32.mrb[0].mxu0
    %v3224 = vadd.f32 %v3111, %v3223
    %v3225 = vpop.f32.mrb[0].mxu0
    %v3226 = vadd.f32 %v3113, %v3225
    %v3227 = vpop.f32.mrb[0].mxu0
    %v3228 = vadd.f32 %v3115, %v3227
    %3229 = vmatprep.mubr.bf16.mxu0 %v478
    %3230 = vmatmul.mubr.bf16.gmra.mrb[0].mxu0 %v477
    %v3231 = vpop.f32.mrb[0].mxu0
    %v3232 = vadd.f32 %v3119, %v3231
    %v3233 = vpop.f32.mrb[0].mxu0
    %v3234 = vadd.f32 %v3121, %v3233
    %v3235 = vpop.f32.mrb[0].mxu0
    %v3236 = vadd.f32 %v3123, %v3235
    %v3237 = vpop.f32.mrb[0].mxu0
    %v3238 = vadd.f32 %v3125, %v3237
    %3239 = vmatprep.mubr.bf16.mxu0 %v497
    %3240 = vmatmul.mubr.bf16.gmra.mrb[0].mxu0 %v496
    %v3241 = vpop.f32.mrb[0].mxu0
    %v3242 = vadd.f32 %v3129, %v3241
    %v3243 = vpop.f32.mrb[0].mxu0
    %v3244 = vadd.f32 %v3131, %v3243
    %v3245 = vpop.f32.mrb[0].mxu0
    %v3246 = vadd.f32 %v3133, %v3245
    %v3247 = vpop.f32.mrb[0].mxu0
    %v3248 = vadd.f32 %v3135, %v3247
    %3249 = vmatprep.mubr.bf16.mxu0 %v516
    %3250 = vmatmul.mubr.bf16.gmra.mrb[0].mxu0 %v515
    %v3251 = vpop.f32.mrb[0].mxu0
    %v3252 = vadd.f32 %v3139, %v3251
    %v3253 = vpop.f32.mrb[0].mxu0
    %v3254 = vadd.f32 %v3141, %v3253
    %v3255 = vpop.f32.mrb[0].mxu0
    %v3256 = vadd.f32 %v3143, %v3255
    %v3257 = vpop.f32.mrb[0].mxu0
    %v3258 = vadd.f32 %v3145, %v3257
    %3259 = vdwg.mxu0
    %3260 = vmatprep.subr.bf16.mxu0 %v2005
    %3261 = vmatpush1.bf16.msra.mxu0 %v2004
    %3262 = vmatprep.subr.bf16.mxu0 %v2007
    %3263 = vmatpush1.bf16.msra.mxu0 %v2006
    %3264 = vmatprep.subr.bf16.mxu0 %v2009
    %3265 = vmatpush1.bf16.msra.mxu0 %v2008
    %3266 = vmatprep.subr.bf16.mxu0 %v2011
    %3267 = vmatpush1.bf16.msra.mxu0 %v2010
    %3268 = vmatprep.subr.bf16.mxu0 %v2013
    %3269 = vmatpush1.bf16.msra.mxu0 %v2012
    %3270 = vmatprep.subr.bf16.mxu0 %v2015
    %3271 = vmatpush1.bf16.msra.mxu0 %v2014
    %3272 = vmatprep.subr.bf16.mxu0 %v2017
    %3273 = vmatpush1.bf16.msra.mxu0 %v2016
    %3274 = vmatprep.subr.bf16.mxu0 %v2019
    %3275 = vmatpush1.bf16.msra.mxu0 %v2018
    %3276 = vmatprep.subr.bf16.mxu0 %v2021
    %3277 = vmatpush1.bf16.msra.mxu0 %v2020
    %3278 = vmatprep.subr.bf16.mxu0 %v2023
    %3279 = vmatpush1.bf16.msra.mxu0 %v2022
    %3280 = vmatprep.subr.bf16.mxu0 %v2025
    %3281 = vmatpush1.bf16.msra.mxu0 %v2024
    %3282 = vmatprep.subr.bf16.mxu0 %v2027
    %3283 = vmatpush1.bf16.msra.mxu0 %v2026
    %3284 = vmatprep.subr.bf16.mxu0 %v2029
    %3285 = vmatpush1.bf16.msra.mxu0 %v2028
    %3286 = vmatprep.subr.bf16.mxu0 %v2031
    %3287 = vmatpush1.bf16.msra.mxu0 %v2030
    %3288 = vmatprep.subr.bf16.mxu0 %v2033
    %3289 = vmatpush1.bf16.msra.mxu0 %v2032
    %3290 = vmatprep.subr.bf16.mxu0 %v2035
    %3291 = vmatpush1.bf16.msra.mxu0 %v2034
    %3292 = vmatprep.mubr.bf16.mxu0 %v385
    %3293 = vmatmul.mubr.bf16.gmra.mrb[0].mxu0 %v384
    %v3294 = vpop.f32.mrb[0].mxu0
    %v3295 = vadd.f32 %v3182, %v3294
    %v3296 = vpop.f32.mrb[0].mxu0
    %v3297 = vadd.f32 %v3184, %v3296
    %v3298 = vpop.f32.mrb[0].mxu0
    %v3299 = vadd.f32 %v3186, %v3298
    %v3300 = vpop.f32.mrb[0].mxu0
    %v3301 = vadd.f32 %v3188, %v3300
    %3302 = vmatprep.mubr.bf16.mxu0 %v404
    %3303 = vmatmul.mubr.bf16.gmra.mrb[0].mxu0 %v403
    %v3304 = vpop.f32.mrb[0].mxu0
    %v3305 = vadd.f32 %v3192, %v3304
    %v3306 = vpop.f32.mrb[0].mxu0
    %v3307 = vadd.f32 %v3194, %v3306
    %v3308 = vpop.f32.mrb[0].mxu0
    %v3309 = vadd.f32 %v3196, %v3308
    %v3310 = vpop.f32.mrb[0].mxu0
    %v3311 = vadd.f32 %v3198, %v3310
    %3312 = vmatprep.mubr.bf16.mxu0 %v423
    %3313 = vmatmul.mubr.bf16.gmra.mrb[0].mxu0 %v422
    %v3314 = vpop.f32.mrb[0].mxu0
    %v3315 = vadd.f32 %v3202, %v3314
    %v3316 = vpop.f32.mrb[0].mxu0
    %v3317 = vadd.f32 %v3204, %v3316
    %v3318 = vpop.f32.mrb[0].mxu0
    %v3319 = vadd.f32 %v3206, %v3318
    %v3320 = vpop.f32.mrb[0].mxu0
    %v3321 = vadd.f32 %v3208, %v3320
    %3322 = vmatprep.mubr.bf16.mxu0 %v442
    %3323 = vmatmul.mubr.bf16.gmra.mrb[0].mxu0 %v441
    %v3324 = vpop.f32.mrb[0].mxu0
    %v3325 = vadd.f32 %v3212, %v3324
    %v3326 = vpop.f32.mrb[0].mxu0
    %v3327 = vadd.f32 %v3214, %v3326
    %v3328 = vpop.f32.mrb[0].mxu0
    %v3329 = vadd.f32 %v3216, %v3328
    %v3330 = vpop.f32.mrb[0].mxu0
    %v3331 = vadd.f32 %v3218, %v3330
    %3332 = vmatprep.mubr.bf16.mxu0 %v461
    %3333 = vmatmul.mubr.bf16.gmra.mrb[0].mxu0 %v460
    %v3334 = vpop.f32.mrb[0].mxu0
    %v3335 = vadd.f32 %v3222, %v3334
    %v3336 = vpop.f32.mrb[0].mxu0
    %v3337 = vadd.f32 %v3224, %v3336
    %v3338 = vpop.f32.mrb[0].mxu0
    %v3339 = vadd.f32 %v3226, %v3338
    %v3340 = vpop.f32.mrb[0].mxu0
    %v3341 = vadd.f32 %v3228, %v3340
    %3342 = vmatprep.mubr.bf16.mxu0 %v480
    %3343 = vmatmul.mubr.bf16.gmra.mrb[0].mxu0 %v479
    %v3344 = vpop.f32.mrb[0].mxu0
    %v3345 = vadd.f32 %v3232, %v3344
    %v3346 = vpop.f32.mrb[0].mxu0
    %v3347 = vadd.f32 %v3234, %v3346
    %v3348 = vpop.f32.mrb[0].mxu0
    %v3349 = vadd.f32 %v3236, %v3348
    %v3350 = vpop.f32.mrb[0].mxu0
    %v3351 = vadd.f32 %v3238, %v3350
    %3352 = vmatprep.mubr.bf16.mxu0 %v499
    %3353 = vmatmul.mubr.bf16.gmra.mrb[0].mxu0 %v498
    %v3354 = vpop.f32.mrb[0].mxu0
    %v3355 = vadd.f32 %v3242, %v3354
    %v3356 = vpop.f32.mrb[0].mxu0
    %v3357 = vadd.f32 %v3244, %v3356
    %v3358 = vpop.f32.mrb[0].mxu0
    %v3359 = vadd.f32 %v3246, %v3358
    %v3360 = vpop.f32.mrb[0].mxu0
    %v3361 = vadd.f32 %v3248, %v3360
    %3362 = vmatprep.mubr.bf16.mxu0 %v518
    %3363 = vmatmul.mubr.bf16.gmra.mrb[0].mxu0 %v517
    %v3364 = vpop.f32.mrb[0].mxu0
    %v3365 = vadd.f32 %v3252, %v3364
    %v3366 = vpop.f32.mrb[0].mxu0
    %v3367 = vadd.f32 %v3254, %v3366
    %v3368 = vpop.f32.mrb[0].mxu0
    %v3369 = vadd.f32 %v3256, %v3368
    %v3370 = vpop.f32.mrb[0].mxu0
    %v3371 = vadd.f32 %v3258, %v3370
    %3372 = vdwg.mxu0
    %3373 = vmatprep.subr.bf16.mxu0 %v2037
    %3374 = vmatpush1.bf16.msra.mxu0 %v2036
    %3375 = vmatprep.subr.bf16.mxu0 %v2039
    %3376 = vmatpush1.bf16.msra.mxu0 %v2038
    %3377 = vmatprep.subr.bf16.mxu0 %v2041
    %3378 = vmatpush1.bf16.msra.mxu0 %v2040
    %3379 = vmatprep.subr.bf16.mxu0 %v2043
    %3380 = vmatpush1.bf16.msra.mxu0 %v2042
    %3381 = vmatprep.subr.bf16.mxu0 %v2045
    %3382 = vmatpush1.bf16.msra.mxu0 %v2044
    %3383 = vmatprep.subr.bf16.mxu0 %v2047
    %3384 = vmatpush1.bf16.msra.mxu0 %v2046
    %3385 = vmatprep.subr.bf16.mxu0 %v2049
    %3386 = vmatpush1.bf16.msra.mxu0 %v2048
    %3387 = vmatprep.subr.bf16.mxu0 %v2051
    %3388 = vmatpush1.bf16.msra.mxu0 %v2050
    %3389 = vmatprep.subr.bf16.mxu0 0
    %3390 = vmatpush1.bf16.msra.mxu0 0
    %3391 = vmatprep.subr.bf16.mxu0 0
    %3392 = vmatpush1.bf16.msra.mxu0 0
    %3393 = vmatprep.subr.bf16.mxu0 0
    %3394 = vmatpush1.bf16.msra.mxu0 0
    %3395 = vmatprep.subr.bf16.mxu0 0
    %3396 = vmatpush1.bf16.msra.mxu0 0
    %3397 = vmatprep.subr.bf16.mxu0 0
    %3398 = vmatpush1.bf16.msra.mxu0 0
    %3399 = vmatprep.subr.bf16.mxu0 0
    %3400 = vmatpush1.bf16.msra.mxu0 0
    %3401 = vmatprep.subr.bf16.mxu0 0
    %3402 = vmatpush1.bf16.msra.mxu0 0
    %3403 = vmatprep.subr.bf16.mxu0 0
    %3404 = vmatpush1.bf16.msra.mxu0 0
    %3405 = vmatprep.mubr.bf16.mxu0 0
    %3406 = vmatmul.mubr.bf16.gmra.mrb[0].mxu0 %v386
    %v3407 = vpop.f32.mrb[0].mxu0
    %v3408 = vadd.f32 %v3295, %v3407
    %v3409 = vpop.f32.mrb[0].mxu0
    %v3410 = vadd.f32 %v3297, %v3409
    %v3411 = vpop.f32.mrb[0].mxu0
    %v3412 = vadd.f32 %v3299, %v3411
    %v3413 = vpop.f32.mrb[0].mxu0
    %v3414 = vadd.f32 %v3301, %v3413
    %3415 = vmatprep.mubr.bf16.mxu0 0
    %3416 = vmatmul.mubr.bf16.gmra.mrb[0].mxu0 %v405
    %v3417 = vpop.f32.mrb[0].mxu0
    %v3418 = vadd.f32 %v3305, %v3417
    %v3419 = vpop.f32.mrb[0].mxu0
    %v3420 = vadd.f32 %v3307, %v3419
    %v3421 = vpop.f32.mrb[0].mxu0
    %v3422 = vadd.f32 %v3309, %v3421
    %v3423 = vpop.f32.mrb[0].mxu0
    %v3424 = vadd.f32 %v3311, %v3423
    %3425 = vmatprep.mubr.bf16.mxu0 0
    %3426 = vmatmul.mubr.bf16.gmra.mrb[0].mxu0 %v424
    %v3427 = vpop.f32.mrb[0].mxu0
    %v3428 = vadd.f32 %v3315, %v3427
    %v3429 = vpop.f32.mrb[0].mxu0
    %v3430 = vadd.f32 %v3317, %v3429
    %v3431 = vpop.f32.mrb[0].mxu0
    %v3432 = vadd.f32 %v3319, %v3431
    %v3433 = vpop.f32.mrb[0].mxu0
    %v3434 = vadd.f32 %v3321, %v3433
    %3435 = vmatprep.mubr.bf16.mxu0 0
    %3436 = vmatmul.mubr.bf16.gmra.mrb[0].mxu0 %v443
    %v3437 = vpop.f32.mrb[0].mxu0
    %v3438 = vadd.f32 %v3325, %v3437
    %v3439 = vpop.f32.mrb[0].mxu0
    %v3440 = vadd.f32 %v3327, %v3439
    %v3441 = vpop.f32.mrb[0].mxu0
    %v3442 = vadd.f32 %v3329, %v3441
    %v3443 = vpop.f32.mrb[0].mxu0
    %v3444 = vadd.f32 %v3331, %v3443
    %3445 = vmatprep.mubr.bf16.mxu0 0
    %3446 = vmatmul.mubr.bf16.gmra.mrb[0].mxu0 %v462
    %v3447 = vpop.f32.mrb[0].mxu0
    %v3448 = vadd.f32 %v3335, %v3447
    %v3449 = vpop.f32.mrb[0].mxu0
    %v3450 = vadd.f32 %v3337, %v3449
    %v3451 = vpop.f32.mrb[0].mxu0
    %v3452 = vadd.f32 %v3339, %v3451
    %v3453 = vpop.f32.mrb[0].mxu0
    %v3454 = vadd.f32 %v3341, %v3453
    %3455 = vmatprep.mubr.bf16.mxu0 0
    %3456 = vmatmul.mubr.bf16.gmra.mrb[0].mxu0 %v481
    %v3457 = vpop.f32.mrb[0].mxu0
    %v3458 = vadd.f32 %v3345, %v3457
    %v3459 = vpop.f32.mrb[0].mxu0
    %v3460 = vadd.f32 %v3347, %v3459
    %v3461 = vpop.f32.mrb[0].mxu0
    %v3462 = vadd.f32 %v3349, %v3461
    %v3463 = vpop.f32.mrb[0].mxu0
    %v3464 = vadd.f32 %v3351, %v3463
    %3465 = vmatprep.mubr.bf16.mxu0 0
    %3466 = vmatmul.mubr.bf16.gmra.mrb[0].mxu0 %v500
    %v3467 = vpop.f32.mrb[0].mxu0
    %v3468 = vadd.f32 %v3355, %v3467
    %v3469 = vpop.f32.mrb[0].mxu0
    %v3470 = vadd.f32 %v3357, %v3469
    %v3471 = vpop.f32.mrb[0].mxu0
    %v3472 = vadd.f32 %v3359, %v3471
    %v3473 = vpop.f32.mrb[0].mxu0
    %v3474 = vadd.f32 %v3361, %v3473
    %3475 = vmatprep.mubr.bf16.mxu0 0
    %3476 = vmatmul.mubr.bf16.gmra.mrb[0].mxu0 %v519
    %v3477 = vpop.f32.mrb[0].mxu0
    %v3478 = vadd.f32 %v3365, %v3477
    %v3479 = vpop.f32.mrb[0].mxu0
    %v3480 = vadd.f32 %v3367, %v3479
    %v3481 = vpop.f32.mrb[0].mxu0
    %v3482 = vadd.f32 %v3369, %v3481
    %v3483 = vpop.f32.mrb[0].mxu0
    %v3484 = vadd.f32 %v3371, %v3483
    %3485 = vdwg.mxu0
    %v3486 = vmax.f32 %v3408, 0.0
    %v3487 = vmax.f32 %v3410, 0.0
    %v3488 = vmax.f32 %v3412, 0.0
    %v3489 = vmax.f32 %v3414, 0.0
    %v3490 = vmax.f32 %v3418, 0.0
    %v3491 = vmax.f32 %v3420, 0.0
    %v3492 = vmax.f32 %v3422, 0.0
    %v3493 = vmax.f32 %v3424, 0.0
    %v3494 = vmax.f32 %v3428, 0.0
    %v3495 = vmax.f32 %v3430, 0.0
    %v3496 = vmax.f32 %v3432, 0.0
    %v3497 = vmax.f32 %v3434, 0.0
    %v3498 = vmax.f32 %v3438, 0.0
    %v3499 = vmax.f32 %v3440, 0.0
    %v3500 = vmax.f32 %v3442, 0.0
    %v3501 = vmax.f32 %v3444, 0.0
    %v3502 = vmax.f32 %v3448, 0.0
    %v3503 = vmax.f32 %v3450, 0.0
    %v3504 = vmax.f32 %v3452, 0.0
    %v3505 = vmax.f32 %v3454, 0.0
    %v3506 = vmax.f32 %v3458, 0.0
    %v3507 = vmax.f32 %v3460, 0.0
    %v3508 = vmax.f32 %v3462, 0.0
    %v3509 = vmax.f32 %v3464, 0.0
    %v3510 = vmax.f32 %v3468, 0.0
    %v3511 = vmax.f32 %v3470, 0.0
    %v3512 = vmax.f32 %v3472, 0.0
    %v3513 = vmax.f32 %v3474, 0.0
    %v3514 = vmax.f32 %v3478, 0.0
    %v3515 = vmax.f32 %v3480, 0.0
    %v3516 = vmax.f32 %v3482, 0.0
    %v3517 = vmax.f32 %v3484, 0.0
    %v3518 = vpack.c.bf16 %v3488, %v3486
    %v3519 = vpack.c.bf16 %v3489, %v3487
    %v3520 = vpack.c.bf16 %v3492, %v3490
    %v3521 = vpack.c.bf16 %v3493, %v3491
    %v3522 = vpack.c.bf16 %v3496, %v3494
    %v3523 = vpack.c.bf16 %v3497, %v3495
    %v3524 = vpack.c.bf16 %v3500, %v3498
    %v3525 = vpack.c.bf16 %v3501, %v3499
    %v3526 = vpack.c.bf16 %v3504, %v3502
    %v3527 = vpack.c.bf16 %v3505, %v3503
    %v3528 = vpack.c.bf16 %v3508, %v3506
    %v3529 = vpack.c.bf16 %v3509, %v3507
    %v3530 = vpack.c.bf16 %v3512, %v3510
    %v3531 = vpack.c.bf16 %v3513, %v3511
    %v3532 = vpack.c.bf16 %v3516, %v3514
    %v3533 = vpack.c.bf16 %v3517, %v3515
    %v3534 = vld [vmem:[%s4] sm:$0xf]
    %v3535 = vld [vmem:[%s4 + $0x4] sm:$0xf]
    %v3536 = vld [vmem:[%s4 + $0x8] sm:$0xf]
    %v3537 = vld [vmem:[%s4 + $0xc] sm:$0xf]
    %v3538 = vld [vmem:[%s4 + $0x10] sm:$0xf]
    %v3539 = vld [vmem:[%s4 + $0x14] sm:$0xf]
    %v3540 = vld [vmem:[%s4 + $0x18] sm:$0xf]
    %v3541 = vld [vmem:[%s4 + $0x1c] sm:$0xf]
    %v3542 = vld [vmem:[%s4 + $0x20] sm:$0xf]
    %v3543 = vld [vmem:[%s4 + $0x24] sm:$0xf]
    %v3544 = vld [vmem:[%s4 + $0x28] sm:$0xf]
    %v3545 = vld [vmem:[%s4 + $0x2c] sm:$0xf]
    %v3546 = vld [vmem:[%s4 + $0x30] sm:$0xf]
    %v3547 = vld [vmem:[%s4 + $0x34] sm:$0xf]
    %v3548 = vld [vmem:[%s4 + $0x38] sm:$0xf]
    %v3549 = vld [vmem:[%s4 + $0x3c] sm:$0xf]
    %v3550 = vld [vmem:[%s4 + $0x40] sm:$0xf]
    %v3551 = vld [vmem:[%s4 + $0x44] sm:$0xf]
    %v3552 = vld [vmem:[%s4 + $0x48] sm:$0xf]
    %v3553 = vld [vmem:[%s4 + $0x4c] sm:$0xf]
    %v3554 = vld [vmem:[%s4 + $0x50] sm:$0xf]
    %v3555 = vld [vmem:[%s4 + $0x54] sm:$0xf]
    %v3556 = vld [vmem:[%s4 + $0x58] sm:$0xf]
    %v3557 = vld [vmem:[%s4 + $0x5c] sm:$0xf]
    %v3558 = vld [vmem:[%s4 + $0x60] sm:$0xf]
    %v3559 = vld [vmem:[%s4 + $0x64] sm:$0xf]
    %v3560 = vld [vmem:[%s4 + $0x68] sm:$0xf]
    %v3561 = vld [vmem:[%s4 + $0x6c] sm:$0xf]
    %v3562 = vld [vmem:[%s4 + $0x70] sm:$0xf]
    %v3563 = vld [vmem:[%s4 + $0x74] sm:$0xf]
    %v3564 = vld [vmem:[%s4 + $0x78] sm:$0xf]
    %v3565 = vld [vmem:[%s4 + $0x7c] sm:$0xf]
    %v3566 = vld [vmem:[%s5] sm:$0x1]
    %v3568 = vlaneseq
    %v3569 = vshrl.u32 %v3568, 7
    %v3570 = vsub.s32 0, %v3569
    %v3571 = vrot.slane %v3566, %v3570
    %v3605 = vunpack.c.l.b16 %v3534
    %v3606 = vunpack.c.l.b16 %v3535
    %v3607 = vunpack.c.l.b16 %v3536
    %v3608 = vunpack.c.l.b16 %v3537
    %v3609 = vunpack.c.l.b16 %v3538
    %v3610 = vunpack.c.l.b16 %v3539
    %v3611 = vunpack.c.l.b16 %v3540
    %v3612 = vunpack.c.l.b16 %v3541
    %v3613 = vunpack.c.l.b16 %v3542
    %v3614 = vunpack.c.l.b16 %v3543
    %v3615 = vunpack.c.l.b16 %v3544
    %v3616 = vunpack.c.l.b16 %v3545
    %v3617 = vunpack.c.l.b16 %v3546
    %v3618 = vunpack.c.l.b16 %v3547
    %v3619 = vunpack.c.l.b16 %v3548
    %v3620 = vunpack.c.l.b16 %v3549
    %v3621 = vunpack.c.l.b16 %v3550
    %v3622 = vunpack.c.l.b16 %v3551
    %v3623 = vunpack.c.l.b16 %v3552
    %v3624 = vunpack.c.l.b16 %v3553
    %v3625 = vunpack.c.l.b16 %v3554
    %v3626 = vunpack.c.l.b16 %v3555
    %v3627 = vunpack.c.l.b16 %v3556
    %v3628 = vunpack.c.l.b16 %v3557
    %v3629 = vunpack.c.l.b16 %v3558
    %v3630 = vunpack.c.l.b16 %v3559
    %v3631 = vunpack.c.l.b16 %v3560
    %v3632 = vunpack.c.l.b16 %v3561
    %v3633 = vunpack.c.l.b16 %v3562
    %v3634 = vunpack.c.l.b16 %v3563
    %v3635 = vunpack.c.l.b16 %v3564
    %v3636 = vunpack.c.l.b16 %v3565
    %v3637 = vpack.c.b16 %v3606, %v3605
    %v3638 = vpack.c.b16 %v3608, %v3607
    %v3639 = vpack.c.b16 %v3610, %v3609
    %v3640 = vpack.c.b16 %v3612, %v3611
    %v3641 = vpack.c.b16 %v3614, %v3613
    %v3642 = vpack.c.b16 %v3616, %v3615
    %v3643 = vpack.c.b16 %v3618, %v3617
    %v3644 = vpack.c.b16 %v3620, %v3619
    %v3645 = vpack.c.b16 %v3622, %v3621
    %v3646 = vpack.c.b16 %v3624, %v3623
    %v3647 = vpack.c.b16 %v3626, %v3625
    %v3648 = vpack.c.b16 %v3628, %v3627
    %v3649 = vpack.c.b16 %v3630, %v3629
    %v3650 = vpack.c.b16 %v3632, %v3631
    %v3651 = vpack.c.b16 %v3634, %v3633
    %v3652 = vpack.c.b16 %v3636, %v3635
    %3669 = vmatprep.subr.bf16.mxu0 0
    %3670 = vmatpush1.bf16.msra.mxu0 %v3637
    %3671 = vmatprep.subr.bf16.mxu0 0
    %3672 = vmatpush1.bf16.msra.mxu0 %v3638
    %3673 = vmatprep.subr.bf16.mxu0 0
    %3674 = vmatpush1.bf16.msra.mxu0 %v3639
    %3675 = vmatprep.subr.bf16.mxu0 0
    %3676 = vmatpush1.bf16.msra.mxu0 %v3640
    %3677 = vmatprep.subr.bf16.mxu0 0
    %3678 = vmatpush1.bf16.msra.mxu0 %v3641
    %3679 = vmatprep.subr.bf16.mxu0 0
    %3680 = vmatpush1.bf16.msra.mxu0 %v3642
    %3681 = vmatprep.subr.bf16.mxu0 0
    %3682 = vmatpush1.bf16.msra.mxu0 %v3643
    %3683 = vmatprep.subr.bf16.mxu0 0
    %3684 = vmatpush1.bf16.msra.mxu0 %v3644
    %3685 = vmatprep.subr.bf16.mxu0 0
    %3686 = vmatpush1.bf16.msra.mxu0 %v3645
    %3687 = vmatprep.subr.bf16.mxu0 0
    %3688 = vmatpush1.bf16.msra.mxu0 %v3646
    %3689 = vmatprep.subr.bf16.mxu0 0
    %3690 = vmatpush1.bf16.msra.mxu0 %v3647
    %3691 = vmatprep.subr.bf16.mxu0 0
    %3692 = vmatpush1.bf16.msra.mxu0 %v3648
    %3693 = vmatprep.subr.bf16.mxu0 0
    %3694 = vmatpush1.bf16.msra.mxu0 %v3649
    %3695 = vmatprep.subr.bf16.mxu0 0
    %3696 = vmatpush1.bf16.msra.mxu0 %v3650
    %3697 = vmatprep.subr.bf16.mxu0 0
    %3698 = vmatpush1.bf16.msra.mxu0 %v3651
    %3699 = vmatprep.subr.bf16.mxu0 0
    %3700 = vmatpush1.bf16.msra.mxu0 %v3652
    %3701 = vmatprep.mubr.bf16.mxu0 %v3519
    %3702 = vmatmul.mubr.bf16.gmra.mrb[0].mxu0 %v3518
    %v3703 = vpop.f32.mrb[0].mxu0
    %v3704 = vadd.f32 %v3571, %v3703
    %v3705 = vpop.f32.mrb[0].mxu0
    %v3706 = vpop.f32.mrb[0].mxu0
    %v3707 = vadd.f32 %v3571, %v3706
    %v3708 = vpop.f32.mrb[0].mxu0
    %3709 = vmatprep.mubr.bf16.mxu0 %v3521
    %3710 = vmatmul.mubr.bf16.gmra.mrb[0].mxu0 %v3520
    %v3711 = vpop.f32.mrb[0].mxu0
    %v3712 = vadd.f32 %v3571, %v3711
    %v3713 = vpop.f32.mrb[0].mxu0
    %v3714 = vpop.f32.mrb[0].mxu0
    %v3715 = vadd.f32 %v3571, %v3714
    %v3716 = vpop.f32.mrb[0].mxu0
    %3717 = vmatprep.mubr.bf16.mxu0 %v3523
    %3718 = vmatmul.mubr.bf16.gmra.mrb[0].mxu0 %v3522
    %v3719 = vpop.f32.mrb[0].mxu0
    %v3720 = vadd.f32 %v3571, %v3719
    %v3721 = vpop.f32.mrb[0].mxu0
    %v3722 = vpop.f32.mrb[0].mxu0
    %v3723 = vadd.f32 %v3571, %v3722
    %v3724 = vpop.f32.mrb[0].mxu0
    %3725 = vmatprep.mubr.bf16.mxu0 %v3525
    %3726 = vmatmul.mubr.bf16.gmra.mrb[0].mxu0 %v3524
    %v3727 = vpop.f32.mrb[0].mxu0
    %v3728 = vadd.f32 %v3571, %v3727
    %v3729 = vpop.f32.mrb[0].mxu0
    %v3730 = vpop.f32.mrb[0].mxu0
    %v3731 = vadd.f32 %v3571, %v3730
    %v3732 = vpop.f32.mrb[0].mxu0
    %3733 = vmatprep.mubr.bf16.mxu0 %v3527
    %3734 = vmatmul.mubr.bf16.gmra.mrb[0].mxu0 %v3526
    %v3735 = vpop.f32.mrb[0].mxu0
    %v3736 = vadd.f32 %v3571, %v3735
    %v3737 = vpop.f32.mrb[0].mxu0
    %v3738 = vpop.f32.mrb[0].mxu0
    %v3739 = vadd.f32 %v3571, %v3738
    %v3740 = vpop.f32.mrb[0].mxu0
    %3741 = vmatprep.mubr.bf16.mxu0 %v3529
    %3742 = vmatmul.mubr.bf16.gmra.mrb[0].mxu0 %v3528
    %v3743 = vpop.f32.mrb[0].mxu0
    %v3744 = vadd.f32 %v3571, %v3743
    %v3745 = vpop.f32.mrb[0].mxu0
    %v3746 = vpop.f32.mrb[0].mxu0
    %v3747 = vadd.f32 %v3571, %v3746
    %v3748 = vpop.f32.mrb[0].mxu0
    %3749 = vmatprep.mubr.bf16.mxu0 %v3531
    %3750 = vmatmul.mubr.bf16.gmra.mrb[0].mxu0 %v3530
    %v3751 = vpop.f32.mrb[0].mxu0
    %v3752 = vadd.f32 %v3571, %v3751
    %v3753 = vpop.f32.mrb[0].mxu0
    %v3754 = vpop.f32.mrb[0].mxu0
    %v3755 = vadd.f32 %v3571, %v3754
    %v3756 = vpop.f32.mrb[0].mxu0
    %3757 = vmatprep.mubr.bf16.mxu0 %v3533
    %3758 = vmatmul.mubr.bf16.gmra.mrb[0].mxu0 %v3532
    %v3759 = vpop.f32.mrb[0].mxu0
    %v3760 = vadd.f32 %v3571, %v3759
    %v3761 = vpop.f32.mrb[0].mxu0
    %v3762 = vpop.f32.mrb[0].mxu0
    %v3763 = vadd.f32 %v3571, %v3762
    %v3764 = vpop.f32.mrb[0].mxu0
    %3765 = vdwg.mxu0
    %v3766 = vmax.f32 %v3704, 0.0
    %v3767 = vmax.f32 %v3707, 0.0
    %v3768 = vmax.f32 %v3712, 0.0
    %v3769 = vmax.f32 %v3715, 0.0
    %v3770 = vmax.f32 %v3720, 0.0
    %v3771 = vmax.f32 %v3723, 0.0
    %v3772 = vmax.f32 %v3728, 0.0
    %v3773 = vmax.f32 %v3731, 0.0
    %v3774 = vmax.f32 %v3736, 0.0
    %v3775 = vmax.f32 %v3739, 0.0
    %v3776 = vmax.f32 %v3744, 0.0
    %v3777 = vmax.f32 %v3747, 0.0
    %v3778 = vmax.f32 %v3752, 0.0
    %v3779 = vmax.f32 %v3755, 0.0
    %v3780 = vmax.f32 %v3760, 0.0
    %v3781 = vmax.f32 %v3763, 0.0
    %v3782 = vpack.c.bf16 %v3767, %v3766
    %v3783 = vpack.c.bf16 %v3769, %v3768
    %v3784 = vpack.c.bf16 %v3771, %v3770
    %v3785 = vpack.c.bf16 %v3773, %v3772
    %v3786 = vpack.c.bf16 %v3775, %v3774
    %v3787 = vpack.c.bf16 %v3777, %v3776
    %v3788 = vpack.c.bf16 %v3779, %v3778
    %v3789 = vpack.c.bf16 %v3781, %v3780
    %v3790 = vld [vmem:[%s6] sm:$0xf]
    %v3791 = vld [vmem:[%s6 + $0x4] sm:$0xf]
    %v3792 = vld [vmem:[%s6 + $0x8] sm:$0xf]
    %v3793 = vld [vmem:[%s6 + $0xc] sm:$0xf]
    %v3794 = vld [vmem:[%s6 + $0x10] sm:$0xf]
    %v3795 = vld [vmem:[%s6 + $0x14] sm:$0xf]
    %v3796 = vld [vmem:[%s6 + $0x18] sm:$0xf]
    %v3797 = vld [vmem:[%s6 + $0x1c] sm:$0xf]
    %v3798 = vld [vmem:[%s6 + $0x20] sm:$0xf]
    %v3799 = vld [vmem:[%s6 + $0x24] sm:$0xf]
    %v3800 = vld [vmem:[%s6 + $0x28] sm:$0xf]
    %v3801 = vld [vmem:[%s6 + $0x2c] sm:$0xf]
    %v3802 = vld [vmem:[%s6 + $0x30] sm:$0xf]
    %v3803 = vld [vmem:[%s6 + $0x34] sm:$0xf]
    %v3804 = vld [vmem:[%s6 + $0x38] sm:$0xf]
    %v3805 = vld [vmem:[%s6 + $0x3c] sm:$0xf]
    %v3806 = vld [vmem:[%s7] sm:$0x1]
    %v3808 = vlaneseq
    %v3809 = vshrl.u32 %v3808, 7
    %v3810 = vsub.s32 0, %v3809
    %v3811 = vrot.slane %v3806, %v3810
    %v3829 = vunpack.c.l.b16 %v3790
    %v3830 = vunpack.c.l.b16 %v3791
    %v3831 = vunpack.c.l.b16 %v3792
    %v3832 = vunpack.c.l.b16 %v3793
    %v3833 = vunpack.c.l.b16 %v3794
    %v3834 = vunpack.c.l.b16 %v3795
    %v3835 = vunpack.c.l.b16 %v3796
    %v3836 = vunpack.c.l.b16 %v3797
    %v3837 = vunpack.c.l.b16 %v3798
    %v3838 = vunpack.c.l.b16 %v3799
    %v3839 = vunpack.c.l.b16 %v3800
    %v3840 = vunpack.c.l.b16 %v3801
    %v3841 = vunpack.c.l.b16 %v3802
    %v3842 = vunpack.c.l.b16 %v3803
    %v3843 = vunpack.c.l.b16 %v3804
    %v3844 = vunpack.c.l.b16 %v3805
    %v3845 = vpack.c.b16 %v3830, %v3829
    %v3846 = vpack.c.b16 %v3832, %v3831
    %v3847 = vpack.c.b16 %v3834, %v3833
    %v3848 = vpack.c.b16 %v3836, %v3835
    %v3849 = vpack.c.b16 %v3838, %v3837
    %v3850 = vpack.c.b16 %v3840, %v3839
    %v3851 = vpack.c.b16 %v3842, %v3841
    %v3852 = vpack.c.b16 %v3844, %v3843
    %3861 = vmatprep.subr.bf16.mxu0 0
    %3862 = vmatpush1.bf16.msra.mxu0 %v3845
    %3863 = vmatprep.subr.bf16.mxu0 0
    %3864 = vmatpush1.bf16.msra.mxu0 %v3846
    %3865 = vmatprep.subr.bf16.mxu0 0
    %3866 = vmatpush1.bf16.msra.mxu0 %v3847
    %3867 = vmatprep.subr.bf16.mxu0 0
    %3868 = vmatpush1.bf16.msra.mxu0 %v3848
    %3869 = vmatprep.subr.bf16.mxu0 0
    %3870 = vmatpush1.bf16.msra.mxu0 %v3849
    %3871 = vmatprep.subr.bf16.mxu0 0
    %3872 = vmatpush1.bf16.msra.mxu0 %v3850
    %3873 = vmatprep.subr.bf16.mxu0 0
    %3874 = vmatpush1.bf16.msra.mxu0 %v3851
    %3875 = vmatprep.subr.bf16.mxu0 0
    %3876 = vmatpush1.bf16.msra.mxu0 %v3852
    %3877 = vmatprep.subr.bf16.mxu0 0
    %3878 = vmatpush1.bf16.msra.mxu0 0
    %3879 = vmatprep.subr.bf16.mxu0 0
    %3880 = vmatpush1.bf16.msra.mxu0 0
    %3881 = vmatprep.subr.bf16.mxu0 0
    %3882 = vmatpush1.bf16.msra.mxu0 0
    %3883 = vmatprep.subr.bf16.mxu0 0
    %3884 = vmatpush1.bf16.msra.mxu0 0
    %3885 = vmatprep.subr.bf16.mxu0 0
    %3886 = vmatpush1.bf16.msra.mxu0 0
    %3887 = vmatprep.subr.bf16.mxu0 0
    %3888 = vmatpush1.bf16.msra.mxu0 0
    %3889 = vmatprep.subr.bf16.mxu0 0
    %3890 = vmatpush1.bf16.msra.mxu0 0
    %3891 = vmatprep.subr.bf16.mxu0 0
    %3892 = vmatpush1.bf16.msra.mxu0 0
    %3893 = vmatprep.mubr.bf16.mxu0 0
    %3894 = vmatmul.mubr.bf16.gmra.mrb[0].mxu0 %v3782
    %v3895 = vpop.f32.mrb[0].mxu0
    %v3896 = vadd.f32 %v3811, %v3895
    %v3897 = vpop.f32.mrb[0].mxu0
    %v3898 = vpop.f32.mrb[0].mxu0
    %v3899 = vadd.f32 %v3811, %v3898
    %v3900 = vpop.f32.mrb[0].mxu0
    %3901 = vmatprep.mubr.bf16.mxu0 0
    %3902 = vmatmul.mubr.bf16.gmra.mrb[0].mxu0 %v3783
    %v3903 = vpop.f32.mrb[0].mxu0
    %v3904 = vadd.f32 %v3811, %v3903
    %v3905 = vpop.f32.mrb[0].mxu0
    %v3906 = vpop.f32.mrb[0].mxu0
    %v3907 = vadd.f32 %v3811, %v3906
    %v3908 = vpop.f32.mrb[0].mxu0
    %3909 = vmatprep.mubr.bf16.mxu0 0
    %3910 = vmatmul.mubr.bf16.gmra.mrb[0].mxu0 %v3784
    %v3911 = vpop.f32.mrb[0].mxu0
    %v3912 = vadd.f32 %v3811, %v3911
    %v3913 = vpop.f32.mrb[0].mxu0
    %v3914 = vpop.f32.mrb[0].mxu0
    %v3915 = vadd.f32 %v3811, %v3914
    %v3916 = vpop.f32.mrb[0].mxu0
    %3917 = vmatprep.mubr.bf16.mxu0 0
    %3918 = vmatmul.mubr.bf16.gmra.mrb[0].mxu0 %v3785
    %v3919 = vpop.f32.mrb[0].mxu0
    %v3920 = vadd.f32 %v3811, %v3919
    %v3921 = vpop.f32.mrb[0].mxu0
    %v3922 = vpop.f32.mrb[0].mxu0
    %v3923 = vadd.f32 %v3811, %v3922
    %v3924 = vpop.f32.mrb[0].mxu0
    %3925 = vmatprep.mubr.bf16.mxu0 0
    %3926 = vmatmul.mubr.bf16.gmra.mrb[0].mxu0 %v3786
    %v3927 = vpop.f32.mrb[0].mxu0
    %v3928 = vadd.f32 %v3811, %v3927
    %v3929 = vpop.f32.mrb[0].mxu0
    %v3930 = vpop.f32.mrb[0].mxu0
    %v3931 = vadd.f32 %v3811, %v3930
    %v3932 = vpop.f32.mrb[0].mxu0
    %3933 = vmatprep.mubr.bf16.mxu0 0
    %3934 = vmatmul.mubr.bf16.gmra.mrb[0].mxu0 %v3787
    %v3935 = vpop.f32.mrb[0].mxu0
    %v3936 = vadd.f32 %v3811, %v3935
    %v3937 = vpop.f32.mrb[0].mxu0
    %v3938 = vpop.f32.mrb[0].mxu0
    %v3939 = vadd.f32 %v3811, %v3938
    %v3940 = vpop.f32.mrb[0].mxu0
    %3941 = vmatprep.mubr.bf16.mxu0 0
    %3942 = vmatmul.mubr.bf16.gmra.mrb[0].mxu0 %v3788
    %v3943 = vpop.f32.mrb[0].mxu0
    %v3944 = vadd.f32 %v3811, %v3943
    %v3945 = vpop.f32.mrb[0].mxu0
    %v3946 = vpop.f32.mrb[0].mxu0
    %v3947 = vadd.f32 %v3811, %v3946
    %v3948 = vpop.f32.mrb[0].mxu0
    %3949 = vmatprep.mubr.bf16.mxu0 0
    %3950 = vmatmul.mubr.bf16.gmra.mrb[0].mxu0 %v3789
    %v3951 = vpop.f32.mrb[0].mxu0
    %v3952 = vadd.f32 %v3811, %v3951
    %v3953 = vpop.f32.mrb[0].mxu0
    %v3954 = vpop.f32.mrb[0].mxu0
    %v3955 = vadd.f32 %v3811, %v3954
    %v3956 = vpop.f32.mrb[0].mxu0
    %3957 = vdwg.mxu0
    %v3958 = vld [vmem:[%s1] sm:$0xff]
    %v3959 = vld [vmem:[%s1 + $0x8] sm:$0xff]
    %v3960 = vld [vmem:[%s1 + $0x10] sm:$0xff]
    %v3961 = vld [vmem:[%s1 + $0x18] sm:$0xff]
    %v3962 = vld [vmem:[%s1 + $0x20] sm:$0xff]
    %v3963 = vld [vmem:[%s1 + $0x28] sm:$0xff]
    %v3964 = vld [vmem:[%s1 + $0x30] sm:$0xff]
    %v3965 = vld [vmem:[%s1 + $0x38] sm:$0xff]
    %v3966 = vld [vmem:[%s1 + $0x40] sm:$0xff]
    %v3967 = vld [vmem:[%s1 + $0x48] sm:$0xff]
    %v3968 = vld [vmem:[%s1 + $0x50] sm:$0xff]
    %v3969 = vld [vmem:[%s1 + $0x58] sm:$0xff]
    %v3970 = vld [vmem:[%s1 + $0x60] sm:$0xff]
    %v3971 = vld [vmem:[%s1 + $0x68] sm:$0xff]
    %v3972 = vld [vmem:[%s1 + $0x70] sm:$0xff]
    %v3973 = vld [vmem:[%s1 + $0x78] sm:$0xff]
    %v3974 = vmul.f32 %v3896, 0.5
    %v3975 = vmul.f32 %v3899, 0.5
    %v3976 = vmul.f32 %v3904, 0.5
    %v3977 = vmul.f32 %v3907, 0.5
    %v3978 = vmul.f32 %v3912, 0.5
    %v3979 = vmul.f32 %v3915, 0.5
    %v3980 = vmul.f32 %v3920, 0.5
    %v3981 = vmul.f32 %v3923, 0.5
    %v3982 = vmul.f32 %v3928, 0.5
    %v3983 = vmul.f32 %v3931, 0.5
    %v3984 = vmul.f32 %v3936, 0.5
    %v3985 = vmul.f32 %v3939, 0.5
    %v3986 = vmul.f32 %v3944, 0.5
    %v3987 = vmul.f32 %v3947, 0.5
    %v3988 = vmul.f32 %v3952, 0.5
    %v3989 = vmul.f32 %v3955, 0.5
    %v3990 = vmul.f32 %v3974, 1.442695
    %v3991 = vpow.pop %v3990
    %v3992 = vmul.f32 %v3975, 1.442695
    %v3993 = vpow.pop %v3992
    %v3994 = vmul.f32 %v3976, 1.442695
    %v3995 = vpow.pop %v3994
    %v3996 = vmul.f32 %v3977, 1.442695
    %v3997 = vpow.pop %v3996
    %v3998 = vmul.f32 %v3978, 1.442695
    %v3999 = vpow.pop %v3998
    %v4000 = vmul.f32 %v3979, 1.442695
    %v4001 = vpow.pop %v4000
    %v4002 = vmul.f32 %v3980, 1.442695
    %v4003 = vpow.pop %v4002
    %v4004 = vmul.f32 %v3981, 1.442695
    %v4005 = vpow.pop %v4004
    %v4006 = vmul.f32 %v3982, 1.442695
    %v4007 = vpow.pop %v4006
    %v4008 = vmul.f32 %v3983, 1.442695
    %v4009 = vpow.pop %v4008
    %v4010 = vmul.f32 %v3984, 1.442695
    %v4011 = vpow.pop %v4010
    %v4012 = vmul.f32 %v3985, 1.442695
    %v4013 = vpow.pop %v4012
    %v4014 = vmul.f32 %v3986, 1.442695
    %v4015 = vpow.pop %v4014
    %v4016 = vmul.f32 %v3987, 1.442695
    %v4017 = vpow.pop %v4016
    %v4018 = vmul.f32 %v3988, 1.442695
    %v4019 = vpow.pop %v4018
    %v4020 = vmul.f32 %v3989, 1.442695
    %v4021 = vpow.pop %v4020
    %4038 = vrot.lane.b32.xlu0 %v3991, 112
    %v4039 = vpop.permute.xlu0 %4038
    %4040 = vrot.lane.b32.xlu0 %v3993, 112
    %v4041 = vpop.permute.xlu0 %4040
    %4042 = vrot.lane.b32.xlu0 %v3995, 112
    %v4043 = vpop.permute.xlu0 %4042
    %4044 = vrot.lane.b32.xlu0 %v3997, 112
    %v4045 = vpop.permute.xlu0 %4044
    %4046 = vrot.lane.b32.xlu0 %v3999, 112
    %v4047 = vpop.permute.xlu0 %4046
    %4048 = vrot.lane.b32.xlu0 %v4001, 112
    %v4049 = vpop.permute.xlu0 %4048
    %4050 = vrot.lane.b32.xlu0 %v4003, 112
    %v4051 = vpop.permute.xlu0 %4050
    %4052 = vrot.lane.b32.xlu0 %v4005, 112
    %v4053 = vpop.permute.xlu0 %4052
    %4054 = vrot.lane.b32.xlu0 %v4007, 112
    %v4055 = vpop.permute.xlu0 %4054
    %4056 = vrot.lane.b32.xlu0 %v4009, 112
    %v4057 = vpop.permute.xlu0 %4056
    %4058 = vrot.lane.b32.xlu0 %v4011, 112
    %v4059 = vpop.permute.xlu0 %4058
    %4060 = vrot.lane.b32.xlu0 %v4013, 112
    %v4061 = vpop.permute.xlu0 %4060
    %4062 = vrot.lane.b32.xlu0 %v4015, 112
    %v4063 = vpop.permute.xlu0 %4062
    %4064 = vrot.lane.b32.xlu0 %v4017, 112
    %v4065 = vpop.permute.xlu0 %4064
    %4066 = vrot.lane.b32.xlu0 %v4019, 112
    %v4067 = vpop.permute.xlu0 %4066
    %4068 = vrot.lane.b32.xlu0 %v4021, 112
    %v4069 = vpop.permute.xlu0 %4068
    %v4086 = vmul.f32 %v3958, %v4039
    %v4087 = vmul.f32 %v3959, %v4041
    %v4088 = vmul.f32 %v3960, %v4043
    %v4089 = vmul.f32 %v3961, %v4045
    %v4090 = vmul.f32 %v3962, %v4047
    %v4091 = vmul.f32 %v3963, %v4049
    %v4092 = vmul.f32 %v3964, %v4051
    %v4093 = vmul.f32 %v3965, %v4053
    %v4094 = vmul.f32 %v3966, %v4055
    %v4095 = vmul.f32 %v3967, %v4057
    %v4096 = vmul.f32 %v3968, %v4059
    %v4097 = vmul.f32 %v3969, %v4061
    %v4098 = vmul.f32 %v3970, %v4063
    %v4099 = vmul.f32 %v3971, %v4065
    %v4100 = vmul.f32 %v3972, %v4067
    %v4101 = vmul.f32 %v3973, %v4069
    %v4102 = vadd.f32 %v3896, %v4086
    %v4103 = vadd.f32 %v3899, %v4087
    %v4104 = vadd.f32 %v3904, %v4088
    %v4105 = vadd.f32 %v3907, %v4089
    %v4106 = vadd.f32 %v3912, %v4090
    %v4107 = vadd.f32 %v3915, %v4091
    %v4108 = vadd.f32 %v3920, %v4092
    %v4109 = vadd.f32 %v3923, %v4093
    %v4110 = vadd.f32 %v3928, %v4094
    %v4111 = vadd.f32 %v3931, %v4095
    %v4112 = vadd.f32 %v3936, %v4096
    %v4113 = vadd.f32 %v3939, %v4097
    %v4114 = vadd.f32 %v3944, %v4098
    %v4115 = vadd.f32 %v3947, %v4099
    %v4116 = vadd.f32 %v3952, %v4100
    %v4117 = vadd.f32 %v3955, %v4101
    %v4118 = vpack.c.bf16 %v4103, %v4102
    %v4119 = vpack.c.bf16 %v4105, %v4104
    %v4120 = vpack.c.bf16 %v4107, %v4106
    %v4121 = vpack.c.bf16 %v4109, %v4108
    %v4122 = vpack.c.bf16 %v4111, %v4110
    %v4123 = vpack.c.bf16 %v4113, %v4112
    %v4124 = vpack.c.bf16 %v4115, %v4114
    %v4125 = vpack.c.bf16 %v4117, %v4116
    %v4126 = vld [vmem:[%s8] sm:$0xf]
    %v4127 = vld [vmem:[%s8 + $0x4] sm:$0xf]
    %v4128 = vld [vmem:[%s9] sm:$0x1]
    %v4130 = vlaneseq
    %v4131 = vshrl.u32 %v4130, 7
    %v4132 = vsub.s32 0, %v4131
    %v4133 = vrot.slane %v4128, %v4132
    %v4137 = vunpack.c.l.b16 %v4126
    %v4138 = vunpack.c.l.b16 %v4127
    %v4139 = vpack.c.b16 %v4138, %v4137
    %vm4141 = vcmask 130048
    %v4143 = vsel %vm4141, %v4118, 0
    %v4146 = vsel %vm4141, %v4119, 0
    %v4149 = vsel %vm4141, %v4120, 0
    %v4152 = vsel %vm4141, %v4121, 0
    %v4155 = vsel %vm4141, %v4122, 0
    %v4158 = vsel %vm4141, %v4123, 0
    %v4161 = vsel %vm4141, %v4124, 0
    %v4164 = vsel %vm4141, %v4125, 0
    %4166 = vmatprep.subr.bf16.mxu0 0
    %4167 = vmatpush1.bf16.msra.mxu0 %v4139
    %4168 = vmatprep.subr.bf16.mxu0 0
    %4169 = vmatpush1.bf16.msra.mxu0 0
    %4170 = vmatprep.subr.bf16.mxu0 0
    %4171 = vmatpush1.bf16.msra.mxu0 0
    %4172 = vmatprep.subr.bf16.mxu0 0
    %4173 = vmatpush1.bf16.msra.mxu0 0
    %4174 = vmatprep.subr.bf16.mxu0 0
    %4175 = vmatpush1.bf16.msra.mxu0 0
    %4176 = vmatprep.subr.bf16.mxu0 0
    %4177 = vmatpush1.bf16.msra.mxu0 0
    %4178 = vmatprep.subr.bf16.mxu0 0
    %4179 = vmatpush1.bf16.msra.mxu0 0
    %4180 = vmatprep.subr.bf16.mxu0 0
    %4181 = vmatpush1.bf16.msra.mxu0 0
    %4182 = vmatprep.subr.bf16.mxu0 0
    %4183 = vmatpush1.bf16.msra.mxu0 0
    %4184 = vmatprep.subr.bf16.mxu0 0
    %4185 = vmatpush1.bf16.msra.mxu0 0
    %4186 = vmatprep.subr.bf16.mxu0 0
    %4187 = vmatpush1.bf16.msra.mxu0 0
    %4188 = vmatprep.subr.bf16.mxu0 0
    %4189 = vmatpush1.bf16.msra.mxu0 0
    %4190 = vmatprep.subr.bf16.mxu0 0
    %4191 = vmatpush1.bf16.msra.mxu0 0
    %4192 = vmatprep.subr.bf16.mxu0 0
    %4193 = vmatpush1.bf16.msra.mxu0 0
    %4194 = vmatprep.subr.bf16.mxu0 0
    %4195 = vmatpush1.bf16.msra.mxu0 0
    %4196 = vmatprep.subr.bf16.mxu0 0
    %4197 = vmatpush1.bf16.msra.mxu0 0
    %4198 = vmatprep.mubr.bf16.mxu0 0
    %4199 = vmatmul.mubr.bf16.gmra.mrb[0].mxu0 %v4143
    %v4200 = vpop.f32.mrb[0].mxu0
    %v4201 = vadd.f32 %v4133, %v4200
    %v4202 = vpop.f32.mrb[0].mxu0
    %v4203 = vpop.f32.mrb[0].mxu0
    %v4204 = vadd.f32 %v4133, %v4203
    %v4205 = vpop.f32.mrb[0].mxu0
    %4206 = vmatprep.mubr.bf16.mxu0 0
    %4207 = vmatmul.mubr.bf16.gmra.mrb[0].mxu0 %v4146
    %v4208 = vpop.f32.mrb[0].mxu0
    %v4209 = vadd.f32 %v4133, %v4208
    %v4210 = vpop.f32.mrb[0].mxu0
    %v4211 = vpop.f32.mrb[0].mxu0
    %v4212 = vadd.f32 %v4133, %v4211
    %v4213 = vpop.f32.mrb[0].mxu0
    %4214 = vmatprep.mubr.bf16.mxu0 0
    %4215 = vmatmul.mubr.bf16.gmra.mrb[0].mxu0 %v4149
    %v4216 = vpop.f32.mrb[0].mxu0
    %v4217 = vadd.f32 %v4133, %v4216
    %v4218 = vpop.f32.mrb[0].mxu0
    %v4219 = vpop.f32.mrb[0].mxu0
    %v4220 = vadd.f32 %v4133, %v4219
    %v4221 = vpop.f32.mrb[0].mxu0
    %4222 = vmatprep.mubr.bf16.mxu0 0
    %4223 = vmatmul.mubr.bf16.gmra.mrb[0].mxu0 %v4152
    %v4224 = vpop.f32.mrb[0].mxu0
    %v4225 = vadd.f32 %v4133, %v4224
    %v4226 = vpop.f32.mrb[0].mxu0
    %v4227 = vpop.f32.mrb[0].mxu0
    %v4228 = vadd.f32 %v4133, %v4227
    %v4229 = vpop.f32.mrb[0].mxu0
    %4230 = vmatprep.mubr.bf16.mxu0 0
    %4231 = vmatmul.mubr.bf16.gmra.mrb[0].mxu0 %v4155
    %v4232 = vpop.f32.mrb[0].mxu0
    %v4233 = vadd.f32 %v4133, %v4232
    %v4234 = vpop.f32.mrb[0].mxu0
    %v4235 = vpop.f32.mrb[0].mxu0
    %v4236 = vadd.f32 %v4133, %v4235
    %v4237 = vpop.f32.mrb[0].mxu0
    %4238 = vmatprep.mubr.bf16.mxu0 0
    %4239 = vmatmul.mubr.bf16.gmra.mrb[0].mxu0 %v4158
    %v4240 = vpop.f32.mrb[0].mxu0
    %v4241 = vadd.f32 %v4133, %v4240
    %v4242 = vpop.f32.mrb[0].mxu0
    %v4243 = vpop.f32.mrb[0].mxu0
    %v4244 = vadd.f32 %v4133, %v4243
    %v4245 = vpop.f32.mrb[0].mxu0
    %4246 = vmatprep.mubr.bf16.mxu0 0
    %4247 = vmatmul.mubr.bf16.gmra.mrb[0].mxu0 %v4161
    %v4248 = vpop.f32.mrb[0].mxu0
    %v4249 = vadd.f32 %v4133, %v4248
    %v4250 = vpop.f32.mrb[0].mxu0
    %v4251 = vpop.f32.mrb[0].mxu0
    %v4252 = vadd.f32 %v4133, %v4251
    %v4253 = vpop.f32.mrb[0].mxu0
    %4254 = vmatprep.mubr.bf16.mxu0 0
    %4255 = vmatmul.mubr.bf16.gmra.mrb[0].mxu0 %v4164
    %v4256 = vpop.f32.mrb[0].mxu0
    %v4257 = vadd.f32 %v4133, %v4256
    %v4258 = vpop.f32.mrb[0].mxu0
    %v4259 = vpop.f32.mrb[0].mxu0
    %v4260 = vadd.f32 %v4133, %v4259
    %v4261 = vpop.f32.mrb[0].mxu0
    %4262 = vdwg.mxu0
    %v4263 = vmax.f32 %v4201, 0.0
    %v4264 = vmax.f32 %v4204, 0.0
    %v4265 = vmax.f32 %v4209, 0.0
    %v4266 = vmax.f32 %v4212, 0.0
    %v4267 = vmax.f32 %v4217, 0.0
    %v4268 = vmax.f32 %v4220, 0.0
    %v4269 = vmax.f32 %v4225, 0.0
    %v4270 = vmax.f32 %v4228, 0.0
    %v4271 = vmax.f32 %v4233, 0.0
    %v4272 = vmax.f32 %v4236, 0.0
    %v4273 = vmax.f32 %v4241, 0.0
    %v4274 = vmax.f32 %v4244, 0.0
    %v4275 = vmax.f32 %v4249, 0.0
    %v4276 = vmax.f32 %v4252, 0.0
    %v4277 = vmax.f32 %v4257, 0.0
    %v4278 = vmax.f32 %v4260, 0.0
    %v4279 = vpack.c.bf16 %v4264, %v4263
    %v4280 = vpack.c.bf16 %v4266, %v4265
    %v4281 = vpack.c.bf16 %v4268, %v4267
    %v4282 = vpack.c.bf16 %v4270, %v4269
    %v4283 = vpack.c.bf16 %v4272, %v4271
    %v4284 = vpack.c.bf16 %v4274, %v4273
    %v4285 = vpack.c.bf16 %v4276, %v4275
    %v4286 = vpack.c.bf16 %v4278, %v4277
    %v4287 = vld [vmem:[%s10] sm:$0xff]
    %v4288 = vld [vmem:[%s10 + $0x8] sm:$0xff]
    %v4289 = vld [vmem:[%s10 + $0x10] sm:$0xff]
    %v4290 = vld [vmem:[%s10 + $0x18] sm:$0xff]
    %v4291 = vld [vmem:[%s10 + $0x20] sm:$0xff]
    %v4292 = vld [vmem:[%s10 + $0x28] sm:$0xff]
    %v4293 = vld [vmem:[%s10 + $0x30] sm:$0xff]
    %v4294 = vld [vmem:[%s10 + $0x38] sm:$0xff]
    %v4295 = vld [vmem:[%s10 + $0x40] sm:$0xff]
    %v4296 = vld [vmem:[%s10 + $0x48] sm:$0xff]
    %v4297 = vld [vmem:[%s10 + $0x50] sm:$0xff]
    %v4298 = vld [vmem:[%s10 + $0x58] sm:$0xff]
    %v4299 = vld [vmem:[%s10 + $0x60] sm:$0xff]
    %v4300 = vld [vmem:[%s10 + $0x68] sm:$0xff]
    %v4301 = vld [vmem:[%s10 + $0x70] sm:$0xff]
    %v4302 = vld [vmem:[%s10 + $0x78] sm:$0xff]
    %v4303 = vld [vmem:[%s11] sm:$0x3]
    %v4305 = vlaneseq
    %v4306 = vshrl.u32 %v4305, 7
    %v4307 = vsub.s32 0, %v4306
    %v4308 = vrot.slane %v4303, %v4307
    %v4309 = vlaneseq
    %v4310 = vshrl.u32 %v4309, 7
    %v4311 = vsub.s32 1, %v4310
    %v4312 = vrot.slane %v4303, %v4311
    %v4331 = vunpack.c.l.b16 %v4287
    %v4332 = vunpack.c.h.b16 %v4287
    %v4333 = vunpack.c.l.b16 %v4288
    %v4334 = vunpack.c.h.b16 %v4288
    %v4335 = vunpack.c.l.b16 %v4289
    %v4336 = vunpack.c.h.b16 %v4289
    %v4337 = vunpack.c.l.b16 %v4290
    %v4338 = vunpack.c.h.b16 %v4290
    %v4339 = vunpack.c.l.b16 %v4291
    %v4340 = vunpack.c.h.b16 %v4291
    %v4341 = vunpack.c.l.b16 %v4292
    %v4342 = vunpack.c.h.b16 %v4292
    %v4343 = vunpack.c.l.b16 %v4293
    %v4344 = vunpack.c.h.b16 %v4293
    %v4345 = vunpack.c.l.b16 %v4294
    %v4346 = vunpack.c.h.b16 %v4294
    %v4347 = vunpack.c.l.b16 %v4295
    %v4348 = vunpack.c.h.b16 %v4295
    %v4349 = vunpack.c.l.b16 %v4296
    %v4350 = vunpack.c.h.b16 %v4296
    %v4351 = vunpack.c.l.b16 %v4297
    %v4352 = vunpack.c.h.b16 %v4297
    %v4353 = vunpack.c.l.b16 %v4298
    %v4354 = vunpack.c.h.b16 %v4298
    %v4355 = vunpack.c.l.b16 %v4299
    %v4356 = vunpack.c.h.b16 %v4299
    %v4357 = vunpack.c.l.b16 %v4300
    %v4358 = vunpack.c.h.b16 %v4300
    %v4359 = vunpack.c.l.b16 %v4301
    %v4360 = vunpack.c.h.b16 %v4301
    %v4361 = vunpack.c.l.b16 %v4302
    %v4362 = vunpack.c.h.b16 %v4302
    %v4363 = vpack.c.b16 %v4333, %v4331
    %v4364 = vpack.c.b16 %v4334, %v4332
    %v4365 = vpack.c.b16 %v4337, %v4335
    %v4366 = vpack.c.b16 %v4338, %v4336
    %v4367 = vpack.c.b16 %v4341, %v4339
    %v4368 = vpack.c.b16 %v4342, %v4340
    %v4369 = vpack.c.b16 %v4345, %v4343
    %v4370 = vpack.c.b16 %v4346, %v4344
    %v4371 = vpack.c.b16 %v4349, %v4347
    %v4372 = vpack.c.b16 %v4350, %v4348
    %v4373 = vpack.c.b16 %v4353, %v4351
    %v4374 = vpack.c.b16 %v4354, %v4352
    %v4375 = vpack.c.b16 %v4357, %v4355
    %v4376 = vpack.c.b16 %v4358, %v4356
    %v4377 = vpack.c.b16 %v4361, %v4359
    %v4378 = vpack.c.b16 %v4362, %v4360
    %4395 = vmatprep.subr.bf16.mxu0 %v4364
    %4396 = vmatpush1.bf16.msra.mxu0 %v4363
    %4397 = vmatprep.subr.bf16.mxu0 %v4366
    %4398 = vmatpush1.bf16.msra.mxu0 %v4365
    %4399 = vmatprep.subr.bf16.mxu0 %v4368
    %4400 = vmatpush1.bf16.msra.mxu0 %v4367
    %4401 = vmatprep.subr.bf16.mxu0 %v4370
    %4402 = vmatpush1.bf16.msra.mxu0 %v4369
    %4403 = vmatprep.subr.bf16.mxu0 %v4372
    %4404 = vmatpush1.bf16.msra.mxu0 %v4371
    %4405 = vmatprep.subr.bf16.mxu0 %v4374
    %4406 = vmatpush1.bf16.msra.mxu0 %v4373
    %4407 = vmatprep.subr.bf16.mxu0 %v4376
    %4408 = vmatpush1.bf16.msra.mxu0 %v4375
    %4409 = vmatprep.subr.bf16.mxu0 %v4378
    %4410 = vmatpush1.bf16.msra.mxu0 %v4377
    %4411 = vmatprep.subr.bf16.mxu0 0
    %4412 = vmatpush1.bf16.msra.mxu0 0
    %4413 = vmatprep.subr.bf16.mxu0 0
    %4414 = vmatpush1.bf16.msra.mxu0 0
    %4415 = vmatprep.subr.bf16.mxu0 0
    %4416 = vmatpush1.bf16.msra.mxu0 0
    %4417 = vmatprep.subr.bf16.mxu0 0
    %4418 = vmatpush1.bf16.msra.mxu0 0
    %4419 = vmatprep.subr.bf16.mxu0 0
    %4420 = vmatpush1.bf16.msra.mxu0 0
    %4421 = vmatprep.subr.bf16.mxu0 0
    %4422 = vmatpush1.bf16.msra.mxu0 0
    %4423 = vmatprep.subr.bf16.mxu0 0
    %4424 = vmatpush1.bf16.msra.mxu0 0
    %4425 = vmatprep.subr.bf16.mxu0 0
    %4426 = vmatpush1.bf16.msra.mxu0 0
    %4427 = vmatprep.mubr.bf16.mxu0 0
    %4428 = vmatmul.mubr.bf16.gmra.mrb[0].mxu0 %v4279
    %v4429 = vpop.f32.mrb[0].mxu0
    %v4430 = vadd.f32 %v4308, %v4429
    %v4431 = vpop.f32.mrb[0].mxu0
    %v4432 = vadd.f32 %v4312, %v4431
    %v4433 = vpop.f32.mrb[0].mxu0
    %v4434 = vadd.f32 %v4308, %v4433
    %v4435 = vpop.f32.mrb[0].mxu0
    %v4436 = vadd.f32 %v4312, %v4435
    %4437 = vmatprep.mubr.bf16.mxu0 0
    %4438 = vmatmul.mubr.bf16.gmra.mrb[0].mxu0 %v4280
    %v4439 = vpop.f32.mrb[0].mxu0
    %v4440 = vadd.f32 %v4308, %v4439
    %v4441 = vpop.f32.mrb[0].mxu0
    %v4442 = vadd.f32 %v4312, %v4441
    %v4443 = vpop.f32.mrb[0].mxu0
    %v4444 = vadd.f32 %v4308, %v4443
    %v4445 = vpop.f32.mrb[0].mxu0
    %v4446 = vadd.f32 %v4312, %v4445
    %4447 = vmatprep.mubr.bf16.mxu0 0
    %4448 = vmatmul.mubr.bf16.gmra.mrb[0].mxu0 %v4281
    %v4449 = vpop.f32.mrb[0].mxu0
    %v4450 = vadd.f32 %v4308, %v4449
    %v4451 = vpop.f32.mrb[0].mxu0
    %v4452 = vadd.f32 %v4312, %v4451
    %v4453 = vpop.f32.mrb[0].mxu0
    %v4454 = vadd.f32 %v4308, %v4453
    %v4455 = vpop.f32.mrb[0].mxu0
    %v4456 = vadd.f32 %v4312, %v4455
    %4457 = vmatprep.mubr.bf16.mxu0 0
    %4458 = vmatmul.mubr.bf16.gmra.mrb[0].mxu0 %v4282
    %v4459 = vpop.f32.mrb[0].mxu0
    %v4460 = vadd.f32 %v4308, %v4459
    %v4461 = vpop.f32.mrb[0].mxu0
    %v4462 = vadd.f32 %v4312, %v4461
    %v4463 = vpop.f32.mrb[0].mxu0
    %v4464 = vadd.f32 %v4308, %v4463
    %v4465 = vpop.f32.mrb[0].mxu0
    %v4466 = vadd.f32 %v4312, %v4465
    %4467 = vmatprep.mubr.bf16.mxu0 0
    %4468 = vmatmul.mubr.bf16.gmra.mrb[0].mxu0 %v4283
    %v4469 = vpop.f32.mrb[0].mxu0
    %v4470 = vadd.f32 %v4308, %v4469
    %v4471 = vpop.f32.mrb[0].mxu0
    %v4472 = vadd.f32 %v4312, %v4471
    %v4473 = vpop.f32.mrb[0].mxu0
    %v4474 = vadd.f32 %v4308, %v4473
    %v4475 = vpop.f32.mrb[0].mxu0
    %v4476 = vadd.f32 %v4312, %v4475
    %4477 = vmatprep.mubr.bf16.mxu0 0
    %4478 = vmatmul.mubr.bf16.gmra.mrb[0].mxu0 %v4284
    %v4479 = vpop.f32.mrb[0].mxu0
    %v4480 = vadd.f32 %v4308, %v4479
    %v4481 = vpop.f32.mrb[0].mxu0
    %v4482 = vadd.f32 %v4312, %v4481
    %v4483 = vpop.f32.mrb[0].mxu0
    %v4484 = vadd.f32 %v4308, %v4483
    %v4485 = vpop.f32.mrb[0].mxu0
    %v4486 = vadd.f32 %v4312, %v4485
    %4487 = vmatprep.mubr.bf16.mxu0 0
    %4488 = vmatmul.mubr.bf16.gmra.mrb[0].mxu0 %v4285
    %v4489 = vpop.f32.mrb[0].mxu0
    %v4490 = vadd.f32 %v4308, %v4489
    %v4491 = vpop.f32.mrb[0].mxu0
    %v4492 = vadd.f32 %v4312, %v4491
    %v4493 = vpop.f32.mrb[0].mxu0
    %v4494 = vadd.f32 %v4308, %v4493
    %v4495 = vpop.f32.mrb[0].mxu0
    %v4496 = vadd.f32 %v4312, %v4495
    %4497 = vmatprep.mubr.bf16.mxu0 0
    %4498 = vmatmul.mubr.bf16.gmra.mrb[0].mxu0 %v4286
    %v4499 = vpop.f32.mrb[0].mxu0
    %v4500 = vadd.f32 %v4308, %v4499
    %v4501 = vpop.f32.mrb[0].mxu0
    %v4502 = vadd.f32 %v4312, %v4501
    %v4503 = vpop.f32.mrb[0].mxu0
    %v4504 = vadd.f32 %v4308, %v4503
    %v4505 = vpop.f32.mrb[0].mxu0
    %v4506 = vadd.f32 %v4312, %v4505
    %4507 = vdwg.mxu0
    %v4508 = vmax.f32 %v4430, 0.0
    %v4509 = vmax.f32 %v4432, 0.0
    %v4510 = vmax.f32 %v4434, 0.0
    %v4511 = vmax.f32 %v4436, 0.0
    %v4512 = vmax.f32 %v4440, 0.0
    %v4513 = vmax.f32 %v4442, 0.0
    %v4514 = vmax.f32 %v4444, 0.0
    %v4515 = vmax.f32 %v4446, 0.0
    %v4516 = vmax.f32 %v4450, 0.0
    %v4517 = vmax.f32 %v4452, 0.0
    %v4518 = vmax.f32 %v4454, 0.0
    %v4519 = vmax.f32 %v4456, 0.0
    %v4520 = vmax.f32 %v4460, 0.0
    %v4521 = vmax.f32 %v4462, 0.0
    %v4522 = vmax.f32 %v4464, 0.0
    %v4523 = vmax.f32 %v4466, 0.0
    %v4524 = vmax.f32 %v4470, 0.0
    %v4525 = vmax.f32 %v4472, 0.0
    %v4526 = vmax.f32 %v4474, 0.0
    %v4527 = vmax.f32 %v4476, 0.0
    %v4528 = vmax.f32 %v4480, 0.0
    %v4529 = vmax.f32 %v4482, 0.0
    %v4530 = vmax.f32 %v4484, 0.0
    %v4531 = vmax.f32 %v4486, 0.0
    %v4532 = vmax.f32 %v4490, 0.0
    %v4533 = vmax.f32 %v4492, 0.0
    %v4534 = vmax.f32 %v4494, 0.0
    %v4535 = vmax.f32 %v4496, 0.0
    %v4536 = vmax.f32 %v4500, 0.0
    %v4537 = vmax.f32 %v4502, 0.0
    %v4538 = vmax.f32 %v4504, 0.0
    %v4539 = vmax.f32 %v4506, 0.0
    %v4540 = vpack.c.bf16 %v4510, %v4508
    %v4541 = vpack.c.bf16 %v4511, %v4509
    %v4542 = vpack.c.bf16 %v4514, %v4512
    %v4543 = vpack.c.bf16 %v4515, %v4513
    %v4544 = vpack.c.bf16 %v4518, %v4516
    %v4545 = vpack.c.bf16 %v4519, %v4517
    %v4546 = vpack.c.bf16 %v4522, %v4520
    %v4547 = vpack.c.bf16 %v4523, %v4521
    %v4548 = vpack.c.bf16 %v4526, %v4524
    %v4549 = vpack.c.bf16 %v4527, %v4525
    %v4550 = vpack.c.bf16 %v4530, %v4528
    %v4551 = vpack.c.bf16 %v4531, %v4529
    %v4552 = vpack.c.bf16 %v4534, %v4532
    %v4553 = vpack.c.bf16 %v4535, %v4533
    %v4554 = vpack.c.bf16 %v4538, %v4536
    %v4555 = vpack.c.bf16 %v4539, %v4537
    %v4556 = vld [vmem:[#allocation2] sm:$0xff]
    %v4557 = vld [vmem:[#allocation2 + $0x8] sm:$0xff]
    %v4558 = vld [vmem:[#allocation2 + $0x10] sm:$0xff]
    %v4559 = vld [vmem:[#allocation2 + $0x18] sm:$0xff]
    %v4560 = vld [vmem:[#allocation2 + $0x20] sm:$0xff]
    %v4561 = vld [vmem:[#allocation2 + $0x28] sm:$0xff]
    %v4562 = vld [vmem:[#allocation2 + $0x30] sm:$0xff]
    %v4563 = vld [vmem:[#allocation2 + $0x38] sm:$0xff]
    %v4564 = vld [vmem:[#allocation2 + $0x40] sm:$0xff]
    %v4565 = vld [vmem:[#allocation2 + $0x48] sm:$0xf]
    %v4566 = vld [vmem:[#allocation2 + $0x4c] sm:$0xff]
    %v4567 = vld [vmem:[#allocation2 + $0x54] sm:$0xff]
    %v4568 = vld [vmem:[#allocation2 + $0x5c] sm:$0xff]
    %v4569 = vld [vmem:[#allocation2 + $0x64] sm:$0xff]
    %v4570 = vld [vmem:[#allocation2 + $0x6c] sm:$0xff]
    %v4571 = vld [vmem:[#allocation2 + $0x74] sm:$0xff]
    %v4572 = vld [vmem:[#allocation2 + $0x7c] sm:$0xff]
    %v4573 = vld [vmem:[#allocation2 + $0x84] sm:$0xff]
    %v4574 = vld [vmem:[#allocation2 + $0x8c] sm:$0xff]
    %v4575 = vld [vmem:[#allocation2 + $0x94] sm:$0xf]
    %v4576 = vld [vmem:[#allocation2 + $0x98] sm:$0xff]
    %v4577 = vld [vmem:[#allocation2 + $0xa0] sm:$0xff]
    %v4578 = vld [vmem:[#allocation2 + $0xa8] sm:$0xff]
    %v4579 = vld [vmem:[#allocation2 + $0xb0] sm:$0xff]
    %v4580 = vld [vmem:[#allocation2 + $0xb8] sm:$0xff]
    %v4581 = vld [vmem:[#allocation2 + $0xc0] sm:$0xff]
    %v4582 = vld [vmem:[#allocation2 + $0xc8] sm:$0xff]
    %v4583 = vld [vmem:[#allocation2 + $0xd0] sm:$0xff]
    %v4584 = vld [vmem:[#allocation2 + $0xd8] sm:$0xff]
    %v4585 = vld [vmem:[#allocation2 + $0xe0] sm:$0xf]
    %v4586 = vld [vmem:[#allocation2 + $0xe4] sm:$0xff]
    %v4587 = vld [vmem:[#allocation2 + $0xec] sm:$0xff]
    %v4588 = vld [vmem:[#allocation2 + $0xf4] sm:$0xff]
    %v4589 = vld [vmem:[#allocation2 + $0xfc] sm:$0xff]
    %v4590 = vld [vmem:[#allocation2 + $0x104] sm:$0xff]
    %v4591 = vld [vmem:[#allocation2 + $0x10c] sm:$0xff]
    %v4592 = vld [vmem:[#allocation2 + $0x114] sm:$0xff]
    %v4593 = vld [vmem:[#allocation2 + $0x11c] sm:$0xff]
    %v4594 = vld [vmem:[#allocation2 + $0x124] sm:$0xff]
    %v4595 = vld [vmem:[#allocation2 + $0x12c] sm:$0xf]
    %v4596 = vld [vmem:[#allocation2 + $0x130] sm:$0xff]
    %v4597 = vld [vmem:[#allocation2 + $0x138] sm:$0xff]
    %v4598 = vld [vmem:[#allocation2 + $0x140] sm:$0xff]
    %v4599 = vld [vmem:[#allocation2 + $0x148] sm:$0xff]
    %v4600 = vld [vmem:[#allocation2 + $0x150] sm:$0xff]
    %v4601 = vld [vmem:[#allocation2 + $0x158] sm:$0xff]
    %v4602 = vld [vmem:[#allocation2 + $0x160] sm:$0xff]
    %v4603 = vld [vmem:[#allocation2 + $0x168] sm:$0xff]
    %v4604 = vld [vmem:[#allocation2 + $0x170] sm:$0xff]
    %v4605 = vld [vmem:[#allocation2 + $0x178] sm:$0xf]
    %v4606 = vld [vmem:[#allocation2 + $0x17c] sm:$0xff]
    %v4607 = vld [vmem:[#allocation2 + $0x184] sm:$0xff]
    %v4608 = vld [vmem:[#allocation2 + $0x18c] sm:$0xff]
    %v4609 = vld [vmem:[#allocation2 + $0x194] sm:$0xff]
    %v4610 = vld [vmem:[#allocation2 + $0x19c] sm:$0xff]
    %v4611 = vld [vmem:[#allocation2 + $0x1a4] sm:$0xff]
    %v4612 = vld [vmem:[#allocation2 + $0x1ac] sm:$0xff]
    %v4613 = vld [vmem:[#allocation2 + $0x1b4] sm:$0xff]
    %v4614 = vld [vmem:[#allocation2 + $0x1bc] sm:$0xff]
    %v4615 = vld [vmem:[#allocation2 + $0x1c4] sm:$0xf]
    %v4616 = vld [vmem:[#allocation2 + $0x1c8] sm:$0xff]
    %v4617 = vld [vmem:[#allocation2 + $0x1d0] sm:$0xff]
    %v4618 = vld [vmem:[#allocation2 + $0x1d8] sm:$0xff]
    %v4619 = vld [vmem:[#allocation2 + $0x1e0] sm:$0xff]
    %v4620 = vld [vmem:[#allocation2 + $0x1e8] sm:$0xff]
    %v4621 = vld [vmem:[#allocation2 + $0x1f0] sm:$0xff]
    %v4622 = vld [vmem:[#allocation2 + $0x1f8] sm:$0xff]
    %v4623 = vld [vmem:[#allocation2 + $0x200] sm:$0xff]
    %v4624 = vld [vmem:[#allocation2 + $0x208] sm:$0xff]
    %v4625 = vld [vmem:[#allocation2 + $0x210] sm:$0xf]
    %v4626 = vld [vmem:[#allocation2 + $0x214] sm:$0xff]
    %v4627 = vld [vmem:[#allocation2 + $0x21c] sm:$0xff]
    %v4628 = vld [vmem:[#allocation2 + $0x224] sm:$0xff]
    %v4629 = vld [vmem:[#allocation2 + $0x22c] sm:$0xff]
    %v4630 = vld [vmem:[#allocation2 + $0x234] sm:$0xff]
    %v4631 = vld [vmem:[#allocation2 + $0x23c] sm:$0xff]
    %v4632 = vld [vmem:[#allocation2 + $0x244] sm:$0xff]
    %v4633 = vld [vmem:[#allocation2 + $0x24c] sm:$0xff]
    %v4634 = vld [vmem:[#allocation2 + $0x254] sm:$0xff]
    %v4635 = vld [vmem:[#allocation2 + $0x25c] sm:$0xf]
    %v4636 = vld [vmem:[#allocation2 + $0x260] sm:$0xff]
    %v4637 = vld [vmem:[#allocation2 + $0x268] sm:$0xff]
    %v4638 = vld [vmem:[#allocation2 + $0x270] sm:$0xff]
    %v4639 = vld [vmem:[#allocation2 + $0x278] sm:$0xff]
    %v4640 = vld [vmem:[#allocation2 + $0x280] sm:$0xff]
    %v4641 = vld [vmem:[#allocation2 + $0x288] sm:$0xff]
    %v4642 = vld [vmem:[#allocation2 + $0x290] sm:$0xff]
    %v4643 = vld [vmem:[#allocation2 + $0x298] sm:$0xff]
    %v4644 = vld [vmem:[#allocation2 + $0x2a0] sm:$0xff]
    %v4645 = vld [vmem:[#allocation2 + $0x2a8] sm:$0xf]
    %v4646 = vld [vmem:[#allocation2 + $0x2ac] sm:$0xff]
    %v4647 = vld [vmem:[#allocation2 + $0x2b4] sm:$0xff]
    %v4648 = vld [vmem:[#allocation2 + $0x2bc] sm:$0xff]
    %v4649 = vld [vmem:[#allocation2 + $0x2c4] sm:$0xff]
    %v4650 = vld [vmem:[#allocation2 + $0x2cc] sm:$0xff]
    %v4651 = vld [vmem:[#allocation2 + $0x2d4] sm:$0xff]
    %v4652 = vld [vmem:[#allocation2 + $0x2dc] sm:$0xff]
    %v4653 = vld [vmem:[#allocation2 + $0x2e4] sm:$0xff]
    %v4654 = vld [vmem:[#allocation2 + $0x2ec] sm:$0xff]
    %v4655 = vld [vmem:[#allocation2 + $0x2f4] sm:$0xf]
    %v4656 = vld [vmem:[#allocation2 + $0x2f8] sm:$0xff]
    %v4657 = vld [vmem:[#allocation2 + $0x300] sm:$0xff]
    %v4658 = vld [vmem:[#allocation2 + $0x308] sm:$0xff]
    %v4659 = vld [vmem:[#allocation2 + $0x310] sm:$0xff]
    %v4660 = vld [vmem:[#allocation2 + $0x318] sm:$0xff]
    %v4661 = vld [vmem:[#allocation2 + $0x320] sm:$0xff]
    %v4662 = vld [vmem:[#allocation2 + $0x328] sm:$0xff]
    %v4663 = vld [vmem:[#allocation2 + $0x330] sm:$0xff]
    %v4664 = vld [vmem:[#allocation2 + $0x338] sm:$0xff]
    %v4665 = vld [vmem:[#allocation2 + $0x340] sm:$0xf]
    %v4666 = vld [vmem:[#allocation2 + $0x344] sm:$0xff]
    %v4667 = vld [vmem:[#allocation2 + $0x34c] sm:$0xff]
    %v4668 = vld [vmem:[#allocation2 + $0x354] sm:$0xff]
    %v4669 = vld [vmem:[#allocation2 + $0x35c] sm:$0xff]
    %v4670 = vld [vmem:[#allocation2 + $0x364] sm:$0xff]
    %v4671 = vld [vmem:[#allocation2 + $0x36c] sm:$0xff]
    %v4672 = vld [vmem:[#allocation2 + $0x374] sm:$0xff]
    %v4673 = vld [vmem:[#allocation2 + $0x37c] sm:$0xff]
    %v4674 = vld [vmem:[#allocation2 + $0x384] sm:$0xff]
    %v4675 = vld [vmem:[#allocation2 + $0x38c] sm:$0xf]
    %v4676 = vld [vmem:[#allocation2 + $0x390] sm:$0xff]
    %v4677 = vld [vmem:[#allocation2 + $0x398] sm:$0xff]
    %v4678 = vld [vmem:[#allocation2 + $0x3a0] sm:$0xff]
    %v4679 = vld [vmem:[#allocation2 + $0x3a8] sm:$0xff]
    %v4680 = vld [vmem:[#allocation2 + $0x3b0] sm:$0xff]
    %v4681 = vld [vmem:[#allocation2 + $0x3b8] sm:$0xff]
    %v4682 = vld [vmem:[#allocation2 + $0x3c0] sm:$0xff]
    %v4683 = vld [vmem:[#allocation2 + $0x3c8] sm:$0xff]
    %v4684 = vld [vmem:[#allocation2 + $0x3d0] sm:$0xff]
    %v4685 = vld [vmem:[#allocation2 + $0x3d8] sm:$0xf]
    %v4686 = vld [vmem:[#allocation2 + $0x3dc] sm:$0xff]
    %v4687 = vld [vmem:[#allocation2 + $0x3e4] sm:$0xff]
    %v4688 = vld [vmem:[#allocation2 + $0x3ec] sm:$0xff]
    %v4689 = vld [vmem:[#allocation2 + $0x3f4] sm:$0xff]
    %v4690 = vld [vmem:[#allocation2 + $0x3fc] sm:$0xff]
    %v4691 = vld [vmem:[#allocation2 + $0x404] sm:$0xff]
    %v4692 = vld [vmem:[#allocation2 + $0x40c] sm:$0xff]
    %v4693 = vld [vmem:[#allocation2 + $0x414] sm:$0xff]
    %v4694 = vld [vmem:[#allocation2 + $0x41c] sm:$0xff]
    %v4695 = vld [vmem:[#allocation2 + $0x424] sm:$0xf]
    %v4696 = vld [vmem:[#allocation2 + $0x428] sm:$0xff]
    %v4697 = vld [vmem:[#allocation2 + $0x430] sm:$0xff]
    %v4698 = vld [vmem:[#allocation2 + $0x438] sm:$0xff]
    %v4699 = vld [vmem:[#allocation2 + $0x440] sm:$0xff]
    %v4700 = vld [vmem:[#allocation2 + $0x448] sm:$0xff]
    %v4701 = vld [vmem:[#allocation2 + $0x450] sm:$0xff]
    %v4702 = vld [vmem:[#allocation2 + $0x458] sm:$0xff]
    %v4703 = vld [vmem:[#allocation2 + $0x460] sm:$0xff]
    %v4704 = vld [vmem:[#allocation2 + $0x468] sm:$0xff]
    %v4705 = vld [vmem:[#allocation2 + $0x470] sm:$0xf]
    %v4706 = vld [vmem:[#allocation2 + $0x474] sm:$0xff]
    %v4707 = vld [vmem:[#allocation2 + $0x47c] sm:$0xff]
    %v4708 = vld [vmem:[#allocation2 + $0x484] sm:$0xff]
    %v4709 = vld [vmem:[#allocation2 + $0x48c] sm:$0xff]
    %v4710 = vld [vmem:[#allocation2 + $0x494] sm:$0xff]
    %v4711 = vld [vmem:[#allocation2 + $0x49c] sm:$0xff]
    %v4712 = vld [vmem:[#allocation2 + $0x4a4] sm:$0xff]
    %v4713 = vld [vmem:[#allocation2 + $0x4ac] sm:$0xff]
    %v4714 = vld [vmem:[#allocation2 + $0x4b4] sm:$0xff]
    %v4715 = vld [vmem:[#allocation2 + $0x4bc] sm:$0xf]
    %v4716 = vld [vmem:[#allocation2 + $0x4c0] sm:$0xff]
    %v4717 = vld [vmem:[#allocation2 + $0x4c8] sm:$0xff]
    %v4718 = vld [vmem:[#allocation2 + $0x4d0] sm:$0xff]
    %v4719 = vld [vmem:[#allocation2 + $0x4d8] sm:$0xff]
    %v4720 = vld [vmem:[#allocation2 + $0x4e0] sm:$0xff]
    %v4721 = vld [vmem:[#allocation2 + $0x4e8] sm:$0xff]
    %v4722 = vld [vmem:[#allocation2 + $0x4f0] sm:$0xff]
    %v4723 = vld [vmem:[#allocation2 + $0x4f8] sm:$0xff]
    %v4724 = vld [vmem:[#allocation2 + $0x500] sm:$0xff]
    %v4725 = vld [vmem:[#allocation2 + $0x508] sm:$0xf]
    %v4726 = vld [vmem:[#allocation2 + $0x50c] sm:$0xff]
    %v4727 = vld [vmem:[#allocation2 + $0x514] sm:$0xff]
    %v4728 = vld [vmem:[#allocation2 + $0x51c] sm:$0xff]
    %v4729 = vld [vmem:[#allocation2 + $0x524] sm:$0xff]
    %v4730 = vld [vmem:[#allocation2 + $0x52c] sm:$0xff]
    %v4731 = vld [vmem:[#allocation2 + $0x534] sm:$0xff]
    %v4732 = vld [vmem:[#allocation2 + $0x53c] sm:$0xff]
    %v4733 = vld [vmem:[#allocation2 + $0x544] sm:$0xff]
    %v4734 = vld [vmem:[#allocation2 + $0x54c] sm:$0xff]
    %v4735 = vld [vmem:[#allocation2 + $0x554] sm:$0xf]
    %v4736 = vld [vmem:[#allocation2 + $0x558] sm:$0xff]
    %v4737 = vld [vmem:[#allocation2 + $0x560] sm:$0xff]
    %v4738 = vld [vmem:[#allocation2 + $0x568] sm:$0xff]
    %v4739 = vld [vmem:[#allocation2 + $0x570] sm:$0xff]
    %v4740 = vld [vmem:[#allocation2 + $0x578] sm:$0xff]
    %v4741 = vld [vmem:[#allocation2 + $0x580] sm:$0xff]
    %v4742 = vld [vmem:[#allocation2 + $0x588] sm:$0xff]
    %v4743 = vld [vmem:[#allocation2 + $0x590] sm:$0xff]
    %v4744 = vld [vmem:[#allocation2 + $0x598] sm:$0xff]
    %v4745 = vld [vmem:[#allocation2 + $0x5a0] sm:$0xf]
    %v4746 = vld [vmem:[#allocation2 + $0x5a4] sm:$0xff]
    %v4747 = vld [vmem:[#allocation2 + $0x5ac] sm:$0xff]
    %v4748 = vld [vmem:[#allocation2 + $0x5b4] sm:$0xff]
    %v4749 = vld [vmem:[#allocation2 + $0x5bc] sm:$0xff]
    %v4750 = vld [vmem:[#allocation2 + $0x5c4] sm:$0xff]
    %v4751 = vld [vmem:[#allocation2 + $0x5cc] sm:$0xff]
    %v4752 = vld [vmem:[#allocation2 + $0x5d4] sm:$0xff]
    %v4753 = vld [vmem:[#allocation2 + $0x5dc] sm:$0xff]
    %v4754 = vld [vmem:[#allocation2 + $0x5e4] sm:$0xff]
    %v4755 = vld [vmem:[#allocation2 + $0x5ec] sm:$0xf]
    %v4756 = vld [vmem:[#allocation2 + $0x5f0] sm:$0xff]
    %v4757 = vld [vmem:[#allocation2 + $0x5f8] sm:$0xff]
    %v4758 = vld [vmem:[#allocation2 + $0x600] sm:$0xff]
    %v4759 = vld [vmem:[#allocation2 + $0x608] sm:$0xff]
    %v4760 = vld [vmem:[#allocation2 + $0x610] sm:$0xff]
    %v4761 = vld [vmem:[#allocation2 + $0x618] sm:$0xff]
    %v4762 = vld [vmem:[#allocation2 + $0x620] sm:$0xff]
    %v4763 = vld [vmem:[#allocation2 + $0x628] sm:$0xff]
    %v4764 = vld [vmem:[#allocation2 + $0x630] sm:$0xff]
    %v4765 = vld [vmem:[#allocation2 + $0x638] sm:$0xf]
    %v4766 = vld [vmem:[#allocation2 + $0x63c] sm:$0xff]
    %v4767 = vld [vmem:[#allocation2 + $0x644] sm:$0xff]
    %v4768 = vld [vmem:[#allocation2 + $0x64c] sm:$0xff]
    %v4769 = vld [vmem:[#allocation2 + $0x654] sm:$0xff]
    %v4770 = vld [vmem:[#allocation2 + $0x65c] sm:$0xff]
    %v4771 = vld [vmem:[#allocation2 + $0x664] sm:$0xff]
    %v4772 = vld [vmem:[#allocation2 + $0x66c] sm:$0xff]
    %v4773 = vld [vmem:[#allocation2 + $0x674] sm:$0xff]
    %v4774 = vld [vmem:[#allocation2 + $0x67c] sm:$0xff]
    %v4775 = vld [vmem:[#allocation2 + $0x684] sm:$0xf]
    %v4776 = vld [vmem:[#allocation2 + $0x688] sm:$0xff]
    %v4777 = vld [vmem:[#allocation2 + $0x690] sm:$0xff]
    %v4778 = vld [vmem:[#allocation2 + $0x698] sm:$0xff]
    %v4779 = vld [vmem:[#allocation2 + $0x6a0] sm:$0xff]
    %v4780 = vld [vmem:[#allocation2 + $0x6a8] sm:$0xff]
    %v4781 = vld [vmem:[#allocation2 + $0x6b0] sm:$0xff]
    %v4782 = vld [vmem:[#allocation2 + $0x6b8] sm:$0xff]
    %v4783 = vld [vmem:[#allocation2 + $0x6c0] sm:$0xff]
    %v4784 = vld [vmem:[#allocation2 + $0x6c8] sm:$0xff]
    %v4785 = vld [vmem:[#allocation2 + $0x6d0] sm:$0xf]
    %v4786 = vld [vmem:[#allocation2 + $0x6d4] sm:$0xff]
    %v4787 = vld [vmem:[#allocation2 + $0x6dc] sm:$0xff]
    %v4788 = vld [vmem:[#allocation2 + $0x6e4] sm:$0xff]
    %v4789 = vld [vmem:[#allocation2 + $0x6ec] sm:$0xff]
    %v4790 = vld [vmem:[#allocation2 + $0x6f4] sm:$0xff]
    %v4791 = vld [vmem:[#allocation2 + $0x6fc] sm:$0xff]
    %v4792 = vld [vmem:[#allocation2 + $0x704] sm:$0xff]
    %v4793 = vld [vmem:[#allocation2 + $0x70c] sm:$0xff]
    %v4794 = vld [vmem:[#allocation2 + $0x714] sm:$0xff]
    %v4795 = vld [vmem:[#allocation2 + $0x71c] sm:$0xf]
    %v4796 = vld [vmem:[#allocation2 + $0x720] sm:$0xff]
    %v4797 = vld [vmem:[#allocation2 + $0x728] sm:$0xff]
    %v4798 = vld [vmem:[#allocation2 + $0x730] sm:$0xff]
    %v4799 = vld [vmem:[#allocation2 + $0x738] sm:$0xff]
    %v4800 = vld [vmem:[#allocation2 + $0x740] sm:$0xff]
    %v4801 = vld [vmem:[#allocation2 + $0x748] sm:$0xff]
    %v4802 = vld [vmem:[#allocation2 + $0x750] sm:$0xff]
    %v4803 = vld [vmem:[#allocation2 + $0x758] sm:$0xff]
    %v4804 = vld [vmem:[#allocation2 + $0x760] sm:$0xff]
    %v4805 = vld [vmem:[#allocation2 + $0x768] sm:$0xf]
    %v4806 = vld [vmem:[#allocation2 + $0x76c] sm:$0xff]
    %v4807 = vld [vmem:[#allocation2 + $0x774] sm:$0xff]
    %v4808 = vld [vmem:[#allocation2 + $0x77c] sm:$0xff]
    %v4809 = vld [vmem:[#allocation2 + $0x784] sm:$0xff]
    %v4810 = vld [vmem:[#allocation2 + $0x78c] sm:$0xff]
    %v4811 = vld [vmem:[#allocation2 + $0x794] sm:$0xff]
    %v4812 = vld [vmem:[#allocation2 + $0x79c] sm:$0xff]
    %v4813 = vld [vmem:[#allocation2 + $0x7a4] sm:$0xff]
    %v4814 = vld [vmem:[#allocation2 + $0x7ac] sm:$0xff]
    %v4815 = vld [vmem:[#allocation2 + $0x7b4] sm:$0xf]
    %v4816 = vld [vmem:[#allocation2 + $0x7b8] sm:$0xff]
    %v4817 = vld [vmem:[#allocation2 + $0x7c0] sm:$0xff]
    %v4818 = vld [vmem:[#allocation2 + $0x7c8] sm:$0xff]
    %v4819 = vld [vmem:[#allocation2 + $0x7d0] sm:$0xff]
    %v4820 = vld [vmem:[#allocation2 + $0x7d8] sm:$0xff]
    %v4821 = vld [vmem:[#allocation2 + $0x7e0] sm:$0xff]
    %v4822 = vld [vmem:[#allocation2 + $0x7e8] sm:$0xff]
    %v4823 = vld [vmem:[#allocation2 + $0x7f0] sm:$0xff]
    %v4824 = vld [vmem:[#allocation2 + $0x7f8] sm:$0xff]
    %v4825 = vld [vmem:[#allocation2 + $0x800] sm:$0xf]
    %v4826 = vld [vmem:[#allocation2 + $0x804] sm:$0xff]
    %v4827 = vld [vmem:[#allocation2 + $0x80c] sm:$0xff]
    %v4828 = vld [vmem:[#allocation2 + $0x814] sm:$0xff]
    %v4829 = vld [vmem:[#allocation2 + $0x81c] sm:$0xff]
    %v4830 = vld [vmem:[#allocation2 + $0x824] sm:$0xff]
    %v4831 = vld [vmem:[#allocation2 + $0x82c] sm:$0xff]
    %v4832 = vld [vmem:[#allocation2 + $0x834] sm:$0xff]
    %v4833 = vld [vmem:[#allocation2 + $0x83c] sm:$0xff]
    %v4834 = vld [vmem:[#allocation2 + $0x844] sm:$0xff]
    %v4835 = vld [vmem:[#allocation2 + $0x84c] sm:$0xf]
    %v4836 = vld [vmem:[#allocation2 + $0x850] sm:$0xff]
    %v4837 = vld [vmem:[#allocation2 + $0x858] sm:$0xff]
    %v4838 = vld [vmem:[#allocation2 + $0x860] sm:$0xff]
    %v4839 = vld [vmem:[#allocation2 + $0x868] sm:$0xff]
    %v4840 = vld [vmem:[#allocation2 + $0x870] sm:$0xff]
    %v4841 = vld [vmem:[#allocation2 + $0x878] sm:$0xff]
    %v4842 = vld [vmem:[#allocation2 + $0x880] sm:$0xff]
    %v4843 = vld [vmem:[#allocation2 + $0x888] sm:$0xff]
    %v4844 = vld [vmem:[#allocation2 + $0x890] sm:$0xff]
    %v4845 = vld [vmem:[#allocation2 + $0x898] sm:$0xf]
    %v4846 = vld [vmem:[#allocation2 + $0x89c] sm:$0xff]
    %v4847 = vld [vmem:[#allocation2 + $0x8a4] sm:$0xff]
    %v4848 = vld [vmem:[#allocation2 + $0x8ac] sm:$0xff]
    %v4849 = vld [vmem:[#allocation2 + $0x8b4] sm:$0xff]
    %v4850 = vld [vmem:[#allocation2 + $0x8bc] sm:$0xff]
    %v4851 = vld [vmem:[#allocation2 + $0x8c4] sm:$0xff]
    %v4852 = vld [vmem:[#allocation2 + $0x8cc] sm:$0xff]
    %v4853 = vld [vmem:[#allocation2 + $0x8d4] sm:$0xff]
    %v4854 = vld [vmem:[#allocation2 + $0x8dc] sm:$0xff]
    %v4855 = vld [vmem:[#allocation2 + $0x8e4] sm:$0xf]
    %v4856 = vld [vmem:[#allocation2 + $0x8e8] sm:$0xff]
    %v4857 = vld [vmem:[#allocation2 + $0x8f0] sm:$0xff]
    %v4858 = vld [vmem:[#allocation2 + $0x8f8] sm:$0xff]
    %v4859 = vld [vmem:[#allocation2 + $0x900] sm:$0xff]
    %v4860 = vld [vmem:[#allocation2 + $0x908] sm:$0xff]
    %v4861 = vld [vmem:[#allocation2 + $0x910] sm:$0xff]
    %v4862 = vld [vmem:[#allocation2 + $0x918] sm:$0xff]
    %v4863 = vld [vmem:[#allocation2 + $0x920] sm:$0xff]
    %v4864 = vld [vmem:[#allocation2 + $0x928] sm:$0xff]
    %v4865 = vld [vmem:[#allocation2 + $0x930] sm:$0xf]
    %v4866 = vld [vmem:[#allocation2 + $0x934] sm:$0xff]
    %v4867 = vld [vmem:[#allocation2 + $0x93c] sm:$0xff]
    %v4868 = vld [vmem:[#allocation2 + $0x944] sm:$0xff]
    %v4869 = vld [vmem:[#allocation2 + $0x94c] sm:$0xff]
    %v4870 = vld [vmem:[#allocation2 + $0x954] sm:$0xff]
    %v4871 = vld [vmem:[#allocation2 + $0x95c] sm:$0xff]
    %v4872 = vld [vmem:[#allocation2 + $0x964] sm:$0xff]
    %v4873 = vld [vmem:[#allocation2 + $0x96c] sm:$0xff]
    %v4874 = vld [vmem:[#allocation2 + $0x974] sm:$0xff]
    %v4875 = vld [vmem:[#allocation2 + $0x97c] sm:$0xf]
    %v4876 = vld [vmem:[%s13] sm:$0xff]
    %v4877 = vld [vmem:[%s13 + $0x8] sm:$0xff]
    %v4878 = vld [vmem:[%s13 + $0x10] sm:$0x7]
    %v4882 = vlaneseq
    %v4883 = vshrl.u32 %v4882, 7
    %v4884 = vsub.s32 0, %v4883
    %v4885 = vrot.slane %v4876, %v4884
    %v4886 = vlaneseq
    %v4887 = vshrl.u32 %v4886, 7
    %v4888 = vsub.s32 1, %v4887
    %v4889 = vrot.slane %v4876, %v4888
    %v4890 = vlaneseq
    %v4891 = vshrl.u32 %v4890, 7
    %v4892 = vsub.s32 2, %v4891
    %v4893 = vrot.slane %v4876, %v4892
    %v4894 = vlaneseq
    %v4895 = vshrl.u32 %v4894, 7
    %v4896 = vsub.s32 3, %v4895
    %v4897 = vrot.slane %v4876, %v4896
    %v4898 = vlaneseq
    %v4899 = vshrl.u32 %v4898, 7
    %v4900 = vsub.s32 4, %v4899
    %v4901 = vrot.slane %v4876, %v4900
    %v4902 = vlaneseq
    %v4903 = vshrl.u32 %v4902, 7
    %v4904 = vsub.s32 5, %v4903
    %v4905 = vrot.slane %v4876, %v4904
    %v4906 = vlaneseq
    %v4907 = vshrl.u32 %v4906, 7
    %v4908 = vsub.s32 6, %v4907
    %v4909 = vrot.slane %v4876, %v4908
    %v4910 = vlaneseq
    %v4911 = vshrl.u32 %v4910, 7
    %v4912 = vsub.s32 7, %v4911
    %v4913 = vrot.slane %v4876, %v4912
    %v4914 = vlaneseq
    %v4915 = vshrl.u32 %v4914, 7
    %v4916 = vsub.s32 0, %v4915
    %v4917 = vrot.slane %v4877, %v4916
    %v4918 = vlaneseq
    %v4919 = vshrl.u32 %v4918, 7
    %v4920 = vsub.s32 1, %v4919
    %v4921 = vrot.slane %v4877, %v4920
    %v4922 = vlaneseq
    %v4923 = vshrl.u32 %v4922, 7
    %v4924 = vsub.s32 2, %v4923
    %v4925 = vrot.slane %v4877, %v4924
    %v4926 = vlaneseq
    %v4927 = vshrl.u32 %v4926, 7
    %v4928 = vsub.s32 3, %v4927
    %v4929 = vrot.slane %v4877, %v4928
    %v4930 = vlaneseq
    %v4931 = vshrl.u32 %v4930, 7
    %v4932 = vsub.s32 4, %v4931
    %v4933 = vrot.slane %v4877, %v4932
    %v4934 = vlaneseq
    %v4935 = vshrl.u32 %v4934, 7
    %v4936 = vsub.s32 5, %v4935
    %v4937 = vrot.slane %v4877, %v4936
    %v4938 = vlaneseq
    %v4939 = vshrl.u32 %v4938, 7
    %v4940 = vsub.s32 6, %v4939
    %v4941 = vrot.slane %v4877, %v4940
    %v4942 = vlaneseq
    %v4943 = vshrl.u32 %v4942, 7
    %v4944 = vsub.s32 7, %v4943
    %v4945 = vrot.slane %v4877, %v4944
    %v4946 = vlaneseq
    %v4947 = vshrl.u32 %v4946, 7
    %v4948 = vsub.s32 0, %v4947
    %v4949 = vrot.slane %v4878, %v4948
    %v4950 = vlaneseq
    %v4951 = vshrl.u32 %v4950, 7
    %v4952 = vsub.s32 1, %v4951
    %v4953 = vrot.slane %v4878, %v4952
    %v4954 = vlaneseq
    %v4955 = vshrl.u32 %v4954, 7
    %v4956 = vsub.s32 2, %v4955
    %v4957 = vrot.slane %v4878, %v4956
    %v5297 = vunpack.c.l.b16 %v4556
    %v5298 = vunpack.c.h.b16 %v4556
    %v5299 = vunpack.c.l.b16 %v4557
    %v5300 = vunpack.c.h.b16 %v4557
    %v5301 = vunpack.c.l.b16 %v4558
    %v5302 = vunpack.c.h.b16 %v4558
    %v5303 = vunpack.c.l.b16 %v4559
    %v5304 = vunpack.c.h.b16 %v4559
    %v5305 = vunpack.c.l.b16 %v4560
    %v5306 = vunpack.c.h.b16 %v4560
    %v5307 = vunpack.c.l.b16 %v4561
    %v5308 = vunpack.c.h.b16 %v4561
    %v5309 = vunpack.c.l.b16 %v4562
    %v5310 = vunpack.c.h.b16 %v4562
    %v5311 = vunpack.c.l.b16 %v4563
    %v5312 = vunpack.c.h.b16 %v4563
    %v5313 = vunpack.c.l.b16 %v4564
    %v5314 = vunpack.c.h.b16 %v4564
    %v5315 = vunpack.c.l.b16 %v4565
    %v5316 = vunpack.c.l.b16 %v4566
    %v5317 = vunpack.c.h.b16 %v4566
    %v5318 = vunpack.c.l.b16 %v4567
    %v5319 = vunpack.c.h.b16 %v4567
    %v5320 = vunpack.c.l.b16 %v4568
    %v5321 = vunpack.c.h.b16 %v4568
    %v5322 = vunpack.c.l.b16 %v4569
    %v5323 = vunpack.c.h.b16 %v4569
    %v5324 = vunpack.c.l.b16 %v4570
    %v5325 = vunpack.c.h.b16 %v4570
    %v5326 = vunpack.c.l.b16 %v4571
    %v5327 = vunpack.c.h.b16 %v4571
    %v5328 = vunpack.c.l.b16 %v4572
    %v5329 = vunpack.c.h.b16 %v4572
    %v5330 = vunpack.c.l.b16 %v4573
    %v5331 = vunpack.c.h.b16 %v4573
    %v5332 = vunpack.c.l.b16 %v4574
    %v5333 = vunpack.c.h.b16 %v4574
    %v5334 = vunpack.c.l.b16 %v4575
    %v5335 = vunpack.c.l.b16 %v4576
    %v5336 = vunpack.c.h.b16 %v4576
    %v5337 = vunpack.c.l.b16 %v4577
    %v5338 = vunpack.c.h.b16 %v4577
    %v5339 = vunpack.c.l.b16 %v4578
    %v5340 = vunpack.c.h.b16 %v4578
    %v5341 = vunpack.c.l.b16 %v4579
    %v5342 = vunpack.c.h.b16 %v4579
    %v5343 = vunpack.c.l.b16 %v4580
    %v5344 = vunpack.c.h.b16 %v4580
    %v5345 = vunpack.c.l.b16 %v4581
    %v5346 = vunpack.c.h.b16 %v4581
    %v5347 = vunpack.c.l.b16 %v4582
    %v5348 = vunpack.c.h.b16 %v4582
    %v5349 = vunpack.c.l.b16 %v4583
    %v5350 = vunpack.c.h.b16 %v4583
    %v5351 = vunpack.c.l.b16 %v4584
    %v5352 = vunpack.c.h.b16 %v4584
    %v5353 = vunpack.c.l.b16 %v4585
    %v5354 = vunpack.c.l.b16 %v4586
    %v5355 = vunpack.c.h.b16 %v4586
    %v5356 = vunpack.c.l.b16 %v4587
    %v5357 = vunpack.c.h.b16 %v4587
    %v5358 = vunpack.c.l.b16 %v4588
    %v5359 = vunpack.c.h.b16 %v4588
    %v5360 = vunpack.c.l.b16 %v4589
    %v5361 = vunpack.c.h.b16 %v4589
    %v5362 = vunpack.c.l.b16 %v4590
    %v5363 = vunpack.c.h.b16 %v4590
    %v5364 = vunpack.c.l.b16 %v4591
    %v5365 = vunpack.c.h.b16 %v4591
    %v5366 = vunpack.c.l.b16 %v4592
    %v5367 = vunpack.c.h.b16 %v4592
    %v5368 = vunpack.c.l.b16 %v4593
    %v5369 = vunpack.c.h.b16 %v4593
    %v5370 = vunpack.c.l.b16 %v4594
    %v5371 = vunpack.c.h.b16 %v4594
    %v5372 = vunpack.c.l.b16 %v4595
    %v5373 = vunpack.c.l.b16 %v4596
    %v5374 = vunpack.c.h.b16 %v4596
    %v5375 = vunpack.c.l.b16 %v4597
    %v5376 = vunpack.c.h.b16 %v4597
    %v5377 = vunpack.c.l.b16 %v4598
    %v5378 = vunpack.c.h.b16 %v4598
    %v5379 = vunpack.c.l.b16 %v4599
    %v5380 = vunpack.c.h.b16 %v4599
    %v5381 = vunpack.c.l.b16 %v4600
    %v5382 = vunpack.c.h.b16 %v4600
    %v5383 = vunpack.c.l.b16 %v4601
    %v5384 = vunpack.c.h.b16 %v4601
    %v5385 = vunpack.c.l.b16 %v4602
    %v5386 = vunpack.c.h.b16 %v4602
    %v5387 = vunpack.c.l.b16 %v4603
    %v5388 = vunpack.c.h.b16 %v4603
    %v5389 = vunpack.c.l.b16 %v4604
    %v5390 = vunpack.c.h.b16 %v4604
    %v5391 = vunpack.c.l.b16 %v4605
    %v5392 = vunpack.c.l.b16 %v4606
    %v5393 = vunpack.c.h.b16 %v4606
    %v5394 = vunpack.c.l.b16 %v4607
    %v5395 = vunpack.c.h.b16 %v4607
    %v5396 = vunpack.c.l.b16 %v4608
    %v5397 = vunpack.c.h.b16 %v4608
    %v5398 = vunpack.c.l.b16 %v4609
    %v5399 = vunpack.c.h.b16 %v4609
    %v5400 = vunpack.c.l.b16 %v4610
    %v5401 = vunpack.c.h.b16 %v4610
    %v5402 = vunpack.c.l.b16 %v4611
    %v5403 = vunpack.c.h.b16 %v4611
    %v5404 = vunpack.c.l.b16 %v4612
    %v5405 = vunpack.c.h.b16 %v4612
    %v5406 = vunpack.c.l.b16 %v4613
    %v5407 = vunpack.c.h.b16 %v4613
    %v5408 = vunpack.c.l.b16 %v4614
    %v5409 = vunpack.c.h.b16 %v4614
    %v5410 = vunpack.c.l.b16 %v4615
    %v5411 = vunpack.c.l.b16 %v4616
    %v5412 = vunpack.c.h.b16 %v4616
    %v5413 = vunpack.c.l.b16 %v4617
    %v5414 = vunpack.c.h.b16 %v4617
    %v5415 = vunpack.c.l.b16 %v4618
    %v5416 = vunpack.c.h.b16 %v4618
    %v5417 = vunpack.c.l.b16 %v4619
    %v5418 = vunpack.c.h.b16 %v4619
    %v5419 = vunpack.c.l.b16 %v4620
    %v5420 = vunpack.c.h.b16 %v4620
    %v5421 = vunpack.c.l.b16 %v4621
    %v5422 = vunpack.c.h.b16 %v4621
    %v5423 = vunpack.c.l.b16 %v4622
    %v5424 = vunpack.c.h.b16 %v4622
    %v5425 = vunpack.c.l.b16 %v4623
    %v5426 = vunpack.c.h.b16 %v4623
    %v5427 = vunpack.c.l.b16 %v4624
    %v5428 = vunpack.c.h.b16 %v4624
    %v5429 = vunpack.c.l.b16 %v4625
    %v5430 = vunpack.c.l.b16 %v4626
    %v5431 = vunpack.c.h.b16 %v4626
    %v5432 = vunpack.c.l.b16 %v4627
    %v5433 = vunpack.c.h.b16 %v4627
    %v5434 = vunpack.c.l.b16 %v4628
    %v5435 = vunpack.c.h.b16 %v4628
    %v5436 = vunpack.c.l.b16 %v4629
    %v5437 = vunpack.c.h.b16 %v4629
    %v5438 = vunpack.c.l.b16 %v4630
    %v5439 = vunpack.c.h.b16 %v4630
    %v5440 = vunpack.c.l.b16 %v4631
    %v5441 = vunpack.c.h.b16 %v4631
    %v5442 = vunpack.c.l.b16 %v4632
    %v5443 = vunpack.c.h.b16 %v4632
    %v5444 = vunpack.c.l.b16 %v4633
    %v5445 = vunpack.c.h.b16 %v4633
    %v5446 = vunpack.c.l.b16 %v4634
    %v5447 = vunpack.c.h.b16 %v4634
    %v5448 = vunpack.c.l.b16 %v4635
    %v5449 = vunpack.c.l.b16 %v4636
    %v5450 = vunpack.c.h.b16 %v4636
    %v5451 = vunpack.c.l.b16 %v4637
    %v5452 = vunpack.c.h.b16 %v4637
    %v5453 = vunpack.c.l.b16 %v4638
    %v5454 = vunpack.c.h.b16 %v4638
    %v5455 = vunpack.c.l.b16 %v4639
    %v5456 = vunpack.c.h.b16 %v4639
    %v5457 = vunpack.c.l.b16 %v4640
    %v5458 = vunpack.c.h.b16 %v4640
    %v5459 = vunpack.c.l.b16 %v4641
    %v5460 = vunpack.c.h.b16 %v4641
    %v5461 = vunpack.c.l.b16 %v4642
    %v5462 = vunpack.c.h.b16 %v4642
    %v5463 = vunpack.c.l.b16 %v4643
    %v5464 = vunpack.c.h.b16 %v4643
    %v5465 = vunpack.c.l.b16 %v4644
    %v5466 = vunpack.c.h.b16 %v4644
    %v5467 = vunpack.c.l.b16 %v4645
    %v5468 = vunpack.c.l.b16 %v4646
    %v5469 = vunpack.c.h.b16 %v4646
    %v5470 = vunpack.c.l.b16 %v4647
    %v5471 = vunpack.c.h.b16 %v4647
    %v5472 = vunpack.c.l.b16 %v4648
    %v5473 = vunpack.c.h.b16 %v4648
    %v5474 = vunpack.c.l.b16 %v4649
    %v5475 = vunpack.c.h.b16 %v4649
    %v5476 = vunpack.c.l.b16 %v4650
    %v5477 = vunpack.c.h.b16 %v4650
    %v5478 = vunpack.c.l.b16 %v4651
    %v5479 = vunpack.c.h.b16 %v4651
    %v5480 = vunpack.c.l.b16 %v4652
    %v5481 = vunpack.c.h.b16 %v4652
    %v5482 = vunpack.c.l.b16 %v4653
    %v5483 = vunpack.c.h.b16 %v4653
    %v5484 = vunpack.c.l.b16 %v4654
    %v5485 = vunpack.c.h.b16 %v4654
    %v5486 = vunpack.c.l.b16 %v4655
    %v5487 = vunpack.c.l.b16 %v4656
    %v5488 = vunpack.c.h.b16 %v4656
    %v5489 = vunpack.c.l.b16 %v4657
    %v5490 = vunpack.c.h.b16 %v4657
    %v5491 = vunpack.c.l.b16 %v4658
    %v5492 = vunpack.c.h.b16 %v4658
    %v5493 = vunpack.c.l.b16 %v4659
    %v5494 = vunpack.c.h.b16 %v4659
    %v5495 = vunpack.c.l.b16 %v4660
    %v5496 = vunpack.c.h.b16 %v4660
    %v5497 = vunpack.c.l.b16 %v4661
    %v5498 = vunpack.c.h.b16 %v4661
    %v5499 = vunpack.c.l.b16 %v4662
    %v5500 = vunpack.c.h.b16 %v4662
    %v5501 = vunpack.c.l.b16 %v4663
    %v5502 = vunpack.c.h.b16 %v4663
    %v5503 = vunpack.c.l.b16 %v4664
    %v5504 = vunpack.c.h.b16 %v4664
    %v5505 = vunpack.c.l.b16 %v4665
    %v5506 = vunpack.c.l.b16 %v4666
    %v5507 = vunpack.c.h.b16 %v4666
    %v5508 = vunpack.c.l.b16 %v4667
    %v5509 = vunpack.c.h.b16 %v4667
    %v5510 = vunpack.c.l.b16 %v4668
    %v5511 = vunpack.c.h.b16 %v4668
    %v5512 = vunpack.c.l.b16 %v4669
    %v5513 = vunpack.c.h.b16 %v4669
    %v5514 = vunpack.c.l.b16 %v4670
    %v5515 = vunpack.c.h.b16 %v4670
    %v5516 = vunpack.c.l.b16 %v4671
    %v5517 = vunpack.c.h.b16 %v4671
    %v5518 = vunpack.c.l.b16 %v4672
    %v5519 = vunpack.c.h.b16 %v4672
    %v5520 = vunpack.c.l.b16 %v4673
    %v5521 = vunpack.c.h.b16 %v4673
    %v5522 = vunpack.c.l.b16 %v4674
    %v5523 = vunpack.c.h.b16 %v4674
    %v5524 = vunpack.c.l.b16 %v4675
    %v5525 = vunpack.c.l.b16 %v4676
    %v5526 = vunpack.c.h.b16 %v4676
    %v5527 = vunpack.c.l.b16 %v4677
    %v5528 = vunpack.c.h.b16 %v4677
    %v5529 = vunpack.c.l.b16 %v4678
    %v5530 = vunpack.c.h.b16 %v4678
    %v5531 = vunpack.c.l.b16 %v4679
    %v5532 = vunpack.c.h.b16 %v4679
    %v5533 = vunpack.c.l.b16 %v4680
    %v5534 = vunpack.c.h.b16 %v4680
    %v5535 = vunpack.c.l.b16 %v4681
    %v5536 = vunpack.c.h.b16 %v4681
    %v5537 = vunpack.c.l.b16 %v4682
    %v5538 = vunpack.c.h.b16 %v4682
    %v5539 = vunpack.c.l.b16 %v4683
    %v5540 = vunpack.c.h.b16 %v4683
    %v5541 = vunpack.c.l.b16 %v4684
    %v5542 = vunpack.c.h.b16 %v4684
    %v5543 = vunpack.c.l.b16 %v4685
    %v5544 = vunpack.c.l.b16 %v4686
    %v5545 = vunpack.c.h.b16 %v4686
    %v5546 = vunpack.c.l.b16 %v4687
    %v5547 = vunpack.c.h.b16 %v4687
    %v5548 = vunpack.c.l.b16 %v4688
    %v5549 = vunpack.c.h.b16 %v4688
    %v5550 = vunpack.c.l.b16 %v4689
    %v5551 = vunpack.c.h.b16 %v4689
    %v5552 = vunpack.c.l.b16 %v4690
    %v5553 = vunpack.c.h.b16 %v4690
    %v5554 = vunpack.c.l.b16 %v4691
    %v5555 = vunpack.c.h.b16 %v4691
    %v5556 = vunpack.c.l.b16 %v4692
    %v5557 = vunpack.c.h.b16 %v4692
    %v5558 = vunpack.c.l.b16 %v4693
    %v5559 = vunpack.c.h.b16 %v4693
    %v5560 = vunpack.c.l.b16 %v4694
    %v5561 = vunpack.c.h.b16 %v4694
    %v5562 = vunpack.c.l.b16 %v4695
    %v5563 = vunpack.c.l.b16 %v4696
    %v5564 = vunpack.c.h.b16 %v4696
    %v5565 = vunpack.c.l.b16 %v4697
    %v5566 = vunpack.c.h.b16 %v4697
    %v5567 = vunpack.c.l.b16 %v4698
    %v5568 = vunpack.c.h.b16 %v4698
    %v5569 = vunpack.c.l.b16 %v4699
    %v5570 = vunpack.c.h.b16 %v4699
    %v5571 = vunpack.c.l.b16 %v4700
    %v5572 = vunpack.c.h.b16 %v4700
    %v5573 = vunpack.c.l.b16 %v4701
    %v5574 = vunpack.c.h.b16 %v4701
    %v5575 = vunpack.c.l.b16 %v4702
    %v5576 = vunpack.c.h.b16 %v4702
    %v5577 = vunpack.c.l.b16 %v4703
    %v5578 = vunpack.c.h.b16 %v4703
    %v5579 = vunpack.c.l.b16 %v4704
    %v5580 = vunpack.c.h.b16 %v4704
    %v5581 = vunpack.c.l.b16 %v4705
    %v5582 = vunpack.c.l.b16 %v4706
    %v5583 = vunpack.c.h.b16 %v4706
    %v5584 = vunpack.c.l.b16 %v4707
    %v5585 = vunpack.c.h.b16 %v4707
    %v5586 = vunpack.c.l.b16 %v4708
    %v5587 = vunpack.c.h.b16 %v4708
    %v5588 = vunpack.c.l.b16 %v4709
    %v5589 = vunpack.c.h.b16 %v4709
    %v5590 = vunpack.c.l.b16 %v4710
    %v5591 = vunpack.c.h.b16 %v4710
    %v5592 = vunpack.c.l.b16 %v4711
    %v5593 = vunpack.c.h.b16 %v4711
    %v5594 = vunpack.c.l.b16 %v4712
    %v5595 = vunpack.c.h.b16 %v4712
    %v5596 = vunpack.c.l.b16 %v4713
    %v5597 = vunpack.c.h.b16 %v4713
    %v5598 = vunpack.c.l.b16 %v4714
    %v5599 = vunpack.c.h.b16 %v4714
    %v5600 = vunpack.c.l.b16 %v4715
    %v5601 = vunpack.c.l.b16 %v4716
    %v5602 = vunpack.c.h.b16 %v4716
    %v5603 = vunpack.c.l.b16 %v4717
    %v5604 = vunpack.c.h.b16 %v4717
    %v5605 = vunpack.c.l.b16 %v4718
    %v5606 = vunpack.c.h.b16 %v4718
    %v5607 = vunpack.c.l.b16 %v4719
    %v5608 = vunpack.c.h.b16 %v4719
    %v5609 = vunpack.c.l.b16 %v4720
    %v5610 = vunpack.c.h.b16 %v4720
    %v5611 = vunpack.c.l.b16 %v4721
    %v5612 = vunpack.c.h.b16 %v4721
    %v5613 = vunpack.c.l.b16 %v4722
    %v5614 = vunpack.c.h.b16 %v4722
    %v5615 = vunpack.c.l.b16 %v4723
    %v5616 = vunpack.c.h.b16 %v4723
    %v5617 = vunpack.c.l.b16 %v4724
    %v5618 = vunpack.c.h.b16 %v4724
    %v5619 = vunpack.c.l.b16 %v4725
    %v5620 = vunpack.c.l.b16 %v4726
    %v5621 = vunpack.c.h.b16 %v4726
    %v5622 = vunpack.c.l.b16 %v4727
    %v5623 = vunpack.c.h.b16 %v4727
    %v5624 = vunpack.c.l.b16 %v4728
    %v5625 = vunpack.c.h.b16 %v4728
    %v5626 = vunpack.c.l.b16 %v4729
    %v5627 = vunpack.c.h.b16 %v4729
    %v5628 = vunpack.c.l.b16 %v4730
    %v5629 = vunpack.c.h.b16 %v4730
    %v5630 = vunpack.c.l.b16 %v4731
    %v5631 = vunpack.c.h.b16 %v4731
    %v5632 = vunpack.c.l.b16 %v4732
    %v5633 = vunpack.c.h.b16 %v4732
    %v5634 = vunpack.c.l.b16 %v4733
    %v5635 = vunpack.c.h.b16 %v4733
    %v5636 = vunpack.c.l.b16 %v4734
    %v5637 = vunpack.c.h.b16 %v4734
    %v5638 = vunpack.c.l.b16 %v4735
    %v5639 = vunpack.c.l.b16 %v4736
    %v5640 = vunpack.c.h.b16 %v4736
    %v5641 = vunpack.c.l.b16 %v4737
    %v5642 = vunpack.c.h.b16 %v4737
    %v5643 = vunpack.c.l.b16 %v4738
    %v5644 = vunpack.c.h.b16 %v4738
    %v5645 = vunpack.c.l.b16 %v4739
    %v5646 = vunpack.c.h.b16 %v4739
    %v5647 = vunpack.c.l.b16 %v4740
    %v5648 = vunpack.c.h.b16 %v4740
    %v5649 = vunpack.c.l.b16 %v4741
    %v5650 = vunpack.c.h.b16 %v4741
    %v5651 = vunpack.c.l.b16 %v4742
    %v5652 = vunpack.c.h.b16 %v4742
    %v5653 = vunpack.c.l.b16 %v4743
    %v5654 = vunpack.c.h.b16 %v4743
    %v5655 = vunpack.c.l.b16 %v4744
    %v5656 = vunpack.c.h.b16 %v4744
    %v5657 = vunpack.c.l.b16 %v4745
    %v5658 = vunpack.c.l.b16 %v4746
    %v5659 = vunpack.c.h.b16 %v4746
    %v5660 = vunpack.c.l.b16 %v4747
    %v5661 = vunpack.c.h.b16 %v4747
    %v5662 = vunpack.c.l.b16 %v4748
    %v5663 = vunpack.c.h.b16 %v4748
    %v5664 = vunpack.c.l.b16 %v4749
    %v5665 = vunpack.c.h.b16 %v4749
    %v5666 = vunpack.c.l.b16 %v4750
    %v5667 = vunpack.c.h.b16 %v4750
    %v5668 = vunpack.c.l.b16 %v4751
    %v5669 = vunpack.c.h.b16 %v4751
    %v5670 = vunpack.c.l.b16 %v4752
    %v5671 = vunpack.c.h.b16 %v4752
    %v5672 = vunpack.c.l.b16 %v4753
    %v5673 = vunpack.c.h.b16 %v4753
    %v5674 = vunpack.c.l.b16 %v4754
    %v5675 = vunpack.c.h.b16 %v4754
    %v5676 = vunpack.c.l.b16 %v4755
    %v5677 = vunpack.c.l.b16 %v4756
    %v5678 = vunpack.c.h.b16 %v4756
    %v5679 = vunpack.c.l.b16 %v4757
    %v5680 = vunpack.c.h.b16 %v4757
    %v5681 = vunpack.c.l.b16 %v4758
    %v5682 = vunpack.c.h.b16 %v4758
    %v5683 = vunpack.c.l.b16 %v4759
    %v5684 = vunpack.c.h.b16 %v4759
    %v5685 = vunpack.c.l.b16 %v4760
    %v5686 = vunpack.c.h.b16 %v4760
    %v5687 = vunpack.c.l.b16 %v4761
    %v5688 = vunpack.c.h.b16 %v4761
    %v5689 = vunpack.c.l.b16 %v4762
    %v5690 = vunpack.c.h.b16 %v4762
    %v5691 = vunpack.c.l.b16 %v4763
    %v5692 = vunpack.c.h.b16 %v4763
    %v5693 = vunpack.c.l.b16 %v4764
    %v5694 = vunpack.c.h.b16 %v4764
    %v5695 = vunpack.c.l.b16 %v4765
    %v5696 = vunpack.c.l.b16 %v4766
    %v5697 = vunpack.c.h.b16 %v4766
    %v5698 = vunpack.c.l.b16 %v4767
    %v5699 = vunpack.c.h.b16 %v4767
    %v5700 = vunpack.c.l.b16 %v4768
    %v5701 = vunpack.c.h.b16 %v4768
    %v5702 = vunpack.c.l.b16 %v4769
    %v5703 = vunpack.c.h.b16 %v4769
    %v5704 = vunpack.c.l.b16 %v4770
    %v5705 = vunpack.c.h.b16 %v4770
    %v5706 = vunpack.c.l.b16 %v4771
    %v5707 = vunpack.c.h.b16 %v4771
    %v5708 = vunpack.c.l.b16 %v4772
    %v5709 = vunpack.c.h.b16 %v4772
    %v5710 = vunpack.c.l.b16 %v4773
    %v5711 = vunpack.c.h.b16 %v4773
    %v5712 = vunpack.c.l.b16 %v4774
    %v5713 = vunpack.c.h.b16 %v4774
    %v5714 = vunpack.c.l.b16 %v4775
    %v5715 = vunpack.c.l.b16 %v4776
    %v5716 = vunpack.c.h.b16 %v4776
    %v5717 = vunpack.c.l.b16 %v4777
    %v5718 = vunpack.c.h.b16 %v4777
    %v5719 = vunpack.c.l.b16 %v4778
    %v5720 = vunpack.c.h.b16 %v4778
    %v5721 = vunpack.c.l.b16 %v4779
    %v5722 = vunpack.c.h.b16 %v4779
    %v5723 = vunpack.c.l.b16 %v4780
    %v5724 = vunpack.c.h.b16 %v4780
    %v5725 = vunpack.c.l.b16 %v4781
    %v5726 = vunpack.c.h.b16 %v4781
    %v5727 = vunpack.c.l.b16 %v4782
    %v5728 = vunpack.c.h.b16 %v4782
    %v5729 = vunpack.c.l.b16 %v4783
    %v5730 = vunpack.c.h.b16 %v4783
    %v5731 = vunpack.c.l.b16 %v4784
    %v5732 = vunpack.c.h.b16 %v4784
    %v5733 = vunpack.c.l.b16 %v4785
    %v5734 = vunpack.c.l.b16 %v4786
    %v5735 = vunpack.c.h.b16 %v4786
    %v5736 = vunpack.c.l.b16 %v4787
    %v5737 = vunpack.c.h.b16 %v4787
    %v5738 = vunpack.c.l.b16 %v4788
    %v5739 = vunpack.c.h.b16 %v4788
    %v5740 = vunpack.c.l.b16 %v4789
    %v5741 = vunpack.c.h.b16 %v4789
    %v5742 = vunpack.c.l.b16 %v4790
    %v5743 = vunpack.c.h.b16 %v4790
    %v5744 = vunpack.c.l.b16 %v4791
    %v5745 = vunpack.c.h.b16 %v4791
    %v5746 = vunpack.c.l.b16 %v4792
    %v5747 = vunpack.c.h.b16 %v4792
    %v5748 = vunpack.c.l.b16 %v4793
    %v5749 = vunpack.c.h.b16 %v4793
    %v5750 = vunpack.c.l.b16 %v4794
    %v5751 = vunpack.c.h.b16 %v4794
    %v5752 = vunpack.c.l.b16 %v4795
    %v5753 = vunpack.c.l.b16 %v4796
    %v5754 = vunpack.c.h.b16 %v4796
    %v5755 = vunpack.c.l.b16 %v4797
    %v5756 = vunpack.c.h.b16 %v4797
    %v5757 = vunpack.c.l.b16 %v4798
    %v5758 = vunpack.c.h.b16 %v4798
    %v5759 = vunpack.c.l.b16 %v4799
    %v5760 = vunpack.c.h.b16 %v4799
    %v5761 = vunpack.c.l.b16 %v4800
    %v5762 = vunpack.c.h.b16 %v4800
    %v5763 = vunpack.c.l.b16 %v4801
    %v5764 = vunpack.c.h.b16 %v4801
    %v5765 = vunpack.c.l.b16 %v4802
    %v5766 = vunpack.c.h.b16 %v4802
    %v5767 = vunpack.c.l.b16 %v4803
    %v5768 = vunpack.c.h.b16 %v4803
    %v5769 = vunpack.c.l.b16 %v4804
    %v5770 = vunpack.c.h.b16 %v4804
    %v5771 = vunpack.c.l.b16 %v4805
    %v5772 = vunpack.c.l.b16 %v4806
    %v5773 = vunpack.c.h.b16 %v4806
    %v5774 = vunpack.c.l.b16 %v4807
    %v5775 = vunpack.c.h.b16 %v4807
    %v5776 = vunpack.c.l.b16 %v4808
    %v5777 = vunpack.c.h.b16 %v4808
    %v5778 = vunpack.c.l.b16 %v4809
    %v5779 = vunpack.c.h.b16 %v4809
    %v5780 = vunpack.c.l.b16 %v4810
    %v5781 = vunpack.c.h.b16 %v4810
    %v5782 = vunpack.c.l.b16 %v4811
    %v5783 = vunpack.c.h.b16 %v4811
    %v5784 = vunpack.c.l.b16 %v4812
    %v5785 = vunpack.c.h.b16 %v4812
    %v5786 = vunpack.c.l.b16 %v4813
    %v5787 = vunpack.c.h.b16 %v4813
    %v5788 = vunpack.c.l.b16 %v4814
    %v5789 = vunpack.c.h.b16 %v4814
    %v5790 = vunpack.c.l.b16 %v4815
    %v5791 = vunpack.c.l.b16 %v4816
    %v5792 = vunpack.c.h.b16 %v4816
    %v5793 = vunpack.c.l.b16 %v4817
    %v5794 = vunpack.c.h.b16 %v4817
    %v5795 = vunpack.c.l.b16 %v4818
    %v5796 = vunpack.c.h.b16 %v4818
    %v5797 = vunpack.c.l.b16 %v4819
    %v5798 = vunpack.c.h.b16 %v4819
    %v5799 = vunpack.c.l.b16 %v4820
    %v5800 = vunpack.c.h.b16 %v4820
    %v5801 = vunpack.c.l.b16 %v4821
    %v5802 = vunpack.c.h.b16 %v4821
    %v5803 = vunpack.c.l.b16 %v4822
    %v5804 = vunpack.c.h.b16 %v4822
    %v5805 = vunpack.c.l.b16 %v4823
    %v5806 = vunpack.c.h.b16 %v4823
    %v5807 = vunpack.c.l.b16 %v4824
    %v5808 = vunpack.c.h.b16 %v4824
    %v5809 = vunpack.c.l.b16 %v4825
    %v5810 = vunpack.c.l.b16 %v4826
    %v5811 = vunpack.c.h.b16 %v4826
    %v5812 = vunpack.c.l.b16 %v4827
    %v5813 = vunpack.c.h.b16 %v4827
    %v5814 = vunpack.c.l.b16 %v4828
    %v5815 = vunpack.c.h.b16 %v4828
    %v5816 = vunpack.c.l.b16 %v4829
    %v5817 = vunpack.c.h.b16 %v4829
    %v5818 = vunpack.c.l.b16 %v4830
    %v5819 = vunpack.c.h.b16 %v4830
    %v5820 = vunpack.c.l.b16 %v4831
    %v5821 = vunpack.c.h.b16 %v4831
    %v5822 = vunpack.c.l.b16 %v4832
    %v5823 = vunpack.c.h.b16 %v4832
    %v5824 = vunpack.c.l.b16 %v4833
    %v5825 = vunpack.c.h.b16 %v4833
    %v5826 = vunpack.c.l.b16 %v4834
    %v5827 = vunpack.c.h.b16 %v4834
    %v5828 = vunpack.c.l.b16 %v4835
    %v5829 = vunpack.c.l.b16 %v4836
    %v5830 = vunpack.c.h.b16 %v4836
    %v5831 = vunpack.c.l.b16 %v4837
    %v5832 = vunpack.c.h.b16 %v4837
    %v5833 = vunpack.c.l.b16 %v4838
    %v5834 = vunpack.c.h.b16 %v4838
    %v5835 = vunpack.c.l.b16 %v4839
    %v5836 = vunpack.c.h.b16 %v4839
    %v5837 = vunpack.c.l.b16 %v4840
    %v5838 = vunpack.c.h.b16 %v4840
    %v5839 = vunpack.c.l.b16 %v4841
    %v5840 = vunpack.c.h.b16 %v4841
    %v5841 = vunpack.c.l.b16 %v4842
    %v5842 = vunpack.c.h.b16 %v4842
    %v5843 = vunpack.c.l.b16 %v4843
    %v5844 = vunpack.c.h.b16 %v4843
    %v5845 = vunpack.c.l.b16 %v4844
    %v5846 = vunpack.c.h.b16 %v4844
    %v5847 = vunpack.c.l.b16 %v4845
    %v5848 = vunpack.c.l.b16 %v4846
    %v5849 = vunpack.c.h.b16 %v4846
    %v5850 = vunpack.c.l.b16 %v4847
    %v5851 = vunpack.c.h.b16 %v4847
    %v5852 = vunpack.c.l.b16 %v4848
    %v5853 = vunpack.c.h.b16 %v4848
    %v5854 = vunpack.c.l.b16 %v4849
    %v5855 = vunpack.c.h.b16 %v4849
    %v5856 = vunpack.c.l.b16 %v4850
    %v5857 = vunpack.c.h.b16 %v4850
    %v5858 = vunpack.c.l.b16 %v4851
    %v5859 = vunpack.c.h.b16 %v4851
    %v5860 = vunpack.c.l.b16 %v4852
    %v5861 = vunpack.c.h.b16 %v4852
    %v5862 = vunpack.c.l.b16 %v4853
    %v5863 = vunpack.c.h.b16 %v4853
    %v5864 = vunpack.c.l.b16 %v4854
    %v5865 = vunpack.c.h.b16 %v4854
    %v5866 = vunpack.c.l.b16 %v4855
    %v5867 = vunpack.c.l.b16 %v4856
    %v5868 = vunpack.c.h.b16 %v4856
    %v5869 = vunpack.c.l.b16 %v4857
    %v5870 = vunpack.c.h.b16 %v4857
    %v5871 = vunpack.c.l.b16 %v4858
    %v5872 = vunpack.c.h.b16 %v4858
    %v5873 = vunpack.c.l.b16 %v4859
    %v5874 = vunpack.c.h.b16 %v4859
    %v5875 = vunpack.c.l.b16 %v4860
    %v5876 = vunpack.c.h.b16 %v4860
    %v5877 = vunpack.c.l.b16 %v4861
    %v5878 = vunpack.c.h.b16 %v4861
    %v5879 = vunpack.c.l.b16 %v4862
    %v5880 = vunpack.c.h.b16 %v4862
    %v5881 = vunpack.c.l.b16 %v4863
    %v5882 = vunpack.c.h.b16 %v4863
    %v5883 = vunpack.c.l.b16 %v4864
    %v5884 = vunpack.c.h.b16 %v4864
    %v5885 = vunpack.c.l.b16 %v4865
    %v5886 = vunpack.c.l.b16 %v4866
    %v5887 = vunpack.c.h.b16 %v4866
    %v5888 = vunpack.c.l.b16 %v4867
    %v5889 = vunpack.c.h.b16 %v4867
    %v5890 = vunpack.c.l.b16 %v4868
    %v5891 = vunpack.c.h.b16 %v4868
    %v5892 = vunpack.c.l.b16 %v4869
    %v5893 = vunpack.c.h.b16 %v4869
    %v5894 = vunpack.c.l.b16 %v4870
    %v5895 = vunpack.c.h.b16 %v4870
    %v5896 = vunpack.c.l.b16 %v4871
    %v5897 = vunpack.c.h.b16 %v4871
    %v5898 = vunpack.c.l.b16 %v4872
    %v5899 = vunpack.c.h.b16 %v4872
    %v5900 = vunpack.c.l.b16 %v4873
    %v5901 = vunpack.c.h.b16 %v4873
    %v5902 = vunpack.c.l.b16 %v4874
    %v5903 = vunpack.c.h.b16 %v4874
    %v5904 = vunpack.c.l.b16 %v4875
    %v5905 = vpack.c.b16 %v5316, %v5297
    %v5906 = vpack.c.b16 %v5317, %v5298
    %v5907 = vpack.c.b16 %v5318, %v5299
    %v5908 = vpack.c.b16 %v5319, %v5300
    %v5909 = vpack.c.b16 %v5320, %v5301
    %v5910 = vpack.c.b16 %v5321, %v5302
    %v5911 = vpack.c.b16 %v5322, %v5303
    %v5912 = vpack.c.b16 %v5323, %v5304
    %v5913 = vpack.c.b16 %v5324, %v5305
    %v5914 = vpack.c.b16 %v5325, %v5306
    %v5915 = vpack.c.b16 %v5326, %v5307
    %v5916 = vpack.c.b16 %v5327, %v5308
    %v5917 = vpack.c.b16 %v5328, %v5309
    %v5918 = vpack.c.b16 %v5329, %v5310
    %v5919 = vpack.c.b16 %v5330, %v5311
    %v5920 = vpack.c.b16 %v5331, %v5312
    %v5921 = vpack.c.b16 %v5332, %v5313
    %v5922 = vpack.c.b16 %v5333, %v5314
    %v5923 = vpack.c.b16 %v5334, %v5315
    %v5924 = vpack.c.b16 %v5354, %v5335
    %v5925 = vpack.c.b16 %v5355, %v5336
    %v5926 = vpack.c.b16 %v5356, %v5337
    %v5927 = vpack.c.b16 %v5357, %v5338
    %v5928 = vpack.c.b16 %v5358, %v5339
    %v5929 = vpack.c.b16 %v5359, %v5340
    %v5930 = vpack.c.b16 %v5360, %v5341
    %v5931 = vpack.c.b16 %v5361, %v5342
    %v5932 = vpack.c.b16 %v5362, %v5343
    %v5933 = vpack.c.b16 %v5363, %v5344
    %v5934 = vpack.c.b16 %v5364, %v5345
    %v5935 = vpack.c.b16 %v5365, %v5346
    %v5936 = vpack.c.b16 %v5366, %v5347
    %v5937 = vpack.c.b16 %v5367, %v5348
    %v5938 = vpack.c.b16 %v5368, %v5349
    %v5939 = vpack.c.b16 %v5369, %v5350
    %v5940 = vpack.c.b16 %v5370, %v5351
    %v5941 = vpack.c.b16 %v5371, %v5352
    %v5942 = vpack.c.b16 %v5372, %v5353
    %v5943 = vpack.c.b16 %v5392, %v5373
    %v5944 = vpack.c.b16 %v5393, %v5374
    %v5945 = vpack.c.b16 %v5394, %v5375
    %v5946 = vpack.c.b16 %v5395, %v5376
    %v5947 = vpack.c.b16 %v5396, %v5377
    %v5948 = vpack.c.b16 %v5397, %v5378
    %v5949 = vpack.c.b16 %v5398, %v5379
    %v5950 = vpack.c.b16 %v5399, %v5380
    %v5951 = vpack.c.b16 %v5400, %v5381
    %v5952 = vpack.c.b16 %v5401, %v5382
    %v5953 = vpack.c.b16 %v5402, %v5383
    %v5954 = vpack.c.b16 %v5403, %v5384
    %v5955 = vpack.c.b16 %v5404, %v5385
    %v5956 = vpack.c.b16 %v5405, %v5386
    %v5957 = vpack.c.b16 %v5406, %v5387
    %v5958 = vpack.c.b16 %v5407, %v5388
    %v5959 = vpack.c.b16 %v5408, %v5389
    %v5960 = vpack.c.b16 %v5409, %v5390
    %v5961 = vpack.c.b16 %v5410, %v5391
    %v5962 = vpack.c.b16 %v5430, %v5411
    %v5963 = vpack.c.b16 %v5431, %v5412
    %v5964 = vpack.c.b16 %v5432, %v5413
    %v5965 = vpack.c.b16 %v5433, %v5414
    %v5966 = vpack.c.b16 %v5434, %v5415
    %v5967 = vpack.c.b16 %v5435, %v5416
    %v5968 = vpack.c.b16 %v5436, %v5417
    %v5969 = vpack.c.b16 %v5437, %v5418
    %v5970 = vpack.c.b16 %v5438, %v5419
    %v5971 = vpack.c.b16 %v5439, %v5420
    %v5972 = vpack.c.b16 %v5440, %v5421
    %v5973 = vpack.c.b16 %v5441, %v5422
    %v5974 = vpack.c.b16 %v5442, %v5423
    %v5975 = vpack.c.b16 %v5443, %v5424
    %v5976 = vpack.c.b16 %v5444, %v5425
    %v5977 = vpack.c.b16 %v5445, %v5426
    %v5978 = vpack.c.b16 %v5446, %v5427
    %v5979 = vpack.c.b16 %v5447, %v5428
    %v5980 = vpack.c.b16 %v5448, %v5429
    %v5981 = vpack.c.b16 %v5468, %v5449
    %v5982 = vpack.c.b16 %v5469, %v5450
    %v5983 = vpack.c.b16 %v5470, %v5451
    %v5984 = vpack.c.b16 %v5471, %v5452
    %v5985 = vpack.c.b16 %v5472, %v5453
    %v5986 = vpack.c.b16 %v5473, %v5454
    %v5987 = vpack.c.b16 %v5474, %v5455
    %v5988 = vpack.c.b16 %v5475, %v5456
    %v5989 = vpack.c.b16 %v5476, %v5457
    %v5990 = vpack.c.b16 %v5477, %v5458
    %v5991 = vpack.c.b16 %v5478, %v5459
    %v5992 = vpack.c.b16 %v5479, %v5460
    %v5993 = vpack.c.b16 %v5480, %v5461
    %v5994 = vpack.c.b16 %v5481, %v5462
    %v5995 = vpack.c.b16 %v5482, %v5463
    %v5996 = vpack.c.b16 %v5483, %v5464
    %v5997 = vpack.c.b16 %v5484, %v5465
    %v5998 = vpack.c.b16 %v5485, %v5466
    %v5999 = vpack.c.b16 %v5486, %v5467
    %v6000 = vpack.c.b16 %v5506, %v5487
    %v6001 = vpack.c.b16 %v5507, %v5488
    %v6002 = vpack.c.b16 %v5508, %v5489
    %v6003 = vpack.c.b16 %v5509, %v5490
    %v6004 = vpack.c.b16 %v5510, %v5491
    %v6005 = vpack.c.b16 %v5511, %v5492
    %v6006 = vpack.c.b16 %v5512, %v5493
    %v6007 = vpack.c.b16 %v5513, %v5494
    %v6008 = vpack.c.b16 %v5514, %v5495
    %v6009 = vpack.c.b16 %v5515, %v5496
    %v6010 = vpack.c.b16 %v5516, %v5497
    %v6011 = vpack.c.b16 %v5517, %v5498
    %v6012 = vpack.c.b16 %v5518, %v5499
    %v6013 = vpack.c.b16 %v5519, %v5500
    %v6014 = vpack.c.b16 %v5520, %v5501
    %v6015 = vpack.c.b16 %v5521, %v5502
    %v6016 = vpack.c.b16 %v5522, %v5503
    %v6017 = vpack.c.b16 %v5523, %v5504
    %v6018 = vpack.c.b16 %v5524, %v5505
    %v6019 = vpack.c.b16 %v5544, %v5525
    %v6020 = vpack.c.b16 %v5545, %v5526
    %v6021 = vpack.c.b16 %v5546, %v5527
    %v6022 = vpack.c.b16 %v5547, %v5528
    %v6023 = vpack.c.b16 %v5548, %v5529
    %v6024 = vpack.c.b16 %v5549, %v5530
    %v6025 = vpack.c.b16 %v5550, %v5531
    %v6026 = vpack.c.b16 %v5551, %v5532
    %v6027 = vpack.c.b16 %v5552, %v5533
    %v6028 = vpack.c.b16 %v5553, %v5534
    %v6029 = vpack.c.b16 %v5554, %v5535
    %v6030 = vpack.c.b16 %v5555, %v5536
    %v6031 = vpack.c.b16 %v5556, %v5537
    %v6032 = vpack.c.b16 %v5557, %v5538
    %v6033 = vpack.c.b16 %v5558, %v5539
    %v6034 = vpack.c.b16 %v5559, %v5540
    %v6035 = vpack.c.b16 %v5560, %v5541
    %v6036 = vpack.c.b16 %v5561, %v5542
    %v6037 = vpack.c.b16 %v5562, %v5543
    %v6038 = vpack.c.b16 %v5582, %v5563
    %v6039 = vpack.c.b16 %v5583, %v5564
    %v6040 = vpack.c.b16 %v5584, %v5565
    %v6041 = vpack.c.b16 %v5585, %v5566
    %v6042 = vpack.c.b16 %v5586, %v5567
    %v6043 = vpack.c.b16 %v5587, %v5568
    %v6044 = vpack.c.b16 %v5588, %v5569
    %v6045 = vpack.c.b16 %v5589, %v5570
    %v6046 = vpack.c.b16 %v5590, %v5571
    %v6047 = vpack.c.b16 %v5591, %v5572
    %v6048 = vpack.c.b16 %v5592, %v5573
    %v6049 = vpack.c.b16 %v5593, %v5574
    %v6050 = vpack.c.b16 %v5594, %v5575
    %v6051 = vpack.c.b16 %v5595, %v5576
    %v6052 = vpack.c.b16 %v5596, %v5577
    %v6053 = vpack.c.b16 %v5597, %v5578
    %v6054 = vpack.c.b16 %v5598, %v5579
    %v6055 = vpack.c.b16 %v5599, %v5580
    %v6056 = vpack.c.b16 %v5600, %v5581
    %v6057 = vpack.c.b16 %v5620, %v5601
    %v6058 = vpack.c.b16 %v5621, %v5602
    %v6059 = vpack.c.b16 %v5622, %v5603
    %v6060 = vpack.c.b16 %v5623, %v5604
    %v6061 = vpack.c.b16 %v5624, %v5605
    %v6062 = vpack.c.b16 %v5625, %v5606
    %v6063 = vpack.c.b16 %v5626, %v5607
    %v6064 = vpack.c.b16 %v5627, %v5608
    %v6065 = vpack.c.b16 %v5628, %v5609
    %v6066 = vpack.c.b16 %v5629, %v5610
    %v6067 = vpack.c.b16 %v5630, %v5611
    %v6068 = vpack.c.b16 %v5631, %v5612
    %v6069 = vpack.c.b16 %v5632, %v5613
    %v6070 = vpack.c.b16 %v5633, %v5614
    %v6071 = vpack.c.b16 %v5634, %v5615
    %v6072 = vpack.c.b16 %v5635, %v5616
    %v6073 = vpack.c.b16 %v5636, %v5617
    %v6074 = vpack.c.b16 %v5637, %v5618
    %v6075 = vpack.c.b16 %v5638, %v5619
    %v6076 = vpack.c.b16 %v5658, %v5639
    %v6077 = vpack.c.b16 %v5659, %v5640
    %v6078 = vpack.c.b16 %v5660, %v5641
    %v6079 = vpack.c.b16 %v5661, %v5642
    %v6080 = vpack.c.b16 %v5662, %v5643
    %v6081 = vpack.c.b16 %v5663, %v5644
    %v6082 = vpack.c.b16 %v5664, %v5645
    %v6083 = vpack.c.b16 %v5665, %v5646
    %v6084 = vpack.c.b16 %v5666, %v5647
    %v6085 = vpack.c.b16 %v5667, %v5648
    %v6086 = vpack.c.b16 %v5668, %v5649
    %v6087 = vpack.c.b16 %v5669, %v5650
    %v6088 = vpack.c.b16 %v5670, %v5651
    %v6089 = vpack.c.b16 %v5671, %v5652
    %v6090 = vpack.c.b16 %v5672, %v5653
    %v6091 = vpack.c.b16 %v5673, %v5654
    %v6092 = vpack.c.b16 %v5674, %v5655
    %v6093 = vpack.c.b16 %v5675, %v5656
    %v6094 = vpack.c.b16 %v5676, %v5657
    %v6095 = vpack.c.b16 %v5696, %v5677
    %v6096 = vpack.c.b16 %v5697, %v5678
    %v6097 = vpack.c.b16 %v5698, %v5679
    %v6098 = vpack.c.b16 %v5699, %v5680
    %v6099 = vpack.c.b16 %v5700, %v5681
    %v6100 = vpack.c.b16 %v5701, %v5682
    %v6101 = vpack.c.b16 %v5702, %v5683
    %v6102 = vpack.c.b16 %v5703, %v5684
    %v6103 = vpack.c.b16 %v5704, %v5685
    %v6104 = vpack.c.b16 %v5705, %v5686
    %v6105 = vpack.c.b16 %v5706, %v5687
    %v6106 = vpack.c.b16 %v5707, %v5688
    %v6107 = vpack.c.b16 %v5708, %v5689
    %v6108 = vpack.c.b16 %v5709, %v5690
    %v6109 = vpack.c.b16 %v5710, %v5691
    %v6110 = vpack.c.b16 %v5711, %v5692
    %v6111 = vpack.c.b16 %v5712, %v5693
    %v6112 = vpack.c.b16 %v5713, %v5694
    %v6113 = vpack.c.b16 %v5714, %v5695
    %v6114 = vpack.c.b16 %v5734, %v5715
    %v6115 = vpack.c.b16 %v5735, %v5716
    %v6116 = vpack.c.b16 %v5736, %v5717
    %v6117 = vpack.c.b16 %v5737, %v5718
    %v6118 = vpack.c.b16 %v5738, %v5719
    %v6119 = vpack.c.b16 %v5739, %v5720
    %v6120 = vpack.c.b16 %v5740, %v5721
    %v6121 = vpack.c.b16 %v5741, %v5722
    %v6122 = vpack.c.b16 %v5742, %v5723
    %v6123 = vpack.c.b16 %v5743, %v5724
    %v6124 = vpack.c.b16 %v5744, %v5725
    %v6125 = vpack.c.b16 %v5745, %v5726
    %v6126 = vpack.c.b16 %v5746, %v5727
    %v6127 = vpack.c.b16 %v5747, %v5728
    %v6128 = vpack.c.b16 %v5748, %v5729
    %v6129 = vpack.c.b16 %v5749, %v5730
    %v6130 = vpack.c.b16 %v5750, %v5731
    %v6131 = vpack.c.b16 %v5751, %v5732
    %v6132 = vpack.c.b16 %v5752, %v5733
    %v6133 = vpack.c.b16 %v5772, %v5753
    %v6134 = vpack.c.b16 %v5773, %v5754
    %v6135 = vpack.c.b16 %v5774, %v5755
    %v6136 = vpack.c.b16 %v5775, %v5756
    %v6137 = vpack.c.b16 %v5776, %v5757
    %v6138 = vpack.c.b16 %v5777, %v5758
    %v6139 = vpack.c.b16 %v5778, %v5759
    %v6140 = vpack.c.b16 %v5779, %v5760
    %v6141 = vpack.c.b16 %v5780, %v5761
    %v6142 = vpack.c.b16 %v5781, %v5762
    %v6143 = vpack.c.b16 %v5782, %v5763
    %v6144 = vpack.c.b16 %v5783, %v5764
    %v6145 = vpack.c.b16 %v5784, %v5765
    %v6146 = vpack.c.b16 %v5785, %v5766
    %v6147 = vpack.c.b16 %v5786, %v5767
    %v6148 = vpack.c.b16 %v5787, %v5768
    %v6149 = vpack.c.b16 %v5788, %v5769
    %v6150 = vpack.c.b16 %v5789, %v5770
    %v6151 = vpack.c.b16 %v5790, %v5771
    %v6152 = vpack.c.b16 %v5810, %v5791
    %v6153 = vpack.c.b16 %v5811, %v5792
    %v6154 = vpack.c.b16 %v5812, %v5793
    %v6155 = vpack.c.b16 %v5813, %v5794
    %v6156 = vpack.c.b16 %v5814, %v5795
    %v6157 = vpack.c.b16 %v5815, %v5796
    %v6158 = vpack.c.b16 %v5816, %v5797
    %v6159 = vpack.c.b16 %v5817, %v5798
    %v6160 = vpack.c.b16 %v5818, %v5799
    %v6161 = vpack.c.b16 %v5819, %v5800
    %v6162 = vpack.c.b16 %v5820, %v5801
    %v6163 = vpack.c.b16 %v5821, %v5802
    %v6164 = vpack.c.b16 %v5822, %v5803
    %v6165 = vpack.c.b16 %v5823, %v5804
    %v6166 = vpack.c.b16 %v5824, %v5805
    %v6167 = vpack.c.b16 %v5825, %v5806
    %v6168 = vpack.c.b16 %v5826, %v5807
    %v6169 = vpack.c.b16 %v5827, %v5808
    %v6170 = vpack.c.b16 %v5828, %v5809
    %v6171 = vpack.c.b16 %v5848, %v5829
    %v6172 = vpack.c.b16 %v5849, %v5830
    %v6173 = vpack.c.b16 %v5850, %v5831
    %v6174 = vpack.c.b16 %v5851, %v5832
    %v6175 = vpack.c.b16 %v5852, %v5833
    %v6176 = vpack.c.b16 %v5853, %v5834
    %v6177 = vpack.c.b16 %v5854, %v5835
    %v6178 = vpack.c.b16 %v5855, %v5836
    %v6179 = vpack.c.b16 %v5856, %v5837
    %v6180 = vpack.c.b16 %v5857, %v5838
    %v6181 = vpack.c.b16 %v5858, %v5839
    %v6182 = vpack.c.b16 %v5859, %v5840
    %v6183 = vpack.c.b16 %v5860, %v5841
    %v6184 = vpack.c.b16 %v5861, %v5842
    %v6185 = vpack.c.b16 %v5862, %v5843
    %v6186 = vpack.c.b16 %v5863, %v5844
    %v6187 = vpack.c.b16 %v5864, %v5845
    %v6188 = vpack.c.b16 %v5865, %v5846
    %v6189 = vpack.c.b16 %v5866, %v5847
    %v6190 = vpack.c.b16 %v5886, %v5867
    %v6191 = vpack.c.b16 %v5887, %v5868
    %v6192 = vpack.c.b16 %v5888, %v5869
    %v6193 = vpack.c.b16 %v5889, %v5870
    %v6194 = vpack.c.b16 %v5890, %v5871
    %v6195 = vpack.c.b16 %v5891, %v5872
    %v6196 = vpack.c.b16 %v5892, %v5873
    %v6197 = vpack.c.b16 %v5893, %v5874
    %v6198 = vpack.c.b16 %v5894, %v5875
    %v6199 = vpack.c.b16 %v5895, %v5876
    %v6200 = vpack.c.b16 %v5896, %v5877
    %v6201 = vpack.c.b16 %v5897, %v5878
    %v6202 = vpack.c.b16 %v5898, %v5879
    %v6203 = vpack.c.b16 %v5899, %v5880
    %v6204 = vpack.c.b16 %v5900, %v5881
    %v6205 = vpack.c.b16 %v5901, %v5882
    %v6206 = vpack.c.b16 %v5902, %v5883
    %v6207 = vpack.c.b16 %v5903, %v5884
    %v6208 = vpack.c.b16 %v5904, %v5885
    %6513 = vmatprep.subr.bf16.mxu0 %v5906
    %6514 = vmatpush1.bf16.msra.mxu0 %v5905
    %6515 = vmatprep.subr.bf16.mxu0 %v5925
    %6516 = vmatpush1.bf16.msra.mxu0 %v5924
    %6517 = vmatprep.subr.bf16.mxu0 %v5944
    %6518 = vmatpush1.bf16.msra.mxu0 %v5943
    %6519 = vmatprep.subr.bf16.mxu0 %v5963
    %6520 = vmatpush1.bf16.msra.mxu0 %v5962
    %6521 = vmatprep.subr.bf16.mxu0 %v5982
    %6522 = vmatpush1.bf16.msra.mxu0 %v5981
    %6523 = vmatprep.subr.bf16.mxu0 %v6001
    %6524 = vmatpush1.bf16.msra.mxu0 %v6000
    %6525 = vmatprep.subr.bf16.mxu0 %v6020
    %6526 = vmatpush1.bf16.msra.mxu0 %v6019
    %6527 = vmatprep.subr.bf16.mxu0 %v6039
    %6528 = vmatpush1.bf16.msra.mxu0 %v6038
    %6529 = vmatprep.subr.bf16.mxu0 %v6058
    %6530 = vmatpush1.bf16.msra.mxu0 %v6057
    %6531 = vmatprep.subr.bf16.mxu0 %v6077
    %6532 = vmatpush1.bf16.msra.mxu0 %v6076
    %6533 = vmatprep.subr.bf16.mxu0 %v6096
    %6534 = vmatpush1.bf16.msra.mxu0 %v6095
    %6535 = vmatprep.subr.bf16.mxu0 %v6115
    %6536 = vmatpush1.bf16.msra.mxu0 %v6114
    %6537 = vmatprep.subr.bf16.mxu0 %v6134
    %6538 = vmatpush1.bf16.msra.mxu0 %v6133
    %6539 = vmatprep.subr.bf16.mxu0 %v6153
    %6540 = vmatpush1.bf16.msra.mxu0 %v6152
    %6541 = vmatprep.subr.bf16.mxu0 %v6172
    %6542 = vmatpush1.bf16.msra.mxu0 %v6171
    %6543 = vmatprep.subr.bf16.mxu0 %v6191
    %6544 = vmatpush1.bf16.msra.mxu0 %v6190
    %6545 = vmatprep.mubr.bf16.mxu0 %v4541
    %6546 = vmatmul.mubr.bf16.gmra.mrb[0].mxu0 %v4540
    %v6547 = vpop.f32.mrb[0].mxu0
    %v6548 = vadd.f32 %v4885, %v6547
    %v6549 = vpop.f32.mrb[0].mxu0
    %v6550 = vadd.f32 %v4889, %v6549
    %v6551 = vpop.f32.mrb[0].mxu0
    %v6552 = vadd.f32 %v4885, %v6551
    %v6553 = vpop.f32.mrb[0].mxu0
    %v6554 = vadd.f32 %v4889, %v6553
    %6555 = vmatprep.mubr.bf16.mxu0 %v4543
    %6556 = vmatmul.mubr.bf16.gmra.mrb[0].mxu0 %v4542
    %v6557 = vpop.f32.mrb[0].mxu0
    %v6558 = vadd.f32 %v4885, %v6557
    %v6559 = vpop.f32.mrb[0].mxu0
    %v6560 = vadd.f32 %v4889, %v6559
    %v6561 = vpop.f32.mrb[0].mxu0
    %v6562 = vadd.f32 %v4885, %v6561
    %v6563 = vpop.f32.mrb[0].mxu0
    %v6564 = vadd.f32 %v4889, %v6563
    %6565 = vmatprep.mubr.bf16.mxu0 %v4545
    %6566 = vmatmul.mubr.bf16.gmra.mrb[0].mxu0 %v4544
    %v6567 = vpop.f32.mrb[0].mxu0
    %v6568 = vadd.f32 %v4885, %v6567
    %v6569 = vpop.f32.mrb[0].mxu0
    %v6570 = vadd.f32 %v4889, %v6569
    %v6571 = vpop.f32.mrb[0].mxu0
    %v6572 = vadd.f32 %v4885, %v6571
    %v6573 = vpop.f32.mrb[0].mxu0
    %v6574 = vadd.f32 %v4889, %v6573
    %6575 = vmatprep.mubr.bf16.mxu0 %v4547
    %6576 = vmatmul.mubr.bf16.gmra.mrb[0].mxu0 %v4546
    %v6577 = vpop.f32.mrb[0].mxu0
    %v6578 = vadd.f32 %v4885, %v6577
    %v6579 = vpop.f32.mrb[0].mxu0
    %v6580 = vadd.f32 %v4889, %v6579
    %v6581 = vpop.f32.mrb[0].mxu0
    %v6582 = vadd.f32 %v4885, %v6581
    %v6583 = vpop.f32.mrb[0].mxu0
    %v6584 = vadd.f32 %v4889, %v6583
    %6585 = vmatprep.mubr.bf16.mxu0 %v4549
    %6586 = vmatmul.mubr.bf16.gmra.mrb[0].mxu0 %v4548
    %v6587 = vpop.f32.mrb[0].mxu0
    %v6588 = vadd.f32 %v4885, %v6587
    %v6589 = vpop.f32.mrb[0].mxu0
    %v6590 = vadd.f32 %v4889, %v6589
    %v6591 = vpop.f32.mrb[0].mxu0
    %v6592 = vadd.f32 %v4885, %v6591
    %v6593 = vpop.f32.mrb[0].mxu0
    %v6594 = vadd.f32 %v4889, %v6593
    %6595 = vmatprep.mubr.bf16.mxu0 %v4551
    %6596 = vmatmul.mubr.bf16.gmra.mrb[0].mxu0 %v4550
    %v6597 = vpop.f32.mrb[0].mxu0
    %v6598 = vadd.f32 %v4885, %v6597
    %v6599 = vpop.f32.mrb[0].mxu0
    %v6600 = vadd.f32 %v4889, %v6599
    %v6601 = vpop.f32.mrb[0].mxu0
    %v6602 = vadd.f32 %v4885, %v6601
    %v6603 = vpop.f32.mrb[0].mxu0
    %v6604 = vadd.f32 %v4889, %v6603
    %6605 = vmatprep.mubr.bf16.mxu0 %v4553
    %6606 = vmatmul.mubr.bf16.gmra.mrb[0].mxu0 %v4552
    %v6607 = vpop.f32.mrb[0].mxu0
    %v6608 = vadd.f32 %v4885, %v6607
    %v6609 = vpop.f32.mrb[0].mxu0
    %v6610 = vadd.f32 %v4889, %v6609
    %v6611 = vpop.f32.mrb[0].mxu0
    %v6612 = vadd.f32 %v4885, %v6611
    %v6613 = vpop.f32.mrb[0].mxu0
    %v6614 = vadd.f32 %v4889, %v6613
    %6615 = vmatprep.mubr.bf16.mxu0 %v4555
    %6616 = vmatmul.mubr.bf16.gmra.mrb[0].mxu0 %v4554
    %v6617 = vpop.f32.mrb[0].mxu0
    %v6618 = vadd.f32 %v4885, %v6617
    %v6619 = vpop.f32.mrb[0].mxu0
    %v6620 = vadd.f32 %v4889, %v6619
    %v6621 = vpop.f32.mrb[0].mxu0
    %v6622 = vadd.f32 %v4885, %v6621
    %v6623 = vpop.f32.mrb[0].mxu0
    %v6624 = vadd.f32 %v4889, %v6623
    %6625 = vdwg.mxu0
    %6626 = vmatprep.subr.bf16.mxu0 %v5908
    %6627 = vmatpush1.bf16.msra.mxu0 %v5907
    %6628 = vmatprep.subr.bf16.mxu0 %v5927
    %6629 = vmatpush1.bf16.msra.mxu0 %v5926
    %6630 = vmatprep.subr.bf16.mxu0 %v5946
    %6631 = vmatpush1.bf16.msra.mxu0 %v5945
    %6632 = vmatprep.subr.bf16.mxu0 %v5965
    %6633 = vmatpush1.bf16.msra.mxu0 %v5964
    %6634 = vmatprep.subr.bf16.mxu0 %v5984
    %6635 = vmatpush1.bf16.msra.mxu0 %v5983
    %6636 = vmatprep.subr.bf16.mxu0 %v6003
    %6637 = vmatpush1.bf16.msra.mxu0 %v6002
    %6638 = vmatprep.subr.bf16.mxu0 %v6022
    %6639 = vmatpush1.bf16.msra.mxu0 %v6021
    %6640 = vmatprep.subr.bf16.mxu0 %v6041
    %6641 = vmatpush1.bf16.msra.mxu0 %v6040
    %6642 = vmatprep.subr.bf16.mxu0 %v6060
    %6643 = vmatpush1.bf16.msra.mxu0 %v6059
    %6644 = vmatprep.subr.bf16.mxu0 %v6079
    %6645 = vmatpush1.bf16.msra.mxu0 %v6078
    %6646 = vmatprep.subr.bf16.mxu0 %v6098
    %6647 = vmatpush1.bf16.msra.mxu0 %v6097
    %6648 = vmatprep.subr.bf16.mxu0 %v6117
    %6649 = vmatpush1.bf16.msra.mxu0 %v6116
    %6650 = vmatprep.subr.bf16.mxu0 %v6136
    %6651 = vmatpush1.bf16.msra.mxu0 %v6135
    %6652 = vmatprep.subr.bf16.mxu0 %v6155
    %6653 = vmatpush1.bf16.msra.mxu0 %v6154
    %6654 = vmatprep.subr.bf16.mxu0 %v6174
    %6655 = vmatpush1.bf16.msra.mxu0 %v6173
    %6656 = vmatprep.subr.bf16.mxu0 %v6193
    %6657 = vmatpush1.bf16.msra.mxu0 %v6192
    %6658 = vmatprep.mubr.bf16.mxu0 %v4541
    %6659 = vmatmul.mubr.bf16.gmra.mrb[0].mxu0 %v4540
    %v6660 = vpop.f32.mrb[0].mxu0
    %v6661 = vadd.f32 %v4893, %v6660
    %v6662 = vpop.f32.mrb[0].mxu0
    %v6663 = vadd.f32 %v4897, %v6662
    %v6664 = vpop.f32.mrb[0].mxu0
    %v6665 = vadd.f32 %v4893, %v6664
    %v6666 = vpop.f32.mrb[0].mxu0
    %v6667 = vadd.f32 %v4897, %v6666
    %6668 = vmatprep.mubr.bf16.mxu0 %v4543
    %6669 = vmatmul.mubr.bf16.gmra.mrb[0].mxu0 %v4542
    %v6670 = vpop.f32.mrb[0].mxu0
    %v6671 = vadd.f32 %v4893, %v6670
    %v6672 = vpop.f32.mrb[0].mxu0
    %v6673 = vadd.f32 %v4897, %v6672
    %v6674 = vpop.f32.mrb[0].mxu0
    %v6675 = vadd.f32 %v4893, %v6674
    %v6676 = vpop.f32.mrb[0].mxu0
    %v6677 = vadd.f32 %v4897, %v6676
    %6678 = vmatprep.mubr.bf16.mxu0 %v4545
    %6679 = vmatmul.mubr.bf16.gmra.mrb[0].mxu0 %v4544
    %v6680 = vpop.f32.mrb[0].mxu0
    %v6681 = vadd.f32 %v4893, %v6680
    %v6682 = vpop.f32.mrb[0].mxu0
    %v6683 = vadd.f32 %v4897, %v6682
    %v6684 = vpop.f32.mrb[0].mxu0
    %v6685 = vadd.f32 %v4893, %v6684
    %v6686 = vpop.f32.mrb[0].mxu0
    %v6687 = vadd.f32 %v4897, %v6686
    %6688 = vmatprep.mubr.bf16.mxu0 %v4547
    %6689 = vmatmul.mubr.bf16.gmra.mrb[0].mxu0 %v4546
    %v6690 = vpop.f32.mrb[0].mxu0
    %v6691 = vadd.f32 %v4893, %v6690
    %v6692 = vpop.f32.mrb[0].mxu0
    %v6693 = vadd.f32 %v4897, %v6692
    %v6694 = vpop.f32.mrb[0].mxu0
    %v6695 = vadd.f32 %v4893, %v6694
    %v6696 = vpop.f32.mrb[0].mxu0
    %v6697 = vadd.f32 %v4897, %v6696
    %6698 = vmatprep.mubr.bf16.mxu0 %v4549
    %6699 = vmatmul.mubr.bf16.gmra.mrb[0].mxu0 %v4548
    %v6700 = vpop.f32.mrb[0].mxu0
    %v6701 = vadd.f32 %v4893, %v6700
    %v6702 = vpop.f32.mrb[0].mxu0
    %v6703 = vadd.f32 %v4897, %v6702
    %v6704 = vpop.f32.mrb[0].mxu0
    %v6705 = vadd.f32 %v4893, %v6704
    %v6706 = vpop.f32.mrb[0].mxu0
    %v6707 = vadd.f32 %v4897, %v6706
    %6708 = vmatprep.mubr.bf16.mxu0 %v4551
    %6709 = vmatmul.mubr.bf16.gmra.mrb[0].mxu0 %v4550
    %v6710 = vpop.f32.mrb[0].mxu0
    %v6711 = vadd.f32 %v4893, %v6710
    %v6712 = vpop.f32.mrb[0].mxu0
    %v6713 = vadd.f32 %v4897, %v6712
    %v6714 = vpop.f32.mrb[0].mxu0
    %v6715 = vadd.f32 %v4893, %v6714
    %v6716 = vpop.f32.mrb[0].mxu0
    %v6717 = vadd.f32 %v4897, %v6716
    %6718 = vmatprep.mubr.bf16.mxu0 %v4553
    %6719 = vmatmul.mubr.bf16.gmra.mrb[0].mxu0 %v4552
    %v6720 = vpop.f32.mrb[0].mxu0
    %v6721 = vadd.f32 %v4893, %v6720
    %v6722 = vpop.f32.mrb[0].mxu0
    %v6723 = vadd.f32 %v4897, %v6722
    %v6724 = vpop.f32.mrb[0].mxu0
    %v6725 = vadd.f32 %v4893, %v6724
    %v6726 = vpop.f32.mrb[0].mxu0
    %v6727 = vadd.f32 %v4897, %v6726
    %6728 = vmatprep.mubr.bf16.mxu0 %v4555
    %6729 = vmatmul.mubr.bf16.gmra.mrb[0].mxu0 %v4554
    %v6730 = vpop.f32.mrb[0].mxu0
    %v6731 = vadd.f32 %v4893, %v6730
    %v6732 = vpop.f32.mrb[0].mxu0
    %v6733 = vadd.f32 %v4897, %v6732
    %v6734 = vpop.f32.mrb[0].mxu0
    %v6735 = vadd.f32 %v4893, %v6734
    %v6736 = vpop.f32.mrb[0].mxu0
    %v6737 = vadd.f32 %v4897, %v6736
    %6738 = vdwg.mxu0
    %6739 = vmatprep.subr.bf16.mxu0 %v5910
    %6740 = vmatpush1.bf16.msra.mxu0 %v5909
    %6741 = vmatprep.subr.bf16.mxu0 %v5929
    %6742 = vmatpush1.bf16.msra.mxu0 %v5928
    %6743 = vmatprep.subr.bf16.mxu0 %v5948
    %6744 = vmatpush1.bf16.msra.mxu0 %v5947
    %6745 = vmatprep.subr.bf16.mxu0 %v5967
    %6746 = vmatpush1.bf16.msra.mxu0 %v5966
    %6747 = vmatprep.subr.bf16.mxu0 %v5986
    %6748 = vmatpush1.bf16.msra.mxu0 %v5985
    %6749 = vmatprep.subr.bf16.mxu0 %v6005
    %6750 = vmatpush1.bf16.msra.mxu0 %v6004
    %6751 = vmatprep.subr.bf16.mxu0 %v6024
    %6752 = vmatpush1.bf16.msra.mxu0 %v6023
    %6753 = vmatprep.subr.bf16.mxu0 %v6043
    %6754 = vmatpush1.bf16.msra.mxu0 %v6042
    %6755 = vmatprep.subr.bf16.mxu0 %v6062
    %6756 = vmatpush1.bf16.msra.mxu0 %v6061
    %6757 = vmatprep.subr.bf16.mxu0 %v6081
    %6758 = vmatpush1.bf16.msra.mxu0 %v6080
    %6759 = vmatprep.subr.bf16.mxu0 %v6100
    %6760 = vmatpush1.bf16.msra.mxu0 %v6099
    %6761 = vmatprep.subr.bf16.mxu0 %v6119
    %6762 = vmatpush1.bf16.msra.mxu0 %v6118
    %6763 = vmatprep.subr.bf16.mxu0 %v6138
    %6764 = vmatpush1.bf16.msra.mxu0 %v6137
    %6765 = vmatprep.subr.bf16.mxu0 %v6157
    %6766 = vmatpush1.bf16.msra.mxu0 %v6156
    %6767 = vmatprep.subr.bf16.mxu0 %v6176
    %6768 = vmatpush1.bf16.msra.mxu0 %v6175
    %6769 = vmatprep.subr.bf16.mxu0 %v6195
    %6770 = vmatpush1.bf16.msra.mxu0 %v6194
    %6771 = vmatprep.mubr.bf16.mxu0 %v4541
    %6772 = vmatmul.mubr.bf16.gmra.mrb[0].mxu0 %v4540
    %v6773 = vpop.f32.mrb[0].mxu0
    %v6774 = vadd.f32 %v4901, %v6773
    %v6775 = vpop.f32.mrb[0].mxu0
    %v6776 = vadd.f32 %v4905, %v6775
    %v6777 = vpop.f32.mrb[0].mxu0
    %v6778 = vadd.f32 %v4901, %v6777
    %v6779 = vpop.f32.mrb[0].mxu0
    %v6780 = vadd.f32 %v4905, %v6779
    %6781 = vmatprep.mubr.bf16.mxu0 %v4543
    %6782 = vmatmul.mubr.bf16.gmra.mrb[0].mxu0 %v4542
    %v6783 = vpop.f32.mrb[0].mxu0
    %v6784 = vadd.f32 %v4901, %v6783
    %v6785 = vpop.f32.mrb[0].mxu0
    %v6786 = vadd.f32 %v4905, %v6785
    %v6787 = vpop.f32.mrb[0].mxu0
    %v6788 = vadd.f32 %v4901, %v6787
    %v6789 = vpop.f32.mrb[0].mxu0
    %v6790 = vadd.f32 %v4905, %v6789
    %6791 = vmatprep.mubr.bf16.mxu0 %v4545
    %6792 = vmatmul.mubr.bf16.gmra.mrb[0].mxu0 %v4544
    %v6793 = vpop.f32.mrb[0].mxu0
    %v6794 = vadd.f32 %v4901, %v6793
    %v6795 = vpop.f32.mrb[0].mxu0
    %v6796 = vadd.f32 %v4905, %v6795
    %v6797 = vpop.f32.mrb[0].mxu0
    %v6798 = vadd.f32 %v4901, %v6797
    %v6799 = vpop.f32.mrb[0].mxu0
    %v6800 = vadd.f32 %v4905, %v6799
    %6801 = vmatprep.mubr.bf16.mxu0 %v4547
    %6802 = vmatmul.mubr.bf16.gmra.mrb[0].mxu0 %v4546
    %v6803 = vpop.f32.mrb[0].mxu0
    %v6804 = vadd.f32 %v4901, %v6803
    %v6805 = vpop.f32.mrb[0].mxu0
    %v6806 = vadd.f32 %v4905, %v6805
    %v6807 = vpop.f32.mrb[0].mxu0
    %v6808 = vadd.f32 %v4901, %v6807
    %v6809 = vpop.f32.mrb[0].mxu0
    %v6810 = vadd.f32 %v4905, %v6809
    %6811 = vmatprep.mubr.bf16.mxu0 %v4549
    %6812 = vmatmul.mubr.bf16.gmra.mrb[0].mxu0 %v4548
    %v6813 = vpop.f32.mrb[0].mxu0
    %v6814 = vadd.f32 %v4901, %v6813
    %v6815 = vpop.f32.mrb[0].mxu0
    %v6816 = vadd.f32 %v4905, %v6815
    %v6817 = vpop.f32.mrb[0].mxu0
    %v6818 = vadd.f32 %v4901, %v6817
    %v6819 = vpop.f32.mrb[0].mxu0
    %v6820 = vadd.f32 %v4905, %v6819
    %6821 = vmatprep.mubr.bf16.mxu0 %v4551
    %6822 = vmatmul.mubr.bf16.gmra.mrb[0].mxu0 %v4550
    %v6823 = vpop.f32.mrb[0].mxu0
    %v6824 = vadd.f32 %v4901, %v6823
    %v6825 = vpop.f32.mrb[0].mxu0
    %v6826 = vadd.f32 %v4905, %v6825
    %v6827 = vpop.f32.mrb[0].mxu0
    %v6828 = vadd.f32 %v4901, %v6827
    %v6829 = vpop.f32.mrb[0].mxu0
    %v6830 = vadd.f32 %v4905, %v6829
    %6831 = vmatprep.mubr.bf16.mxu0 %v4553
    %6832 = vmatmul.mubr.bf16.gmra.mrb[0].mxu0 %v4552
    %v6833 = vpop.f32.mrb[0].mxu0
    %v6834 = vadd.f32 %v4901, %v6833
    %v6835 = vpop.f32.mrb[0].mxu0
    %v6836 = vadd.f32 %v4905, %v6835
    %v6837 = vpop.f32.mrb[0].mxu0
    %v6838 = vadd.f32 %v4901, %v6837
    %v6839 = vpop.f32.mrb[0].mxu0
    %v6840 = vadd.f32 %v4905, %v6839
    %6841 = vmatprep.mubr.bf16.mxu0 %v4555
    %6842 = vmatmul.mubr.bf16.gmra.mrb[0].mxu0 %v4554
    %v6843 = vpop.f32.mrb[0].mxu0
    %v6844 = vadd.f32 %v4901, %v6843
    %v6845 = vpop.f32.mrb[0].mxu0
    %v6846 = vadd.f32 %v4905, %v6845
    %v6847 = vpop.f32.mrb[0].mxu0
    %v6848 = vadd.f32 %v4901, %v6847
    %v6849 = vpop.f32.mrb[0].mxu0
    %v6850 = vadd.f32 %v4905, %v6849
    %6851 = vdwg.mxu0
    %6852 = vmatprep.subr.bf16.mxu0 %v5912
    %6853 = vmatpush1.bf16.msra.mxu0 %v5911
    %6854 = vmatprep.subr.bf16.mxu0 %v5931
    %6855 = vmatpush1.bf16.msra.mxu0 %v5930
    %6856 = vmatprep.subr.bf16.mxu0 %v5950
    %6857 = vmatpush1.bf16.msra.mxu0 %v5949
    %6858 = vmatprep.subr.bf16.mxu0 %v5969
    %6859 = vmatpush1.bf16.msra.mxu0 %v5968
    %6860 = vmatprep.subr.bf16.mxu0 %v5988
    %6861 = vmatpush1.bf16.msra.mxu0 %v5987
    %6862 = vmatprep.subr.bf16.mxu0 %v6007
    %6863 = vmatpush1.bf16.msra.mxu0 %v6006
    %6864 = vmatprep.subr.bf16.mxu0 %v6026
    %6865 = vmatpush1.bf16.msra.mxu0 %v6025
    %6866 = vmatprep.subr.bf16.mxu0 %v6045
    %6867 = vmatpush1.bf16.msra.mxu0 %v6044
    %6868 = vmatprep.subr.bf16.mxu0 %v6064
    %6869 = vmatpush1.bf16.msra.mxu0 %v6063
    %6870 = vmatprep.subr.bf16.mxu0 %v6083
    %6871 = vmatpush1.bf16.msra.mxu0 %v6082
    %6872 = vmatprep.subr.bf16.mxu0 %v6102
    %6873 = vmatpush1.bf16.msra.mxu0 %v6101
    %6874 = vmatprep.subr.bf16.mxu0 %v6121
    %6875 = vmatpush1.bf16.msra.mxu0 %v6120
    %6876 = vmatprep.subr.bf16.mxu0 %v6140
    %6877 = vmatpush1.bf16.msra.mxu0 %v6139
    %6878 = vmatprep.subr.bf16.mxu0 %v6159
    %6879 = vmatpush1.bf16.msra.mxu0 %v6158
    %6880 = vmatprep.subr.bf16.mxu0 %v6178
    %6881 = vmatpush1.bf16.msra.mxu0 %v6177
    %6882 = vmatprep.subr.bf16.mxu0 %v6197
    %6883 = vmatpush1.bf16.msra.mxu0 %v6196
    %6884 = vmatprep.mubr.bf16.mxu0 %v4541
    %6885 = vmatmul.mubr.bf16.gmra.mrb[0].mxu0 %v4540
    %v6886 = vpop.f32.mrb[0].mxu0
    %v6887 = vadd.f32 %v4909, %v6886
    %v6888 = vpop.f32.mrb[0].mxu0
    %v6889 = vadd.f32 %v4913, %v6888
    %v6890 = vpop.f32.mrb[0].mxu0
    %v6891 = vadd.f32 %v4909, %v6890
    %v6892 = vpop.f32.mrb[0].mxu0
    %v6893 = vadd.f32 %v4913, %v6892
    %6894 = vmatprep.mubr.bf16.mxu0 %v4543
    %6895 = vmatmul.mubr.bf16.gmra.mrb[0].mxu0 %v4542
    %v6896 = vpop.f32.mrb[0].mxu0
    %v6897 = vadd.f32 %v4909, %v6896
    %v6898 = vpop.f32.mrb[0].mxu0
    %v6899 = vadd.f32 %v4913, %v6898
    %v6900 = vpop.f32.mrb[0].mxu0
    %v6901 = vadd.f32 %v4909, %v6900
    %v6902 = vpop.f32.mrb[0].mxu0
    %v6903 = vadd.f32 %v4913, %v6902
    %6904 = vmatprep.mubr.bf16.mxu0 %v4545
    %6905 = vmatmul.mubr.bf16.gmra.mrb[0].mxu0 %v4544
    %v6906 = vpop.f32.mrb[0].mxu0
    %v6907 = vadd.f32 %v4909, %v6906
    %v6908 = vpop.f32.mrb[0].mxu0
    %v6909 = vadd.f32 %v4913, %v6908
    %v6910 = vpop.f32.mrb[0].mxu0
    %v6911 = vadd.f32 %v4909, %v6910
    %v6912 = vpop.f32.mrb[0].mxu0
    %v6913 = vadd.f32 %v4913, %v6912
    %6914 = vmatprep.mubr.bf16.mxu0 %v4547
    %6915 = vmatmul.mubr.bf16.gmra.mrb[0].mxu0 %v4546
    %v6916 = vpop.f32.mrb[0].mxu0
    %v6917 = vadd.f32 %v4909, %v6916
    %v6918 = vpop.f32.mrb[0].mxu0
    %v6919 = vadd.f32 %v4913, %v6918
    %v6920 = vpop.f32.mrb[0].mxu0
    %v6921 = vadd.f32 %v4909, %v6920
    %v6922 = vpop.f32.mrb[0].mxu0
    %v6923 = vadd.f32 %v4913, %v6922
    %6924 = vmatprep.mubr.bf16.mxu0 %v4549
    %6925 = vmatmul.mubr.bf16.gmra.mrb[0].mxu0 %v4548
    %v6926 = vpop.f32.mrb[0].mxu0
    %v6927 = vadd.f32 %v4909, %v6926
    %v6928 = vpop.f32.mrb[0].mxu0
    %v6929 = vadd.f32 %v4913, %v6928
    %v6930 = vpop.f32.mrb[0].mxu0
    %v6931 = vadd.f32 %v4909, %v6930
    %v6932 = vpop.f32.mrb[0].mxu0
    %v6933 = vadd.f32 %v4913, %v6932
    %6934 = vmatprep.mubr.bf16.mxu0 %v4551
    %6935 = vmatmul.mubr.bf16.gmra.mrb[0].mxu0 %v4550
    %v6936 = vpop.f32.mrb[0].mxu0
    %v6937 = vadd.f32 %v4909, %v6936
    %v6938 = vpop.f32.mrb[0].mxu0
    %v6939 = vadd.f32 %v4913, %v6938
    %v6940 = vpop.f32.mrb[0].mxu0
    %v6941 = vadd.f32 %v4909, %v6940
    %v6942 = vpop.f32.mrb[0].mxu0
    %v6943 = vadd.f32 %v4913, %v6942
    %6944 = vmatprep.mubr.bf16.mxu0 %v4553
    %6945 = vmatmul.mubr.bf16.gmra.mrb[0].mxu0 %v4552
    %v6946 = vpop.f32.mrb[0].mxu0
    %v6947 = vadd.f32 %v4909, %v6946
    %v6948 = vpop.f32.mrb[0].mxu0
    %v6949 = vadd.f32 %v4913, %v6948
    %v6950 = vpop.f32.mrb[0].mxu0
    %v6951 = vadd.f32 %v4909, %v6950
    %v6952 = vpop.f32.mrb[0].mxu0
    %v6953 = vadd.f32 %v4913, %v6952
    %6954 = vmatprep.mubr.bf16.mxu0 %v4555
    %6955 = vmatmul.mubr.bf16.gmra.mrb[0].mxu0 %v4554
    %v6956 = vpop.f32.mrb[0].mxu0
    %v6957 = vadd.f32 %v4909, %v6956
    %v6958 = vpop.f32.mrb[0].mxu0
    %v6959 = vadd.f32 %v4913, %v6958
    %v6960 = vpop.f32.mrb[0].mxu0
    %v6961 = vadd.f32 %v4909, %v6960
    %v6962 = vpop.f32.mrb[0].mxu0
    %v6963 = vadd.f32 %v4913, %v6962
    %6964 = vdwg.mxu0
    %6965 = vmatprep.subr.bf16.mxu0 %v5914
    %6966 = vmatpush1.bf16.msra.mxu0 %v5913
    %6967 = vmatprep.subr.bf16.mxu0 %v5933
    %6968 = vmatpush1.bf16.msra.mxu0 %v5932
    %6969 = vmatprep.subr.bf16.mxu0 %v5952
    %6970 = vmatpush1.bf16.msra.mxu0 %v5951
    %6971 = vmatprep.subr.bf16.mxu0 %v5971
    %6972 = vmatpush1.bf16.msra.mxu0 %v5970
    %6973 = vmatprep.subr.bf16.mxu0 %v5990
    %6974 = vmatpush1.bf16.msra.mxu0 %v5989
    %6975 = vmatprep.subr.bf16.mxu0 %v6009
    %6976 = vmatpush1.bf16.msra.mxu0 %v6008
    %6977 = vmatprep.subr.bf16.mxu0 %v6028
    %6978 = vmatpush1.bf16.msra.mxu0 %v6027
    %6979 = vmatprep.subr.bf16.mxu0 %v6047
    %6980 = vmatpush1.bf16.msra.mxu0 %v6046
    %6981 = vmatprep.subr.bf16.mxu0 %v6066
    %6982 = vmatpush1.bf16.msra.mxu0 %v6065
    %6983 = vmatprep.subr.bf16.mxu0 %v6085
    %6984 = vmatpush1.bf16.msra.mxu0 %v6084
    %6985 = vmatprep.subr.bf16.mxu0 %v6104
    %6986 = vmatpush1.bf16.msra.mxu0 %v6103
    %6987 = vmatprep.subr.bf16.mxu0 %v6123
    %6988 = vmatpush1.bf16.msra.mxu0 %v6122
    %6989 = vmatprep.subr.bf16.mxu0 %v6142
    %6990 = vmatpush1.bf16.msra.mxu0 %v6141
    %6991 = vmatprep.subr.bf16.mxu0 %v6161
    %6992 = vmatpush1.bf16.msra.mxu0 %v6160
    %6993 = vmatprep.subr.bf16.mxu0 %v6180
    %6994 = vmatpush1.bf16.msra.mxu0 %v6179
    %6995 = vmatprep.subr.bf16.mxu0 %v6199
    %6996 = vmatpush1.bf16.msra.mxu0 %v6198
    %6997 = vmatprep.mubr.bf16.mxu0 %v4541
    %6998 = vmatmul.mubr.bf16.gmra.mrb[0].mxu0 %v4540
    %v6999 = vpop.f32.mrb[0].mxu0
    %v7000 = vadd.f32 %v4917, %v6999
    %v7001 = vpop.f32.mrb[0].mxu0
    %v7002 = vadd.f32 %v4921, %v7001
    %v7003 = vpop.f32.mrb[0].mxu0
    %v7004 = vadd.f32 %v4917, %v7003
    %v7005 = vpop.f32.mrb[0].mxu0
    %v7006 = vadd.f32 %v4921, %v7005
    %7007 = vmatprep.mubr.bf16.mxu0 %v4543
    %7008 = vmatmul.mubr.bf16.gmra.mrb[0].mxu0 %v4542
    %v7009 = vpop.f32.mrb[0].mxu0
    %v7010 = vadd.f32 %v4917, %v7009
    %v7011 = vpop.f32.mrb[0].mxu0
    %v7012 = vadd.f32 %v4921, %v7011
    %v7013 = vpop.f32.mrb[0].mxu0
    %v7014 = vadd.f32 %v4917, %v7013
    %v7015 = vpop.f32.mrb[0].mxu0
    %v7016 = vadd.f32 %v4921, %v7015
    %7017 = vmatprep.mubr.bf16.mxu0 %v4545
    %7018 = vmatmul.mubr.bf16.gmra.mrb[0].mxu0 %v4544
    %v7019 = vpop.f32.mrb[0].mxu0
    %v7020 = vadd.f32 %v4917, %v7019
    %v7021 = vpop.f32.mrb[0].mxu0
    %v7022 = vadd.f32 %v4921, %v7021
    %v7023 = vpop.f32.mrb[0].mxu0
    %v7024 = vadd.f32 %v4917, %v7023
    %v7025 = vpop.f32.mrb[0].mxu0
    %v7026 = vadd.f32 %v4921, %v7025
    %7027 = vmatprep.mubr.bf16.mxu0 %v4547
    %7028 = vmatmul.mubr.bf16.gmra.mrb[0].mxu0 %v4546
    %v7029 = vpop.f32.mrb[0].mxu0
    %v7030 = vadd.f32 %v4917, %v7029
    %v7031 = vpop.f32.mrb[0].mxu0
    %v7032 = vadd.f32 %v4921, %v7031
    %v7033 = vpop.f32.mrb[0].mxu0
    %v7034 = vadd.f32 %v4917, %v7033
    %v7035 = vpop.f32.mrb[0].mxu0
    %v7036 = vadd.f32 %v4921, %v7035
    %7037 = vmatprep.mubr.bf16.mxu0 %v4549
    %7038 = vmatmul.mubr.bf16.gmra.mrb[0].mxu0 %v4548
    %v7039 = vpop.f32.mrb[0].mxu0
    %v7040 = vadd.f32 %v4917, %v7039
    %v7041 = vpop.f32.mrb[0].mxu0
    %v7042 = vadd.f32 %v4921, %v7041
    %v7043 = vpop.f32.mrb[0].mxu0
    %v7044 = vadd.f32 %v4917, %v7043
    %v7045 = vpop.f32.mrb[0].mxu0
    %v7046 = vadd.f32 %v4921, %v7045
    %7047 = vmatprep.mubr.bf16.mxu0 %v4551
    %7048 = vmatmul.mubr.bf16.gmra.mrb[0].mxu0 %v4550
    %v7049 = vpop.f32.mrb[0].mxu0
    %v7050 = vadd.f32 %v4917, %v7049
    %v7051 = vpop.f32.mrb[0].mxu0
    %v7052 = vadd.f32 %v4921, %v7051
    %v7053 = vpop.f32.mrb[0].mxu0
    %v7054 = vadd.f32 %v4917, %v7053
    %v7055 = vpop.f32.mrb[0].mxu0
    %v7056 = vadd.f32 %v4921, %v7055
    %7057 = vmatprep.mubr.bf16.mxu0 %v4553
    %7058 = vmatmul.mubr.bf16.gmra.mrb[0].mxu0 %v4552
    %v7059 = vpop.f32.mrb[0].mxu0
    %v7060 = vadd.f32 %v4917, %v7059
    %v7061 = vpop.f32.mrb[0].mxu0
    %v7062 = vadd.f32 %v4921, %v7061
    %v7063 = vpop.f32.mrb[0].mxu0
    %v7064 = vadd.f32 %v4917, %v7063
    %v7065 = vpop.f32.mrb[0].mxu0
    %v7066 = vadd.f32 %v4921, %v7065
    %7067 = vmatprep.mubr.bf16.mxu0 %v4555
    %7068 = vmatmul.mubr.bf16.gmra.mrb[0].mxu0 %v4554
    %v7069 = vpop.f32.mrb[0].mxu0
    %v7070 = vadd.f32 %v4917, %v7069
    %v7071 = vpop.f32.mrb[0].mxu0
    %v7072 = vadd.f32 %v4921, %v7071
    %v7073 = vpop.f32.mrb[0].mxu0
    %v7074 = vadd.f32 %v4917, %v7073
    %v7075 = vpop.f32.mrb[0].mxu0
    %v7076 = vadd.f32 %v4921, %v7075
    %7077 = vdwg.mxu0
    %7078 = vmatprep.subr.bf16.mxu0 %v5916
    %7079 = vmatpush1.bf16.msra.mxu0 %v5915
    %7080 = vmatprep.subr.bf16.mxu0 %v5935
    %7081 = vmatpush1.bf16.msra.mxu0 %v5934
    %7082 = vmatprep.subr.bf16.mxu0 %v5954
    %7083 = vmatpush1.bf16.msra.mxu0 %v5953
    %7084 = vmatprep.subr.bf16.mxu0 %v5973
    %7085 = vmatpush1.bf16.msra.mxu0 %v5972
    %7086 = vmatprep.subr.bf16.mxu0 %v5992
    %7087 = vmatpush1.bf16.msra.mxu0 %v5991
    %7088 = vmatprep.subr.bf16.mxu0 %v6011
    %7089 = vmatpush1.bf16.msra.mxu0 %v6010
    %7090 = vmatprep.subr.bf16.mxu0 %v6030
    %7091 = vmatpush1.bf16.msra.mxu0 %v6029
    %7092 = vmatprep.subr.bf16.mxu0 %v6049
    %7093 = vmatpush1.bf16.msra.mxu0 %v6048
    %7094 = vmatprep.subr.bf16.mxu0 %v6068
    %7095 = vmatpush1.bf16.msra.mxu0 %v6067
    %7096 = vmatprep.subr.bf16.mxu0 %v6087
    %7097 = vmatpush1.bf16.msra.mxu0 %v6086
    %7098 = vmatprep.subr.bf16.mxu0 %v6106
    %7099 = vmatpush1.bf16.msra.mxu0 %v6105
    %7100 = vmatprep.subr.bf16.mxu0 %v6125
    %7101 = vmatpush1.bf16.msra.mxu0 %v6124
    %7102 = vmatprep.subr.bf16.mxu0 %v6144
    %7103 = vmatpush1.bf16.msra.mxu0 %v6143
    %7104 = vmatprep.subr.bf16.mxu0 %v6163
    %7105 = vmatpush1.bf16.msra.mxu0 %v6162
    %7106 = vmatprep.subr.bf16.mxu0 %v6182
    %7107 = vmatpush1.bf16.msra.mxu0 %v6181
    %7108 = vmatprep.subr.bf16.mxu0 %v6201
    %7109 = vmatpush1.bf16.msra.mxu0 %v6200
    %7110 = vmatprep.mubr.bf16.mxu0 %v4541
    %7111 = vmatmul.mubr.bf16.gmra.mrb[0].mxu0 %v4540
    %v7112 = vpop.f32.mrb[0].mxu0
    %v7113 = vadd.f32 %v4925, %v7112
    %v7114 = vpop.f32.mrb[0].mxu0
    %v7115 = vadd.f32 %v4929, %v7114
    %v7116 = vpop.f32.mrb[0].mxu0
    %v7117 = vadd.f32 %v4925, %v7116
    %v7118 = vpop.f32.mrb[0].mxu0
    %v7119 = vadd.f32 %v4929, %v7118
    %7120 = vmatprep.mubr.bf16.mxu0 %v4543
    %7121 = vmatmul.mubr.bf16.gmra.mrb[0].mxu0 %v4542
    %v7122 = vpop.f32.mrb[0].mxu0
    %v7123 = vadd.f32 %v4925, %v7122
    %v7124 = vpop.f32.mrb[0].mxu0
    %v7125 = vadd.f32 %v4929, %v7124
    %v7126 = vpop.f32.mrb[0].mxu0
    %v7127 = vadd.f32 %v4925, %v7126
    %v7128 = vpop.f32.mrb[0].mxu0
    %v7129 = vadd.f32 %v4929, %v7128
    %7130 = vmatprep.mubr.bf16.mxu0 %v4545
    %7131 = vmatmul.mubr.bf16.gmra.mrb[0].mxu0 %v4544
    %v7132 = vpop.f32.mrb[0].mxu0
    %v7133 = vadd.f32 %v4925, %v7132
    %v7134 = vpop.f32.mrb[0].mxu0
    %v7135 = vadd.f32 %v4929, %v7134
    %v7136 = vpop.f32.mrb[0].mxu0
    %v7137 = vadd.f32 %v4925, %v7136
    %v7138 = vpop.f32.mrb[0].mxu0
    %v7139 = vadd.f32 %v4929, %v7138
    %7140 = vmatprep.mubr.bf16.mxu0 %v4547
    %7141 = vmatmul.mubr.bf16.gmra.mrb[0].mxu0 %v4546
    %v7142 = vpop.f32.mrb[0].mxu0
    %v7143 = vadd.f32 %v4925, %v7142
    %v7144 = vpop.f32.mrb[0].mxu0
    %v7145 = vadd.f32 %v4929, %v7144
    %v7146 = vpop.f32.mrb[0].mxu0
    %v7147 = vadd.f32 %v4925, %v7146
    %v7148 = vpop.f32.mrb[0].mxu0
    %v7149 = vadd.f32 %v4929, %v7148
    %7150 = vmatprep.mubr.bf16.mxu0 %v4549
    %7151 = vmatmul.mubr.bf16.gmra.mrb[0].mxu0 %v4548
    %v7152 = vpop.f32.mrb[0].mxu0
    %v7153 = vadd.f32 %v4925, %v7152
    %v7154 = vpop.f32.mrb[0].mxu0
    %v7155 = vadd.f32 %v4929, %v7154
    %v7156 = vpop.f32.mrb[0].mxu0
    %v7157 = vadd.f32 %v4925, %v7156
    %v7158 = vpop.f32.mrb[0].mxu0
    %v7159 = vadd.f32 %v4929, %v7158
    %7160 = vmatprep.mubr.bf16.mxu0 %v4551
    %7161 = vmatmul.mubr.bf16.gmra.mrb[0].mxu0 %v4550
    %v7162 = vpop.f32.mrb[0].mxu0
    %v7163 = vadd.f32 %v4925, %v7162
    %v7164 = vpop.f32.mrb[0].mxu0
    %v7165 = vadd.f32 %v4929, %v7164
    %v7166 = vpop.f32.mrb[0].mxu0
    %v7167 = vadd.f32 %v4925, %v7166
    %v7168 = vpop.f32.mrb[0].mxu0
    %v7169 = vadd.f32 %v4929, %v7168
    %7170 = vmatprep.mubr.bf16.mxu0 %v4553
    %7171 = vmatmul.mubr.bf16.gmra.mrb[0].mxu0 %v4552
    %v7172 = vpop.f32.mrb[0].mxu0
    %v7173 = vadd.f32 %v4925, %v7172
    %v7174 = vpop.f32.mrb[0].mxu0
    %v7175 = vadd.f32 %v4929, %v7174
    %v7176 = vpop.f32.mrb[0].mxu0
    %v7177 = vadd.f32 %v4925, %v7176
    %v7178 = vpop.f32.mrb[0].mxu0
    %v7179 = vadd.f32 %v4929, %v7178
    %7180 = vmatprep.mubr.bf16.mxu0 %v4555
    %7181 = vmatmul.mubr.bf16.gmra.mrb[0].mxu0 %v4554
    %v7182 = vpop.f32.mrb[0].mxu0
    %v7183 = vadd.f32 %v4925, %v7182
    %v7184 = vpop.f32.mrb[0].mxu0
    %v7185 = vadd.f32 %v4929, %v7184
    %v7186 = vpop.f32.mrb[0].mxu0
    %v7187 = vadd.f32 %v4925, %v7186
    %v7188 = vpop.f32.mrb[0].mxu0
    %v7189 = vadd.f32 %v4929, %v7188
    %7190 = vdwg.mxu0
    %7191 = vmatprep.subr.bf16.mxu0 %v5918
    %7192 = vmatpush1.bf16.msra.mxu0 %v5917
    %7193 = vmatprep.subr.bf16.mxu0 %v5937
    %7194 = vmatpush1.bf16.msra.mxu0 %v5936
    %7195 = vmatprep.subr.bf16.mxu0 %v5956
    %7196 = vmatpush1.bf16.msra.mxu0 %v5955
    %7197 = vmatprep.subr.bf16.mxu0 %v5975
    %7198 = vmatpush1.bf16.msra.mxu0 %v5974
    %7199 = vmatprep.subr.bf16.mxu0 %v5994
    %7200 = vmatpush1.bf16.msra.mxu0 %v5993
    %7201 = vmatprep.subr.bf16.mxu0 %v6013
    %7202 = vmatpush1.bf16.msra.mxu0 %v6012
    %7203 = vmatprep.subr.bf16.mxu0 %v6032
    %7204 = vmatpush1.bf16.msra.mxu0 %v6031
    %7205 = vmatprep.subr.bf16.mxu0 %v6051
    %7206 = vmatpush1.bf16.msra.mxu0 %v6050
    %7207 = vmatprep.subr.bf16.mxu0 %v6070
    %7208 = vmatpush1.bf16.msra.mxu0 %v6069
    %7209 = vmatprep.subr.bf16.mxu0 %v6089
    %7210 = vmatpush1.bf16.msra.mxu0 %v6088
    %7211 = vmatprep.subr.bf16.mxu0 %v6108
    %7212 = vmatpush1.bf16.msra.mxu0 %v6107
    %7213 = vmatprep.subr.bf16.mxu0 %v6127
    %7214 = vmatpush1.bf16.msra.mxu0 %v6126
    %7215 = vmatprep.subr.bf16.mxu0 %v6146
    %7216 = vmatpush1.bf16.msra.mxu0 %v6145
    %7217 = vmatprep.subr.bf16.mxu0 %v6165
    %7218 = vmatpush1.bf16.msra.mxu0 %v6164
    %7219 = vmatprep.subr.bf16.mxu0 %v6184
    %7220 = vmatpush1.bf16.msra.mxu0 %v6183
    %7221 = vmatprep.subr.bf16.mxu0 %v6203
    %7222 = vmatpush1.bf16.msra.mxu0 %v6202
    %7223 = vmatprep.mubr.bf16.mxu0 %v4541
    %7224 = vmatmul.mubr.bf16.gmra.mrb[0].mxu0 %v4540
    %v7225 = vpop.f32.mrb[0].mxu0
    %v7226 = vadd.f32 %v4933, %v7225
    %v7227 = vpop.f32.mrb[0].mxu0
    %v7228 = vadd.f32 %v4937, %v7227
    %v7229 = vpop.f32.mrb[0].mxu0
    %v7230 = vadd.f32 %v4933, %v7229
    %v7231 = vpop.f32.mrb[0].mxu0
    %v7232 = vadd.f32 %v4937, %v7231
    %7233 = vmatprep.mubr.bf16.mxu0 %v4543
    %7234 = vmatmul.mubr.bf16.gmra.mrb[0].mxu0 %v4542
    %v7235 = vpop.f32.mrb[0].mxu0
    %v7236 = vadd.f32 %v4933, %v7235
    %v7237 = vpop.f32.mrb[0].mxu0
    %v7238 = vadd.f32 %v4937, %v7237
    %v7239 = vpop.f32.mrb[0].mxu0
    %v7240 = vadd.f32 %v4933, %v7239
    %v7241 = vpop.f32.mrb[0].mxu0
    %v7242 = vadd.f32 %v4937, %v7241
    %7243 = vmatprep.mubr.bf16.mxu0 %v4545
    %7244 = vmatmul.mubr.bf16.gmra.mrb[0].mxu0 %v4544
    %v7245 = vpop.f32.mrb[0].mxu0
    %v7246 = vadd.f32 %v4933, %v7245
    %v7247 = vpop.f32.mrb[0].mxu0
    %v7248 = vadd.f32 %v4937, %v7247
    %v7249 = vpop.f32.mrb[0].mxu0
    %v7250 = vadd.f32 %v4933, %v7249
    %v7251 = vpop.f32.mrb[0].mxu0
    %v7252 = vadd.f32 %v4937, %v7251
    %7253 = vmatprep.mubr.bf16.mxu0 %v4547
    %7254 = vmatmul.mubr.bf16.gmra.mrb[0].mxu0 %v4546
    %v7255 = vpop.f32.mrb[0].mxu0
    %v7256 = vadd.f32 %v4933, %v7255
    %v7257 = vpop.f32.mrb[0].mxu0
    %v7258 = vadd.f32 %v4937, %v7257
    %v7259 = vpop.f32.mrb[0].mxu0
    %v7260 = vadd.f32 %v4933, %v7259
    %v7261 = vpop.f32.mrb[0].mxu0
    %v7262 = vadd.f32 %v4937, %v7261
    %7263 = vmatprep.mubr.bf16.mxu0 %v4549
    %7264 = vmatmul.mubr.bf16.gmra.mrb[0].mxu0 %v4548
    %v7265 = vpop.f32.mrb[0].mxu0
    %v7266 = vadd.f32 %v4933, %v7265
    %v7267 = vpop.f32.mrb[0].mxu0
    %v7268 = vadd.f32 %v4937, %v7267
    %v7269 = vpop.f32.mrb[0].mxu0
    %v7270 = vadd.f32 %v4933, %v7269
    %v7271 = vpop.f32.mrb[0].mxu0
    %v7272 = vadd.f32 %v4937, %v7271
    %7273 = vmatprep.mubr.bf16.mxu0 %v4551
    %7274 = vmatmul.mubr.bf16.gmra.mrb[0].mxu0 %v4550
    %v7275 = vpop.f32.mrb[0].mxu0
    %v7276 = vadd.f32 %v4933, %v7275
    %v7277 = vpop.f32.mrb[0].mxu0
    %v7278 = vadd.f32 %v4937, %v7277
    %v7279 = vpop.f32.mrb[0].mxu0
    %v7280 = vadd.f32 %v4933, %v7279
    %v7281 = vpop.f32.mrb[0].mxu0
    %v7282 = vadd.f32 %v4937, %v7281
    %7283 = vmatprep.mubr.bf16.mxu0 %v4553
    %7284 = vmatmul.mubr.bf16.gmra.mrb[0].mxu0 %v4552
    %v7285 = vpop.f32.mrb[0].mxu0
    %v7286 = vadd.f32 %v4933, %v7285
    %v7287 = vpop.f32.mrb[0].mxu0
    %v7288 = vadd.f32 %v4937, %v7287
    %v7289 = vpop.f32.mrb[0].mxu0
    %v7290 = vadd.f32 %v4933, %v7289
    %v7291 = vpop.f32.mrb[0].mxu0
    %v7292 = vadd.f32 %v4937, %v7291
    %7293 = vmatprep.mubr.bf16.mxu0 %v4555
    %7294 = vmatmul.mubr.bf16.gmra.mrb[0].mxu0 %v4554
    %v7295 = vpop.f32.mrb[0].mxu0
    %v7296 = vadd.f32 %v4933, %v7295
    %v7297 = vpop.f32.mrb[0].mxu0
    %v7298 = vadd.f32 %v4937, %v7297
    %v7299 = vpop.f32.mrb[0].mxu0
    %v7300 = vadd.f32 %v4933, %v7299
    %v7301 = vpop.f32.mrb[0].mxu0
    %v7302 = vadd.f32 %v4937, %v7301
    %7303 = vdwg.mxu0
    %7304 = vmatprep.subr.bf16.mxu0 %v5920
    %7305 = vmatpush1.bf16.msra.mxu0 %v5919
    %7306 = vmatprep.subr.bf16.mxu0 %v5939
    %7307 = vmatpush1.bf16.msra.mxu0 %v5938
    %7308 = vmatprep.subr.bf16.mxu0 %v5958
    %7309 = vmatpush1.bf16.msra.mxu0 %v5957
    %7310 = vmatprep.subr.bf16.mxu0 %v5977
    %7311 = vmatpush1.bf16.msra.mxu0 %v5976
    %7312 = vmatprep.subr.bf16.mxu0 %v5996
    %7313 = vmatpush1.bf16.msra.mxu0 %v5995
    %7314 = vmatprep.subr.bf16.mxu0 %v6015
    %7315 = vmatpush1.bf16.msra.mxu0 %v6014
    %7316 = vmatprep.subr.bf16.mxu0 %v6034
    %7317 = vmatpush1.bf16.msra.mxu0 %v6033
    %7318 = vmatprep.subr.bf16.mxu0 %v6053
    %7319 = vmatpush1.bf16.msra.mxu0 %v6052
    %7320 = vmatprep.subr.bf16.mxu0 %v6072
    %7321 = vmatpush1.bf16.msra.mxu0 %v6071
    %7322 = vmatprep.subr.bf16.mxu0 %v6091
    %7323 = vmatpush1.bf16.msra.mxu0 %v6090
    %7324 = vmatprep.subr.bf16.mxu0 %v6110
    %7325 = vmatpush1.bf16.msra.mxu0 %v6109
    %7326 = vmatprep.subr.bf16.mxu0 %v6129
    %7327 = vmatpush1.bf16.msra.mxu0 %v6128
    %7328 = vmatprep.subr.bf16.mxu0 %v6148
    %7329 = vmatpush1.bf16.msra.mxu0 %v6147
    %7330 = vmatprep.subr.bf16.mxu0 %v6167
    %7331 = vmatpush1.bf16.msra.mxu0 %v6166
    %7332 = vmatprep.subr.bf16.mxu0 %v6186
    %7333 = vmatpush1.bf16.msra.mxu0 %v6185
    %7334 = vmatprep.subr.bf16.mxu0 %v6205
    %7335 = vmatpush1.bf16.msra.mxu0 %v6204
    %7336 = vmatprep.mubr.bf16.mxu0 %v4541
    %7337 = vmatmul.mubr.bf16.gmra.mrb[0].mxu0 %v4540
    %v7338 = vpop.f32.mrb[0].mxu0
    %v7339 = vadd.f32 %v4941, %v7338
    %v7340 = vpop.f32.mrb[0].mxu0
    %v7341 = vadd.f32 %v4945, %v7340
    %v7342 = vpop.f32.mrb[0].mxu0
    %v7343 = vadd.f32 %v4941, %v7342
    %v7344 = vpop.f32.mrb[0].mxu0
    %v7345 = vadd.f32 %v4945, %v7344
    %7346 = vmatprep.mubr.bf16.mxu0 %v4543
    %7347 = vmatmul.mubr.bf16.gmra.mrb[0].mxu0 %v4542
    %v7348 = vpop.f32.mrb[0].mxu0
    %v7349 = vadd.f32 %v4941, %v7348
    %v7350 = vpop.f32.mrb[0].mxu0
    %v7351 = vadd.f32 %v4945, %v7350
    %v7352 = vpop.f32.mrb[0].mxu0
    %v7353 = vadd.f32 %v4941, %v7352
    %v7354 = vpop.f32.mrb[0].mxu0
    %v7355 = vadd.f32 %v4945, %v7354
    %7356 = vmatprep.mubr.bf16.mxu0 %v4545
    %7357 = vmatmul.mubr.bf16.gmra.mrb[0].mxu0 %v4544
    %v7358 = vpop.f32.mrb[0].mxu0
    %v7359 = vadd.f32 %v4941, %v7358
    %v7360 = vpop.f32.mrb[0].mxu0
    %v7361 = vadd.f32 %v4945, %v7360
    %v7362 = vpop.f32.mrb[0].mxu0
    %v7363 = vadd.f32 %v4941, %v7362
    %v7364 = vpop.f32.mrb[0].mxu0
    %v7365 = vadd.f32 %v4945, %v7364
    %7366 = vmatprep.mubr.bf16.mxu0 %v4547
    %7367 = vmatmul.mubr.bf16.gmra.mrb[0].mxu0 %v4546
    %v7368 = vpop.f32.mrb[0].mxu0
    %v7369 = vadd.f32 %v4941, %v7368
    %v7370 = vpop.f32.mrb[0].mxu0
    %v7371 = vadd.f32 %v4945, %v7370
    %v7372 = vpop.f32.mrb[0].mxu0
    %v7373 = vadd.f32 %v4941, %v7372
    %v7374 = vpop.f32.mrb[0].mxu0
    %v7375 = vadd.f32 %v4945, %v7374
    %7376 = vmatprep.mubr.bf16.mxu0 %v4549
    %7377 = vmatmul.mubr.bf16.gmra.mrb[0].mxu0 %v4548
    %v7378 = vpop.f32.mrb[0].mxu0
    %v7379 = vadd.f32 %v4941, %v7378
    %v7380 = vpop.f32.mrb[0].mxu0
    %v7381 = vadd.f32 %v4945, %v7380
    %v7382 = vpop.f32.mrb[0].mxu0
    %v7383 = vadd.f32 %v4941, %v7382
    %v7384 = vpop.f32.mrb[0].mxu0
    %v7385 = vadd.f32 %v4945, %v7384
    %7386 = vmatprep.mubr.bf16.mxu0 %v4551
    %7387 = vmatmul.mubr.bf16.gmra.mrb[0].mxu0 %v4550
    %v7388 = vpop.f32.mrb[0].mxu0
    %v7389 = vadd.f32 %v4941, %v7388
    %v7390 = vpop.f32.mrb[0].mxu0
    %v7391 = vadd.f32 %v4945, %v7390
    %v7392 = vpop.f32.mrb[0].mxu0
    %v7393 = vadd.f32 %v4941, %v7392
    %v7394 = vpop.f32.mrb[0].mxu0
    %v7395 = vadd.f32 %v4945, %v7394
    %7396 = vmatprep.mubr.bf16.mxu0 %v4553
    %7397 = vmatmul.mubr.bf16.gmra.mrb[0].mxu0 %v4552
    %v7398 = vpop.f32.mrb[0].mxu0
    %v7399 = vadd.f32 %v4941, %v7398
    %v7400 = vpop.f32.mrb[0].mxu0
    %v7401 = vadd.f32 %v4945, %v7400
    %v7402 = vpop.f32.mrb[0].mxu0
    %v7403 = vadd.f32 %v4941, %v7402
    %v7404 = vpop.f32.mrb[0].mxu0
    %v7405 = vadd.f32 %v4945, %v7404
    %7406 = vmatprep.mubr.bf16.mxu0 %v4555
    %7407 = vmatmul.mubr.bf16.gmra.mrb[0].mxu0 %v4554
    %v7408 = vpop.f32.mrb[0].mxu0
    %v7409 = vadd.f32 %v4941, %v7408
    %v7410 = vpop.f32.mrb[0].mxu0
    %v7411 = vadd.f32 %v4945, %v7410
    %v7412 = vpop.f32.mrb[0].mxu0
    %v7413 = vadd.f32 %v4941, %v7412
    %v7414 = vpop.f32.mrb[0].mxu0
    %v7415 = vadd.f32 %v4945, %v7414
    %7416 = vdwg.mxu0
    %7417 = vmatprep.subr.bf16.mxu0 %v5922
    %7418 = vmatpush1.bf16.msra.mxu0 %v5921
    %7419 = vmatprep.subr.bf16.mxu0 %v5941
    %7420 = vmatpush1.bf16.msra.mxu0 %v5940
    %7421 = vmatprep.subr.bf16.mxu0 %v5960
    %7422 = vmatpush1.bf16.msra.mxu0 %v5959
    %7423 = vmatprep.subr.bf16.mxu0 %v5979
    %7424 = vmatpush1.bf16.msra.mxu0 %v5978
    %7425 = vmatprep.subr.bf16.mxu0 %v5998
    %7426 = vmatpush1.bf16.msra.mxu0 %v5997
    %7427 = vmatprep.subr.bf16.mxu0 %v6017
    %7428 = vmatpush1.bf16.msra.mxu0 %v6016
    %7429 = vmatprep.subr.bf16.mxu0 %v6036
    %7430 = vmatpush1.bf16.msra.mxu0 %v6035
    %7431 = vmatprep.subr.bf16.mxu0 %v6055
    %7432 = vmatpush1.bf16.msra.mxu0 %v6054
    %7433 = vmatprep.subr.bf16.mxu0 %v6074
    %7434 = vmatpush1.bf16.msra.mxu0 %v6073
    %7435 = vmatprep.subr.bf16.mxu0 %v6093
    %7436 = vmatpush1.bf16.msra.mxu0 %v6092
    %7437 = vmatprep.subr.bf16.mxu0 %v6112
    %7438 = vmatpush1.bf16.msra.mxu0 %v6111
    %7439 = vmatprep.subr.bf16.mxu0 %v6131
    %7440 = vmatpush1.bf16.msra.mxu0 %v6130
    %7441 = vmatprep.subr.bf16.mxu0 %v6150
    %7442 = vmatpush1.bf16.msra.mxu0 %v6149
    %7443 = vmatprep.subr.bf16.mxu0 %v6169
    %7444 = vmatpush1.bf16.msra.mxu0 %v6168
    %7445 = vmatprep.subr.bf16.mxu0 %v6188
    %7446 = vmatpush1.bf16.msra.mxu0 %v6187
    %7447 = vmatprep.subr.bf16.mxu0 %v6207
    %7448 = vmatpush1.bf16.msra.mxu0 %v6206
    %7449 = vmatprep.mubr.bf16.mxu0 %v4541
    %7450 = vmatmul.mubr.bf16.gmra.mrb[0].mxu0 %v4540
    %v7451 = vpop.f32.mrb[0].mxu0
    %v7452 = vadd.f32 %v4949, %v7451
    %v7453 = vpop.f32.mrb[0].mxu0
    %v7454 = vadd.f32 %v4953, %v7453
    %v7455 = vpop.f32.mrb[0].mxu0
    %v7456 = vadd.f32 %v4949, %v7455
    %v7457 = vpop.f32.mrb[0].mxu0
    %v7458 = vadd.f32 %v4953, %v7457
    %7459 = vmatprep.mubr.bf16.mxu0 %v4543
    %7460 = vmatmul.mubr.bf16.gmra.mrb[0].mxu0 %v4542
    %v7461 = vpop.f32.mrb[0].mxu0
    %v7462 = vadd.f32 %v4949, %v7461
    %v7463 = vpop.f32.mrb[0].mxu0
    %v7464 = vadd.f32 %v4953, %v7463
    %v7465 = vpop.f32.mrb[0].mxu0
    %v7466 = vadd.f32 %v4949, %v7465
    %v7467 = vpop.f32.mrb[0].mxu0
    %v7468 = vadd.f32 %v4953, %v7467
    %7469 = vmatprep.mubr.bf16.mxu0 %v4545
    %7470 = vmatmul.mubr.bf16.gmra.mrb[0].mxu0 %v4544
    %v7471 = vpop.f32.mrb[0].mxu0
    %v7472 = vadd.f32 %v4949, %v7471
    %v7473 = vpop.f32.mrb[0].mxu0
    %v7474 = vadd.f32 %v4953, %v7473
    %v7475 = vpop.f32.mrb[0].mxu0
    %v7476 = vadd.f32 %v4949, %v7475
    %v7477 = vpop.f32.mrb[0].mxu0
    %v7478 = vadd.f32 %v4953, %v7477
    %7479 = vmatprep.mubr.bf16.mxu0 %v4547
    %7480 = vmatmul.mubr.bf16.gmra.mrb[0].mxu0 %v4546
    %v7481 = vpop.f32.mrb[0].mxu0
    %v7482 = vadd.f32 %v4949, %v7481
    %v7483 = vpop.f32.mrb[0].mxu0
    %v7484 = vadd.f32 %v4953, %v7483
    %v7485 = vpop.f32.mrb[0].mxu0
    %v7486 = vadd.f32 %v4949, %v7485
    %v7487 = vpop.f32.mrb[0].mxu0
    %v7488 = vadd.f32 %v4953, %v7487
    %7489 = vmatprep.mubr.bf16.mxu0 %v4549
    %7490 = vmatmul.mubr.bf16.gmra.mrb[0].mxu0 %v4548
    %v7491 = vpop.f32.mrb[0].mxu0
    %v7492 = vadd.f32 %v4949, %v7491
    %v7493 = vpop.f32.mrb[0].mxu0
    %v7494 = vadd.f32 %v4953, %v7493
    %v7495 = vpop.f32.mrb[0].mxu0
    %v7496 = vadd.f32 %v4949, %v7495
    %v7497 = vpop.f32.mrb[0].mxu0
    %v7498 = vadd.f32 %v4953, %v7497
    %7499 = vmatprep.mubr.bf16.mxu0 %v4551
    %7500 = vmatmul.mubr.bf16.gmra.mrb[0].mxu0 %v4550
    %v7501 = vpop.f32.mrb[0].mxu0
    %v7502 = vadd.f32 %v4949, %v7501
    %v7503 = vpop.f32.mrb[0].mxu0
    %v7504 = vadd.f32 %v4953, %v7503
    %v7505 = vpop.f32.mrb[0].mxu0
    %v7506 = vadd.f32 %v4949, %v7505
    %v7507 = vpop.f32.mrb[0].mxu0
    %v7508 = vadd.f32 %v4953, %v7507
    %7509 = vmatprep.mubr.bf16.mxu0 %v4553
    %7510 = vmatmul.mubr.bf16.gmra.mrb[0].mxu0 %v4552
    %v7511 = vpop.f32.mrb[0].mxu0
    %v7512 = vadd.f32 %v4949, %v7511
    %v7513 = vpop.f32.mrb[0].mxu0
    %v7514 = vadd.f32 %v4953, %v7513
    %v7515 = vpop.f32.mrb[0].mxu0
    %v7516 = vadd.f32 %v4949, %v7515
    %v7517 = vpop.f32.mrb[0].mxu0
    %v7518 = vadd.f32 %v4953, %v7517
    %7519 = vmatprep.mubr.bf16.mxu0 %v4555
    %7520 = vmatmul.mubr.bf16.gmra.mrb[0].mxu0 %v4554
    %v7521 = vpop.f32.mrb[0].mxu0
    %v7522 = vadd.f32 %v4949, %v7521
    %v7523 = vpop.f32.mrb[0].mxu0
    %v7524 = vadd.f32 %v4953, %v7523
    %v7525 = vpop.f32.mrb[0].mxu0
    %v7526 = vadd.f32 %v4949, %v7525
    %v7527 = vpop.f32.mrb[0].mxu0
    %v7528 = vadd.f32 %v4953, %v7527
    %7529 = vdwg.mxu0
    %7530 = vmatprep.subr.bf16.mxu0 0
    %7531 = vmatpush1.bf16.msra.mxu0 %v5923
    %7532 = vmatprep.subr.bf16.mxu0 0
    %7533 = vmatpush1.bf16.msra.mxu0 %v5942
    %7534 = vmatprep.subr.bf16.mxu0 0
    %7535 = vmatpush1.bf16.msra.mxu0 %v5961
    %7536 = vmatprep.subr.bf16.mxu0 0
    %7537 = vmatpush1.bf16.msra.mxu0 %v5980
    %7538 = vmatprep.subr.bf16.mxu0 0
    %7539 = vmatpush1.bf16.msra.mxu0 %v5999
    %7540 = vmatprep.subr.bf16.mxu0 0
    %7541 = vmatpush1.bf16.msra.mxu0 %v6018
    %7542 = vmatprep.subr.bf16.mxu0 0
    %7543 = vmatpush1.bf16.msra.mxu0 %v6037
    %7544 = vmatprep.subr.bf16.mxu0 0
    %7545 = vmatpush1.bf16.msra.mxu0 %v6056
    %7546 = vmatprep.subr.bf16.mxu0 0
    %7547 = vmatpush1.bf16.msra.mxu0 %v6075
    %7548 = vmatprep.subr.bf16.mxu0 0
    %7549 = vmatpush1.bf16.msra.mxu0 %v6094
    %7550 = vmatprep.subr.bf16.mxu0 0
    %7551 = vmatpush1.bf16.msra.mxu0 %v6113
    %7552 = vmatprep.subr.bf16.mxu0 0
    %7553 = vmatpush1.bf16.msra.mxu0 %v6132
    %7554 = vmatprep.subr.bf16.mxu0 0
    %7555 = vmatpush1.bf16.msra.mxu0 %v6151
    %7556 = vmatprep.subr.bf16.mxu0 0
    %7557 = vmatpush1.bf16.msra.mxu0 %v6170
    %7558 = vmatprep.subr.bf16.mxu0 0
    %7559 = vmatpush1.bf16.msra.mxu0 %v6189
    %7560 = vmatprep.subr.bf16.mxu0 0
    %7561 = vmatpush1.bf16.msra.mxu0 %v6208
    %7562 = vmatprep.mubr.bf16.mxu0 %v4541
    %7563 = vmatmul.mubr.bf16.gmra.mrb[0].mxu0 %v4540
    %v7564 = vpop.f32.mrb[0].mxu0
    %v7565 = vadd.f32 %v4957, %v7564
    %v7566 = vpop.f32.mrb[0].mxu0
    %v7567 = vpop.f32.mrb[0].mxu0
    %v7568 = vadd.f32 %v4957, %v7567
    %v7569 = vpop.f32.mrb[0].mxu0
    %7570 = vmatprep.mubr.bf16.mxu0 %v4543
    %7571 = vmatmul.mubr.bf16.gmra.mrb[0].mxu0 %v4542
    %v7572 = vpop.f32.mrb[0].mxu0
    %v7573 = vadd.f32 %v4957, %v7572
    %v7574 = vpop.f32.mrb[0].mxu0
    %v7575 = vpop.f32.mrb[0].mxu0
    %v7576 = vadd.f32 %v4957, %v7575
    %v7577 = vpop.f32.mrb[0].mxu0
    %7578 = vmatprep.mubr.bf16.mxu0 %v4545
    %7579 = vmatmul.mubr.bf16.gmra.mrb[0].mxu0 %v4544
    %v7580 = vpop.f32.mrb[0].mxu0
    %v7581 = vadd.f32 %v4957, %v7580
    %v7582 = vpop.f32.mrb[0].mxu0
    %v7583 = vpop.f32.mrb[0].mxu0
    %v7584 = vadd.f32 %v4957, %v7583
    %v7585 = vpop.f32.mrb[0].mxu0
    %7586 = vmatprep.mubr.bf16.mxu0 %v4547
    %7587 = vmatmul.mubr.bf16.gmra.mrb[0].mxu0 %v4546
    %v7588 = vpop.f32.mrb[0].mxu0
    %v7589 = vadd.f32 %v4957, %v7588
    %v7590 = vpop.f32.mrb[0].mxu0
    %v7591 = vpop.f32.mrb[0].mxu0
    %v7592 = vadd.f32 %v4957, %v7591
    %v7593 = vpop.f32.mrb[0].mxu0
    %7594 = vmatprep.mubr.bf16.mxu0 %v4549
    %7595 = vmatmul.mubr.bf16.gmra.mrb[0].mxu0 %v4548
    %v7596 = vpop.f32.mrb[0].mxu0
    %v7597 = vadd.f32 %v4957, %v7596
    %v7598 = vpop.f32.mrb[0].mxu0
    %v7599 = vpop.f32.mrb[0].mxu0
    %v7600 = vadd.f32 %v4957, %v7599
    %v7601 = vpop.f32.mrb[0].mxu0
    %7602 = vmatprep.mubr.bf16.mxu0 %v4551
    %7603 = vmatmul.mubr.bf16.gmra.mrb[0].mxu0 %v4550
    %v7604 = vpop.f32.mrb[0].mxu0
    %v7605 = vadd.f32 %v4957, %v7604
    %v7606 = vpop.f32.mrb[0].mxu0
    %v7607 = vpop.f32.mrb[0].mxu0
    %v7608 = vadd.f32 %v4957, %v7607
    %v7609 = vpop.f32.mrb[0].mxu0
    %7610 = vmatprep.mubr.bf16.mxu0 %v4553
    %7611 = vmatmul.mubr.bf16.gmra.mrb[0].mxu0 %v4552
    %v7612 = vpop.f32.mrb[0].mxu0
    %v7613 = vadd.f32 %v4957, %v7612
    %v7614 = vpop.f32.mrb[0].mxu0
    %v7615 = vpop.f32.mrb[0].mxu0
    %v7616 = vadd.f32 %v4957, %v7615
    %v7617 = vpop.f32.mrb[0].mxu0
    %7618 = vmatprep.mubr.bf16.mxu0 %v4555
    %7619 = vmatmul.mubr.bf16.gmra.mrb[0].mxu0 %v4554
    %v7620 = vpop.f32.mrb[0].mxu0
    %v7621 = vadd.f32 %v4957, %v7620
    %v7622 = vpop.f32.mrb[0].mxu0
    %v7623 = vpop.f32.mrb[0].mxu0
    %v7624 = vadd.f32 %v4957, %v7623
    %v7625 = vpop.f32.mrb[0].mxu0
    %7626 = vdwg.mxu0
    %v7627 = vxor.u32 %v6548, 2147483648
    %v7628 = vxor.u32 %v6550, 2147483648
    %v7629 = vxor.u32 %v6661, 2147483648
    %v7630 = vxor.u32 %v6663, 2147483648
    %v7631 = vxor.u32 %v6774, 2147483648
    %v7632 = vxor.u32 %v6776, 2147483648
    %v7633 = vxor.u32 %v6887, 2147483648
    %v7634 = vxor.u32 %v6889, 2147483648
    %v7635 = vxor.u32 %v7000, 2147483648
    %v7636 = vxor.u32 %v7002, 2147483648
    %v7637 = vxor.u32 %v7113, 2147483648
    %v7638 = vxor.u32 %v7115, 2147483648
    %v7639 = vxor.u32 %v7226, 2147483648
    %v7640 = vxor.u32 %v7228, 2147483648
    %v7641 = vxor.u32 %v7339, 2147483648
    %v7642 = vxor.u32 %v7341, 2147483648
    %v7643 = vxor.u32 %v7452, 2147483648
    %v7644 = vxor.u32 %v7454, 2147483648
    %v7645 = vxor.u32 %v7565, 2147483648
    %v7646 = vxor.u32 %v6552, 2147483648
    %v7647 = vxor.u32 %v6554, 2147483648
    %v7648 = vxor.u32 %v6665, 2147483648
    %v7649 = vxor.u32 %v6667, 2147483648
    %v7650 = vxor.u32 %v6778, 2147483648
    %v7651 = vxor.u32 %v6780, 2147483648
    %v7652 = vxor.u32 %v6891, 2147483648
    %v7653 = vxor.u32 %v6893, 2147483648
    %v7654 = vxor.u32 %v7004, 2147483648
    %v7655 = vxor.u32 %v7006, 2147483648
    %v7656 = vxor.u32 %v7117, 2147483648
    %v7657 = vxor.u32 %v7119, 2147483648
    %v7658 = vxor.u32 %v7230, 2147483648
    %v7659 = vxor.u32 %v7232, 2147483648
    %v7660 = vxor.u32 %v7343, 2147483648
    %v7661 = vxor.u32 %v7345, 2147483648
    %v7662 = vxor.u32 %v7456, 2147483648
    %v7663 = vxor.u32 %v7458, 2147483648
    %v7664 = vxor.u32 %v7568, 2147483648
    %v7665 = vxor.u32 %v6558, 2147483648
    %v7666 = vxor.u32 %v6560, 2147483648
    %v7667 = vxor.u32 %v6671, 2147483648
    %v7668 = vxor.u32 %v6673, 2147483648
    %v7669 = vxor.u32 %v6784, 2147483648
    %v7670 = vxor.u32 %v6786, 2147483648
    %v7671 = vxor.u32 %v6897, 2147483648
    %v7672 = vxor.u32 %v6899, 2147483648
    %v7673 = vxor.u32 %v7010, 2147483648
    %v7674 = vxor.u32 %v7012, 2147483648
    %v7675 = vxor.u32 %v7123, 2147483648
    %v7676 = vxor.u32 %v7125, 2147483648
    %v7677 = vxor.u32 %v7236, 2147483648
    %v7678 = vxor.u32 %v7238, 2147483648
    %v7679 = vxor.u32 %v7349, 2147483648
    %v7680 = vxor.u32 %v7351, 2147483648
    %v7681 = vxor.u32 %v7462, 2147483648
    %v7682 = vxor.u32 %v7464, 2147483648
    %v7683 = vxor.u32 %v7573, 2147483648
    %v7684 = vxor.u32 %v6562, 2147483648
    %v7685 = vxor.u32 %v6564, 2147483648
    %v7686 = vxor.u32 %v6675, 2147483648
    %v7687 = vxor.u32 %v6677, 2147483648
    %v7688 = vxor.u32 %v6788, 2147483648
    %v7689 = vxor.u32 %v6790, 2147483648
    %v7690 = vxor.u32 %v6901, 2147483648
    %v7691 = vxor.u32 %v6903, 2147483648
    %v7692 = vxor.u32 %v7014, 2147483648
    %v7693 = vxor.u32 %v7016, 2147483648
    %v7694 = vxor.u32 %v7127, 2147483648
    %v7695 = vxor.u32 %v7129, 2147483648
    %v7696 = vxor.u32 %v7240, 2147483648
    %v7697 = vxor.u32 %v7242, 2147483648
    %v7698 = vxor.u32 %v7353, 2147483648
    %v7699 = vxor.u32 %v7355, 2147483648
    %v7700 = vxor.u32 %v7466, 2147483648
    %v7701 = vxor.u32 %v7468, 2147483648
    %v7702 = vxor.u32 %v7576, 2147483648
    %v7703 = vxor.u32 %v6568, 2147483648
    %v7704 = vxor.u32 %v6570, 2147483648
    %v7705 = vxor.u32 %v6681, 2147483648
    %v7706 = vxor.u32 %v6683, 2147483648
    %v7707 = vxor.u32 %v6794, 2147483648
    %v7708 = vxor.u32 %v6796, 2147483648
    %v7709 = vxor.u32 %v6907, 2147483648
    %v7710 = vxor.u32 %v6909, 2147483648
    %v7711 = vxor.u32 %v7020, 2147483648
    %v7712 = vxor.u32 %v7022, 2147483648
    %v7713 = vxor.u32 %v7133, 2147483648
    %v7714 = vxor.u32 %v7135, 2147483648
    %v7715 = vxor.u32 %v7246, 2147483648
    %v7716 = vxor.u32 %v7248, 2147483648
    %v7717 = vxor.u32 %v7359, 2147483648
    %v7718 = vxor.u32 %v7361, 2147483648
    %v7719 = vxor.u32 %v7472, 2147483648
    %v7720 = vxor.u32 %v7474, 2147483648
    %v7721 = vxor.u32 %v7581, 2147483648
    %v7722 = vxor.u32 %v6572, 2147483648
    %v7723 = vxor.u32 %v6574, 2147483648
    %v7724 = vxor.u32 %v6685, 2147483648
    %v7725 = vxor.u32 %v6687, 2147483648
    %v7726 = vxor.u32 %v6798, 2147483648
    %v7727 = vxor.u32 %v6800, 2147483648
    %v7728 = vxor.u32 %v6911, 2147483648
    %v7729 = vxor.u32 %v6913, 2147483648
    %v7730 = vxor.u32 %v7024, 2147483648
    %v7731 = vxor.u32 %v7026, 2147483648
    %v7732 = vxor.u32 %v7137, 2147483648
    %v7733 = vxor.u32 %v7139, 2147483648
    %v7734 = vxor.u32 %v7250, 2147483648
    %v7735 = vxor.u32 %v7252, 2147483648
    %v7736 = vxor.u32 %v7363, 2147483648
    %v7737 = vxor.u32 %v7365, 2147483648
    %v7738 = vxor.u32 %v7476, 2147483648
    %v7739 = vxor.u32 %v7478, 2147483648
    %v7740 = vxor.u32 %v7584, 2147483648
    %v7741 = vxor.u32 %v6578, 2147483648
    %v7742 = vxor.u32 %v6580, 2147483648
    %v7743 = vxor.u32 %v6691, 2147483648
    %v7744 = vxor.u32 %v6693, 2147483648
    %v7745 = vxor.u32 %v6804, 2147483648
    %v7746 = vxor.u32 %v6806, 2147483648
    %v7747 = vxor.u32 %v6917, 2147483648
    %v7748 = vxor.u32 %v6919, 2147483648
    %v7749 = vxor.u32 %v7030, 2147483648
    %v7750 = vxor.u32 %v7032, 2147483648
    %v7751 = vxor.u32 %v7143, 2147483648
    %v7752 = vxor.u32 %v7145, 2147483648
    %v7753 = vxor.u32 %v7256, 2147483648
    %v7754 = vxor.u32 %v7258, 2147483648
    %v7755 = vxor.u32 %v7369, 2147483648
    %v7756 = vxor.u32 %v7371, 2147483648
    %v7757 = vxor.u32 %v7482, 2147483648
    %v7758 = vxor.u32 %v7484, 2147483648
    %v7759 = vxor.u32 %v7589, 2147483648
    %v7760 = vxor.u32 %v6582, 2147483648
    %v7761 = vxor.u32 %v6584, 2147483648
    %v7762 = vxor.u32 %v6695, 2147483648
    %v7763 = vxor.u32 %v6697, 2147483648
    %v7764 = vxor.u32 %v6808, 2147483648
    %v7765 = vxor.u32 %v6810, 2147483648
    %v7766 = vxor.u32 %v6921, 2147483648
    %v7767 = vxor.u32 %v6923, 2147483648
    %v7768 = vxor.u32 %v7034, 2147483648
    %v7769 = vxor.u32 %v7036, 2147483648
    %v7770 = vxor.u32 %v7147, 2147483648
    %v7771 = vxor.u32 %v7149, 2147483648
    %v7772 = vxor.u32 %v7260, 2147483648
    %v7773 = vxor.u32 %v7262, 2147483648
    %v7774 = vxor.u32 %v7373, 2147483648
    %v7775 = vxor.u32 %v7375, 2147483648
    %v7776 = vxor.u32 %v7486, 2147483648
    %v7777 = vxor.u32 %v7488, 2147483648
    %v7778 = vxor.u32 %v7592, 2147483648
    %v7779 = vxor.u32 %v6588, 2147483648
    %v7780 = vxor.u32 %v6590, 2147483648
    %v7781 = vxor.u32 %v6701, 2147483648
    %v7782 = vxor.u32 %v6703, 2147483648
    %v7783 = vxor.u32 %v6814, 2147483648
    %v7784 = vxor.u32 %v6816, 2147483648
    %v7785 = vxor.u32 %v6927, 2147483648
    %v7786 = vxor.u32 %v6929, 2147483648
    %v7787 = vxor.u32 %v7040, 2147483648
    %v7788 = vxor.u32 %v7042, 2147483648
    %v7789 = vxor.u32 %v7153, 2147483648
    %v7790 = vxor.u32 %v7155, 2147483648
    %v7791 = vxor.u32 %v7266, 2147483648
    %v7792 = vxor.u32 %v7268, 2147483648
    %v7793 = vxor.u32 %v7379, 2147483648
    %v7794 = vxor.u32 %v7381, 2147483648
    %v7795 = vxor.u32 %v7492, 2147483648
    %v7796 = vxor.u32 %v7494, 2147483648
    %v7797 = vxor.u32 %v7597, 2147483648
    %v7798 = vxor.u32 %v6592, 2147483648
    %v7799 = vxor.u32 %v6594, 2147483648
    %v7800 = vxor.u32 %v6705, 2147483648
    %v7801 = vxor.u32 %v6707, 2147483648
    %v7802 = vxor.u32 %v6818, 2147483648
    %v7803 = vxor.u32 %v6820, 2147483648
    %v7804 = vxor.u32 %v6931, 2147483648
    %v7805 = vxor.u32 %v6933, 2147483648
    %v7806 = vxor.u32 %v7044, 2147483648
    %v7807 = vxor.u32 %v7046, 2147483648
    %v7808 = vxor.u32 %v7157, 2147483648
    %v7809 = vxor.u32 %v7159, 2147483648
    %v7810 = vxor.u32 %v7270, 2147483648
    %v7811 = vxor.u32 %v7272, 2147483648
    %v7812 = vxor.u32 %v7383, 2147483648
    %v7813 = vxor.u32 %v7385, 2147483648
    %v7814 = vxor.u32 %v7496, 2147483648
    %v7815 = vxor.u32 %v7498, 2147483648
    %v7816 = vxor.u32 %v7600, 2147483648
    %v7817 = vxor.u32 %v6598, 2147483648
    %v7818 = vxor.u32 %v6600, 2147483648
    %v7819 = vxor.u32 %v6711, 2147483648
    %v7820 = vxor.u32 %v6713, 2147483648
    %v7821 = vxor.u32 %v6824, 2147483648
    %v7822 = vxor.u32 %v6826, 2147483648
    %v7823 = vxor.u32 %v6937, 2147483648
    %v7824 = vxor.u32 %v6939, 2147483648
    %v7825 = vxor.u32 %v7050, 2147483648
    %v7826 = vxor.u32 %v7052, 2147483648
    %v7827 = vxor.u32 %v7163, 2147483648
    %v7828 = vxor.u32 %v7165, 2147483648
    %v7829 = vxor.u32 %v7276, 2147483648
    %v7830 = vxor.u32 %v7278, 2147483648
    %v7831 = vxor.u32 %v7389, 2147483648
    %v7832 = vxor.u32 %v7391, 2147483648
    %v7833 = vxor.u32 %v7502, 2147483648
    %v7834 = vxor.u32 %v7504, 2147483648
    %v7835 = vxor.u32 %v7605, 2147483648
    %v7836 = vxor.u32 %v6602, 2147483648
    %v7837 = vxor.u32 %v6604, 2147483648
    %v7838 = vxor.u32 %v6715, 2147483648
    %v7839 = vxor.u32 %v6717, 2147483648
    %v7840 = vxor.u32 %v6828, 2147483648
    %v7841 = vxor.u32 %v6830, 2147483648
    %v7842 = vxor.u32 %v6941, 2147483648
    %v7843 = vxor.u32 %v6943, 2147483648
    %v7844 = vxor.u32 %v7054, 2147483648
    %v7845 = vxor.u32 %v7056, 2147483648
    %v7846 = vxor.u32 %v7167, 2147483648
    %v7847 = vxor.u32 %v7169, 2147483648
    %v7848 = vxor.u32 %v7280, 2147483648
    %v7849 = vxor.u32 %v7282, 2147483648
    %v7850 = vxor.u32 %v7393, 2147483648
    %v7851 = vxor.u32 %v7395, 2147483648
    %v7852 = vxor.u32 %v7506, 2147483648
    %v7853 = vxor.u32 %v7508, 2147483648
    %v7854 = vxor.u32 %v7608, 2147483648
    %v7855 = vxor.u32 %v6608, 2147483648
    %v7856 = vxor.u32 %v6610, 2147483648
    %v7857 = vxor.u32 %v6721, 2147483648
    %v7858 = vxor.u32 %v6723, 2147483648
    %v7859 = vxor.u32 %v6834, 2147483648
    %v7860 = vxor.u32 %v6836, 2147483648
    %v7861 = vxor.u32 %v6947, 2147483648
    %v7862 = vxor.u32 %v6949, 2147483648
    %v7863 = vxor.u32 %v7060, 2147483648
    %v7864 = vxor.u32 %v7062, 2147483648
    %v7865 = vxor.u32 %v7173, 2147483648
    %v7866 = vxor.u32 %v7175, 2147483648
    %v7867 = vxor.u32 %v7286, 2147483648
    %v7868 = vxor.u32 %v7288, 2147483648
    %v7869 = vxor.u32 %v7399, 2147483648
    %v7870 = vxor.u32 %v7401, 2147483648
    %v7871 = vxor.u32 %v7512, 2147483648
    %v7872 = vxor.u32 %v7514, 2147483648
    %v7873 = vxor.u32 %v7613, 2147483648
    %v7874 = vxor.u32 %v6612, 2147483648
    %v7875 = vxor.u32 %v6614, 2147483648
    %v7876 = vxor.u32 %v6725, 2147483648
    %v7877 = vxor.u32 %v6727, 2147483648
    %v7878 = vxor.u32 %v6838, 2147483648
    %v7879 = vxor.u32 %v6840, 2147483648
    %v7880 = vxor.u32 %v6951, 2147483648
    %v7881 = vxor.u32 %v6953, 2147483648
    %v7882 = vxor.u32 %v7064, 2147483648
    %v7883 = vxor.u32 %v7066, 2147483648
    %v7884 = vxor.u32 %v7177, 2147483648
    %v7885 = vxor.u32 %v7179, 2147483648
    %v7886 = vxor.u32 %v7290, 2147483648
    %v7887 = vxor.u32 %v7292, 2147483648
    %v7888 = vxor.u32 %v7403, 2147483648
    %v7889 = vxor.u32 %v7405, 2147483648
    %v7890 = vxor.u32 %v7516, 2147483648
    %v7891 = vxor.u32 %v7518, 2147483648
    %v7892 = vxor.u32 %v7616, 2147483648
    %v7893 = vxor.u32 %v6618, 2147483648
    %v7894 = vxor.u32 %v6620, 2147483648
    %v7895 = vxor.u32 %v6731, 2147483648
    %v7896 = vxor.u32 %v6733, 2147483648
    %v7897 = vxor.u32 %v6844, 2147483648
    %v7898 = vxor.u32 %v6846, 2147483648
    %v7899 = vxor.u32 %v6957, 2147483648
    %v7900 = vxor.u32 %v6959, 2147483648
    %v7901 = vxor.u32 %v7070, 2147483648
    %v7902 = vxor.u32 %v7072, 2147483648
    %v7903 = vxor.u32 %v7183, 2147483648
    %v7904 = vxor.u32 %v7185, 2147483648
    %v7905 = vxor.u32 %v7296, 2147483648
    %v7906 = vxor.u32 %v7298, 2147483648
    %v7907 = vxor.u32 %v7409, 2147483648
    %v7908 = vxor.u32 %v7411, 2147483648
    %v7909 = vxor.u32 %v7522, 2147483648
    %v7910 = vxor.u32 %v7524, 2147483648
    %v7911 = vxor.u32 %v7621, 2147483648
    %v7912 = vxor.u32 %v6622, 2147483648
    %v7913 = vxor.u32 %v6624, 2147483648
    %v7914 = vxor.u32 %v6735, 2147483648
    %v7915 = vxor.u32 %v6737, 2147483648
    %v7916 = vxor.u32 %v6848, 2147483648
    %v7917 = vxor.u32 %v6850, 2147483648
    %v7918 = vxor.u32 %v6961, 2147483648
    %v7919 = vxor.u32 %v6963, 2147483648
    %v7920 = vxor.u32 %v7074, 2147483648
    %v7921 = vxor.u32 %v7076, 2147483648
    %v7922 = vxor.u32 %v7187, 2147483648
    %v7923 = vxor.u32 %v7189, 2147483648
    %v7924 = vxor.u32 %v7300, 2147483648
    %v7925 = vxor.u32 %v7302, 2147483648
    %v7926 = vxor.u32 %v7413, 2147483648
    %v7927 = vxor.u32 %v7415, 2147483648
    %v7928 = vxor.u32 %v7526, 2147483648
    %v7929 = vxor.u32 %v7528, 2147483648
    %v7930 = vxor.u32 %v7624, 2147483648
    %v7931 = vmul.f32 %v7627, 1.442695
    %v7932 = vpow.pop %v7931
    %v7933 = vmul.f32 %v7628, 1.442695
    %v7934 = vpow.pop %v7933
    %v7935 = vmul.f32 %v7629, 1.442695
    %v7936 = vpow.pop %v7935
    %v7937 = vmul.f32 %v7630, 1.442695
    %v7938 = vpow.pop %v7937
    %v7939 = vmul.f32 %v7631, 1.442695
    %v7940 = vpow.pop %v7939
    %v7941 = vmul.f32 %v7632, 1.442695
    %v7942 = vpow.pop %v7941
    %v7943 = vmul.f32 %v7633, 1.442695
    %v7944 = vpow.pop %v7943
    %v7945 = vmul.f32 %v7634, 1.442695
    %v7946 = vpow.pop %v7945
    %v7947 = vmul.f32 %v7635, 1.442695
    %v7948 = vpow.pop %v7947
    %v7949 = vmul.f32 %v7636, 1.442695
    %v7950 = vpow.pop %v7949
    %v7951 = vmul.f32 %v7637, 1.442695
    %v7952 = vpow.pop %v7951
    %v7953 = vmul.f32 %v7638, 1.442695
    %v7954 = vpow.pop %v7953
    %v7955 = vmul.f32 %v7639, 1.442695
    %v7956 = vpow.pop %v7955
    %v7957 = vmul.f32 %v7640, 1.442695
    %v7958 = vpow.pop %v7957
    %v7959 = vmul.f32 %v7641, 1.442695
    %v7960 = vpow.pop %v7959
    %v7961 = vmul.f32 %v7642, 1.442695
    %v7962 = vpow.pop %v7961
    %v7963 = vmul.f32 %v7643, 1.442695
    %v7964 = vpow.pop %v7963
    %v7965 = vmul.f32 %v7644, 1.442695
    %v7966 = vpow.pop %v7965
    %v7967 = vmul.f32 %v7645, 1.442695
    %v7968 = vpow.pop %v7967
    %v7969 = vmul.f32 %v7646, 1.442695
    %v7970 = vpow.pop %v7969
    %v7971 = vmul.f32 %v7647, 1.442695
    %v7972 = vpow.pop %v7971
    %v7973 = vmul.f32 %v7648, 1.442695
    %v7974 = vpow.pop %v7973
    %v7975 = vmul.f32 %v7649, 1.442695
    %v7976 = vpow.pop %v7975
    %v7977 = vmul.f32 %v7650, 1.442695
    %v7978 = vpow.pop %v7977
    %v7979 = vmul.f32 %v7651, 1.442695
    %v7980 = vpow.pop %v7979
    %v7981 = vmul.f32 %v7652, 1.442695
    %v7982 = vpow.pop %v7981
    %v7983 = vmul.f32 %v7653, 1.442695
    %v7984 = vpow.pop %v7983
    %v7985 = vmul.f32 %v7654, 1.442695
    %v7986 = vpow.pop %v7985
    %v7987 = vmul.f32 %v7655, 1.442695
    %v7988 = vpow.pop %v7987
    %v7989 = vmul.f32 %v7656, 1.442695
    %v7990 = vpow.pop %v7989
    %v7991 = vmul.f32 %v7657, 1.442695
    %v7992 = vpow.pop %v7991
    %v7993 = vmul.f32 %v7658, 1.442695
    %v7994 = vpow.pop %v7993
    %v7995 = vmul.f32 %v7659, 1.442695
    %v7996 = vpow.pop %v7995
    %v7997 = vmul.f32 %v7660, 1.442695
    %v7998 = vpow.pop %v7997
    %v7999 = vmul.f32 %v7661, 1.442695
    %v8000 = vpow.pop %v7999
    %v8001 = vmul.f32 %v7662, 1.442695
    %v8002 = vpow.pop %v8001
    %v8003 = vmul.f32 %v7663, 1.442695
    %v8004 = vpow.pop %v8003
    %v8005 = vmul.f32 %v7664, 1.442695
    %v8006 = vpow.pop %v8005
    %v8007 = vmul.f32 %v7665, 1.442695
    %v8008 = vpow.pop %v8007
    %v8009 = vmul.f32 %v7666, 1.442695
    %v8010 = vpow.pop %v8009
    %v8011 = vmul.f32 %v7667, 1.442695
    %v8012 = vpow.pop %v8011
    %v8013 = vmul.f32 %v7668, 1.442695
    %v8014 = vpow.pop %v8013
    %v8015 = vmul.f32 %v7669, 1.442695
    %v8016 = vpow.pop %v8015
    %v8017 = vmul.f32 %v7670, 1.442695
    %v8018 = vpow.pop %v8017
    %v8019 = vmul.f32 %v7671, 1.442695
    %v8020 = vpow.pop %v8019
    %v8021 = vmul.f32 %v7672, 1.442695
    %v8022 = vpow.pop %v8021
    %v8023 = vmul.f32 %v7673, 1.442695
    %v8024 = vpow.pop %v8023
    %v8025 = vmul.f32 %v7674, 1.442695
    %v8026 = vpow.pop %v8025
    %v8027 = vmul.f32 %v7675, 1.442695
    %v8028 = vpow.pop %v8027
    %v8029 = vmul.f32 %v7676, 1.442695
    %v8030 = vpow.pop %v8029
    %v8031 = vmul.f32 %v7677, 1.442695
    %v8032 = vpow.pop %v8031
    %v8033 = vmul.f32 %v7678, 1.442695
    %v8034 = vpow.pop %v8033
    %v8035 = vmul.f32 %v7679, 1.442695
    %v8036 = vpow.pop %v8035
    %v8037 = vmul.f32 %v7680, 1.442695
    %v8038 = vpow.pop %v8037
    %v8039 = vmul.f32 %v7681, 1.442695
    %v8040 = vpow.pop %v8039
    %v8041 = vmul.f32 %v7682, 1.442695
    %v8042 = vpow.pop %v8041
    %v8043 = vmul.f32 %v7683, 1.442695
    %v8044 = vpow.pop %v8043
    %v8045 = vmul.f32 %v7684, 1.442695
    %v8046 = vpow.pop %v8045
    %v8047 = vmul.f32 %v7685, 1.442695
    %v8048 = vpow.pop %v8047
    %v8049 = vmul.f32 %v7686, 1.442695
    %v8050 = vpow.pop %v8049
    %v8051 = vmul.f32 %v7687, 1.442695
    %v8052 = vpow.pop %v8051
    %v8053 = vmul.f32 %v7688, 1.442695
    %v8054 = vpow.pop %v8053
    %v8055 = vmul.f32 %v7689, 1.442695
    %v8056 = vpow.pop %v8055
    %v8057 = vmul.f32 %v7690, 1.442695
    %v8058 = vpow.pop %v8057
    %v8059 = vmul.f32 %v7691, 1.442695
    %v8060 = vpow.pop %v8059
    %v8061 = vmul.f32 %v7692, 1.442695
    %v8062 = vpow.pop %v8061
    %v8063 = vmul.f32 %v7693, 1.442695
    %v8064 = vpow.pop %v8063
    %v8065 = vmul.f32 %v7694, 1.442695
    %v8066 = vpow.pop %v8065
    %v8067 = vmul.f32 %v7695, 1.442695
    %v8068 = vpow.pop %v8067
    %v8069 = vmul.f32 %v7696, 1.442695
    %v8070 = vpow.pop %v8069
    %v8071 = vmul.f32 %v7697, 1.442695
    %v8072 = vpow.pop %v8071
    %v8073 = vmul.f32 %v7698, 1.442695
    %v8074 = vpow.pop %v8073
    %v8075 = vmul.f32 %v7699, 1.442695
    %v8076 = vpow.pop %v8075
    %v8077 = vmul.f32 %v7700, 1.442695
    %v8078 = vpow.pop %v8077
    %v8079 = vmul.f32 %v7701, 1.442695
    %v8080 = vpow.pop %v8079
    %v8081 = vmul.f32 %v7702, 1.442695
    %v8082 = vpow.pop %v8081
    %v8083 = vmul.f32 %v7703, 1.442695
    %v8084 = vpow.pop %v8083
    %v8085 = vmul.f32 %v7704, 1.442695
    %v8086 = vpow.pop %v8085
    %v8087 = vmul.f32 %v7705, 1.442695
    %v8088 = vpow.pop %v8087
    %v8089 = vmul.f32 %v7706, 1.442695
    %v8090 = vpow.pop %v8089
    %v8091 = vmul.f32 %v7707, 1.442695
    %v8092 = vpow.pop %v8091
    %v8093 = vmul.f32 %v7708, 1.442695
    %v8094 = vpow.pop %v8093
    %v8095 = vmul.f32 %v7709, 1.442695
    %v8096 = vpow.pop %v8095
    %v8097 = vmul.f32 %v7710, 1.442695
    %v8098 = vpow.pop %v8097
    %v8099 = vmul.f32 %v7711, 1.442695
    %v8100 = vpow.pop %v8099
    %v8101 = vmul.f32 %v7712, 1.442695
    %v8102 = vpow.pop %v8101
    %v8103 = vmul.f32 %v7713, 1.442695
    %v8104 = vpow.pop %v8103
    %v8105 = vmul.f32 %v7714, 1.442695
    %v8106 = vpow.pop %v8105
    %v8107 = vmul.f32 %v7715, 1.442695
    %v8108 = vpow.pop %v8107
    %v8109 = vmul.f32 %v7716, 1.442695
    %v8110 = vpow.pop %v8109
    %v8111 = vmul.f32 %v7717, 1.442695
    %v8112 = vpow.pop %v8111
    %v8113 = vmul.f32 %v7718, 1.442695
    %v8114 = vpow.pop %v8113
    %v8115 = vmul.f32 %v7719, 1.442695
    %v8116 = vpow.pop %v8115
    %v8117 = vmul.f32 %v7720, 1.442695
    %v8118 = vpow.pop %v8117
    %v8119 = vmul.f32 %v7721, 1.442695
    %v8120 = vpow.pop %v8119
    %v8121 = vmul.f32 %v7722, 1.442695
    %v8122 = vpow.pop %v8121
    %v8123 = vmul.f32 %v7723, 1.442695
    %v8124 = vpow.pop %v8123
    %v8125 = vmul.f32 %v7724, 1.442695
    %v8126 = vpow.pop %v8125
    %v8127 = vmul.f32 %v7725, 1.442695
    %v8128 = vpow.pop %v8127
    %v8129 = vmul.f32 %v7726, 1.442695
    %v8130 = vpow.pop %v8129
    %v8131 = vmul.f32 %v7727, 1.442695
    %v8132 = vpow.pop %v8131
    %v8133 = vmul.f32 %v7728, 1.442695
    %v8134 = vpow.pop %v8133
    %v8135 = vmul.f32 %v7729, 1.442695
    %v8136 = vpow.pop %v8135
    %v8137 = vmul.f32 %v7730, 1.442695
    %v8138 = vpow.pop %v8137
    %v8139 = vmul.f32 %v7731, 1.442695
    %v8140 = vpow.pop %v8139
    %v8141 = vmul.f32 %v7732, 1.442695
    %v8142 = vpow.pop %v8141
    %v8143 = vmul.f32 %v7733, 1.442695
    %v8144 = vpow.pop %v8143
    %v8145 = vmul.f32 %v7734, 1.442695
    %v8146 = vpow.pop %v8145
    %v8147 = vmul.f32 %v7735, 1.442695
    %v8148 = vpow.pop %v8147
    %v8149 = vmul.f32 %v7736, 1.442695
    %v8150 = vpow.pop %v8149
    %v8151 = vmul.f32 %v7737, 1.442695
    %v8152 = vpow.pop %v8151
    %v8153 = vmul.f32 %v7738, 1.442695
    %v8154 = vpow.pop %v8153
    %v8155 = vmul.f32 %v7739, 1.442695
    %v8156 = vpow.pop %v8155
    %v8157 = vmul.f32 %v7740, 1.442695
    %v8158 = vpow.pop %v8157
    %v8159 = vmul.f32 %v7741, 1.442695
    %v8160 = vpow.pop %v8159
    %v8161 = vmul.f32 %v7742, 1.442695
    %v8162 = vpow.pop %v8161
    %v8163 = vmul.f32 %v7743, 1.442695
    %v8164 = vpow.pop %v8163
    %v8165 = vmul.f32 %v7744, 1.442695
    %v8166 = vpow.pop %v8165
    %v8167 = vmul.f32 %v7745, 1.442695
    %v8168 = vpow.pop %v8167
    %v8169 = vmul.f32 %v7746, 1.442695
    %v8170 = vpow.pop %v8169
    %v8171 = vmul.f32 %v7747, 1.442695
    %v8172 = vpow.pop %v8171
    %v8173 = vmul.f32 %v7748, 1.442695
    %v8174 = vpow.pop %v8173
    %v8175 = vmul.f32 %v7749, 1.442695
    %v8176 = vpow.pop %v8175
    %v8177 = vmul.f32 %v7750, 1.442695
    %v8178 = vpow.pop %v8177
    %v8179 = vmul.f32 %v7751, 1.442695
    %v8180 = vpow.pop %v8179
    %v8181 = vmul.f32 %v7752, 1.442695
    %v8182 = vpow.pop %v8181
    %v8183 = vmul.f32 %v7753, 1.442695
    %v8184 = vpow.pop %v8183
    %v8185 = vmul.f32 %v7754, 1.442695
    %v8186 = vpow.pop %v8185
    %v8187 = vmul.f32 %v7755, 1.442695
    %v8188 = vpow.pop %v8187
    %v8189 = vmul.f32 %v7756, 1.442695
    %v8190 = vpow.pop %v8189
    %v8191 = vmul.f32 %v7757, 1.442695
    %v8192 = vpow.pop %v8191
    %v8193 = vmul.f32 %v7758, 1.442695
    %v8194 = vpow.pop %v8193
    %v8195 = vmul.f32 %v7759, 1.442695
    %v8196 = vpow.pop %v8195
    %v8197 = vmul.f32 %v7760, 1.442695
    %v8198 = vpow.pop %v8197
    %v8199 = vmul.f32 %v7761, 1.442695
    %v8200 = vpow.pop %v8199
    %v8201 = vmul.f32 %v7762, 1.442695
    %v8202 = vpow.pop %v8201
    %v8203 = vmul.f32 %v7763, 1.442695
    %v8204 = vpow.pop %v8203
    %v8205 = vmul.f32 %v7764, 1.442695
    %v8206 = vpow.pop %v8205
    %v8207 = vmul.f32 %v7765, 1.442695
    %v8208 = vpow.pop %v8207
    %v8209 = vmul.f32 %v7766, 1.442695
    %v8210 = vpow.pop %v8209
    %v8211 = vmul.f32 %v7767, 1.442695
    %v8212 = vpow.pop %v8211
    %v8213 = vmul.f32 %v7768, 1.442695
    %v8214 = vpow.pop %v8213
    %v8215 = vmul.f32 %v7769, 1.442695
    %v8216 = vpow.pop %v8215
    %v8217 = vmul.f32 %v7770, 1.442695
    %v8218 = vpow.pop %v8217
    %v8219 = vmul.f32 %v7771, 1.442695
    %v8220 = vpow.pop %v8219
    %v8221 = vmul.f32 %v7772, 1.442695
    %v8222 = vpow.pop %v8221
    %v8223 = vmul.f32 %v7773, 1.442695
    %v8224 = vpow.pop %v8223
    %v8225 = vmul.f32 %v7774, 1.442695
    %v8226 = vpow.pop %v8225
    %v8227 = vmul.f32 %v7775, 1.442695
    %v8228 = vpow.pop %v8227
    %v8229 = vmul.f32 %v7776, 1.442695
    %v8230 = vpow.pop %v8229
    %v8231 = vmul.f32 %v7777, 1.442695
    %v8232 = vpow.pop %v8231
    %v8233 = vmul.f32 %v7778, 1.442695
    %v8234 = vpow.pop %v8233
    %v8235 = vmul.f32 %v7779, 1.442695
    %v8236 = vpow.pop %v8235
    %v8237 = vmul.f32 %v7780, 1.442695
    %v8238 = vpow.pop %v8237
    %v8239 = vmul.f32 %v7781, 1.442695
    %v8240 = vpow.pop %v8239
    %v8241 = vmul.f32 %v7782, 1.442695
    %v8242 = vpow.pop %v8241
    %v8243 = vmul.f32 %v7783, 1.442695
    %v8244 = vpow.pop %v8243
    %v8245 = vmul.f32 %v7784, 1.442695
    %v8246 = vpow.pop %v8245
    %v8247 = vmul.f32 %v7785, 1.442695
    %v8248 = vpow.pop %v8247
    %v8249 = vmul.f32 %v7786, 1.442695
    %v8250 = vpow.pop %v8249
    %v8251 = vmul.f32 %v7787, 1.442695
    %v8252 = vpow.pop %v8251
    %v8253 = vmul.f32 %v7788, 1.442695
    %v8254 = vpow.pop %v8253
    %v8255 = vmul.f32 %v7789, 1.442695
    %v8256 = vpow.pop %v8255
    %v8257 = vmul.f32 %v7790, 1.442695
    %v8258 = vpow.pop %v8257
    %v8259 = vmul.f32 %v7791, 1.442695
    %v8260 = vpow.pop %v8259
    %v8261 = vmul.f32 %v7792, 1.442695
    %v8262 = vpow.pop %v8261
    %v8263 = vmul.f32 %v7793, 1.442695
    %v8264 = vpow.pop %v8263
    %v8265 = vmul.f32 %v7794, 1.442695
    %v8266 = vpow.pop %v8265
    %v8267 = vmul.f32 %v7795, 1.442695
    %v8268 = vpow.pop %v8267
    %v8269 = vmul.f32 %v7796, 1.442695
    %v8270 = vpow.pop %v8269
    %v8271 = vmul.f32 %v7797, 1.442695
    %v8272 = vpow.pop %v8271
    %v8273 = vmul.f32 %v7798, 1.442695
    %v8274 = vpow.pop %v8273
    %v8275 = vmul.f32 %v7799, 1.442695
    %v8276 = vpow.pop %v8275
    %v8277 = vmul.f32 %v7800, 1.442695
    %v8278 = vpow.pop %v8277
    %v8279 = vmul.f32 %v7801, 1.442695
    %v8280 = vpow.pop %v8279
    %v8281 = vmul.f32 %v7802, 1.442695
    %v8282 = vpow.pop %v8281
    %v8283 = vmul.f32 %v7803, 1.442695
    %v8284 = vpow.pop %v8283
    %v8285 = vmul.f32 %v7804, 1.442695
    %v8286 = vpow.pop %v8285
    %v8287 = vmul.f32 %v7805, 1.442695
    %v8288 = vpow.pop %v8287
    %v8289 = vmul.f32 %v7806, 1.442695
    %v8290 = vpow.pop %v8289
    %v8291 = vmul.f32 %v7807, 1.442695
    %v8292 = vpow.pop %v8291
    %v8293 = vmul.f32 %v7808, 1.442695
    %v8294 = vpow.pop %v8293
    %v8295 = vmul.f32 %v7809, 1.442695
    %v8296 = vpow.pop %v8295
    %v8297 = vmul.f32 %v7810, 1.442695
    %v8298 = vpow.pop %v8297
    %v8299 = vmul.f32 %v7811, 1.442695
    %v8300 = vpow.pop %v8299
    %v8301 = vmul.f32 %v7812, 1.442695
    %v8302 = vpow.pop %v8301
    %v8303 = vmul.f32 %v7813, 1.442695
    %v8304 = vpow.pop %v8303
    %v8305 = vmul.f32 %v7814, 1.442695
    %v8306 = vpow.pop %v8305
    %v8307 = vmul.f32 %v7815, 1.442695
    %v8308 = vpow.pop %v8307
    %v8309 = vmul.f32 %v7816, 1.442695
    %v8310 = vpow.pop %v8309
    %v8311 = vmul.f32 %v7817, 1.442695
    %v8312 = vpow.pop %v8311
    %v8313 = vmul.f32 %v7818, 1.442695
    %v8314 = vpow.pop %v8313
    %v8315 = vmul.f32 %v7819, 1.442695
    %v8316 = vpow.pop %v8315
    %v8317 = vmul.f32 %v7820, 1.442695
    %v8318 = vpow.pop %v8317
    %v8319 = vmul.f32 %v7821, 1.442695
    %v8320 = vpow.pop %v8319
    %v8321 = vmul.f32 %v7822, 1.442695
    %v8322 = vpow.pop %v8321
    %v8323 = vmul.f32 %v7823, 1.442695
    %v8324 = vpow.pop %v8323
    %v8325 = vmul.f32 %v7824, 1.442695
    %v8326 = vpow.pop %v8325
    %v8327 = vmul.f32 %v7825, 1.442695
    %v8328 = vpow.pop %v8327
    %v8329 = vmul.f32 %v7826, 1.442695
    %v8330 = vpow.pop %v8329
    %v8331 = vmul.f32 %v7827, 1.442695
    %v8332 = vpow.pop %v8331
    %v8333 = vmul.f32 %v7828, 1.442695
    %v8334 = vpow.pop %v8333
    %v8335 = vmul.f32 %v7829, 1.442695
    %v8336 = vpow.pop %v8335
    %v8337 = vmul.f32 %v7830, 1.442695
    %v8338 = vpow.pop %v8337
    %v8339 = vmul.f32 %v7831, 1.442695
    %v8340 = vpow.pop %v8339
    %v8341 = vmul.f32 %v7832, 1.442695
    %v8342 = vpow.pop %v8341
    %v8343 = vmul.f32 %v7833, 1.442695
    %v8344 = vpow.pop %v8343
    %v8345 = vmul.f32 %v7834, 1.442695
    %v8346 = vpow.pop %v8345
    %v8347 = vmul.f32 %v7835, 1.442695
    %v8348 = vpow.pop %v8347
    %v8349 = vmul.f32 %v7836, 1.442695
    %v8350 = vpow.pop %v8349
    %v8351 = vmul.f32 %v7837, 1.442695
    %v8352 = vpow.pop %v8351
    %v8353 = vmul.f32 %v7838, 1.442695
    %v8354 = vpow.pop %v8353
    %v8355 = vmul.f32 %v7839, 1.442695
    %v8356 = vpow.pop %v8355
    %v8357 = vmul.f32 %v7840, 1.442695
    %v8358 = vpow.pop %v8357
    %v8359 = vmul.f32 %v7841, 1.442695
    %v8360 = vpow.pop %v8359
    %v8361 = vmul.f32 %v7842, 1.442695
    %v8362 = vpow.pop %v8361
    %v8363 = vmul.f32 %v7843, 1.442695
    %v8364 = vpow.pop %v8363
    %v8365 = vmul.f32 %v7844, 1.442695
    %v8366 = vpow.pop %v8365
    %v8367 = vmul.f32 %v7845, 1.442695
    %v8368 = vpow.pop %v8367
    %v8369 = vmul.f32 %v7846, 1.442695
    %v8370 = vpow.pop %v8369
    %v8371 = vmul.f32 %v7847, 1.442695
    %v8372 = vpow.pop %v8371
    %v8373 = vmul.f32 %v7848, 1.442695
    %v8374 = vpow.pop %v8373
    %v8375 = vmul.f32 %v7849, 1.442695
    %v8376 = vpow.pop %v8375
    %v8377 = vmul.f32 %v7850, 1.442695
    %v8378 = vpow.pop %v8377
    %v8379 = vmul.f32 %v7851, 1.442695
    %v8380 = vpow.pop %v8379
    %v8381 = vmul.f32 %v7852, 1.442695
    %v8382 = vpow.pop %v8381
    %v8383 = vmul.f32 %v7853, 1.442695
    %v8384 = vpow.pop %v8383
    %v8385 = vmul.f32 %v7854, 1.442695
    %v8386 = vpow.pop %v8385
    %v8387 = vmul.f32 %v7855, 1.442695
    %v8388 = vpow.pop %v8387
    %v8389 = vmul.f32 %v7856, 1.442695
    %v8390 = vpow.pop %v8389
    %v8391 = vmul.f32 %v7857, 1.442695
    %v8392 = vpow.pop %v8391
    %v8393 = vmul.f32 %v7858, 1.442695
    %v8394 = vpow.pop %v8393
    %v8395 = vmul.f32 %v7859, 1.442695
    %v8396 = vpow.pop %v8395
    %v8397 = vmul.f32 %v7860, 1.442695
    %v8398 = vpow.pop %v8397
    %v8399 = vmul.f32 %v7861, 1.442695
    %v8400 = vpow.pop %v8399
    %v8401 = vmul.f32 %v7862, 1.442695
    %v8402 = vpow.pop %v8401
    %v8403 = vmul.f32 %v7863, 1.442695
    %v8404 = vpow.pop %v8403
    %v8405 = vmul.f32 %v7864, 1.442695
    %v8406 = vpow.pop %v8405
    %v8407 = vmul.f32 %v7865, 1.442695
    %v8408 = vpow.pop %v8407
    %v8409 = vmul.f32 %v7866, 1.442695
    %v8410 = vpow.pop %v8409
    %v8411 = vmul.f32 %v7867, 1.442695
    %v8412 = vpow.pop %v8411
    %v8413 = vmul.f32 %v7868, 1.442695
    %v8414 = vpow.pop %v8413
    %v8415 = vmul.f32 %v7869, 1.442695
    %v8416 = vpow.pop %v8415
    %v8417 = vmul.f32 %v7870, 1.442695
    %v8418 = vpow.pop %v8417
    %v8419 = vmul.f32 %v7871, 1.442695
    %v8420 = vpow.pop %v8419
    %v8421 = vmul.f32 %v7872, 1.442695
    %v8422 = vpow.pop %v8421
    %v8423 = vmul.f32 %v7873, 1.442695
    %v8424 = vpow.pop %v8423
    %v8425 = vmul.f32 %v7874, 1.442695
    %v8426 = vpow.pop %v8425
    %v8427 = vmul.f32 %v7875, 1.442695
    %v8428 = vpow.pop %v8427
    %v8429 = vmul.f32 %v7876, 1.442695
    %v8430 = vpow.pop %v8429
    %v8431 = vmul.f32 %v7877, 1.442695
    %v8432 = vpow.pop %v8431
    %v8433 = vmul.f32 %v7878, 1.442695
    %v8434 = vpow.pop %v8433
    %v8435 = vmul.f32 %v7879, 1.442695
    %v8436 = vpow.pop %v8435
    %v8437 = vmul.f32 %v7880, 1.442695
    %v8438 = vpow.pop %v8437
    %v8439 = vmul.f32 %v7881, 1.442695
    %v8440 = vpow.pop %v8439
    %v8441 = vmul.f32 %v7882, 1.442695
    %v8442 = vpow.pop %v8441
    %v8443 = vmul.f32 %v7883, 1.442695
    %v8444 = vpow.pop %v8443
    %v8445 = vmul.f32 %v7884, 1.442695
    %v8446 = vpow.pop %v8445
    %v8447 = vmul.f32 %v7885, 1.442695
    %v8448 = vpow.pop %v8447
    %v8449 = vmul.f32 %v7886, 1.442695
    %v8450 = vpow.pop %v8449
    %v8451 = vmul.f32 %v7887, 1.442695
    %v8452 = vpow.pop %v8451
    %v8453 = vmul.f32 %v7888, 1.442695
    %v8454 = vpow.pop %v8453
    %v8455 = vmul.f32 %v7889, 1.442695
    %v8456 = vpow.pop %v8455
    %v8457 = vmul.f32 %v7890, 1.442695
    %v8458 = vpow.pop %v8457
    %v8459 = vmul.f32 %v7891, 1.442695
    %v8460 = vpow.pop %v8459
    %v8461 = vmul.f32 %v7892, 1.442695
    %v8462 = vpow.pop %v8461
    %v8463 = vmul.f32 %v7893, 1.442695
    %v8464 = vpow.pop %v8463
    %v8465 = vmul.f32 %v7894, 1.442695
    %v8466 = vpow.pop %v8465
    %v8467 = vmul.f32 %v7895, 1.442695
    %v8468 = vpow.pop %v8467
    %v8469 = vmul.f32 %v7896, 1.442695
    %v8470 = vpow.pop %v8469
    %v8471 = vmul.f32 %v7897, 1.442695
    %v8472 = vpow.pop %v8471
    %v8473 = vmul.f32 %v7898, 1.442695
    %v8474 = vpow.pop %v8473
    %v8475 = vmul.f32 %v7899, 1.442695
    %v8476 = vpow.pop %v8475
    %v8477 = vmul.f32 %v7900, 1.442695
    %v8478 = vpow.pop %v8477
    %v8479 = vmul.f32 %v7901, 1.442695
    %v8480 = vpow.pop %v8479
    %v8481 = vmul.f32 %v7902, 1.442695
    %v8482 = vpow.pop %v8481
    %v8483 = vmul.f32 %v7903, 1.442695
    %v8484 = vpow.pop %v8483
    %v8485 = vmul.f32 %v7904, 1.442695
    %v8486 = vpow.pop %v8485
    %v8487 = vmul.f32 %v7905, 1.442695
    %v8488 = vpow.pop %v8487
    %v8489 = vmul.f32 %v7906, 1.442695
    %v8490 = vpow.pop %v8489
    %v8491 = vmul.f32 %v7907, 1.442695
    %v8492 = vpow.pop %v8491
    %v8493 = vmul.f32 %v7908, 1.442695
    %v8494 = vpow.pop %v8493
    %v8495 = vmul.f32 %v7909, 1.442695
    %v8496 = vpow.pop %v8495
    %v8497 = vmul.f32 %v7910, 1.442695
    %v8498 = vpow.pop %v8497
    %v8499 = vmul.f32 %v7911, 1.442695
    %v8500 = vpow.pop %v8499
    %v8501 = vmul.f32 %v7912, 1.442695
    %v8502 = vpow.pop %v8501
    %v8503 = vmul.f32 %v7913, 1.442695
    %v8504 = vpow.pop %v8503
    %v8505 = vmul.f32 %v7914, 1.442695
    %v8506 = vpow.pop %v8505
    %v8507 = vmul.f32 %v7915, 1.442695
    %v8508 = vpow.pop %v8507
    %v8509 = vmul.f32 %v7916, 1.442695
    %v8510 = vpow.pop %v8509
    %v8511 = vmul.f32 %v7917, 1.442695
    %v8512 = vpow.pop %v8511
    %v8513 = vmul.f32 %v7918, 1.442695
    %v8514 = vpow.pop %v8513
    %v8515 = vmul.f32 %v7919, 1.442695
    %v8516 = vpow.pop %v8515
    %v8517 = vmul.f32 %v7920, 1.442695
    %v8518 = vpow.pop %v8517
    %v8519 = vmul.f32 %v7921, 1.442695
    %v8520 = vpow.pop %v8519
    %v8521 = vmul.f32 %v7922, 1.442695
    %v8522 = vpow.pop %v8521
    %v8523 = vmul.f32 %v7923, 1.442695
    %v8524 = vpow.pop %v8523
    %v8525 = vmul.f32 %v7924, 1.442695
    %v8526 = vpow.pop %v8525
    %v8527 = vmul.f32 %v7925, 1.442695
    %v8528 = vpow.pop %v8527
    %v8529 = vmul.f32 %v7926, 1.442695
    %v8530 = vpow.pop %v8529
    %v8531 = vmul.f32 %v7927, 1.442695
    %v8532 = vpow.pop %v8531
    %v8533 = vmul.f32 %v7928, 1.442695
    %v8534 = vpow.pop %v8533
    %v8535 = vmul.f32 %v7929, 1.442695
    %v8536 = vpow.pop %v8535
    %v8537 = vmul.f32 %v7930, 1.442695
    %v8538 = vpow.pop %v8537
    %v8539 = vadd.f32 %v7932, 1.0
    %v8540 = vadd.f32 %v7934, 1.0
    %v8541 = vadd.f32 %v7936, 1.0
    %v8542 = vadd.f32 %v7938, 1.0
    %v8543 = vadd.f32 %v7940, 1.0
    %v8544 = vadd.f32 %v7942, 1.0
    %v8545 = vadd.f32 %v7944, 1.0
    %v8546 = vadd.f32 %v7946, 1.0
    %v8547 = vadd.f32 %v7948, 1.0
    %v8548 = vadd.f32 %v7950, 1.0
    %v8549 = vadd.f32 %v7952, 1.0
    %v8550 = vadd.f32 %v7954, 1.0
    %v8551 = vadd.f32 %v7956, 1.0
    %v8552 = vadd.f32 %v7958, 1.0
    %v8553 = vadd.f32 %v7960, 1.0
    %v8554 = vadd.f32 %v7962, 1.0
    %v8555 = vadd.f32 %v7964, 1.0
    %v8556 = vadd.f32 %v7966, 1.0
    %v8557 = vadd.f32 %v7968, 1.0
    %v8558 = vadd.f32 %v7970, 1.0
    %v8559 = vadd.f32 %v7972, 1.0
    %v8560 = vadd.f32 %v7974, 1.0
    %v8561 = vadd.f32 %v7976, 1.0
    %v8562 = vadd.f32 %v7978, 1.0
    %v8563 = vadd.f32 %v7980, 1.0
    %v8564 = vadd.f32 %v7982, 1.0
    %v8565 = vadd.f32 %v7984, 1.0
    %v8566 = vadd.f32 %v7986, 1.0
    %v8567 = vadd.f32 %v7988, 1.0
    %v8568 = vadd.f32 %v7990, 1.0
    %v8569 = vadd.f32 %v7992, 1.0
    %v8570 = vadd.f32 %v7994, 1.0
    %v8571 = vadd.f32 %v7996, 1.0
    %v8572 = vadd.f32 %v7998, 1.0
    %v8573 = vadd.f32 %v8000, 1.0
    %v8574 = vadd.f32 %v8002, 1.0
    %v8575 = vadd.f32 %v8004, 1.0
    %v8576 = vadd.f32 %v8006, 1.0
    %v8577 = vadd.f32 %v8008, 1.0
    %v8578 = vadd.f32 %v8010, 1.0
    %v8579 = vadd.f32 %v8012, 1.0
    %v8580 = vadd.f32 %v8014, 1.0
    %v8581 = vadd.f32 %v8016, 1.0
    %v8582 = vadd.f32 %v8018, 1.0
    %v8583 = vadd.f32 %v8020, 1.0
    %v8584 = vadd.f32 %v8022, 1.0
    %v8585 = vadd.f32 %v8024, 1.0
    %v8586 = vadd.f32 %v8026, 1.0
    %v8587 = vadd.f32 %v8028, 1.0
    %v8588 = vadd.f32 %v8030, 1.0
    %v8589 = vadd.f32 %v8032, 1.0
    %v8590 = vadd.f32 %v8034, 1.0
    %v8591 = vadd.f32 %v8036, 1.0
    %v8592 = vadd.f32 %v8038, 1.0
    %v8593 = vadd.f32 %v8040, 1.0
    %v8594 = vadd.f32 %v8042, 1.0
    %v8595 = vadd.f32 %v8044, 1.0
    %v8596 = vadd.f32 %v8046, 1.0
    %v8597 = vadd.f32 %v8048, 1.0
    %v8598 = vadd.f32 %v8050, 1.0
    %v8599 = vadd.f32 %v8052, 1.0
    %v8600 = vadd.f32 %v8054, 1.0
    %v8601 = vadd.f32 %v8056, 1.0
    %v8602 = vadd.f32 %v8058, 1.0
    %v8603 = vadd.f32 %v8060, 1.0
    %v8604 = vadd.f32 %v8062, 1.0
    %v8605 = vadd.f32 %v8064, 1.0
    %v8606 = vadd.f32 %v8066, 1.0
    %v8607 = vadd.f32 %v8068, 1.0
    %v8608 = vadd.f32 %v8070, 1.0
    %v8609 = vadd.f32 %v8072, 1.0
    %v8610 = vadd.f32 %v8074, 1.0
    %v8611 = vadd.f32 %v8076, 1.0
    %v8612 = vadd.f32 %v8078, 1.0
    %v8613 = vadd.f32 %v8080, 1.0
    %v8614 = vadd.f32 %v8082, 1.0
    %v8615 = vadd.f32 %v8084, 1.0
    %v8616 = vadd.f32 %v8086, 1.0
    %v8617 = vadd.f32 %v8088, 1.0
    %v8618 = vadd.f32 %v8090, 1.0
    %v8619 = vadd.f32 %v8092, 1.0
    %v8620 = vadd.f32 %v8094, 1.0
    %v8621 = vadd.f32 %v8096, 1.0
    %v8622 = vadd.f32 %v8098, 1.0
    %v8623 = vadd.f32 %v8100, 1.0
    %v8624 = vadd.f32 %v8102, 1.0
    %v8625 = vadd.f32 %v8104, 1.0
    %v8626 = vadd.f32 %v8106, 1.0
    %v8627 = vadd.f32 %v8108, 1.0
    %v8628 = vadd.f32 %v8110, 1.0
    %v8629 = vadd.f32 %v8112, 1.0
    %v8630 = vadd.f32 %v8114, 1.0
    %v8631 = vadd.f32 %v8116, 1.0
    %v8632 = vadd.f32 %v8118, 1.0
    %v8633 = vadd.f32 %v8120, 1.0
    %v8634 = vadd.f32 %v8122, 1.0
    %v8635 = vadd.f32 %v8124, 1.0
    %v8636 = vadd.f32 %v8126, 1.0
    %v8637 = vadd.f32 %v8128, 1.0
    %v8638 = vadd.f32 %v8130, 1.0
    %v8639 = vadd.f32 %v8132, 1.0
    %v8640 = vadd.f32 %v8134, 1.0
    %v8641 = vadd.f32 %v8136, 1.0
    %v8642 = vadd.f32 %v8138, 1.0
    %v8643 = vadd.f32 %v8140, 1.0
    %v8644 = vadd.f32 %v8142, 1.0
    %v8645 = vadd.f32 %v8144, 1.0
    %v8646 = vadd.f32 %v8146, 1.0
    %v8647 = vadd.f32 %v8148, 1.0
    %v8648 = vadd.f32 %v8150, 1.0
    %v8649 = vadd.f32 %v8152, 1.0
    %v8650 = vadd.f32 %v8154, 1.0
    %v8651 = vadd.f32 %v8156, 1.0
    %v8652 = vadd.f32 %v8158, 1.0
    %v8653 = vadd.f32 %v8160, 1.0
    %v8654 = vadd.f32 %v8162, 1.0
    %v8655 = vadd.f32 %v8164, 1.0
    %v8656 = vadd.f32 %v8166, 1.0
    %v8657 = vadd.f32 %v8168, 1.0
    %v8658 = vadd.f32 %v8170, 1.0
    %v8659 = vadd.f32 %v8172, 1.0
    %v8660 = vadd.f32 %v8174, 1.0
    %v8661 = vadd.f32 %v8176, 1.0
    %v8662 = vadd.f32 %v8178, 1.0
    %v8663 = vadd.f32 %v8180, 1.0
    %v8664 = vadd.f32 %v8182, 1.0
    %v8665 = vadd.f32 %v8184, 1.0
    %v8666 = vadd.f32 %v8186, 1.0
    %v8667 = vadd.f32 %v8188, 1.0
    %v8668 = vadd.f32 %v8190, 1.0
    %v8669 = vadd.f32 %v8192, 1.0
    %v8670 = vadd.f32 %v8194, 1.0
    %v8671 = vadd.f32 %v8196, 1.0
    %v8672 = vadd.f32 %v8198, 1.0
    %v8673 = vadd.f32 %v8200, 1.0
    %v8674 = vadd.f32 %v8202, 1.0
    %v8675 = vadd.f32 %v8204, 1.0
    %v8676 = vadd.f32 %v8206, 1.0
    %v8677 = vadd.f32 %v8208, 1.0
    %v8678 = vadd.f32 %v8210, 1.0
    %v8679 = vadd.f32 %v8212, 1.0
    %v8680 = vadd.f32 %v8214, 1.0
    %v8681 = vadd.f32 %v8216, 1.0
    %v8682 = vadd.f32 %v8218, 1.0
    %v8683 = vadd.f32 %v8220, 1.0
    %v8684 = vadd.f32 %v8222, 1.0
    %v8685 = vadd.f32 %v8224, 1.0
    %v8686 = vadd.f32 %v8226, 1.0
    %v8687 = vadd.f32 %v8228, 1.0
    %v8688 = vadd.f32 %v8230, 1.0
    %v8689 = vadd.f32 %v8232, 1.0
    %v8690 = vadd.f32 %v8234, 1.0
    %v8691 = vadd.f32 %v8236, 1.0
    %v8692 = vadd.f32 %v8238, 1.0
    %v8693 = vadd.f32 %v8240, 1.0
    %v8694 = vadd.f32 %v8242, 1.0
    %v8695 = vadd.f32 %v8244, 1.0
    %v8696 = vadd.f32 %v8246, 1.0
    %v8697 = vadd.f32 %v8248, 1.0
    %v8698 = vadd.f32 %v8250, 1.0
    %v8699 = vadd.f32 %v8252, 1.0
    %v8700 = vadd.f32 %v8254, 1.0
    %v8701 = vadd.f32 %v8256, 1.0
    %v8702 = vadd.f32 %v8258, 1.0
    %v8703 = vadd.f32 %v8260, 1.0
    %v8704 = vadd.f32 %v8262, 1.0
    %v8705 = vadd.f32 %v8264, 1.0
    %v8706 = vadd.f32 %v8266, 1.0
    %v8707 = vadd.f32 %v8268, 1.0
    %v8708 = vadd.f32 %v8270, 1.0
    %v8709 = vadd.f32 %v8272, 1.0
    %v8710 = vadd.f32 %v8274, 1.0
    %v8711 = vadd.f32 %v8276, 1.0
    %v8712 = vadd.f32 %v8278, 1.0
    %v8713 = vadd.f32 %v8280, 1.0
    %v8714 = vadd.f32 %v8282, 1.0
    %v8715 = vadd.f32 %v8284, 1.0
    %v8716 = vadd.f32 %v8286, 1.0
    %v8717 = vadd.f32 %v8288, 1.0
    %v8718 = vadd.f32 %v8290, 1.0
    %v8719 = vadd.f32 %v8292, 1.0
    %v8720 = vadd.f32 %v8294, 1.0
    %v8721 = vadd.f32 %v8296, 1.0
    %v8722 = vadd.f32 %v8298, 1.0
    %v8723 = vadd.f32 %v8300, 1.0
    %v8724 = vadd.f32 %v8302, 1.0
    %v8725 = vadd.f32 %v8304, 1.0
    %v8726 = vadd.f32 %v8306, 1.0
    %v8727 = vadd.f32 %v8308, 1.0
    %v8728 = vadd.f32 %v8310, 1.0
    %v8729 = vadd.f32 %v8312, 1.0
    %v8730 = vadd.f32 %v8314, 1.0
    %v8731 = vadd.f32 %v8316, 1.0
    %v8732 = vadd.f32 %v8318, 1.0
    %v8733 = vadd.f32 %v8320, 1.0
    %v8734 = vadd.f32 %v8322, 1.0
    %v8735 = vadd.f32 %v8324, 1.0
    %v8736 = vadd.f32 %v8326, 1.0
    %v8737 = vadd.f32 %v8328, 1.0
    %v8738 = vadd.f32 %v8330, 1.0
    %v8739 = vadd.f32 %v8332, 1.0
    %v8740 = vadd.f32 %v8334, 1.0
    %v8741 = vadd.f32 %v8336, 1.0
    %v8742 = vadd.f32 %v8338, 1.0
    %v8743 = vadd.f32 %v8340, 1.0
    %v8744 = vadd.f32 %v8342, 1.0
    %v8745 = vadd.f32 %v8344, 1.0
    %v8746 = vadd.f32 %v8346, 1.0
    %v8747 = vadd.f32 %v8348, 1.0
    %v8748 = vadd.f32 %v8350, 1.0
    %v8749 = vadd.f32 %v8352, 1.0
    %v8750 = vadd.f32 %v8354, 1.0
    %v8751 = vadd.f32 %v8356, 1.0
    %v8752 = vadd.f32 %v8358, 1.0
    %v8753 = vadd.f32 %v8360, 1.0
    %v8754 = vadd.f32 %v8362, 1.0
    %v8755 = vadd.f32 %v8364, 1.0
    %v8756 = vadd.f32 %v8366, 1.0
    %v8757 = vadd.f32 %v8368, 1.0
    %v8758 = vadd.f32 %v8370, 1.0
    %v8759 = vadd.f32 %v8372, 1.0
    %v8760 = vadd.f32 %v8374, 1.0
    %v8761 = vadd.f32 %v8376, 1.0
    %v8762 = vadd.f32 %v8378, 1.0
    %v8763 = vadd.f32 %v8380, 1.0
    %v8764 = vadd.f32 %v8382, 1.0
    %v8765 = vadd.f32 %v8384, 1.0
    %v8766 = vadd.f32 %v8386, 1.0
    %v8767 = vadd.f32 %v8388, 1.0
    %v8768 = vadd.f32 %v8390, 1.0
    %v8769 = vadd.f32 %v8392, 1.0
    %v8770 = vadd.f32 %v8394, 1.0
    %v8771 = vadd.f32 %v8396, 1.0
    %v8772 = vadd.f32 %v8398, 1.0
    %v8773 = vadd.f32 %v8400, 1.0
    %v8774 = vadd.f32 %v8402, 1.0
    %v8775 = vadd.f32 %v8404, 1.0
    %v8776 = vadd.f32 %v8406, 1.0
    %v8777 = vadd.f32 %v8408, 1.0
    %v8778 = vadd.f32 %v8410, 1.0
    %v8779 = vadd.f32 %v8412, 1.0
    %v8780 = vadd.f32 %v8414, 1.0
    %v8781 = vadd.f32 %v8416, 1.0
    %v8782 = vadd.f32 %v8418, 1.0
    %v8783 = vadd.f32 %v8420, 1.0
    %v8784 = vadd.f32 %v8422, 1.0
    %v8785 = vadd.f32 %v8424, 1.0
    %v8786 = vadd.f32 %v8426, 1.0
    %v8787 = vadd.f32 %v8428, 1.0
    %v8788 = vadd.f32 %v8430, 1.0
    %v8789 = vadd.f32 %v8432, 1.0
    %v8790 = vadd.f32 %v8434, 1.0
    %v8791 = vadd.f32 %v8436, 1.0
    %v8792 = vadd.f32 %v8438, 1.0
    %v8793 = vadd.f32 %v8440, 1.0
    %v8794 = vadd.f32 %v8442, 1.0
    %v8795 = vadd.f32 %v8444, 1.0
    %v8796 = vadd.f32 %v8446, 1.0
    %v8797 = vadd.f32 %v8448, 1.0
    %v8798 = vadd.f32 %v8450, 1.0
    %v8799 = vadd.f32 %v8452, 1.0
    %v8800 = vadd.f32 %v8454, 1.0
    %v8801 = vadd.f32 %v8456, 1.0
    %v8802 = vadd.f32 %v8458, 1.0
    %v8803 = vadd.f32 %v8460, 1.0
    %v8804 = vadd.f32 %v8462, 1.0
    %v8805 = vadd.f32 %v8464, 1.0
    %v8806 = vadd.f32 %v8466, 1.0
    %v8807 = vadd.f32 %v8468, 1.0
    %v8808 = vadd.f32 %v8470, 1.0
    %v8809 = vadd.f32 %v8472, 1.0
    %v8810 = vadd.f32 %v8474, 1.0
    %v8811 = vadd.f32 %v8476, 1.0
    %v8812 = vadd.f32 %v8478, 1.0
    %v8813 = vadd.f32 %v8480, 1.0
    %v8814 = vadd.f32 %v8482, 1.0
    %v8815 = vadd.f32 %v8484, 1.0
    %v8816 = vadd.f32 %v8486, 1.0
    %v8817 = vadd.f32 %v8488, 1.0
    %v8818 = vadd.f32 %v8490, 1.0
    %v8819 = vadd.f32 %v8492, 1.0
    %v8820 = vadd.f32 %v8494, 1.0
    %v8821 = vadd.f32 %v8496, 1.0
    %v8822 = vadd.f32 %v8498, 1.0
    %v8823 = vadd.f32 %v8500, 1.0
    %v8824 = vadd.f32 %v8502, 1.0
    %v8825 = vadd.f32 %v8504, 1.0
    %v8826 = vadd.f32 %v8506, 1.0
    %v8827 = vadd.f32 %v8508, 1.0
    %v8828 = vadd.f32 %v8510, 1.0
    %v8829 = vadd.f32 %v8512, 1.0
    %v8830 = vadd.f32 %v8514, 1.0
    %v8831 = vadd.f32 %v8516, 1.0
    %v8832 = vadd.f32 %v8518, 1.0
    %v8833 = vadd.f32 %v8520, 1.0
    %v8834 = vadd.f32 %v8522, 1.0
    %v8835 = vadd.f32 %v8524, 1.0
    %v8836 = vadd.f32 %v8526, 1.0
    %v8837 = vadd.f32 %v8528, 1.0
    %v8838 = vadd.f32 %v8530, 1.0
    %v8839 = vadd.f32 %v8532, 1.0
    %v8840 = vadd.f32 %v8534, 1.0
    %v8841 = vadd.f32 %v8536, 1.0
    %v8842 = vadd.f32 %v8538, 1.0
    %v8843 = vrcp.pop %v8539
    %v8844 = vmul.f32 1.0, %v8843
    %v8845 = vrcp.pop %v8540
    %v8846 = vmul.f32 1.0, %v8845
    %v8847 = vrcp.pop %v8541
    %v8848 = vmul.f32 1.0, %v8847
    %v8849 = vrcp.pop %v8542
    %v8850 = vmul.f32 1.0, %v8849
    %v8851 = vrcp.pop %v8543
    %v8852 = vmul.f32 1.0, %v8851
    %v8853 = vrcp.pop %v8544
    %v8854 = vmul.f32 1.0, %v8853
    %v8855 = vrcp.pop %v8545
    %v8856 = vmul.f32 1.0, %v8855
    %v8857 = vrcp.pop %v8546
    %v8858 = vmul.f32 1.0, %v8857
    %v8859 = vrcp.pop %v8547
    %v8860 = vmul.f32 1.0, %v8859
    %v8861 = vrcp.pop %v8548
    %v8862 = vmul.f32 1.0, %v8861
    %v8863 = vrcp.pop %v8549
    %v8864 = vmul.f32 1.0, %v8863
    %v8865 = vrcp.pop %v8550
    %v8866 = vmul.f32 1.0, %v8865
    %v8867 = vrcp.pop %v8551
    %v8868 = vmul.f32 1.0, %v8867
    %v8869 = vrcp.pop %v8552
    %v8870 = vmul.f32 1.0, %v8869
    %v8871 = vrcp.pop %v8553
    %v8872 = vmul.f32 1.0, %v8871
    %v8873 = vrcp.pop %v8554
    %v8874 = vmul.f32 1.0, %v8873
    %v8875 = vrcp.pop %v8555
    %v8876 = vmul.f32 1.0, %v8875
    %v8877 = vrcp.pop %v8556
    %v8878 = vmul.f32 1.0, %v8877
    %v8879 = vrcp.pop %v8557
    %v8880 = vmul.f32 1.0, %v8879
    %v8881 = vrcp.pop %v8558
    %v8882 = vmul.f32 1.0, %v8881
    %v8883 = vrcp.pop %v8559
    %v8884 = vmul.f32 1.0, %v8883
    %v8885 = vrcp.pop %v8560
    %v8886 = vmul.f32 1.0, %v8885
    %v8887 = vrcp.pop %v8561
    %v8888 = vmul.f32 1.0, %v8887
    %v8889 = vrcp.pop %v8562
    %v8890 = vmul.f32 1.0, %v8889
    %v8891 = vrcp.pop %v8563
    %v8892 = vmul.f32 1.0, %v8891
    %v8893 = vrcp.pop %v8564
    %v8894 = vmul.f32 1.0, %v8893
    %v8895 = vrcp.pop %v8565
    %v8896 = vmul.f32 1.0, %v8895
    %v8897 = vrcp.pop %v8566
    %v8898 = vmul.f32 1.0, %v8897
    %v8899 = vrcp.pop %v8567
    %v8900 = vmul.f32 1.0, %v8899
    %v8901 = vrcp.pop %v8568
    %v8902 = vmul.f32 1.0, %v8901
    %v8903 = vrcp.pop %v8569
    %v8904 = vmul.f32 1.0, %v8903
    %v8905 = vrcp.pop %v8570
    %v8906 = vmul.f32 1.0, %v8905
    %v8907 = vrcp.pop %v8571
    %v8908 = vmul.f32 1.0, %v8907
    %v8909 = vrcp.pop %v8572
    %v8910 = vmul.f32 1.0, %v8909
    %v8911 = vrcp.pop %v8573
    %v8912 = vmul.f32 1.0, %v8911
    %v8913 = vrcp.pop %v8574
    %v8914 = vmul.f32 1.0, %v8913
    %v8915 = vrcp.pop %v8575
    %v8916 = vmul.f32 1.0, %v8915
    %v8917 = vrcp.pop %v8576
    %v8918 = vmul.f32 1.0, %v8917
    %v8919 = vrcp.pop %v8577
    %v8920 = vmul.f32 1.0, %v8919
    %v8921 = vrcp.pop %v8578
    %v8922 = vmul.f32 1.0, %v8921
    %v8923 = vrcp.pop %v8579
    %v8924 = vmul.f32 1.0, %v8923
    %v8925 = vrcp.pop %v8580
    %v8926 = vmul.f32 1.0, %v8925
    %v8927 = vrcp.pop %v8581
    %v8928 = vmul.f32 1.0, %v8927
    %v8929 = vrcp.pop %v8582
    %v8930 = vmul.f32 1.0, %v8929
    %v8931 = vrcp.pop %v8583
    %v8932 = vmul.f32 1.0, %v8931
    %v8933 = vrcp.pop %v8584
    %v8934 = vmul.f32 1.0, %v8933
    %v8935 = vrcp.pop %v8585
    %v8936 = vmul.f32 1.0, %v8935
    %v8937 = vrcp.pop %v8586
    %v8938 = vmul.f32 1.0, %v8937
    %v8939 = vrcp.pop %v8587
    %v8940 = vmul.f32 1.0, %v8939
    %v8941 = vrcp.pop %v8588
    %v8942 = vmul.f32 1.0, %v8941
    %v8943 = vrcp.pop %v8589
    %v8944 = vmul.f32 1.0, %v8943
    %v8945 = vrcp.pop %v8590
    %v8946 = vmul.f32 1.0, %v8945
    %v8947 = vrcp.pop %v8591
    %v8948 = vmul.f32 1.0, %v8947
    %v8949 = vrcp.pop %v8592
    %v8950 = vmul.f32 1.0, %v8949
    %v8951 = vrcp.pop %v8593
    %v8952 = vmul.f32 1.0, %v8951
    %v8953 = vrcp.pop %v8594
    %v8954 = vmul.f32 1.0, %v8953
    %v8955 = vrcp.pop %v8595
    %v8956 = vmul.f32 1.0, %v8955
    %v8957 = vrcp.pop %v8596
    %v8958 = vmul.f32 1.0, %v8957
    %v8959 = vrcp.pop %v8597
    %v8960 = vmul.f32 1.0, %v8959
    %v8961 = vrcp.pop %v8598
    %v8962 = vmul.f32 1.0, %v8961
    %v8963 = vrcp.pop %v8599
    %v8964 = vmul.f32 1.0, %v8963
    %v8965 = vrcp.pop %v8600
    %v8966 = vmul.f32 1.0, %v8965
    %v8967 = vrcp.pop %v8601
    %v8968 = vmul.f32 1.0, %v8967
    %v8969 = vrcp.pop %v8602
    %v8970 = vmul.f32 1.0, %v8969
    %v8971 = vrcp.pop %v8603
    %v8972 = vmul.f32 1.0, %v8971
    %v8973 = vrcp.pop %v8604
    %v8974 = vmul.f32 1.0, %v8973
    %v8975 = vrcp.pop %v8605
    %v8976 = vmul.f32 1.0, %v8975
    %v8977 = vrcp.pop %v8606
    %v8978 = vmul.f32 1.0, %v8977
    %v8979 = vrcp.pop %v8607
    %v8980 = vmul.f32 1.0, %v8979
    %v8981 = vrcp.pop %v8608
    %v8982 = vmul.f32 1.0, %v8981
    %v8983 = vrcp.pop %v8609
    %v8984 = vmul.f32 1.0, %v8983
    %v8985 = vrcp.pop %v8610
    %v8986 = vmul.f32 1.0, %v8985
    %v8987 = vrcp.pop %v8611
    %v8988 = vmul.f32 1.0, %v8987
    %v8989 = vrcp.pop %v8612
    %v8990 = vmul.f32 1.0, %v8989
    %v8991 = vrcp.pop %v8613
    %v8992 = vmul.f32 1.0, %v8991
    %v8993 = vrcp.pop %v8614
    %v8994 = vmul.f32 1.0, %v8993
    %v8995 = vrcp.pop %v8615
    %v8996 = vmul.f32 1.0, %v8995
    %v8997 = vrcp.pop %v8616
    %v8998 = vmul.f32 1.0, %v8997
    %v8999 = vrcp.pop %v8617
    %v9000 = vmul.f32 1.0, %v8999
    %v9001 = vrcp.pop %v8618
    %v9002 = vmul.f32 1.0, %v9001
    %v9003 = vrcp.pop %v8619
    %v9004 = vmul.f32 1.0, %v9003
    %v9005 = vrcp.pop %v8620
    %v9006 = vmul.f32 1.0, %v9005
    %v9007 = vrcp.pop %v8621
    %v9008 = vmul.f32 1.0, %v9007
    %v9009 = vrcp.pop %v8622
    %v9010 = vmul.f32 1.0, %v9009
    %v9011 = vrcp.pop %v8623
    %v9012 = vmul.f32 1.0, %v9011
    %v9013 = vrcp.pop %v8624
    %v9014 = vmul.f32 1.0, %v9013
    %v9015 = vrcp.pop %v8625
    %v9016 = vmul.f32 1.0, %v9015
    %v9017 = vrcp.pop %v8626
    %v9018 = vmul.f32 1.0, %v9017
    %v9019 = vrcp.pop %v8627
    %v9020 = vmul.f32 1.0, %v9019
    %v9021 = vrcp.pop %v8628
    %v9022 = vmul.f32 1.0, %v9021
    %v9023 = vrcp.pop %v8629
    %v9024 = vmul.f32 1.0, %v9023
    %v9025 = vrcp.pop %v8630
    %v9026 = vmul.f32 1.0, %v9025
    %v9027 = vrcp.pop %v8631
    %v9028 = vmul.f32 1.0, %v9027
    %v9029 = vrcp.pop %v8632
    %v9030 = vmul.f32 1.0, %v9029
    %v9031 = vrcp.pop %v8633
    %v9032 = vmul.f32 1.0, %v9031
    %v9033 = vrcp.pop %v8634
    %v9034 = vmul.f32 1.0, %v9033
    %v9035 = vrcp.pop %v8635
    %v9036 = vmul.f32 1.0, %v9035
    %v9037 = vrcp.pop %v8636
    %v9038 = vmul.f32 1.0, %v9037
    %v9039 = vrcp.pop %v8637
    %v9040 = vmul.f32 1.0, %v9039
    %v9041 = vrcp.pop %v8638
    %v9042 = vmul.f32 1.0, %v9041
    %v9043 = vrcp.pop %v8639
    %v9044 = vmul.f32 1.0, %v9043
    %v9045 = vrcp.pop %v8640
    %v9046 = vmul.f32 1.0, %v9045
    %v9047 = vrcp.pop %v8641
    %v9048 = vmul.f32 1.0, %v9047
    %v9049 = vrcp.pop %v8642
    %v9050 = vmul.f32 1.0, %v9049
    %v9051 = vrcp.pop %v8643
    %v9052 = vmul.f32 1.0, %v9051
    %v9053 = vrcp.pop %v8644
    %v9054 = vmul.f32 1.0, %v9053
    %v9055 = vrcp.pop %v8645
    %v9056 = vmul.f32 1.0, %v9055
    %v9057 = vrcp.pop %v8646
    %v9058 = vmul.f32 1.0, %v9057
    %v9059 = vrcp.pop %v8647
    %v9060 = vmul.f32 1.0, %v9059
    %v9061 = vrcp.pop %v8648
    %v9062 = vmul.f32 1.0, %v9061
    %v9063 = vrcp.pop %v8649
    %v9064 = vmul.f32 1.0, %v9063
    %v9065 = vrcp.pop %v8650
    %v9066 = vmul.f32 1.0, %v9065
    %v9067 = vrcp.pop %v8651
    %v9068 = vmul.f32 1.0, %v9067
    %v9069 = vrcp.pop %v8652
    %v9070 = vmul.f32 1.0, %v9069
    %v9071 = vrcp.pop %v8653
    %v9072 = vmul.f32 1.0, %v9071
    %v9073 = vrcp.pop %v8654
    %v9074 = vmul.f32 1.0, %v9073
    %v9075 = vrcp.pop %v8655
    %v9076 = vmul.f32 1.0, %v9075
    %v9077 = vrcp.pop %v8656
    %v9078 = vmul.f32 1.0, %v9077
    %v9079 = vrcp.pop %v8657
    %v9080 = vmul.f32 1.0, %v9079
    %v9081 = vrcp.pop %v8658
    %v9082 = vmul.f32 1.0, %v9081
    %v9083 = vrcp.pop %v8659
    %v9084 = vmul.f32 1.0, %v9083
    %v9085 = vrcp.pop %v8660
    %v9086 = vmul.f32 1.0, %v9085
    %v9087 = vrcp.pop %v8661
    %v9088 = vmul.f32 1.0, %v9087
    %v9089 = vrcp.pop %v8662
    %v9090 = vmul.f32 1.0, %v9089
    %v9091 = vrcp.pop %v8663
    %v9092 = vmul.f32 1.0, %v9091
    %v9093 = vrcp.pop %v8664
    %v9094 = vmul.f32 1.0, %v9093
    %v9095 = vrcp.pop %v8665
    %v9096 = vmul.f32 1.0, %v9095
    %v9097 = vrcp.pop %v8666
    %v9098 = vmul.f32 1.0, %v9097
    %v9099 = vrcp.pop %v8667
    %v9100 = vmul.f32 1.0, %v9099
    %v9101 = vrcp.pop %v8668
    %v9102 = vmul.f32 1.0, %v9101
    %v9103 = vrcp.pop %v8669
    %v9104 = vmul.f32 1.0, %v9103
    %v9105 = vrcp.pop %v8670
    %v9106 = vmul.f32 1.0, %v9105
    %v9107 = vrcp.pop %v8671
    %v9108 = vmul.f32 1.0, %v9107
    %v9109 = vrcp.pop %v8672
    %v9110 = vmul.f32 1.0, %v9109
    %v9111 = vrcp.pop %v8673
    %v9112 = vmul.f32 1.0, %v9111
    %v9113 = vrcp.pop %v8674
    %v9114 = vmul.f32 1.0, %v9113
    %v9115 = vrcp.pop %v8675
    %v9116 = vmul.f32 1.0, %v9115
    %v9117 = vrcp.pop %v8676
    %v9118 = vmul.f32 1.0, %v9117
    %v9119 = vrcp.pop %v8677
    %v9120 = vmul.f32 1.0, %v9119
    %v9121 = vrcp.pop %v8678
    %v9122 = vmul.f32 1.0, %v9121
    %v9123 = vrcp.pop %v8679
    %v9124 = vmul.f32 1.0, %v9123
    %v9125 = vrcp.pop %v8680
    %v9126 = vmul.f32 1.0, %v9125
    %v9127 = vrcp.pop %v8681
    %v9128 = vmul.f32 1.0, %v9127
    %v9129 = vrcp.pop %v8682
    %v9130 = vmul.f32 1.0, %v9129
    %v9131 = vrcp.pop %v8683
    %v9132 = vmul.f32 1.0, %v9131
    %v9133 = vrcp.pop %v8684
    %v9134 = vmul.f32 1.0, %v9133
    %v9135 = vrcp.pop %v8685
    %v9136 = vmul.f32 1.0, %v9135
    %v9137 = vrcp.pop %v8686
    %v9138 = vmul.f32 1.0, %v9137
    %v9139 = vrcp.pop %v8687
    %v9140 = vmul.f32 1.0, %v9139
    %v9141 = vrcp.pop %v8688
    %v9142 = vmul.f32 1.0, %v9141
    %v9143 = vrcp.pop %v8689
    %v9144 = vmul.f32 1.0, %v9143
    %v9145 = vrcp.pop %v8690
    %v9146 = vmul.f32 1.0, %v9145
    %v9147 = vrcp.pop %v8691
    %v9148 = vmul.f32 1.0, %v9147
    %v9149 = vrcp.pop %v8692
    %v9150 = vmul.f32 1.0, %v9149
    %v9151 = vrcp.pop %v8693
    %v9152 = vmul.f32 1.0, %v9151
    %v9153 = vrcp.pop %v8694
    %v9154 = vmul.f32 1.0, %v9153
    %v9155 = vrcp.pop %v8695
    %v9156 = vmul.f32 1.0, %v9155
    %v9157 = vrcp.pop %v8696
    %v9158 = vmul.f32 1.0, %v9157
    %v9159 = vrcp.pop %v8697
    %v9160 = vmul.f32 1.0, %v9159
    %v9161 = vrcp.pop %v8698
    %v9162 = vmul.f32 1.0, %v9161
    %v9163 = vrcp.pop %v8699
    %v9164 = vmul.f32 1.0, %v9163
    %v9165 = vrcp.pop %v8700
    %v9166 = vmul.f32 1.0, %v9165
    %v9167 = vrcp.pop %v8701
    %v9168 = vmul.f32 1.0, %v9167
    %v9169 = vrcp.pop %v8702
    %v9170 = vmul.f32 1.0, %v9169
    %v9171 = vrcp.pop %v8703
    %v9172 = vmul.f32 1.0, %v9171
    %v9173 = vrcp.pop %v8704
    %v9174 = vmul.f32 1.0, %v9173
    %v9175 = vrcp.pop %v8705
    %v9176 = vmul.f32 1.0, %v9175
    %v9177 = vrcp.pop %v8706
    %v9178 = vmul.f32 1.0, %v9177
    %v9179 = vrcp.pop %v8707
    %v9180 = vmul.f32 1.0, %v9179
    %v9181 = vrcp.pop %v8708
    %v9182 = vmul.f32 1.0, %v9181
    %v9183 = vrcp.pop %v8709
    %v9184 = vmul.f32 1.0, %v9183
    %v9185 = vrcp.pop %v8710
    %v9186 = vmul.f32 1.0, %v9185
    %v9187 = vrcp.pop %v8711
    %v9188 = vmul.f32 1.0, %v9187
    %v9189 = vrcp.pop %v8712
    %v9190 = vmul.f32 1.0, %v9189
    %v9191 = vrcp.pop %v8713
    %v9192 = vmul.f32 1.0, %v9191
    %v9193 = vrcp.pop %v8714
    %v9194 = vmul.f32 1.0, %v9193
    %v9195 = vrcp.pop %v8715
    %v9196 = vmul.f32 1.0, %v9195
    %v9197 = vrcp.pop %v8716
    %v9198 = vmul.f32 1.0, %v9197
    %v9199 = vrcp.pop %v8717
    %v9200 = vmul.f32 1.0, %v9199
    %v9201 = vrcp.pop %v8718
    %v9202 = vmul.f32 1.0, %v9201
    %v9203 = vrcp.pop %v8719
    %v9204 = vmul.f32 1.0, %v9203
    %v9205 = vrcp.pop %v8720
    %v9206 = vmul.f32 1.0, %v9205
    %v9207 = vrcp.pop %v8721
    %v9208 = vmul.f32 1.0, %v9207
    %v9209 = vrcp.pop %v8722
    %v9210 = vmul.f32 1.0, %v9209
    %v9211 = vrcp.pop %v8723
    %v9212 = vmul.f32 1.0, %v9211
    %v9213 = vrcp.pop %v8724
    %v9214 = vmul.f32 1.0, %v9213
    %v9215 = vrcp.pop %v8725
    %v9216 = vmul.f32 1.0, %v9215
    %v9217 = vrcp.pop %v8726
    %v9218 = vmul.f32 1.0, %v9217
    %v9219 = vrcp.pop %v8727
    %v9220 = vmul.f32 1.0, %v9219
    %v9221 = vrcp.pop %v8728
    %v9222 = vmul.f32 1.0, %v9221
    %v9223 = vrcp.pop %v8729
    %v9224 = vmul.f32 1.0, %v9223
    %v9225 = vrcp.pop %v8730
    %v9226 = vmul.f32 1.0, %v9225
    %v9227 = vrcp.pop %v8731
    %v9228 = vmul.f32 1.0, %v9227
    %v9229 = vrcp.pop %v8732
    %v9230 = vmul.f32 1.0, %v9229
    %v9231 = vrcp.pop %v8733
    %v9232 = vmul.f32 1.0, %v9231
    %v9233 = vrcp.pop %v8734
    %v9234 = vmul.f32 1.0, %v9233
    %v9235 = vrcp.pop %v8735
    %v9236 = vmul.f32 1.0, %v9235
    %v9237 = vrcp.pop %v8736
    %v9238 = vmul.f32 1.0, %v9237
    %v9239 = vrcp.pop %v8737
    %v9240 = vmul.f32 1.0, %v9239
    %v9241 = vrcp.pop %v8738
    %v9242 = vmul.f32 1.0, %v9241
    %v9243 = vrcp.pop %v8739
    %v9244 = vmul.f32 1.0, %v9243
    %v9245 = vrcp.pop %v8740
    %v9246 = vmul.f32 1.0, %v9245
    %v9247 = vrcp.pop %v8741
    %v9248 = vmul.f32 1.0, %v9247
    %v9249 = vrcp.pop %v8742
    %v9250 = vmul.f32 1.0, %v9249
    %v9251 = vrcp.pop %v8743
    %v9252 = vmul.f32 1.0, %v9251
    %v9253 = vrcp.pop %v8744
    %v9254 = vmul.f32 1.0, %v9253
    %v9255 = vrcp.pop %v8745
    %v9256 = vmul.f32 1.0, %v9255
    %v9257 = vrcp.pop %v8746
    %v9258 = vmul.f32 1.0, %v9257
    %v9259 = vrcp.pop %v8747
    %v9260 = vmul.f32 1.0, %v9259
    %v9261 = vrcp.pop %v8748
    %v9262 = vmul.f32 1.0, %v9261
    %v9263 = vrcp.pop %v8749
    %v9264 = vmul.f32 1.0, %v9263
    %v9265 = vrcp.pop %v8750
    %v9266 = vmul.f32 1.0, %v9265
    %v9267 = vrcp.pop %v8751
    %v9268 = vmul.f32 1.0, %v9267
    %v9269 = vrcp.pop %v8752
    %v9270 = vmul.f32 1.0, %v9269
    %v9271 = vrcp.pop %v8753
    %v9272 = vmul.f32 1.0, %v9271
    %v9273 = vrcp.pop %v8754
    %v9274 = vmul.f32 1.0, %v9273
    %v9275 = vrcp.pop %v8755
    %v9276 = vmul.f32 1.0, %v9275
    %v9277 = vrcp.pop %v8756
    %v9278 = vmul.f32 1.0, %v9277
    %v9279 = vrcp.pop %v8757
    %v9280 = vmul.f32 1.0, %v9279
    %v9281 = vrcp.pop %v8758
    %v9282 = vmul.f32 1.0, %v9281
    %v9283 = vrcp.pop %v8759
    %v9284 = vmul.f32 1.0, %v9283
    %v9285 = vrcp.pop %v8760
    %v9286 = vmul.f32 1.0, %v9285
    %v9287 = vrcp.pop %v8761
    %v9288 = vmul.f32 1.0, %v9287
    %v9289 = vrcp.pop %v8762
    %v9290 = vmul.f32 1.0, %v9289
    %v9291 = vrcp.pop %v8763
    %v9292 = vmul.f32 1.0, %v9291
    %v9293 = vrcp.pop %v8764
    %v9294 = vmul.f32 1.0, %v9293
    %v9295 = vrcp.pop %v8765
    %v9296 = vmul.f32 1.0, %v9295
    %v9297 = vrcp.pop %v8766
    %v9298 = vmul.f32 1.0, %v9297
    %v9299 = vrcp.pop %v8767
    %v9300 = vmul.f32 1.0, %v9299
    %v9301 = vrcp.pop %v8768
    %v9302 = vmul.f32 1.0, %v9301
    %v9303 = vrcp.pop %v8769
    %v9304 = vmul.f32 1.0, %v9303
    %v9305 = vrcp.pop %v8770
    %v9306 = vmul.f32 1.0, %v9305
    %v9307 = vrcp.pop %v8771
    %v9308 = vmul.f32 1.0, %v9307
    %v9309 = vrcp.pop %v8772
    %v9310 = vmul.f32 1.0, %v9309
    %v9311 = vrcp.pop %v8773
    %v9312 = vmul.f32 1.0, %v9311
    %v9313 = vrcp.pop %v8774
    %v9314 = vmul.f32 1.0, %v9313
    %v9315 = vrcp.pop %v8775
    %v9316 = vmul.f32 1.0, %v9315
    %v9317 = vrcp.pop %v8776
    %v9318 = vmul.f32 1.0, %v9317
    %v9319 = vrcp.pop %v8777
    %v9320 = vmul.f32 1.0, %v9319
    %v9321 = vrcp.pop %v8778
    %v9322 = vmul.f32 1.0, %v9321
    %v9323 = vrcp.pop %v8779
    %v9324 = vmul.f32 1.0, %v9323
    %v9325 = vrcp.pop %v8780
    %v9326 = vmul.f32 1.0, %v9325
    %v9327 = vrcp.pop %v8781
    %v9328 = vmul.f32 1.0, %v9327
    %v9329 = vrcp.pop %v8782
    %v9330 = vmul.f32 1.0, %v9329
    %v9331 = vrcp.pop %v8783
    %v9332 = vmul.f32 1.0, %v9331
    %v9333 = vrcp.pop %v8784
    %v9334 = vmul.f32 1.0, %v9333
    %v9335 = vrcp.pop %v8785
    %v9336 = vmul.f32 1.0, %v9335
    %v9337 = vrcp.pop %v8786
    %v9338 = vmul.f32 1.0, %v9337
    %v9339 = vrcp.pop %v8787
    %v9340 = vmul.f32 1.0, %v9339
    %v9341 = vrcp.pop %v8788
    %v9342 = vmul.f32 1.0, %v9341
    %v9343 = vrcp.pop %v8789
    %v9344 = vmul.f32 1.0, %v9343
    %v9345 = vrcp.pop %v8790
    %v9346 = vmul.f32 1.0, %v9345
    %v9347 = vrcp.pop %v8791
    %v9348 = vmul.f32 1.0, %v9347
    %v9349 = vrcp.pop %v8792
    %v9350 = vmul.f32 1.0, %v9349
    %v9351 = vrcp.pop %v8793
    %v9352 = vmul.f32 1.0, %v9351
    %v9353 = vrcp.pop %v8794
    %v9354 = vmul.f32 1.0, %v9353
    %v9355 = vrcp.pop %v8795
    %v9356 = vmul.f32 1.0, %v9355
    %v9357 = vrcp.pop %v8796
    %v9358 = vmul.f32 1.0, %v9357
    %v9359 = vrcp.pop %v8797
    %v9360 = vmul.f32 1.0, %v9359
    %v9361 = vrcp.pop %v8798
    %v9362 = vmul.f32 1.0, %v9361
    %v9363 = vrcp.pop %v8799
    %v9364 = vmul.f32 1.0, %v9363
    %v9365 = vrcp.pop %v8800
    %v9366 = vmul.f32 1.0, %v9365
    %v9367 = vrcp.pop %v8801
    %v9368 = vmul.f32 1.0, %v9367
    %v9369 = vrcp.pop %v8802
    %v9370 = vmul.f32 1.0, %v9369
    %v9371 = vrcp.pop %v8803
    %v9372 = vmul.f32 1.0, %v9371
    %v9373 = vrcp.pop %v8804
    %v9374 = vmul.f32 1.0, %v9373
    %v9375 = vrcp.pop %v8805
    %v9376 = vmul.f32 1.0, %v9375
    %v9377 = vrcp.pop %v8806
    %v9378 = vmul.f32 1.0, %v9377
    %v9379 = vrcp.pop %v8807
    %v9380 = vmul.f32 1.0, %v9379
    %v9381 = vrcp.pop %v8808
    %v9382 = vmul.f32 1.0, %v9381
    %v9383 = vrcp.pop %v8809
    %v9384 = vmul.f32 1.0, %v9383
    %v9385 = vrcp.pop %v8810
    %v9386 = vmul.f32 1.0, %v9385
    %v9387 = vrcp.pop %v8811
    %v9388 = vmul.f32 1.0, %v9387
    %v9389 = vrcp.pop %v8812
    %v9390 = vmul.f32 1.0, %v9389
    %v9391 = vrcp.pop %v8813
    %v9392 = vmul.f32 1.0, %v9391
    %v9393 = vrcp.pop %v8814
    %v9394 = vmul.f32 1.0, %v9393
    %v9395 = vrcp.pop %v8815
    %v9396 = vmul.f32 1.0, %v9395
    %v9397 = vrcp.pop %v8816
    %v9398 = vmul.f32 1.0, %v9397
    %v9399 = vrcp.pop %v8817
    %v9400 = vmul.f32 1.0, %v9399
    %v9401 = vrcp.pop %v8818
    %v9402 = vmul.f32 1.0, %v9401
    %v9403 = vrcp.pop %v8819
    %v9404 = vmul.f32 1.0, %v9403
    %v9405 = vrcp.pop %v8820
    %v9406 = vmul.f32 1.0, %v9405
    %v9407 = vrcp.pop %v8821
    %v9408 = vmul.f32 1.0, %v9407
    %v9409 = vrcp.pop %v8822
    %v9410 = vmul.f32 1.0, %v9409
    %v9411 = vrcp.pop %v8823
    %v9412 = vmul.f32 1.0, %v9411
    %v9413 = vrcp.pop %v8824
    %v9414 = vmul.f32 1.0, %v9413
    %v9415 = vrcp.pop %v8825
    %v9416 = vmul.f32 1.0, %v9415
    %v9417 = vrcp.pop %v8826
    %v9418 = vmul.f32 1.0, %v9417
    %v9419 = vrcp.pop %v8827
    %v9420 = vmul.f32 1.0, %v9419
    %v9421 = vrcp.pop %v8828
    %v9422 = vmul.f32 1.0, %v9421
    %v9423 = vrcp.pop %v8829
    %v9424 = vmul.f32 1.0, %v9423
    %v9425 = vrcp.pop %v8830
    %v9426 = vmul.f32 1.0, %v9425
    %v9427 = vrcp.pop %v8831
    %v9428 = vmul.f32 1.0, %v9427
    %v9429 = vrcp.pop %v8832
    %v9430 = vmul.f32 1.0, %v9429
    %v9431 = vrcp.pop %v8833
    %v9432 = vmul.f32 1.0, %v9431
    %v9433 = vrcp.pop %v8834
    %v9434 = vmul.f32 1.0, %v9433
    %v9435 = vrcp.pop %v8835
    %v9436 = vmul.f32 1.0, %v9435
    %v9437 = vrcp.pop %v8836
    %v9438 = vmul.f32 1.0, %v9437
    %v9439 = vrcp.pop %v8837
    %v9440 = vmul.f32 1.0, %v9439
    %v9441 = vrcp.pop %v8838
    %v9442 = vmul.f32 1.0, %v9441
    %v9443 = vrcp.pop %v8839
    %v9444 = vmul.f32 1.0, %v9443
    %v9445 = vrcp.pop %v8840
    %v9446 = vmul.f32 1.0, %v9445
    %v9447 = vrcp.pop %v8841
    %v9448 = vmul.f32 1.0, %v9447
    %v9449 = vrcp.pop %v8842
    %v9450 = vmul.f32 1.0, %v9449
    %9451 = vst [vmem:[%s14] sm:$0xff] %v8844
    %9452 = vst [vmem:[%s14 + $0x8] sm:$0xff] %v8846
    %9453 = vst [vmem:[%s14 + $0x10] sm:$0xff] %v8848
    %9454 = vst [vmem:[%s14 + $0x18] sm:$0xff] %v8850
    %9455 = vst [vmem:[%s14 + $0x20] sm:$0xff] %v8852
    %9456 = vst [vmem:[%s14 + $0x28] sm:$0xff] %v8854
    %9457 = vst [vmem:[%s14 + $0x30] sm:$0xff] %v8856
    %9458 = vst [vmem:[%s14 + $0x38] sm:$0xff] %v8858
    %9459 = vst [vmem:[%s14 + $0x40] sm:$0xff] %v8860
    %9460 = vst [vmem:[%s14 + $0x48] sm:$0xff] %v8862
    %9461 = vst [vmem:[%s14 + $0x50] sm:$0xff] %v8864
    %9462 = vst [vmem:[%s14 + $0x58] sm:$0xff] %v8866
    %9463 = vst [vmem:[%s14 + $0x60] sm:$0xff] %v8868
    %9464 = vst [vmem:[%s14 + $0x68] sm:$0xff] %v8870
    %9465 = vst [vmem:[%s14 + $0x70] sm:$0xff] %v8872
    %9466 = vst [vmem:[%s14 + $0x78] sm:$0xff] %v8874
    %9467 = vst [vmem:[%s14 + $0x80] sm:$0xff] %v8876
    %9468 = vst [vmem:[%s14 + $0x88] sm:$0xff] %v8878
    %9469 = vst [vmem:[%s14 + $0x90] sm:$0xff] %v8880
    %9470 = vst [vmem:[%s14 + $0x98] sm:$0xff] %v8882
    %9471 = vst [vmem:[%s14 + $0xa0] sm:$0xff] %v8884
    %9472 = vst [vmem:[%s14 + $0xa8] sm:$0xff] %v8886
    %9473 = vst [vmem:[%s14 + $0xb0] sm:$0xff] %v8888
    %9474 = vst [vmem:[%s14 + $0xb8] sm:$0xff] %v8890
    %9475 = vst [vmem:[%s14 + $0xc0] sm:$0xff] %v8892
    %9476 = vst [vmem:[%s14 + $0xc8] sm:$0xff] %v8894
    %9477 = vst [vmem:[%s14 + $0xd0] sm:$0xff] %v8896
    %9478 = vst [vmem:[%s14 + $0xd8] sm:$0xff] %v8898
    %9479 = vst [vmem:[%s14 + $0xe0] sm:$0xff] %v8900
    %9480 = vst [vmem:[%s14 + $0xe8] sm:$0xff] %v8902
    %9481 = vst [vmem:[%s14 + $0xf0] sm:$0xff] %v8904
    %9482 = vst [vmem:[%s14 + $0xf8] sm:$0xff] %v8906
    %9483 = vst [vmem:[%s14 + $0x100] sm:$0xff] %v8908
    %9484 = vst [vmem:[%s14 + $0x108] sm:$0xff] %v8910
    %9485 = vst [vmem:[%s14 + $0x110] sm:$0xff] %v8912
    %9486 = vst [vmem:[%s14 + $0x118] sm:$0xff] %v8914
    %9487 = vst [vmem:[%s14 + $0x120] sm:$0xff] %v8916
    %9488 = vst [vmem:[%s14 + $0x128] sm:$0xff] %v8918
    %9489 = vst [vmem:[%s14 + $0x130] sm:$0xff] %v8920
    %9490 = vst [vmem:[%s14 + $0x138] sm:$0xff] %v8922
    %9491 = vst [vmem:[%s14 + $0x140] sm:$0xff] %v8924
    %9492 = vst [vmem:[%s14 + $0x148] sm:$0xff] %v8926
    %9493 = vst [vmem:[%s14 + $0x150] sm:$0xff] %v8928
    %9494 = vst [vmem:[%s14 + $0x158] sm:$0xff] %v8930
    %9495 = vst [vmem:[%s14 + $0x160] sm:$0xff] %v8932
    %9496 = vst [vmem:[%s14 + $0x168] sm:$0xff] %v8934
    %9497 = vst [vmem:[%s14 + $0x170] sm:$0xff] %v8936
    %9498 = vst [vmem:[%s14 + $0x178] sm:$0xff] %v8938
    %9499 = vst [vmem:[%s14 + $0x180] sm:$0xff] %v8940
    %9500 = vst [vmem:[%s14 + $0x188] sm:$0xff] %v8942
    %9501 = vst [vmem:[%s14 + $0x190] sm:$0xff] %v8944
    %9502 = vst [vmem:[%s14 + $0x198] sm:$0xff] %v8946
    %9503 = vst [vmem:[%s14 + $0x1a0] sm:$0xff] %v8948
    %9504 = vst [vmem:[%s14 + $0x1a8] sm:$0xff] %v8950
    %9505 = vst [vmem:[%s14 + $0x1b0] sm:$0xff] %v8952
    %9506 = vst [vmem:[%s14 + $0x1b8] sm:$0xff] %v8954
    %9507 = vst [vmem:[%s14 + $0x1c0] sm:$0xff] %v8956
    %9508 = vst [vmem:[%s14 + $0x1c8] sm:$0xff] %v8958
    %9509 = vst [vmem:[%s14 + $0x1d0] sm:$0xff] %v8960
    %9510 = vst [vmem:[%s14 + $0x1d8] sm:$0xff] %v8962
    %9511 = vst [vmem:[%s14 + $0x1e0] sm:$0xff] %v8964
    %9512 = vst [vmem:[%s14 + $0x1e8] sm:$0xff] %v8966
    %9513 = vst [vmem:[%s14 + $0x1f0] sm:$0xff] %v8968
    %9514 = vst [vmem:[%s14 + $0x1f8] sm:$0xff] %v8970
    %9515 = vst [vmem:[%s14 + $0x200] sm:$0xff] %v8972
    %9516 = vst [vmem:[%s14 + $0x208] sm:$0xff] %v8974
    %9517 = vst [vmem:[%s14 + $0x210] sm:$0xff] %v8976
    %9518 = vst [vmem:[%s14 + $0x218] sm:$0xff] %v8978
    %9519 = vst [vmem:[%s14 + $0x220] sm:$0xff] %v8980
    %9520 = vst [vmem:[%s14 + $0x228] sm:$0xff] %v8982
    %9521 = vst [vmem:[%s14 + $0x230] sm:$0xff] %v8984
    %9522 = vst [vmem:[%s14 + $0x238] sm:$0xff] %v8986
    %9523 = vst [vmem:[%s14 + $0x240] sm:$0xff] %v8988
    %9524 = vst [vmem:[%s14 + $0x248] sm:$0xff] %v8990
    %9525 = vst [vmem:[%s14 + $0x250] sm:$0xff] %v8992
    %9526 = vst [vmem:[%s14 + $0x258] sm:$0xff] %v8994
    %9527 = vst [vmem:[%s14 + $0x260] sm:$0xff] %v8996
    %9528 = vst [vmem:[%s14 + $0x268] sm:$0xff] %v8998
    %9529 = vst [vmem:[%s14 + $0x270] sm:$0xff] %v9000
    %9530 = vst [vmem:[%s14 + $0x278] sm:$0xff] %v9002
    %9531 = vst [vmem:[%s14 + $0x280] sm:$0xff] %v9004
    %9532 = vst [vmem:[%s14 + $0x288] sm:$0xff] %v9006
    %9533 = vst [vmem:[%s14 + $0x290] sm:$0xff] %v9008
    %9534 = vst [vmem:[%s14 + $0x298] sm:$0xff] %v9010
    %9535 = vst [vmem:[%s14 + $0x2a0] sm:$0xff] %v9012
    %9536 = vst [vmem:[%s14 + $0x2a8] sm:$0xff] %v9014
    %9537 = vst [vmem:[%s14 + $0x2b0] sm:$0xff] %v9016
    %9538 = vst [vmem:[%s14 + $0x2b8] sm:$0xff] %v9018
    %9539 = vst [vmem:[%s14 + $0x2c0] sm:$0xff] %v9020
    %9540 = vst [vmem:[%s14 + $0x2c8] sm:$0xff] %v9022
    %9541 = vst [vmem:[%s14 + $0x2d0] sm:$0xff] %v9024
    %9542 = vst [vmem:[%s14 + $0x2d8] sm:$0xff] %v9026
    %9543 = vst [vmem:[%s14 + $0x2e0] sm:$0xff] %v9028
    %9544 = vst [vmem:[%s14 + $0x2e8] sm:$0xff] %v9030
    %9545 = vst [vmem:[%s14 + $0x2f0] sm:$0xff] %v9032
    %9546 = vst [vmem:[%s14 + $0x2f8] sm:$0xff] %v9034
    %9547 = vst [vmem:[%s14 + $0x300] sm:$0xff] %v9036
    %9548 = vst [vmem:[%s14 + $0x308] sm:$0xff] %v9038
    %9549 = vst [vmem:[%s14 + $0x310] sm:$0xff] %v9040
    %9550 = vst [vmem:[%s14 + $0x318] sm:$0xff] %v9042
    %9551 = vst [vmem:[%s14 + $0x320] sm:$0xff] %v9044
    %9552 = vst [vmem:[%s14 + $0x328] sm:$0xff] %v9046
    %9553 = vst [vmem:[%s14 + $0x330] sm:$0xff] %v9048
    %9554 = vst [vmem:[%s14 + $0x338] sm:$0xff] %v9050
    %9555 = vst [vmem:[%s14 + $0x340] sm:$0xff] %v9052
    %9556 = vst [vmem:[%s14 + $0x348] sm:$0xff] %v9054
    %9557 = vst [vmem:[%s14 + $0x350] sm:$0xff] %v9056
    %9558 = vst [vmem:[%s14 + $0x358] sm:$0xff] %v9058
    %9559 = vst [vmem:[%s14 + $0x360] sm:$0xff] %v9060
    %9560 = vst [vmem:[%s14 + $0x368] sm:$0xff] %v9062
    %9561 = vst [vmem:[%s14 + $0x370] sm:$0xff] %v9064
    %9562 = vst [vmem:[%s14 + $0x378] sm:$0xff] %v9066
    %9563 = vst [vmem:[%s14 + $0x380] sm:$0xff] %v9068
    %9564 = vst [vmem:[%s14 + $0x388] sm:$0xff] %v9070
    %9565 = vst [vmem:[%s14 + $0x390] sm:$0xff] %v9072
    %9566 = vst [vmem:[%s14 + $0x398] sm:$0xff] %v9074
    %9567 = vst [vmem:[%s14 + $0x3a0] sm:$0xff] %v9076
    %9568 = vst [vmem:[%s14 + $0x3a8] sm:$0xff] %v9078
    %9569 = vst [vmem:[%s14 + $0x3b0] sm:$0xff] %v9080
    %9570 = vst [vmem:[%s14 + $0x3b8] sm:$0xff] %v9082
    %9571 = vst [vmem:[%s14 + $0x3c0] sm:$0xff] %v9084
    %9572 = vst [vmem:[%s14 + $0x3c8] sm:$0xff] %v9086
    %9573 = vst [vmem:[%s14 + $0x3d0] sm:$0xff] %v9088
    %9574 = vst [vmem:[%s14 + $0x3d8] sm:$0xff] %v9090
    %9575 = vst [vmem:[%s14 + $0x3e0] sm:$0xff] %v9092
    %9576 = vst [vmem:[%s14 + $0x3e8] sm:$0xff] %v9094
    %9577 = vst [vmem:[%s14 + $0x3f0] sm:$0xff] %v9096
    %9578 = vst [vmem:[%s14 + $0x3f8] sm:$0xff] %v9098
    %9579 = vst [vmem:[%s14 + $0x400] sm:$0xff] %v9100
    %9580 = vst [vmem:[%s14 + $0x408] sm:$0xff] %v9102
    %9581 = vst [vmem:[%s14 + $0x410] sm:$0xff] %v9104
    %9582 = vst [vmem:[%s14 + $0x418] sm:$0xff] %v9106
    %9583 = vst [vmem:[%s14 + $0x420] sm:$0xff] %v9108
    %9584 = vst [vmem:[%s14 + $0x428] sm:$0xff] %v9110
    %9585 = vst [vmem:[%s14 + $0x430] sm:$0xff] %v9112
    %9586 = vst [vmem:[%s14 + $0x438] sm:$0xff] %v9114
    %9587 = vst [vmem:[%s14 + $0x440] sm:$0xff] %v9116
    %9588 = vst [vmem:[%s14 + $0x448] sm:$0xff] %v9118
    %9589 = vst [vmem:[%s14 + $0x450] sm:$0xff] %v9120
    %9590 = vst [vmem:[%s14 + $0x458] sm:$0xff] %v9122
    %9591 = vst [vmem:[%s14 + $0x460] sm:$0xff] %v9124
    %9592 = vst [vmem:[%s14 + $0x468] sm:$0xff] %v9126
    %9593 = vst [vmem:[%s14 + $0x470] sm:$0xff] %v9128
    %9594 = vst [vmem:[%s14 + $0x478] sm:$0xff] %v9130
    %9595 = vst [vmem:[%s14 + $0x480] sm:$0xff] %v9132
    %9596 = vst [vmem:[%s14 + $0x488] sm:$0xff] %v9134
    %9597 = vst [vmem:[%s14 + $0x490] sm:$0xff] %v9136
    %9598 = vst [vmem:[%s14 + $0x498] sm:$0xff] %v9138
    %9599 = vst [vmem:[%s14 + $0x4a0] sm:$0xff] %v9140
    %9600 = vst [vmem:[%s14 + $0x4a8] sm:$0xff] %v9142
    %9601 = vst [vmem:[%s14 + $0x4b0] sm:$0xff] %v9144
    %9602 = vst [vmem:[%s14 + $0x4b8] sm:$0xff] %v9146
    %9603 = vst [vmem:[%s14 + $0x4c0] sm:$0xff] %v9148
    %9604 = vst [vmem:[%s14 + $0x4c8] sm:$0xff] %v9150
    %9605 = vst [vmem:[%s14 + $0x4d0] sm:$0xff] %v9152
    %9606 = vst [vmem:[%s14 + $0x4d8] sm:$0xff] %v9154
    %9607 = vst [vmem:[%s14 + $0x4e0] sm:$0xff] %v9156
    %9608 = vst [vmem:[%s14 + $0x4e8] sm:$0xff] %v9158
    %9609 = vst [vmem:[%s14 + $0x4f0] sm:$0xff] %v9160
    %9610 = vst [vmem:[%s14 + $0x4f8] sm:$0xff] %v9162
    %9611 = vst [vmem:[%s14 + $0x500] sm:$0xff] %v9164
    %9612 = vst [vmem:[%s14 + $0x508] sm:$0xff] %v9166
    %9613 = vst [vmem:[%s14 + $0x510] sm:$0xff] %v9168
    %9614 = vst [vmem:[%s14 + $0x518] sm:$0xff] %v9170
    %9615 = vst [vmem:[%s14 + $0x520] sm:$0xff] %v9172
    %9616 = vst [vmem:[%s14 + $0x528] sm:$0xff] %v9174
    %9617 = vst [vmem:[%s14 + $0x530] sm:$0xff] %v9176
    %9618 = vst [vmem:[%s14 + $0x538] sm:$0xff] %v9178
    %9619 = vst [vmem:[%s14 + $0x540] sm:$0xff] %v9180
    %9620 = vst [vmem:[%s14 + $0x548] sm:$0xff] %v9182
    %9621 = vst [vmem:[%s14 + $0x550] sm:$0xff] %v9184
    %9622 = vst [vmem:[%s14 + $0x558] sm:$0xff] %v9186
    %9623 = vst [vmem:[%s14 + $0x560] sm:$0xff] %v9188
    %9624 = vst [vmem:[%s14 + $0x568] sm:$0xff] %v9190
    %9625 = vst [vmem:[%s14 + $0x570] sm:$0xff] %v9192
    %9626 = vst [vmem:[%s14 + $0x578] sm:$0xff] %v9194
    %9627 = vst [vmem:[%s14 + $0x580] sm:$0xff] %v9196
    %9628 = vst [vmem:[%s14 + $0x588] sm:$0xff] %v9198
    %9629 = vst [vmem:[%s14 + $0x590] sm:$0xff] %v9200
    %9630 = vst [vmem:[%s14 + $0x598] sm:$0xff] %v9202
    %9631 = vst [vmem:[%s14 + $0x5a0] sm:$0xff] %v9204
    %9632 = vst [vmem:[%s14 + $0x5a8] sm:$0xff] %v9206
    %9633 = vst [vmem:[%s14 + $0x5b0] sm:$0xff] %v9208
    %9634 = vst [vmem:[%s14 + $0x5b8] sm:$0xff] %v9210
    %9635 = vst [vmem:[%s14 + $0x5c0] sm:$0xff] %v9212
    %9636 = vst [vmem:[%s14 + $0x5c8] sm:$0xff] %v9214
    %9637 = vst [vmem:[%s14 + $0x5d0] sm:$0xff] %v9216
    %9638 = vst [vmem:[%s14 + $0x5d8] sm:$0xff] %v9218
    %9639 = vst [vmem:[%s14 + $0x5e0] sm:$0xff] %v9220
    %9640 = vst [vmem:[%s14 + $0x5e8] sm:$0xff] %v9222
    %9641 = vst [vmem:[%s14 + $0x5f0] sm:$0xff] %v9224
    %9642 = vst [vmem:[%s14 + $0x5f8] sm:$0xff] %v9226
    %9643 = vst [vmem:[%s14 + $0x600] sm:$0xff] %v9228
    %9644 = vst [vmem:[%s14 + $0x608] sm:$0xff] %v9230
    %9645 = vst [vmem:[%s14 + $0x610] sm:$0xff] %v9232
    %9646 = vst [vmem:[%s14 + $0x618] sm:$0xff] %v9234
    %9647 = vst [vmem:[%s14 + $0x620] sm:$0xff] %v9236
    %9648 = vst [vmem:[%s14 + $0x628] sm:$0xff] %v9238
    %9649 = vst [vmem:[%s14 + $0x630] sm:$0xff] %v9240
    %9650 = vst [vmem:[%s14 + $0x638] sm:$0xff] %v9242
    %9651 = vst [vmem:[%s14 + $0x640] sm:$0xff] %v9244
    %9652 = vst [vmem:[%s14 + $0x648] sm:$0xff] %v9246
    %9653 = vst [vmem:[%s14 + $0x650] sm:$0xff] %v9248
    %9654 = vst [vmem:[%s14 + $0x658] sm:$0xff] %v9250
    %9655 = vst [vmem:[%s14 + $0x660] sm:$0xff] %v9252
    %9656 = vst [vmem:[%s14 + $0x668] sm:$0xff] %v9254
    %9657 = vst [vmem:[%s14 + $0x670] sm:$0xff] %v9256
    %9658 = vst [vmem:[%s14 + $0x678] sm:$0xff] %v9258
    %9659 = vst [vmem:[%s14 + $0x680] sm:$0xff] %v9260
    %9660 = vst [vmem:[%s14 + $0x688] sm:$0xff] %v9262
    %9661 = vst [vmem:[%s14 + $0x690] sm:$0xff] %v9264
    %9662 = vst [vmem:[%s14 + $0x698] sm:$0xff] %v9266
    %9663 = vst [vmem:[%s14 + $0x6a0] sm:$0xff] %v9268
    %9664 = vst [vmem:[%s14 + $0x6a8] sm:$0xff] %v9270
    %9665 = vst [vmem:[%s14 + $0x6b0] sm:$0xff] %v9272
    %9666 = vst [vmem:[%s14 + $0x6b8] sm:$0xff] %v9274
    %9667 = vst [vmem:[%s14 + $0x6c0] sm:$0xff] %v9276
    %9668 = vst [vmem:[%s14 + $0x6c8] sm:$0xff] %v9278
    %9669 = vst [vmem:[%s14 + $0x6d0] sm:$0xff] %v9280
    %9670 = vst [vmem:[%s14 + $0x6d8] sm:$0xff] %v9282
    %9671 = vst [vmem:[%s14 + $0x6e0] sm:$0xff] %v9284
    %9672 = vst [vmem:[%s14 + $0x6e8] sm:$0xff] %v9286
    %9673 = vst [vmem:[%s14 + $0x6f0] sm:$0xff] %v9288
    %9674 = vst [vmem:[%s14 + $0x6f8] sm:$0xff] %v9290
    %9675 = vst [vmem:[%s14 + $0x700] sm:$0xff] %v9292
    %9676 = vst [vmem:[%s14 + $0x708] sm:$0xff] %v9294
    %9677 = vst [vmem:[%s14 + $0x710] sm:$0xff] %v9296
    %9678 = vst [vmem:[%s14 + $0x718] sm:$0xff] %v9298
    %9679 = vst [vmem:[%s14 + $0x720] sm:$0xff] %v9300
    %9680 = vst [vmem:[%s14 + $0x728] sm:$0xff] %v9302
    %9681 = vst [vmem:[%s14 + $0x730] sm:$0xff] %v9304
    %9682 = vst [vmem:[%s14 + $0x738] sm:$0xff] %v9306
    %9683 = vst [vmem:[%s14 + $0x740] sm:$0xff] %v9308
    %9684 = vst [vmem:[%s14 + $0x748] sm:$0xff] %v9310
    %9685 = vst [vmem:[%s14 + $0x750] sm:$0xff] %v9312
    %9686 = vst [vmem:[%s14 + $0x758] sm:$0xff] %v9314
    %9687 = vst [vmem:[%s14 + $0x760] sm:$0xff] %v9316
    %9688 = vst [vmem:[%s14 + $0x768] sm:$0xff] %v9318
    %9689 = vst [vmem:[%s14 + $0x770] sm:$0xff] %v9320
    %9690 = vst [vmem:[%s14 + $0x778] sm:$0xff] %v9322
    %9691 = vst [vmem:[%s14 + $0x780] sm:$0xff] %v9324
    %9692 = vst [vmem:[%s14 + $0x788] sm:$0xff] %v9326
    %9693 = vst [vmem:[%s14 + $0x790] sm:$0xff] %v9328
    %9694 = vst [vmem:[%s14 + $0x798] sm:$0xff] %v9330
    %9695 = vst [vmem:[%s14 + $0x7a0] sm:$0xff] %v9332
    %9696 = vst [vmem:[%s14 + $0x7a8] sm:$0xff] %v9334
    %9697 = vst [vmem:[%s14 + $0x7b0] sm:$0xff] %v9336
    %9698 = vst [vmem:[%s14 + $0x7b8] sm:$0xff] %v9338
    %9699 = vst [vmem:[%s14 + $0x7c0] sm:$0xff] %v9340
    %9700 = vst [vmem:[%s14 + $0x7c8] sm:$0xff] %v9342
    %9701 = vst [vmem:[%s14 + $0x7d0] sm:$0xff] %v9344
    %9702 = vst [vmem:[%s14 + $0x7d8] sm:$0xff] %v9346
    %9703 = vst [vmem:[%s14 + $0x7e0] sm:$0xff] %v9348
    %9704 = vst [vmem:[%s14 + $0x7e8] sm:$0xff] %v9350
    %9705 = vst [vmem:[%s14 + $0x7f0] sm:$0xff] %v9352
    %9706 = vst [vmem:[%s14 + $0x7f8] sm:$0xff] %v9354
    %9707 = vst [vmem:[%s14 + $0x800] sm:$0xff] %v9356
    %9708 = vst [vmem:[%s14 + $0x808] sm:$0xff] %v9358
    %9709 = vst [vmem:[%s14 + $0x810] sm:$0xff] %v9360
    %9710 = vst [vmem:[%s14 + $0x818] sm:$0xff] %v9362
    %9711 = vst [vmem:[%s14 + $0x820] sm:$0xff] %v9364
    %9712 = vst [vmem:[%s14 + $0x828] sm:$0xff] %v9366
    %9713 = vst [vmem:[%s14 + $0x830] sm:$0xff] %v9368
    %9714 = vst [vmem:[%s14 + $0x838] sm:$0xff] %v9370
    %9715 = vst [vmem:[%s14 + $0x840] sm:$0xff] %v9372
    %9716 = vst [vmem:[%s14 + $0x848] sm:$0xff] %v9374
    %9717 = vst [vmem:[%s14 + $0x850] sm:$0xff] %v9376
    %9718 = vst [vmem:[%s14 + $0x858] sm:$0xff] %v9378
    %9719 = vst [vmem:[%s14 + $0x860] sm:$0xff] %v9380
    %9720 = vst [vmem:[%s14 + $0x868] sm:$0xff] %v9382
    %9721 = vst [vmem:[%s14 + $0x870] sm:$0xff] %v9384
    %9722 = vst [vmem:[%s14 + $0x878] sm:$0xff] %v9386
    %9723 = vst [vmem:[%s14 + $0x880] sm:$0xff] %v9388
    %9724 = vst [vmem:[%s14 + $0x888] sm:$0xff] %v9390
    %9725 = vst [vmem:[%s14 + $0x890] sm:$0xff] %v9392
    %9726 = vst [vmem:[%s14 + $0x898] sm:$0xff] %v9394
    %9727 = vst [vmem:[%s14 + $0x8a0] sm:$0xff] %v9396
    %9728 = vst [vmem:[%s14 + $0x8a8] sm:$0xff] %v9398
    %9729 = vst [vmem:[%s14 + $0x8b0] sm:$0xff] %v9400
    %9730 = vst [vmem:[%s14 + $0x8b8] sm:$0xff] %v9402
    %9731 = vst [vmem:[%s14 + $0x8c0] sm:$0xff] %v9404
    %9732 = vst [vmem:[%s14 + $0x8c8] sm:$0xff] %v9406
    %9733 = vst [vmem:[%s14 + $0x8d0] sm:$0xff] %v9408
    %9734 = vst [vmem:[%s14 + $0x8d8] sm:$0xff] %v9410
    %9735 = vst [vmem:[%s14 + $0x8e0] sm:$0xff] %v9412
    %9736 = vst [vmem:[%s14 + $0x8e8] sm:$0xff] %v9414
    %9737 = vst [vmem:[%s14 + $0x8f0] sm:$0xff] %v9416
    %9738 = vst [vmem:[%s14 + $0x8f8] sm:$0xff] %v9418
    %9739 = vst [vmem:[%s14 + $0x900] sm:$0xff] %v9420
    %9740 = vst [vmem:[%s14 + $0x908] sm:$0xff] %v9422
    %9741 = vst [vmem:[%s14 + $0x910] sm:$0xff] %v9424
    %9742 = vst [vmem:[%s14 + $0x918] sm:$0xff] %v9426
    %9743 = vst [vmem:[%s14 + $0x920] sm:$0xff] %v9428
    %9744 = vst [vmem:[%s14 + $0x928] sm:$0xff] %v9430
    %9745 = vst [vmem:[%s14 + $0x930] sm:$0xff] %v9432
    %9746 = vst [vmem:[%s14 + $0x938] sm:$0xff] %v9434
    %9747 = vst [vmem:[%s14 + $0x940] sm:$0xff] %v9436
    %9748 = vst [vmem:[%s14 + $0x948] sm:$0xff] %v9438
    %9749 = vst [vmem:[%s14 + $0x950] sm:$0xff] %v9440
    %9750 = vst [vmem:[%s14 + $0x958] sm:$0xff] %v9442
    %9751 = vst [vmem:[%s14 + $0x960] sm:$0xff] %v9444
    %9752 = vst [vmem:[%s14 + $0x968] sm:$0xff] %v9446
    %9753 = vst [vmem:[%s14 + $0x970] sm:$0xff] %v9448
    %9754 = vst [vmem:[%s14 + $0x978] sm:$0xff] %v9450
    %vm9755 = vcmask 261120
    %9756 = vst.msk [vmem:[%s15] sm:$0xff] %vm9755, %v3896
    %9757 = vst.msk [vmem:[%s15 + $0x8] sm:$0xff] %vm9755, %v3899
    %9758 = vst.msk [vmem:[%s15 + $0x10] sm:$0xff] %vm9755, %v3904
    %9759 = vst.msk [vmem:[%s15 + $0x18] sm:$0xff] %vm9755, %v3907
    %9760 = vst.msk [vmem:[%s15 + $0x20] sm:$0xff] %vm9755, %v3912
    %9761 = vst.msk [vmem:[%s15 + $0x28] sm:$0xff] %vm9755, %v3915
    %9762 = vst.msk [vmem:[%s15 + $0x30] sm:$0xff] %vm9755, %v3920
    %9763 = vst.msk [vmem:[%s15 + $0x38] sm:$0xff] %vm9755, %v3923
    %9764 = vst.msk [vmem:[%s15 + $0x40] sm:$0xff] %vm9755, %v3928
    %9765 = vst.msk [vmem:[%s15 + $0x48] sm:$0xff] %vm9755, %v3931
    %9766 = vst.msk [vmem:[%s15 + $0x50] sm:$0xff] %vm9755, %v3936
    %9767 = vst.msk [vmem:[%s15 + $0x58] sm:$0xff] %vm9755, %v3939
    %9768 = vst.msk [vmem:[%s15 + $0x60] sm:$0xff] %vm9755, %v3944
    %9769 = vst.msk [vmem:[%s15 + $0x68] sm:$0xff] %vm9755, %v3947
    %9770 = vst.msk [vmem:[%s15 + $0x70] sm:$0xff] %vm9755, %v3952
    %9771 = vst.msk [vmem:[%s15 + $0x78] sm:$0xff] %vm9755, %v3955
    // Predicated region
    $region62: #{vae_forward.1} parent=1 // pred_check
      _
    $region63: #{vae_forward.1} parent=1 // pred_check_branch
      %9773 = sbr.rel (0) target = $region65
    $region64: #{vae_forward.1} parent=1 // pred_region
      _
    $region65: #{vae_forward.1} parent=1 // pred_fallthru
      _
    // Predicated region
    $region66: #{vae_forward.1} parent=1 // pred_check
      _
    $region67: #{vae_forward.1} parent=1 // pred_check_branch
      %9775 = sbr.rel (0) target = $region69
    $region68: #{vae_forward.1} parent=1 // pred_region
      _
    $region69: #{vae_forward.1} parent=1 // pred_fallthru
      _
    // Predicated region
    $region70: #{vae_forward.1} parent=1 // pred_check
      _
    $region71: #{vae_forward.1} parent=1 // pred_check_branch
      %9777 = sbr.rel (0) target = $region73
    $region72: #{vae_forward.1} parent=1 // pred_region
      _
    $region73: #{vae_forward.1} parent=1 // pred_fallthru
      _
    // Predicated region
    $region74: #{vae_forward.1} parent=1 // pred_check
      _
    $region75: #{vae_forward.1} parent=1 // pred_check_branch
      %9779 = sbr.rel (0) target = $region77
    $region76: #{vae_forward.1} parent=1 // pred_region
      _
    $region77: #{vae_forward.1} parent=1 // pred_fallthru
      _
    %9780 = vsyncpa [#allocation3], 1

</llo_original>
